<compile_context>
chip_gen: v5e
topology: v5e:2x2
jax: 0.10.0
libtpu: 0.0.40
codegen_flags: <defaults>
</compile_context>

<pallas_src>
import functools

import jax
import jax.numpy as jnp
import numpy as np
from jax.experimental import pallas as pl
from jax.experimental.pallas import tpu as pltpu

LEAKY_SLOPE = 0.01   # torch.nn.LeakyReLU default
BN_EPS = 1e-5        # torch.nn.BatchNorm2d default


# ------------------------------ fused kernel --------------------------------

def _conv5l_kernel(x_ref,
                   w1_ref, s1_ref, b1_ref,
                   w2_ref, s2_ref, b2_ref,
                   w3_ref, s3_ref, b3_ref,
                   w4_ref, s4_ref, b4_ref,
                   w5_ref, s5_ref, b5_ref,
                   o_ref,
                   x_slab, t1p, t3p):
    # x_ref : (1, H, W, Cin)   full image of this batch element (VMEM resident)
    # o_ref : (1, TH, W, Cout) one row strip of the final output
    # x_slab: (TH+4, W, Cin)   input rows of this strip + 2-row halo
    # t1p   : (TH+4, W+2, C2)  layer-1 output, zero-bordered (halo for layer 2)
    # t3p   : (TH+2, W+2, C2)  layer-3 output, zero-bordered (halo for layer 4)
    H, W, Cin = x_ref.shape[1], x_ref.shape[2], x_ref.shape[3]
    TH = o_ref.shape[1]
    Cout = o_ref.shape[3]
    C2 = t1p.shape[2]
    Wp = W + 2
    R1 = TH + 4            # rows of layer-1 output needed (2-row halo)
    R2 = TH + 2            # rows of layer-2/3 output needed (1-row halo)
    S = H // TH            # number of row strips (static)
    s = pl.program_id(1)
    row0 = s * TH          # first (global) output row of this strip

    def bn_leaky(y, scale_ref, bias_ref):
        y = y * scale_ref[...] + bias_ref[...]
        return jnp.where(y > 0, y, LEAKY_SLOPE * y)

    # ---- stage this strip's input rows (+/- 2-row halo) into VMEM scratch ----
    if S == 1:
        x_slab[2:TH + 2, :, :] = x_ref[0]
    else:
        @pl.when(s == 0)
        def _():
            x_slab[2:TH + 4, :, :] = x_ref[0, 0:TH + 2, :, :]

        @pl.when(jnp.logical_and(s > 0, s < S - 1))
        def _():
            x_slab[:, :, :] = x_ref[0, pl.ds(row0 - 2, TH + 4), :, :]

        @pl.when(s == S - 1)
        def _():
            x_slab[0:TH + 2, :, :] = x_ref[0, pl.ds(row0 - 2, TH + 2), :, :]
    # Slab rows falling outside the image keep stale data here; the matching
    # rows of t1p are explicitly zeroed below (conv zero-padding semantics).

    # ----------------- layer 1: 1x1 conv + BN + LeakyReLU -------------------
    y1 = jnp.dot(x_slab[...].reshape(R1 * W, Cin), w1_ref[...],
                 preferred_element_type=jnp.float32)
    y1 = bn_leaky(y1, s1_ref, b1_ref)                       # (R1*W, C2)
    t1p[:, 0:1, :] = jnp.zeros((R1, 1, C2), t1p.dtype)      # left  W-pad
    t1p[:, W + 1:W + 2, :] = jnp.zeros((R1, 1, C2), t1p.dtype)  # right W-pad
    t1p[:, 1:W + 1, :] = y1.reshape(R1, W, C2)

    @pl.when(s == 0)
    def _():  # global rows -2, -1 -> zero padding
        t1p[0:2, :, :] = jnp.zeros((2, Wp, C2), t1p.dtype)

    @pl.when(s == S - 1)
    def _():  # global rows H, H+1 -> zero padding
        t1p[R1 - 2:R1, :, :] = jnp.zeros((2, Wp, C2), t1p.dtype)

    # --------- layer 2: 3x3 conv as ONE matmul with K = 9*C2 ----------------
    taps = []
    for dy in range(3):
        for dx in range(3):
            taps.append(t1p[dy:dy + R2, dx:dx + W, :].reshape(R2 * W, C2))
    y2 = jnp.dot(jnp.concatenate(taps, axis=1), w2_ref[...],
                 preferred_element_type=jnp.float32)
    y2 = bn_leaky(y2, s2_ref, b2_ref)                       # (R2*W, Cout)

    # ----------------- layer 3: 1x1 conv + BN + LeakyReLU -------------------
    y3 = jnp.dot(y2, w3_ref[...], preferred_element_type=jnp.float32)
    y3 = bn_leaky(y3, s3_ref, b3_ref)                       # (R2*W, C2)
    t3p[:, 0:1, :] = jnp.zeros((R2, 1, C2), t3p.dtype)
    t3p[:, W + 1:W + 2, :] = jnp.zeros((R2, 1, C2), t3p.dtype)
    t3p[:, 1:W + 1, :] = y3.reshape(R2, W, C2)

    @pl.when(s == 0)
    def _():  # global row -1 -> zero padding
        t3p[0:1, :, :] = jnp.zeros((1, Wp, C2), t3p.dtype)

    @pl.when(s == S - 1)
    def _():  # global row H -> zero padding
        t3p[R2 - 1:R2, :, :] = jnp.zeros((1, Wp, C2), t3p.dtype)

    # --------- layer 4: 3x3 conv as ONE matmul with K = 9*C2 ----------------
    taps = []
    for dy in range(3):
        for dx in range(3):
            taps.append(t3p[dy:dy + TH, dx:dx + W, :].reshape(TH * W, C2))
    y4 = jnp.dot(jnp.concatenate(taps, axis=1), w4_ref[...],
                 preferred_element_type=jnp.float32)
    y4 = bn_leaky(y4, s4_ref, b4_ref)                       # (TH*W, Cout)

    # ----------------- layer 5: 1x1 conv + BN + LeakyReLU -------------------
    y5 = jnp.dot(y4, w5_ref[...], preferred_element_type=jnp.float32)
    y5 = bn_leaky(y5, s5_ref, b5_ref)                       # (TH*W, Cout)
    o_ref[0] = y5.reshape(TH, W, Cout).astype(o_ref.dtype)


# -------------------------------- wrapper ------------------------------------

def conv5l_pallas(x_nhwc, kparams, *, strip_rows):
    """Fused Conv5L.  x: (N,H,W,Cin) NHWC.  kparams: 15 arrays (w,scale,bias)x5."""
    N, H, W, Cin = x_nhwc.shape
    (w1, _, _, w2, _, _, w3, _, _, w4, _, _, w5, _, _) = kparams
    C2 = w1.shape[1]
    Cout = w5.shape[1]
    TH = strip_rows
    assert H % TH == 0, "strip_rows must divide H"
    S = H // TH
    assert S == 1 or (TH >= 4 and TH + 4 <= H), "strip too small for 2-row halo"

    def wmap(n, s):
        return (0, 0)

    in_specs = [pl.BlockSpec((1, H, W, Cin), lambda n, s: (n, 0, 0, 0))]
    for w in (w1, w2, w3, w4, w5):
        c = w.shape[1]
        in_specs += [pl.BlockSpec(w.shape, wmap),
                     pl.BlockSpec((1, c), wmap),
                     pl.BlockSpec((1, c), wmap)]

    return pl.pallas_call(
        _conv5l_kernel,
        out_shape=jax.ShapeDtypeStruct((N, H, W, Cout), x_nhwc.dtype),
        grid=(N, S),
        in_specs=in_specs,
        out_specs=pl.BlockSpec((1, TH, W, Cout), lambda n, s: (n, s, 0, 0)),
        scratch_shapes=[
            pltpu.VMEM((TH + 4, W, Cin), jnp.float32),
            pltpu.VMEM((TH + 4, W + 2, C2), jnp.float32),
            pltpu.VMEM((TH + 2, W + 2, C2), jnp.float32),
        ],
        compiler_params=pltpu.CompilerParams(
            dimension_semantics=("parallel", "parallel"),
            vmem_limit_bytes=32 * 1024 * 1024),
    )(x_nhwc, *kparams)


@functools.partial(jax.jit, static_argnames=("strip_rows",))
def conv5l_forward(x_nchw, kparams, strip_rows=8):
    """NCHW in / NCHW out, like the PyTorch Conv5L module."""
    x = jnp.transpose(x_nchw, (0, 2, 3, 1))          # NHWC for the TPU kernel
    y = conv5l_pallas(x, kparams, strip_rows=strip_rows)
    return jnp.transpose(y, (0, 3, 1, 2))


# -------------------------- parameter construction ---------------------------

def init_conv5l_params(key, channel_in, channel_out):
    """Synthetic params for the 5 ConvBL layers in PyTorch layouts
    (OIHW conv weight, per-channel BN gamma/beta/running_mean/running_var)."""
    c2 = channel_out * 2
    defs = [(channel_in, c2, 1),
            (c2, channel_out, 3),
            (channel_out, c2, 1),
            (c2, channel_out, 3),
            (channel_out, channel_out, 1)]
    layers = []
    for cin, cout, k in defs:
        key, kw, kg, kb, km, kv = jax.random.split(key, 6)
        w = jax.random.normal(kw, (cout, cin, k, k), jnp.float32)
        w = w / np.sqrt(cin * k * k)
        layers.append(dict(
            k=k, w=w,
            gamma=1.0 + 0.1 * jax.random.normal(kg, (cout,), jnp.float32),
            beta=0.05 * jax.random.normal(kb, (cout,), jnp.float32),
            mean=0.05 * jax.random.normal(km, (cout,), jnp.float32),
            var=jax.random.uniform(kv, (cout,), jnp.float32,
                                   minval=0.5, maxval=1.5)))
    return layers


def fold_for_kernel(layers):
    """Fold eval-mode BN into per-channel scale/bias and lay weights out for the
    fused kernel: 1x1 -> (Cin,Cout); 3x3 -> (9*Cin,Cout) with tap order (dy,dx,cin)."""
    flat = []
    for layer in layers:
        scale = layer["gamma"] / jnp.sqrt(layer["var"] + BN_EPS)
        bias = layer["beta"] - layer["mean"] * scale
        w = layer["w"]                                        # (Cout, Cin, k, k)
        if layer["k"] == 1:
            wmat = jnp.transpose(w[:, :, 0, 0], (1, 0))       # (Cin, Cout)
        else:
            wmat = jnp.transpose(w, (2, 3, 1, 0)).reshape(-1, w.shape[0])
        flat += [wmat, scale.reshape(1, -1), bias.reshape(1, -1)]
    return tuple(flat)


# ---------------------------- pure-JAX reference -----------------------------

def conv5l_reference(x_nchw, layers):
    y = x_nchw
    for layer in layers:
        k = layer["k"]
        p = (k - 1) // 2
        y = jax.lax.conv_general_dilated(
            y, layer["w"], window_strides=(1, 1),
            padding=[(p, p), (p, p)],
            dimension_numbers=("NCHW", "OIHW", "NCHW"),
            precision=jax.lax.Precision.HIGHEST)
        scale = layer["gamma"] / jnp.sqrt(layer["var"] + BN_EPS)
        bias = layer["beta"] - layer["mean"] * scale
        y = y * scale.reshape(1, -1, 1, 1) + bias.reshape(1, -1, 1, 1)
        y = jnp.where(y > 0, y, LEAKY_SLOPE * y)
    return y


if __name__ == "__main__":
    key = jax.random.PRNGKey(0)
    kx, kp = jax.random.split(key)

    # Conv5L(384, 128) -- the `conv5l52` instance of the Darknet53 head -- at a
    # reduced spatial size (16x16 instead of 52x52) to keep the demo small.
    N, C_IN, C_OUT, H, W = 2, 384, 128, 16, 16
    x = jax.random.normal(kx, (N, C_IN, H, W), jnp.float32)   # NCHW like torch

    layers = init_conv5l_params(kp, C_IN, C_OUT)
    kparams = fold_for_kernel(layers)

    out = conv5l_forward(x, kparams, strip_rows=8)
    out = jax.block_until_ready(out)

    ref = conv5l_reference(x, layers)
    np.testing.assert_allclose(np.asarray(out), np.asarray(ref),
                               rtol=2e-3, atol=2e-3)
    assert out.shape == (N, C_OUT, H, W)
    print("KERNEL_OK")
</pallas_src>

<mosaic_0001>
module attributes {stable_mosaic.version = 11 : i64} {
  func.func @_conv5l_kernel(%arg0: i32, %arg1: i32, %arg2: memref<1x16x16x384xf32, #tpu.memory_space<vmem>>, %arg3: memref<384x256xf32, #tpu.memory_space<vmem>>, %arg4: memref<1x256xf32, #tpu.memory_space<vmem>>, %arg5: memref<1x256xf32, #tpu.memory_space<vmem>>, %arg6: memref<2304x128xf32, #tpu.memory_space<vmem>>, %arg7: memref<1x128xf32, #tpu.memory_space<vmem>>, %arg8: memref<1x128xf32, #tpu.memory_space<vmem>>, %arg9: memref<128x256xf32, #tpu.memory_space<vmem>>, %arg10: memref<1x256xf32, #tpu.memory_space<vmem>>, %arg11: memref<1x256xf32, #tpu.memory_space<vmem>>, %arg12: memref<2304x128xf32, #tpu.memory_space<vmem>>, %arg13: memref<1x128xf32, #tpu.memory_space<vmem>>, %arg14: memref<1x128xf32, #tpu.memory_space<vmem>>, %arg15: memref<128x128xf32, #tpu.memory_space<vmem>>, %arg16: memref<1x128xf32, #tpu.memory_space<vmem>>, %arg17: memref<1x128xf32, #tpu.memory_space<vmem>>, %arg18: memref<1x8x16x128xf32, #tpu.memory_space<vmem>>, %arg19: memref<12x16x384xf32, #tpu.memory_space<vmem>>, %arg20: memref<12x18x256xf32, #tpu.memory_space<vmem>>, %arg21: memref<10x18x256xf32, #tpu.memory_space<vmem>>) attributes {dimension_semantics = [#tpu.dimension_semantics<parallel>, #tpu.dimension_semantics<parallel>], iteration_bounds = array<i64: 2, 2>, scalar_prefetch = 0 : i64, scratch_operands = 3 : i64, tpu.core_type = #tpu.core_type<tc>, window_params = [{transform_indices = @transform_0, window_bounds = array<i64: 1, 16, 16, 384>}, {pipeline_mode = #tpu.pipeline_mode<synchronous>, transform_indices = @transform_1, window_bounds = array<i64: 384, 256>}, {pipeline_mode = #tpu.pipeline_mode<synchronous>, transform_indices = @transform_2, window_bounds = array<i64: 1, 256>}, {pipeline_mode = #tpu.pipeline_mode<synchronous>, transform_indices = @transform_3, window_bounds = array<i64: 1, 256>}, {pipeline_mode = #tpu.pipeline_mode<synchronous>, transform_indices = @transform_4, window_bounds = array<i64: 2304, 128>}, {pipeline_mode = #tpu.pipeline_mode<synchronous>, transform_indices = @transform_5, window_bounds = array<i64: 1, 128>}, {pipeline_mode = #tpu.pipeline_mode<synchronous>, transform_indices = @transform_6, window_bounds = array<i64: 1, 128>}, {pipeline_mode = #tpu.pipeline_mode<synchronous>, transform_indices = @transform_7, window_bounds = array<i64: 128, 256>}, {pipeline_mode = #tpu.pipeline_mode<synchronous>, transform_indices = @transform_8, window_bounds = array<i64: 1, 256>}, {pipeline_mode = #tpu.pipeline_mode<synchronous>, transform_indices = @transform_9, window_bounds = array<i64: 1, 256>}, {pipeline_mode = #tpu.pipeline_mode<synchronous>, transform_indices = @transform_10, window_bounds = array<i64: 2304, 128>}, {pipeline_mode = #tpu.pipeline_mode<synchronous>, transform_indices = @transform_11, window_bounds = array<i64: 1, 128>}, {pipeline_mode = #tpu.pipeline_mode<synchronous>, transform_indices = @transform_12, window_bounds = array<i64: 1, 128>}, {pipeline_mode = #tpu.pipeline_mode<synchronous>, transform_indices = @transform_13, window_bounds = array<i64: 128, 128>}, {pipeline_mode = #tpu.pipeline_mode<synchronous>, transform_indices = @transform_14, window_bounds = array<i64: 1, 128>}, {pipeline_mode = #tpu.pipeline_mode<synchronous>, transform_indices = @transform_15, window_bounds = array<i64: 1, 128>}, {transform_indices = @transform_16, window_bounds = array<i64: 1, 8, 16, 128>}]} {
    %c8_i32 = arith.constant 8 : i32
    %0 = arith.muli %arg1, %c8_i32 : i32
    %c0_i32 = arith.constant 0 : i32
    %1 = arith.cmpi eq, %arg1, %c0_i32 : i32
    %2 = arith.extui %1 : i1 to i32
    %c0_i32_0 = arith.constant 0 : i32
    %3 = arith.cmpi ne, %2, %c0_i32_0 : i32
    scf.if %3 {
      %c0_136 = arith.constant 0 : index
      %c0_137 = arith.constant 0 : index
      %c0_138 = arith.constant 0 : index
      %c0_139 = arith.constant 0 : index
      %145 = vector.load %arg2[%c0_136, %c0_137, %c0_138, %c0_139] : memref<1x16x16x384xf32, #tpu.memory_space<vmem>>, vector<1x10x16x384xf32>
      %146 = vector.shape_cast %145 : vector<1x10x16x384xf32> to vector<10x16x384xf32>
      %c2_140 = arith.constant 2 : index
      %c0_141 = arith.constant 0 : index
      %c0_142 = arith.constant 0 : index
      %147 = vector.load %arg19[%c2_140, %c0_141, %c0_142] : memref<12x16x384xf32, #tpu.memory_space<vmem>>, vector<10x16x384xf32>
      tpu.vector_store %arg19[%c2_140, %c0_141, %c0_142], %146 {strides = array<i32>} : memref<12x16x384xf32, #tpu.memory_space<vmem>>, vector<10x16x384xf32>,
    } else {
    }
    %c0_i32_1 = arith.constant 0 : i32
    %4 = arith.cmpi sgt, %arg1, %c0_i32_1 : i32
    %c1_i32 = arith.constant 1 : i32
    %5 = arith.cmpi slt, %arg1, %c1_i32 : i32
    %6 = arith.andi %4, %5 : i1
    %7 = arith.extui %6 : i1 to i32
    %c0_i32_2 = arith.constant 0 : i32
    %8 = arith.cmpi ne, %7, %c0_i32_2 : i32
    scf.if %8 {
      %c2_i32 = arith.constant 2 : i32
      %145 = arith.subi %0, %c2_i32 : i32
      %c0_136 = arith.constant 0 : index
      %146 = arith.index_cast %145 : i32 to index
      %c0_137 = arith.constant 0 : index
      %c0_138 = arith.constant 0 : index
      %147 = vector.load %arg2[%c0_136, %146, %c0_137, %c0_138] : memref<1x16x16x384xf32, #tpu.memory_space<vmem>>, vector<1x12x16x384xf32>
      %148 = vector.shape_cast %147 : vector<1x12x16x384xf32> to vector<12x16x384xf32>
      %c0_139 = arith.constant 0 : index
      %c0_140 = arith.constant 0 : index
      %c0_141 = arith.constant 0 : index
      %149 = vector.load %arg19[%c0_139, %c0_140, %c0_141] : memref<12x16x384xf32, #tpu.memory_space<vmem>>, vector<12x16x384xf32>
      tpu.vector_store %arg19[%c0_139, %c0_140, %c0_141], %148 {strides = array<i32>} : memref<12x16x384xf32, #tpu.memory_space<vmem>>, vector<12x16x384xf32>,
    } else {
    }
    %c1_i32_3 = arith.constant 1 : i32
    %9 = arith.cmpi eq, %arg1, %c1_i32_3 : i32
    %10 = arith.extui %9 : i1 to i32
    %c0_i32_4 = arith.constant 0 : i32
    %11 = arith.cmpi ne, %10, %c0_i32_4 : i32
    scf.if %11 {
      %c2_i32 = arith.constant 2 : i32
      %145 = arith.subi %0, %c2_i32 : i32
      %c0_136 = arith.constant 0 : index
      %146 = arith.index_cast %145 : i32 to index
      %c0_137 = arith.constant 0 : index
      %c0_138 = arith.constant 0 : index
      %147 = vector.load %arg2[%c0_136, %146, %c0_137, %c0_138] : memref<1x16x16x384xf32, #tpu.memory_space<vmem>>, vector<1x10x16x384xf32>
      %148 = vector.shape_cast %147 : vector<1x10x16x384xf32> to vector<10x16x384xf32>
      %c0_139 = arith.constant 0 : index
      %c0_140 = arith.constant 0 : index
      %c0_141 = arith.constant 0 : index
      %149 = vector.load %arg19[%c0_139, %c0_140, %c0_141] : memref<12x16x384xf32, #tpu.memory_space<vmem>>, vector<10x16x384xf32>
      tpu.vector_store %arg19[%c0_139, %c0_140, %c0_141], %148 {strides = array<i32>} : memref<12x16x384xf32, #tpu.memory_space<vmem>>, vector<10x16x384xf32>,
    } else {
    }
    %c0 = arith.constant 0 : index
    %c0_5 = arith.constant 0 : index
    %c0_6 = arith.constant 0 : index
    %12 = vector.load %arg19[%c0, %c0_5, %c0_6] : memref<12x16x384xf32, #tpu.memory_space<vmem>>, vector<12x16x384xf32>
    %13 = vector.shape_cast %12 : vector<12x16x384xf32> to vector<192x384xf32>
    %c0_7 = arith.constant 0 : index
    %c0_8 = arith.constant 0 : index
    %14 = vector.load %arg3[%c0_7, %c0_8] : memref<384x256xf32, #tpu.memory_space<vmem>>, vector<384x256xf32>
    %cst = arith.constant dense<0.000000e+00> : vector<192x256xf32>
    %15 = tpu.matmul %13, %14, %cst {dimension_numbers = #tpu.dot_dimension_numbers<[1], [0], [0], [1], [0, 0, 1, 1], [], []>} : vector<192x384xf32>, vector<384x256xf32>, vector<192x256xf32> -> vector<192x256xf32>
    %c0_9 = arith.constant 0 : index
    %c0_10 = arith.constant 0 : index
    %16 = vector.load %arg4[%c0_9, %c0_10] : memref<1x256xf32, #tpu.memory_space<vmem>>, vector<1x256xf32>
    %17 = vector.broadcast %16 : vector<1x256xf32> to vector<192x256xf32>
    %18 = arith.mulf %15, %17 : vector<192x256xf32>
    %c0_11 = arith.constant 0 : index
    %c0_12 = arith.constant 0 : index
    %19 = vector.load %arg5[%c0_11, %c0_12] : memref<1x256xf32, #tpu.memory_space<vmem>>, vector<1x256xf32>
    %20 = vector.broadcast %19 : vector<1x256xf32> to vector<192x256xf32>
    %21 = arith.addf %18, %20 : vector<192x256xf32>
    %cst_13 = arith.constant 0.000000e+00 : f32
    %22 = vector.broadcast %cst_13 : f32 to vector<192x256xf32>
    %23 = arith.cmpf ogt, %21, %22 : vector<192x256xf32>
    %cst_14 = arith.constant 0.00999999977 : f32
    %24 = vector.broadcast %cst_14 : f32 to vector<192x256xf32>
    %25 = arith.mulf %24, %21 : vector<192x256xf32>
    %26 = arith.select %23, %21, %25 : vector<192x256xi1>, vector<192x256xf32>
    %cst_15 = arith.constant 0.000000e+00 : f32
    %27 = vector.broadcast %cst_15 : f32 to vector<12x1x256xf32>
    %c0_16 = arith.constant 0 : index
    %c0_17 = arith.constant 0 : index
    %c0_18 = arith.constant 0 : index
    %28 = vector.load %arg20[%c0_16, %c0_17, %c0_18] : memref<12x18x256xf32, #tpu.memory_space<vmem>>, vector<12x1x256xf32>
    tpu.vector_store %arg20[%c0_16, %c0_17, %c0_18], %27 {strides = array<i32>} : memref<12x18x256xf32, #tpu.memory_space<vmem>>, vector<12x1x256xf32>,
    %cst_19 = arith.constant 0.000000e+00 : f32
    %29 = vector.broadcast %cst_19 : f32 to vector<12x1x256xf32>
    %c0_20 = arith.constant 0 : index
    %c17 = arith.constant 17 : index
    %c0_21 = arith.constant 0 : index
    %30 = vector.load %arg20[%c0_20, %c17, %c0_21] : memref<12x18x256xf32, #tpu.memory_space<vmem>>, vector<12x1x256xf32>
    tpu.vector_store %arg20[%c0_20, %c17, %c0_21], %29 {strides = array<i32>} : memref<12x18x256xf32, #tpu.memory_space<vmem>>, vector<12x1x256xf32>,
    %31 = vector.shape_cast %26 : vector<192x256xf32> to vector<12x16x256xf32>
    %c0_22 = arith.constant 0 : index
    %c1 = arith.constant 1 : index
    %c0_23 = arith.constant 0 : index
    %32 = vector.load %arg20[%c0_22, %c1, %c0_23] : memref<12x18x256xf32, #tpu.memory_space<vmem>>, vector<12x16x256xf32>
    tpu.vector_store %arg20[%c0_22, %c1, %c0_23], %31 {strides = array<i32>} : memref<12x18x256xf32, #tpu.memory_space<vmem>>, vector<12x16x256xf32>,
    %c0_i32_24 = arith.constant 0 : i32
    %33 = arith.cmpi eq, %arg1, %c0_i32_24 : i32
    %34 = arith.extui %33 : i1 to i32
    %c0_i32_25 = arith.constant 0 : i32
    %35 = arith.cmpi ne, %34, %c0_i32_25 : i32
    scf.if %35 {
      %cst_136 = arith.constant 0.000000e+00 : f32
      %145 = vector.broadcast %cst_136 : f32 to vector<2x18x256xf32>
      %c0_137 = arith.constant 0 : index
      %c0_138 = arith.constant 0 : index
      %c0_139 = arith.constant 0 : index
      %146 = vector.load %arg20[%c0_137, %c0_138, %c0_139] : memref<12x18x256xf32, #tpu.memory_space<vmem>>, vector<2x18x256xf32>
      tpu.vector_store %arg20[%c0_137, %c0_138, %c0_139], %145 {strides = array<i32>} : memref<12x18x256xf32, #tpu.memory_space<vmem>>, vector<2x18x256xf32>,
    } else {
    }
    %c1_i32_26 = arith.constant 1 : i32
    %36 = arith.cmpi eq, %arg1, %c1_i32_26 : i32
    %37 = arith.extui %36 : i1 to i32
    %c0_i32_27 = arith.constant 0 : i32
    %38 = arith.cmpi ne, %37, %c0_i32_27 : i32
    scf.if %38 {
      %cst_136 = arith.constant 0.000000e+00 : f32
      %145 = vector.broadcast %cst_136 : f32 to vector<2x18x256xf32>
      %c10 = arith.constant 10 : index
      %c0_137 = arith.constant 0 : index
      %c0_138 = arith.constant 0 : index
      %146 = vector.load %arg20[%c10, %c0_137, %c0_138] : memref<12x18x256xf32, #tpu.memory_space<vmem>>, vector<2x18x256xf32>
      tpu.vector_store %arg20[%c10, %c0_137, %c0_138], %145 {strides = array<i32>} : memref<12x18x256xf32, #tpu.memory_space<vmem>>, vector<2x18x256xf32>,
    } else {
    }
    %c0_28 = arith.constant 0 : index
    %c0_29 = arith.constant 0 : index
    %c0_30 = arith.constant 0 : index
    %39 = vector.load %arg20[%c0_28, %c0_29, %c0_30] : memref<12x18x256xf32, #tpu.memory_space<vmem>>, vector<10x16x256xf32>
    %40 = vector.shape_cast %39 : vector<10x16x256xf32> to vector<160x256xf32>
    %c0_31 = arith.constant 0 : index
    %c1_32 = arith.constant 1 : index
    %c0_33 = arith.constant 0 : index
    %41 = vector.load %arg20[%c0_31, %c1_32, %c0_33] : memref<12x18x256xf32, #tpu.memory_space<vmem>>, vector<10x16x256xf32>
    %42 = vector.shape_cast %41 : vector<10x16x256xf32> to vector<160x256xf32>
    %c0_34 = arith.constant 0 : index
    %c2 = arith.constant 2 : index
    %c0_35 = arith.constant 0 : index
    %43 = vector.load %arg20[%c0_34, %c2, %c0_35] : memref<12x18x256xf32, #tpu.memory_space<vmem>>, vector<10x16x256xf32>
    %44 = vector.shape_cast %43 : vector<10x16x256xf32> to vector<160x256xf32>
    %c1_36 = arith.constant 1 : index
    %c0_37 = arith.constant 0 : index
    %c0_38 = arith.constant 0 : index
    %45 = vector.load %arg20[%c1_36, %c0_37, %c0_38] : memref<12x18x256xf32, #tpu.memory_space<vmem>>, vector<10x16x256xf32>
    %46 = vector.shape_cast %45 : vector<10x16x256xf32> to vector<160x256xf32>
    %c1_39 = arith.constant 1 : index
    %c1_40 = arith.constant 1 : index
    %c0_41 = arith.constant 0 : index
    %47 = vector.load %arg20[%c1_39, %c1_40, %c0_41] : memref<12x18x256xf32, #tpu.memory_space<vmem>>, vector<10x16x256xf32>
    %48 = vector.shape_cast %47 : vector<10x16x256xf32> to vector<160x256xf32>
    %c1_42 = arith.constant 1 : index
    %c2_43 = arith.constant 2 : index
    %c0_44 = arith.constant 0 : index
    %49 = vector.load %arg20[%c1_42, %c2_43, %c0_44] : memref<12x18x256xf32, #tpu.memory_space<vmem>>, vector<10x16x256xf32>
    %50 = vector.shape_cast %49 : vector<10x16x256xf32> to vector<160x256xf32>
    %c2_45 = arith.constant 2 : index
    %c0_46 = arith.constant 0 : index
    %c0_47 = arith.constant 0 : index
    %51 = vector.load %arg20[%c2_45, %c0_46, %c0_47] : memref<12x18x256xf32, #tpu.memory_space<vmem>>, vector<10x16x256xf32>
    %52 = vector.shape_cast %51 : vector<10x16x256xf32> to vector<160x256xf32>
    %c2_48 = arith.constant 2 : index
    %c1_49 = arith.constant 1 : index
    %c0_50 = arith.constant 0 : index
    %53 = vector.load %arg20[%c2_48, %c1_49, %c0_50] : memref<12x18x256xf32, #tpu.memory_space<vmem>>, vector<10x16x256xf32>
    %54 = vector.shape_cast %53 : vector<10x16x256xf32> to vector<160x256xf32>
    %c2_51 = arith.constant 2 : index
    %c2_52 = arith.constant 2 : index
    %c0_53 = arith.constant 0 : index
    %55 = vector.load %arg20[%c2_51, %c2_52, %c0_53] : memref<12x18x256xf32, #tpu.memory_space<vmem>>, vector<10x16x256xf32>
    %56 = vector.shape_cast %55 : vector<10x16x256xf32> to vector<160x256xf32>
    %57 = tpu.concatenate %40, %42, %44, %46, %48, %50, %52, %54, %56 in 1 : vector<160x256xf32>, vector<160x256xf32>, vector<160x256xf32>, vector<160x256xf32>, vector<160x256xf32>, vector<160x256xf32>, vector<160x256xf32>, vector<160x256xf32>, vector<160x256xf32> -> vector<160x2304xf32>
    %c0_54 = arith.constant 0 : index
    %c0_55 = arith.constant 0 : index
    %58 = vector.load %arg6[%c0_54, %c0_55] : memref<2304x128xf32, #tpu.memory_space<vmem>>, vector<2304x128xf32>
    %cst_56 = arith.constant dense<0.000000e+00> : vector<160x128xf32>
    %59 = tpu.matmul %57, %58, %cst_56 {dimension_numbers = #tpu.dot_dimension_numbers<[1], [0], [0], [1], [0, 0, 1, 1], [], []>} : vector<160x2304xf32>, vector<2304x128xf32>, vector<160x128xf32> -> vector<160x128xf32>
    %c0_57 = arith.constant 0 : index
    %c0_58 = arith.constant 0 : index
    %60 = vector.load %arg7[%c0_57, %c0_58] : memref<1x128xf32, #tpu.memory_space<vmem>>, vector<1x128xf32>
    %61 = vector.broadcast %60 : vector<1x128xf32> to vector<160x128xf32>
    %62 = arith.mulf %59, %61 : vector<160x128xf32>
    %c0_59 = arith.constant 0 : index
    %c0_60 = arith.constant 0 : index
    %63 = vector.load %arg8[%c0_59, %c0_60] : memref<1x128xf32, #tpu.memory_space<vmem>>, vector<1x128xf32>
    %64 = vector.broadcast %63 : vector<1x128xf32> to vector<160x128xf32>
    %65 = arith.addf %62, %64 : vector<160x128xf32>
    %cst_61 = arith.constant 0.000000e+00 : f32
    %66 = vector.broadcast %cst_61 : f32 to vector<160x128xf32>
    %67 = arith.cmpf ogt, %65, %66 : vector<160x128xf32>
    %cst_62 = arith.constant 0.00999999977 : f32
    %68 = vector.broadcast %cst_62 : f32 to vector<160x128xf32>
    %69 = arith.mulf %68, %65 : vector<160x128xf32>
    %70 = arith.select %67, %65, %69 : vector<160x128xi1>, vector<160x128xf32>
    %c0_63 = arith.constant 0 : index
    %c0_64 = arith.constant 0 : index
    %71 = vector.load %arg9[%c0_63, %c0_64] : memref<128x256xf32, #tpu.memory_space<vmem>>, vector<128x256xf32>
    %cst_65 = arith.constant dense<0.000000e+00> : vector<160x256xf32>
    %72 = tpu.matmul %70, %71, %cst_65 {dimension_numbers = #tpu.dot_dimension_numbers<[1], [0], [0], [1], [0, 0, 1, 1], [], []>} : vector<160x128xf32>, vector<128x256xf32>, vector<160x256xf32> -> vector<160x256xf32>
    %c0_66 = arith.constant 0 : index
    %c0_67 = arith.constant 0 : index
    %73 = vector.load %arg10[%c0_66, %c0_67] : memref<1x256xf32, #tpu.memory_space<vmem>>, vector<1x256xf32>
    %74 = vector.broadcast %73 : vector<1x256xf32> to vector<160x256xf32>
    %75 = arith.mulf %72, %74 : vector<160x256xf32>
    %c0_68 = arith.constant 0 : index
    %c0_69 = arith.constant 0 : index
    %76 = vector.load %arg11[%c0_68, %c0_69] : memref<1x256xf32, #tpu.memory_space<vmem>>, vector<1x256xf32>
    %77 = vector.broadcast %76 : vector<1x256xf32> to vector<160x256xf32>
    %78 = arith.addf %75, %77 : vector<160x256xf32>
    %cst_70 = arith.constant 0.000000e+00 : f32
    %79 = vector.broadcast %cst_70 : f32 to vector<160x256xf32>
    %80 = arith.cmpf ogt, %78, %79 : vector<160x256xf32>
    %cst_71 = arith.constant 0.00999999977 : f32
    %81 = vector.broadcast %cst_71 : f32 to vector<160x256xf32>
    %82 = arith.mulf %81, %78 : vector<160x256xf32>
    %83 = arith.select %80, %78, %82 : vector<160x256xi1>, vector<160x256xf32>
    %cst_72 = arith.constant 0.000000e+00 : f32
    %84 = vector.broadcast %cst_72 : f32 to vector<10x1x256xf32>
    %c0_73 = arith.constant 0 : index
    %c0_74 = arith.constant 0 : index
    %c0_75 = arith.constant 0 : index
    %85 = vector.load %arg21[%c0_73, %c0_74, %c0_75] : memref<10x18x256xf32, #tpu.memory_space<vmem>>, vector<10x1x256xf32>
    tpu.vector_store %arg21[%c0_73, %c0_74, %c0_75], %84 {strides = array<i32>} : memref<10x18x256xf32, #tpu.memory_space<vmem>>, vector<10x1x256xf32>,
    %cst_76 = arith.constant 0.000000e+00 : f32
    %86 = vector.broadcast %cst_76 : f32 to vector<10x1x256xf32>
    %c0_77 = arith.constant 0 : index
    %c17_78 = arith.constant 17 : index
    %c0_79 = arith.constant 0 : index
    %87 = vector.load %arg21[%c0_77, %c17_78, %c0_79] : memref<10x18x256xf32, #tpu.memory_space<vmem>>, vector<10x1x256xf32>
    tpu.vector_store %arg21[%c0_77, %c17_78, %c0_79], %86 {strides = array<i32>} : memref<10x18x256xf32, #tpu.memory_space<vmem>>, vector<10x1x256xf32>,
    %88 = vector.shape_cast %83 : vector<160x256xf32> to vector<10x16x256xf32>
    %c0_80 = arith.constant 0 : index
    %c1_81 = arith.constant 1 : index
    %c0_82 = arith.constant 0 : index
    %89 = vector.load %arg21[%c0_80, %c1_81, %c0_82] : memref<10x18x256xf32, #tpu.memory_space<vmem>>, vector<10x16x256xf32>
    tpu.vector_store %arg21[%c0_80, %c1_81, %c0_82], %88 {strides = array<i32>} : memref<10x18x256xf32, #tpu.memory_space<vmem>>, vector<10x16x256xf32>,
    %c0_i32_83 = arith.constant 0 : i32
    %90 = arith.cmpi eq, %arg1, %c0_i32_83 : i32
    %91 = arith.extui %90 : i1 to i32
    %c0_i32_84 = arith.constant 0 : i32
    %92 = arith.cmpi ne, %91, %c0_i32_84 : i32
    scf.if %92 {
      %cst_136 = arith.constant 0.000000e+00 : f32
      %145 = vector.broadcast %cst_136 : f32 to vector<1x18x256xf32>
      %c0_137 = arith.constant 0 : index
      %c0_138 = arith.constant 0 : index
      %c0_139 = arith.constant 0 : index
      %146 = vector.load %arg21[%c0_137, %c0_138, %c0_139] : memref<10x18x256xf32, #tpu.memory_space<vmem>>, vector<1x18x256xf32>
      tpu.vector_store %arg21[%c0_137, %c0_138, %c0_139], %145 {strides = array<i32>} : memref<10x18x256xf32, #tpu.memory_space<vmem>>, vector<1x18x256xf32>,
    } else {
    }
    %c1_i32_85 = arith.constant 1 : i32
    %93 = arith.cmpi eq, %arg1, %c1_i32_85 : i32
    %94 = arith.extui %93 : i1 to i32
    %c0_i32_86 = arith.constant 0 : i32
    %95 = arith.cmpi ne, %94, %c0_i32_86 : i32
    scf.if %95 {
      %cst_136 = arith.constant 0.000000e+00 : f32
      %145 = vector.broadcast %cst_136 : f32 to vector<1x18x256xf32>
      %c9 = arith.constant 9 : index
      %c0_137 = arith.constant 0 : index
      %c0_138 = arith.constant 0 : index
      %146 = vector.load %arg21[%c9, %c0_137, %c0_138] : memref<10x18x256xf32, #tpu.memory_space<vmem>>, vector<1x18x256xf32>
      tpu.vector_store %arg21[%c9, %c0_137, %c0_138], %145 {strides = array<i32>} : memref<10x18x256xf32, #tpu.memory_space<vmem>>, vector<1x18x256xf32>,
    } else {
    }
    %c0_87 = arith.constant 0 : index
    %c0_88 = arith.constant 0 : index
    %c0_89 = arith.constant 0 : index
    %96 = vector.load %arg21[%c0_87, %c0_88, %c0_89] : memref<10x18x256xf32, #tpu.memory_space<vmem>>, vector<8x16x256xf32>
    %97 = vector.shape_cast %96 : vector<8x16x256xf32> to vector<128x256xf32>
    %c0_90 = arith.constant 0 : index
    %c1_91 = arith.constant 1 : index
    %c0_92 = arith.constant 0 : index
    %98 = vector.load %arg21[%c0_90, %c1_91, %c0_92] : memref<10x18x256xf32, #tpu.memory_space<vmem>>, vector<8x16x256xf32>
    %99 = vector.shape_cast %98 : vector<8x16x256xf32> to vector<128x256xf32>
    %c0_93 = arith.constant 0 : index
    %c2_94 = arith.constant 2 : index
    %c0_95 = arith.constant 0 : index
    %100 = vector.load %arg21[%c0_93, %c2_94, %c0_95] : memref<10x18x256xf32, #tpu.memory_space<vmem>>, vector<8x16x256xf32>
    %101 = vector.shape_cast %100 : vector<8x16x256xf32> to vector<128x256xf32>
    %c1_96 = arith.constant 1 : index
    %c0_97 = arith.constant 0 : index
    %c0_98 = arith.constant 0 : index
    %102 = vector.load %arg21[%c1_96, %c0_97, %c0_98] : memref<10x18x256xf32, #tpu.memory_space<vmem>>, vector<8x16x256xf32>
    %103 = vector.shape_cast %102 : vector<8x16x256xf32> to vector<128x256xf32>
    %c1_99 = arith.constant 1 : index
    %c1_100 = arith.constant 1 : index
    %c0_101 = arith.constant 0 : index
    %104 = vector.load %arg21[%c1_99, %c1_100, %c0_101] : memref<10x18x256xf32, #tpu.memory_space<vmem>>, vector<8x16x256xf32>
    %105 = vector.shape_cast %104 : vector<8x16x256xf32> to vector<128x256xf32>
    %c1_102 = arith.constant 1 : index
    %c2_103 = arith.constant 2 : index
    %c0_104 = arith.constant 0 : index
    %106 = vector.load %arg21[%c1_102, %c2_103, %c0_104] : memref<10x18x256xf32, #tpu.memory_space<vmem>>, vector<8x16x256xf32>
    %107 = vector.shape_cast %106 : vector<8x16x256xf32> to vector<128x256xf32>
    %c2_105 = arith.constant 2 : index
    %c0_106 = arith.constant 0 : index
    %c0_107 = arith.constant 0 : index
    %108 = vector.load %arg21[%c2_105, %c0_106, %c0_107] : memref<10x18x256xf32, #tpu.memory_space<vmem>>, vector<8x16x256xf32>
    %109 = vector.shape_cast %108 : vector<8x16x256xf32> to vector<128x256xf32>
    %c2_108 = arith.constant 2 : index
    %c1_109 = arith.constant 1 : index
    %c0_110 = arith.constant 0 : index
    %110 = vector.load %arg21[%c2_108, %c1_109, %c0_110] : memref<10x18x256xf32, #tpu.memory_space<vmem>>, vector<8x16x256xf32>
    %111 = vector.shape_cast %110 : vector<8x16x256xf32> to vector<128x256xf32>
    %c2_111 = arith.constant 2 : index
    %c2_112 = arith.constant 2 : index
    %c0_113 = arith.constant 0 : index
    %112 = vector.load %arg21[%c2_111, %c2_112, %c0_113] : memref<10x18x256xf32, #tpu.memory_space<vmem>>, vector<8x16x256xf32>
    %113 = vector.shape_cast %112 : vector<8x16x256xf32> to vector<128x256xf32>
    %114 = tpu.concatenate %97, %99, %101, %103, %105, %107, %109, %111, %113 in 1 : vector<128x256xf32>, vector<128x256xf32>, vector<128x256xf32>, vector<128x256xf32>, vector<128x256xf32>, vector<128x256xf32>, vector<128x256xf32>, vector<128x256xf32>, vector<128x256xf32> -> vector<128x2304xf32>
    %c0_114 = arith.constant 0 : index
    %c0_115 = arith.constant 0 : index
    %115 = vector.load %arg12[%c0_114, %c0_115] : memref<2304x128xf32, #tpu.memory_space<vmem>>, vector<2304x128xf32>
    %cst_116 = arith.constant dense<0.000000e+00> : vector<128x128xf32>
    %116 = tpu.matmul %114, %115, %cst_116 {dimension_numbers = #tpu.dot_dimension_numbers<[1], [0], [0], [1], [0, 0, 1, 1], [], []>} : vector<128x2304xf32>, vector<2304x128xf32>, vector<128x128xf32> -> vector<128x128xf32>
    %c0_117 = arith.constant 0 : index
    %c0_118 = arith.constant 0 : index
    %117 = vector.load %arg13[%c0_117, %c0_118] : memref<1x128xf32, #tpu.memory_space<vmem>>, vector<1x128xf32>
    %118 = vector.broadcast %117 : vector<1x128xf32> to vector<128x128xf32>
    %119 = arith.mulf %116, %118 : vector<128x128xf32>
    %c0_119 = arith.constant 0 : index
    %c0_120 = arith.constant 0 : index
    %120 = vector.load %arg14[%c0_119, %c0_120] : memref<1x128xf32, #tpu.memory_space<vmem>>, vector<1x128xf32>
    %121 = vector.broadcast %120 : vector<1x128xf32> to vector<128x128xf32>
    %122 = arith.addf %119, %121 : vector<128x128xf32>
    %cst_121 = arith.constant 0.000000e+00 : f32
    %123 = vector.broadcast %cst_121 : f32 to vector<128x128xf32>
    %124 = arith.cmpf ogt, %122, %123 : vector<128x128xf32>
    %cst_122 = arith.constant 0.00999999977 : f32
    %125 = vector.broadcast %cst_122 : f32 to vector<128x128xf32>
    %126 = arith.mulf %125, %122 : vector<128x128xf32>
    %127 = arith.select %124, %122, %126 : vector<128x128xi1>, vector<128x128xf32>
    %c0_123 = arith.constant 0 : index
    %c0_124 = arith.constant 0 : index
    %128 = vector.load %arg15[%c0_123, %c0_124] : memref<128x128xf32, #tpu.memory_space<vmem>>, vector<128x128xf32>
    %cst_125 = arith.constant dense<0.000000e+00> : vector<128x128xf32>
    %129 = tpu.matmul %127, %128, %cst_125 {dimension_numbers = #tpu.dot_dimension_numbers<[1], [0], [0], [1], [0, 0, 1, 1], [], []>} : vector<128x128xf32>, vector<128x128xf32>, vector<128x128xf32> -> vector<128x128xf32>
    %c0_126 = arith.constant 0 : index
    %c0_127 = arith.constant 0 : index
    %130 = vector.load %arg16[%c0_126, %c0_127] : memref<1x128xf32, #tpu.memory_space<vmem>>, vector<1x128xf32>
    %131 = vector.broadcast %130 : vector<1x128xf32> to vector<128x128xf32>
    %132 = arith.mulf %129, %131 : vector<128x128xf32>
    %c0_128 = arith.constant 0 : index
    %c0_129 = arith.constant 0 : index
    %133 = vector.load %arg17[%c0_128, %c0_129] : memref<1x128xf32, #tpu.memory_space<vmem>>, vector<1x128xf32>
    %134 = vector.broadcast %133 : vector<1x128xf32> to vector<128x128xf32>
    %135 = arith.addf %132, %134 : vector<128x128xf32>
    %cst_130 = arith.constant 0.000000e+00 : f32
    %136 = vector.broadcast %cst_130 : f32 to vector<128x128xf32>
    %137 = arith.cmpf ogt, %135, %136 : vector<128x128xf32>
    %cst_131 = arith.constant 0.00999999977 : f32
    %138 = vector.broadcast %cst_131 : f32 to vector<128x128xf32>
    %139 = arith.mulf %138, %135 : vector<128x128xf32>
    %140 = arith.select %137, %135, %139 : vector<128x128xi1>, vector<128x128xf32>
    %141 = vector.shape_cast %140 : vector<128x128xf32> to vector<8x16x128xf32>
    %c0_132 = arith.constant 0 : index
    %c0_133 = arith.constant 0 : index
    %c0_134 = arith.constant 0 : index
    %c0_135 = arith.constant 0 : index
    %142 = vector.load %arg18[%c0_132, %c0_133, %c0_134, %c0_135] : memref<1x8x16x128xf32, #tpu.memory_space<vmem>>, vector<1x8x16x128xf32>
    %143 = vector.shape_cast %142 : vector<1x8x16x128xf32> to vector<8x16x128xf32>
    %144 = vector.shape_cast %141 : vector<8x16x128xf32> to vector<1x8x16x128xf32>
    tpu.vector_store %arg18[%c0_132, %c0_133, %c0_134, %c0_135], %144 {strides = array<i32>} : memref<1x8x16x128xf32, #tpu.memory_space<vmem>>, vector<1x8x16x128xf32>,
    return
  }
  func.func @transform_0(%arg0: i32, %arg1: i32) -> (i32, i32, i32, i32) {
    %c0_i32 = arith.constant 0 : i32
    %c0_i32_0 = arith.constant 0 : i32
    %c0_i32_1 = arith.constant 0 : i32
    %c0_i32_2 = arith.constant 0 : i32
    return %arg0, %c0_i32, %c0_i32_0, %c0_i32_1 : i32, i32, i32, i32
  }
  func.func @transform_1(%arg0: i32, %arg1: i32) -> (i32, i32) {
    %c0_i32 = arith.constant 0 : i32
    %c0_i32_0 = arith.constant 0 : i32
    %c0_i32_1 = arith.constant 0 : i32
    return %c0_i32, %c0_i32_0 : i32, i32
  }
  func.func @transform_2(%arg0: i32, %arg1: i32) -> (i32, i32) {
    %c0_i32 = arith.constant 0 : i32
    %c0_i32_0 = arith.constant 0 : i32
    %c0_i32_1 = arith.constant 0 : i32
    return %c0_i32, %c0_i32_0 : i32, i32
  }
  func.func @transform_3(%arg0: i32, %arg1: i32) -> (i32, i32) {
    %c0_i32 = arith.constant 0 : i32
    %c0_i32_0 = arith.constant 0 : i32
    %c0_i32_1 = arith.constant 0 : i32
    return %c0_i32, %c0_i32_0 : i32, i32
  }
  func.func @transform_4(%arg0: i32, %arg1: i32) -> (i32, i32) {
    %c0_i32 = arith.constant 0 : i32
    %c0_i32_0 = arith.constant 0 : i32
    %c0_i32_1 = arith.constant 0 : i32
    return %c0_i32, %c0_i32_0 : i32, i32
  }
  func.func @transform_5(%arg0: i32, %arg1: i32) -> (i32, i32) {
    %c0_i32 = arith.constant 0 : i32
    %c0_i32_0 = arith.constant 0 : i32
    %c0_i32_1 = arith.constant 0 : i32
    return %c0_i32, %c0_i32_0 : i32, i32
  }
  func.func @transform_6(%arg0: i32, %arg1: i32) -> (i32, i32) {
    %c0_i32 = arith.constant 0 : i32
    %c0_i32_0 = arith.constant 0 : i32
    %c0_i32_1 = arith.constant 0 : i32
    return %c0_i32, %c0_i32_0 : i32, i32
  }
  func.func @transform_7(%arg0: i32, %arg1: i32) -> (i32, i32) {
    %c0_i32 = arith.constant 0 : i32
    %c0_i32_0 = arith.constant 0 : i32
    %c0_i32_1 = arith.constant 0 : i32
    return %c0_i32, %c0_i32_0 : i32, i32
  }
  func.func @transform_8(%arg0: i32, %arg1: i32) -> (i32, i32) {
    %c0_i32 = arith.constant 0 : i32
    %c0_i32_0 = arith.constant 0 : i32
    %c0_i32_1 = arith.constant 0 : i32
    return %c0_i32, %c0_i32_0 : i32, i32
  }
  func.func @transform_9(%arg0: i32, %arg1: i32) -> (i32, i32) {
    %c0_i32 = arith.constant 0 : i32
    %c0_i32_0 = arith.constant 0 : i32
    %c0_i32_1 = arith.constant 0 : i32
    return %c0_i32, %c0_i32_0 : i32, i32
  }
  func.func @transform_10(%arg0: i32, %arg1: i32) -> (i32, i32) {
    %c0_i32 = arith.constant 0 : i32
    %c0_i32_0 = arith.constant 0 : i32
    %c0_i32_1 = arith.constant 0 : i32
    return %c0_i32, %c0_i32_0 : i32, i32
  }
  func.func @transform_11(%arg0: i32, %arg1: i32) -> (i32, i32) {
    %c0_i32 = arith.constant 0 : i32
    %c0_i32_0 = arith.constant 0 : i32
    %c0_i32_1 = arith.constant 0 : i32
    return %c0_i32, %c0_i32_0 : i32, i32
  }
  func.func @transform_12(%arg0: i32, %arg1: i32) -> (i32, i32) {
    %c0_i32 = arith.constant 0 : i32
    %c0_i32_0 = arith.constant 0 : i32
    %c0_i32_1 = arith.constant 0 : i32
    return %c0_i32, %c0_i32_0 : i32, i32
  }
  func.func @transform_13(%arg0: i32, %arg1: i32) -> (i32, i32) {
    %c0_i32 = arith.constant 0 : i32
    %c0_i32_0 = arith.constant 0 : i32
    %c0_i32_1 = arith.constant 0 : i32
    return %c0_i32, %c0_i32_0 : i32, i32
  }
  func.func @transform_14(%arg0: i32, %arg1: i32) -> (i32, i32) {
    %c0_i32 = arith.constant 0 : i32
    %c0_i32_0 = arith.constant 0 : i32
    %c0_i32_1 = arith.constant 0 : i32
    return %c0_i32, %c0_i32_0 : i32, i32
  }
  func.func @transform_15(%arg0: i32, %arg1: i32) -> (i32, i32) {
    %c0_i32 = arith.constant 0 : i32
    %c0_i32_0 = arith.constant 0 : i32
    %c0_i32_1 = arith.constant 0 : i32
    return %c0_i32, %c0_i32_0 : i32, i32
  }
  func.func @transform_16(%arg0: i32, %arg1: i32) -> (i32, i32, i32, i32) {
    %c0_i32 = arith.constant 0 : i32
    %c0_i32_0 = arith.constant 0 : i32
    %c0_i32_1 = arith.constant 0 : i32
    return %arg0, %arg1, %c0_i32, %c0_i32_0 : i32, i32, i32, i32
  }
}

</mosaic_0001>

<llo_original>
// kernel: conv5l_forward.1
$region0: #{conv5l_forward.1}
  #allocation0 [shape = 'u32[]', space=smem, size = 0x4, offset = 0x4, fixed_abs, tag = 'smem constant byte address 0x4 - core index']
  #allocation1 [shape = 'u32[72,128]{1,0:T(1,128)}', space=vmem, size = 0x9000, scoped, tag = 'internal scratch']
  #allocation2 [shape = 'f32[12,16,384]{2,1,0:T(8,128)}', space=vmem, size = 0x48000, scoped, tag = 'scratch operand']
  #allocation3 [shape = 'f32[12,18,256]{2,1,0:T(8,128)}', space=vmem, size = 0x48000, scoped, tag = 'scratch operand']
  #allocation4 [shape = 'f32[10,18,256]{2,1,0:T(8,128)}', space=vmem, size = 0x3c000, scoped, tag = 'scratch operand']
  %s0 = inlined_call_operand.hbm [shape: f32[2,16,16,384], index: 0, kind: input, shape index: {}]
  %s1 = inlined_call_operand.hbm [shape: f32[384,256], index: 1, kind: input, shape index: {}]
  %s2 = inlined_call_operand.hbm [shape: f32[1,256], index: 2, kind: input, shape index: {}]
  %s3 = inlined_call_operand.hbm [shape: f32[1,256], index: 3, kind: input, shape index: {}]
  %s4 = inlined_call_operand.hbm [shape: f32[2304,128], index: 4, kind: input, shape index: {}]
  %s5 = inlined_call_operand.hbm [shape: f32[1,128], index: 5, kind: input, shape index: {}]
  %s6 = inlined_call_operand.hbm [shape: f32[1,128], index: 6, kind: input, shape index: {}]
  %s7 = inlined_call_operand.hbm [shape: f32[128,256], index: 7, kind: input, shape index: {}]
  %s8 = inlined_call_operand.hbm [shape: f32[1,256], index: 8, kind: input, shape index: {}]
  %s9 = inlined_call_operand.hbm [shape: f32[1,256], index: 9, kind: input, shape index: {}]
  %s10 = inlined_call_operand.hbm [shape: f32[2304,128], index: 10, kind: input, shape index: {}]
  %s11 = inlined_call_operand.hbm [shape: f32[1,128], index: 11, kind: input, shape index: {}]
  %s12 = inlined_call_operand.hbm [shape: f32[1,128], index: 12, kind: input, shape index: {}]
  %s13 = inlined_call_operand.hbm [shape: f32[128,128], index: 13, kind: input, shape index: {}]
  %s14 = inlined_call_operand.hbm [shape: f32[1,128], index: 14, kind: input, shape index: {}]
  %s15 = inlined_call_operand.hbm [shape: f32[1,128], index: 15, kind: input, shape index: {}]
  %s16 = inlined_call_operand.hbm [shape: f32[2,16,16,128], index: 16, kind: output, shape index: {}]
  %s17 = sld [smem:[#allocation0]]
  $region189: #{conv5l_forward.1} parent=0
    _
  %s19 = ssub.s32 1, %s17
  %s20 = scalar_select 0, %s19, %s17
  $region1: #{conv5l_forward.1} parent=0
    #allocation5 [shape = 'u8[786432]{0}', space=vmem, size = 0xc0000, scoped, tag = 'input window, operand 0']
    #allocation6 [shape = 's32[2]{0}', space=sflag, size = 0x8, scoped, tag = 'scoped memory for conv5l_forward.1']
    #allocation7 [shape = 's32[2]{0}', space=sflag, size = 0x8, scoped, tag = 'scoped memory for conv5l_forward.1']
    #allocation8 [shape = 'u8[393216]{0}', space=vmem, size = 0x60000, scoped, tag = 'input window, operand 1, single buffered']
    #allocation9 [shape = 's32[1]{0}', space=sflag, size = 0x4, scoped, tag = 'scoped memory for conv5l_forward.1']
    #allocation10 [shape = 'u8[1024]{0}', space=vmem, size = 0x400, scoped, tag = 'input window, operand 2, single buffered']
    #allocation11 [shape = 'u8[1024]{0}', space=vmem, size = 0x400, scoped, tag = 'input window, operand 3, single buffered']
    #allocation12 [shape = 's32[1]{0}', space=sflag, size = 0x4, scoped, tag = 'scoped memory for conv5l_forward.1']
    #allocation13 [shape = 'u8[1179648]{0}', space=vmem, size = 0x120000, scoped, tag = 'input window, operand 4, single buffered']
    #allocation14 [shape = 'u8[512]{0}', space=vmem, size = 0x400, scoped, tag = 'input window, operand 5, single buffered']
    #allocation15 [shape = 's32[1]{0}', space=sflag, size = 0x4, scoped, tag = 'scoped memory for conv5l_forward.1']
    #allocation16 [shape = 'u8[512]{0}', space=vmem, size = 0x400, scoped, tag = 'input window, operand 6, single buffered']
    #allocation17 [shape = 'u8[131072]{0}', space=vmem, size = 0x20000, scoped, tag = 'input window, operand 7, single buffered']
    #allocation18 [shape = 's32[1]{0}', space=sflag, size = 0x4, scoped, tag = 'scoped memory for conv5l_forward.1']
    #allocation19 [shape = 'u8[1024]{0}', space=vmem, size = 0x400, scoped, tag = 'input window, operand 8, single buffered']
    #allocation20 [shape = 'u8[1024]{0}', space=vmem, size = 0x400, scoped, tag = 'input window, operand 9, single buffered']
    #allocation21 [shape = 's32[1]{0}', space=sflag, size = 0x4, scoped, tag = 'scoped memory for conv5l_forward.1']
    #allocation22 [shape = 'u8[1179648]{0}', space=vmem, size = 0x120000, scoped, tag = 'input window, operand 10, single buffered']
    #allocation23 [shape = 'u8[512]{0}', space=vmem, size = 0x400, scoped, tag = 'input window, operand 11, single buffered']
    #allocation24 [shape = 's32[1]{0}', space=sflag, size = 0x4, scoped, tag = 'scoped memory for conv5l_forward.1']
    #allocation25 [shape = 'u8[512]{0}', space=vmem, size = 0x400, scoped, tag = 'input window, operand 12, single buffered']
    #allocation26 [shape = 'u8[65536]{0}', space=vmem, size = 0x10000, scoped, tag = 'input window, operand 13, single buffered']
    #allocation27 [shape = 's32[1]{0}', space=sflag, size = 0x4, scoped, tag = 'scoped memory for conv5l_forward.1']
    #allocation28 [shape = 'u8[512]{0}', space=vmem, size = 0x400, scoped, tag = 'input window, operand 14, single buffered']
    #allocation29 [shape = 'u8[512]{0}', space=vmem, size = 0x400, scoped, tag = 'input window, operand 15, single buffered']
    #allocation30 [shape = 's32[1]{0}', space=sflag, size = 0x4, scoped, tag = 'scoped memory for conv5l_forward.1']
    #allocation31 [shape = 'u8[131072]{0}', space=vmem, size = 0x20000, scoped, tag = 'output window, operand 0']
    %21 = vsyncpa [#allocation6], 0
    %s22 = scalar_lea.sflag [#allocation6], 1
    %23 = vsyncpa %s22, 0
    %24 = vsyncpa [#allocation9], 0
    %25 = vsyncpa [#allocation12], 0
    %26 = vsyncpa [#allocation15], 0
    %27 = vsyncpa [#allocation18], 0
    %28 = vsyncpa [#allocation21], 0
    %29 = vsyncpa [#allocation24], 0
    %30 = vsyncpa [#allocation27], 0
    %31 = vsyncpa [#allocation30], 0
    %32 = vsyncpa [#allocation7], 0
    %s33 = scalar_lea.sflag [#allocation7], 1
    %34 = vsyncpa %s33, 0
    loop: start=0, step=1, limit=6
    $region2: #{conv5l_forward.1} parent=1 // loop_pre_header
      _
    $region3: #{conv5l_forward.1} parent=1 // loop_header
      %s36 = sphi 0, %s40
      %p37 = scmp.ge.s32.totalorder %s36, 6
      %s43 = sphi 0, %s55
      %s44 = sphi 0, %s51
      %s45 = sphi 0, %s43
      %s46 = sphi 0, %s44
      %s47 = sphi 0, %s45
      %s48 = sphi 0, %s46
      %s58 = sphi 0, %s60
      %s61 = sphi 0, %s58
      %s62 = sphi 0, %s61
      %s78 = sphi 0, %s62
      %s82 = sphi 0, %s82
      %s84 = sphi 0, %s82
      %s85 = sphi 0, %s84
      %s99 = sphi 0, %s85
      %s103 = sphi 0, %s103
      %s105 = sphi 0, %s103
      %s106 = sphi 0, %s105
      %s120 = sphi 0, %s106
      %s124 = sphi 0, %s124
      %s126 = sphi 0, %s124
      %s127 = sphi 0, %s126
      %s141 = sphi 0, %s127
      %s145 = sphi 0, %s145
      %s147 = sphi 0, %s145
      %s148 = sphi 0, %s147
      %s162 = sphi 0, %s148
      %s166 = sphi 0, %s166
      %s168 = sphi 0, %s166
      %s169 = sphi 0, %s168
      %s183 = sphi 0, %s169
      %s187 = sphi 0, %s187
      %s189 = sphi 0, %s187
      %s190 = sphi 0, %s189
      %s204 = sphi 0, %s190
      %s208 = sphi 0, %s208
      %s210 = sphi 0, %s208
      %s211 = sphi 0, %s210
      %s225 = sphi 0, %s211
      %s229 = sphi 0, %s229
      %s231 = sphi 0, %s229
      %s232 = sphi 0, %s231
      %s246 = sphi 0, %s232
      %s250 = sphi 0, %s250
      %s252 = sphi 0, %s250
      %s253 = sphi 0, %s252
      %s267 = sphi 0, %s253
      %s271 = sphi 0, %s271
      %s273 = sphi 0, %s271
      %s274 = sphi 0, %s273
      %s288 = sphi 0, %s274
      %s292 = sphi 0, %s292
      %s294 = sphi 0, %s292
      %s295 = sphi 0, %s294
      %s309 = sphi 0, %s295
      %s313 = sphi 0, %s313
      %s315 = sphi 0, %s313
      %s316 = sphi 0, %s315
      %s330 = sphi 0, %s316
      %s334 = sphi 0, %s334
      %s336 = sphi 0, %s334
      %s337 = sphi 0, %s336
      %s351 = sphi 0, %s337
      %s355 = sphi 0, %s355
      %s357 = sphi 0, %s355
      %s358 = sphi 0, %s357
      %s372 = sphi 0, %s358
      %s376 = sphi 0, %s376
      %s378 = sphi 0, %s376
      %s379 = sphi 0, %s378
      %s393 = sphi 0, %s379
      %s401 = sphi 0, %s403
      %s404 = sphi 0, %s401
      %s405 = sphi 0, %s404
      %s421 = sphi 0, %s405
    $region4: #{conv5l_forward.1} parent=1 // loop_header_branch
      %39 = sbr.rel (%p37) target = $region8
    $region5: #{conv5l_forward.1} parent=1 // loop_body
      %s41 = ssub.s32 %s36, 1
      %s42 = ssub.s32 %s36, 2
      %s49 = sadd.s32 1, %s44
      %p50 = scmp.ge.s32.totalorder %s49, 2
      %s51 = scalar_select %p50, 0, %s49
      %s52 = sadd.s32 1, %s43
      %s53 = scalar_select %p50, %s52, %s43
      %p54 = scmp.ge.s32.totalorder %s53, 2
      %s55 = scalar_select %p54, 0, %s53
      %s56 = ssub.s32 %s43, %s55
      %p57 = scmp.eq.s32.totalorder %s56, 0
      %s59 = sadd.s32 %s58, 1
      %s60 = scalar_select %p57, %s58, %s59
      %p63 = pneg %p57
      %p64 = scmp.eq.s32.totalorder %s36, 3
      %p65 = por %p63, %p64
      %p66 = scmp.ne.s32.totalorder %s58, %s61
      %p67 = scmp.eq.s32.totalorder %s36, 0
      %p68 = por %p66, %p67
      %p69 = scmp.ne.s32.totalorder %s58, %s61
      %p70 = scmp.eq.s32.totalorder %s41, 3
      %p71 = por %p69, %p70
      %p72 = scmp.ne.s32.totalorder %s61, %s62
      %p73 = scmp.eq.s32.totalorder %s41, 0
      %p74 = por %p72, %p73
      %p75 = scmp.ne.s32.totalorder %s61, %s62
      %p76 = scmp.eq.s32.totalorder %s42, 3
      %p77 = por %p75, %p76
      %p79 = scmp.ne.s32.totalorder %s62, %s78
      %p80 = scmp.eq.s32.totalorder %s42, 0
      %p81 = por %p79, %p80
      %s83 = sadd.s32 %s82, 1
      %p86 = scmp.eq.s32.totalorder %s36, 3
      %p87 = scmp.ne.s32.totalorder %s82, %s84
      %p88 = scmp.eq.s32.totalorder %s36, 0
      %p89 = por %p87, %p88
      %p90 = scmp.ne.s32.totalorder %s82, %s84
      %p91 = scmp.eq.s32.totalorder %s41, 3
      %p92 = por %p90, %p91
      %p93 = scmp.ne.s32.totalorder %s84, %s85
      %p94 = scmp.eq.s32.totalorder %s41, 0
      %p95 = por %p93, %p94
      %p96 = scmp.ne.s32.totalorder %s84, %s85
      %p97 = scmp.eq.s32.totalorder %s42, 3
      %p98 = por %p96, %p97
      %p100 = scmp.ne.s32.totalorder %s85, %s99
      %p101 = scmp.eq.s32.totalorder %s42, 0
      %p102 = por %p100, %p101
      %s104 = sadd.s32 %s103, 1
      %p107 = scmp.eq.s32.totalorder %s36, 3
      %p108 = scmp.ne.s32.totalorder %s103, %s105
      %p109 = scmp.eq.s32.totalorder %s36, 0
      %p110 = por %p108, %p109
      %p111 = scmp.ne.s32.totalorder %s103, %s105
      %p112 = scmp.eq.s32.totalorder %s41, 3
      %p113 = por %p111, %p112
      %p114 = scmp.ne.s32.totalorder %s105, %s106
      %p115 = scmp.eq.s32.totalorder %s41, 0
      %p116 = por %p114, %p115
      %p117 = scmp.ne.s32.totalorder %s105, %s106
      %p118 = scmp.eq.s32.totalorder %s42, 3
      %p119 = por %p117, %p118
      %p121 = scmp.ne.s32.totalorder %s106, %s120
      %p122 = scmp.eq.s32.totalorder %s42, 0
      %p123 = por %p121, %p122
      %s125 = sadd.s32 %s124, 1
      %p128 = scmp.eq.s32.totalorder %s36, 3
      %p129 = scmp.ne.s32.totalorder %s124, %s126
      %p130 = scmp.eq.s32.totalorder %s36, 0
      %p131 = por %p129, %p130
      %p132 = scmp.ne.s32.totalorder %s124, %s126
      %p133 = scmp.eq.s32.totalorder %s41, 3
      %p134 = por %p132, %p133
      %p135 = scmp.ne.s32.totalorder %s126, %s127
      %p136 = scmp.eq.s32.totalorder %s41, 0
      %p137 = por %p135, %p136
      %p138 = scmp.ne.s32.totalorder %s126, %s127
      %p139 = scmp.eq.s32.totalorder %s42, 3
      %p140 = por %p138, %p139
      %p142 = scmp.ne.s32.totalorder %s127, %s141
      %p143 = scmp.eq.s32.totalorder %s42, 0
      %p144 = por %p142, %p143
      %s146 = sadd.s32 %s145, 1
      %p149 = scmp.eq.s32.totalorder %s36, 3
      %p150 = scmp.ne.s32.totalorder %s145, %s147
      %p151 = scmp.eq.s32.totalorder %s36, 0
      %p152 = por %p150, %p151
      %p153 = scmp.ne.s32.totalorder %s145, %s147
      %p154 = scmp.eq.s32.totalorder %s41, 3
      %p155 = por %p153, %p154
      %p156 = scmp.ne.s32.totalorder %s147, %s148
      %p157 = scmp.eq.s32.totalorder %s41, 0
      %p158 = por %p156, %p157
      %p159 = scmp.ne.s32.totalorder %s147, %s148
      %p160 = scmp.eq.s32.totalorder %s42, 3
      %p161 = por %p159, %p160
      %p163 = scmp.ne.s32.totalorder %s148, %s162
      %p164 = scmp.eq.s32.totalorder %s42, 0
      %p165 = por %p163, %p164
      %s167 = sadd.s32 %s166, 1
      %p170 = scmp.eq.s32.totalorder %s36, 3
      %p171 = scmp.ne.s32.totalorder %s166, %s168
      %p172 = scmp.eq.s32.totalorder %s36, 0
      %p173 = por %p171, %p172
      %p174 = scmp.ne.s32.totalorder %s166, %s168
      %p175 = scmp.eq.s32.totalorder %s41, 3
      %p176 = por %p174, %p175
      %p177 = scmp.ne.s32.totalorder %s168, %s169
      %p178 = scmp.eq.s32.totalorder %s41, 0
      %p179 = por %p177, %p178
      %p180 = scmp.ne.s32.totalorder %s168, %s169
      %p181 = scmp.eq.s32.totalorder %s42, 3
      %p182 = por %p180, %p181
      %p184 = scmp.ne.s32.totalorder %s169, %s183
      %p185 = scmp.eq.s32.totalorder %s42, 0
      %p186 = por %p184, %p185
      %s188 = sadd.s32 %s187, 1
      %p191 = scmp.eq.s32.totalorder %s36, 3
      %p192 = scmp.ne.s32.totalorder %s187, %s189
      %p193 = scmp.eq.s32.totalorder %s36, 0
      %p194 = por %p192, %p193
      %p195 = scmp.ne.s32.totalorder %s187, %s189
      %p196 = scmp.eq.s32.totalorder %s41, 3
      %p197 = por %p195, %p196
      %p198 = scmp.ne.s32.totalorder %s189, %s190
      %p199 = scmp.eq.s32.totalorder %s41, 0
      %p200 = por %p198, %p199
      %p201 = scmp.ne.s32.totalorder %s189, %s190
      %p202 = scmp.eq.s32.totalorder %s42, 3
      %p203 = por %p201, %p202
      %p205 = scmp.ne.s32.totalorder %s190, %s204
      %p206 = scmp.eq.s32.totalorder %s42, 0
      %p207 = por %p205, %p206
      %s209 = sadd.s32 %s208, 1
      %p212 = scmp.eq.s32.totalorder %s36, 3
      %p213 = scmp.ne.s32.totalorder %s208, %s210
      %p214 = scmp.eq.s32.totalorder %s36, 0
      %p215 = por %p213, %p214
      %p216 = scmp.ne.s32.totalorder %s208, %s210
      %p217 = scmp.eq.s32.totalorder %s41, 3
      %p218 = por %p216, %p217
      %p219 = scmp.ne.s32.totalorder %s210, %s211
      %p220 = scmp.eq.s32.totalorder %s41, 0
      %p221 = por %p219, %p220
      %p222 = scmp.ne.s32.totalorder %s210, %s211
      %p223 = scmp.eq.s32.totalorder %s42, 3
      %p224 = por %p222, %p223
      %p226 = scmp.ne.s32.totalorder %s211, %s225
      %p227 = scmp.eq.s32.totalorder %s42, 0
      %p228 = por %p226, %p227
      %s230 = sadd.s32 %s229, 1
      %p233 = scmp.eq.s32.totalorder %s36, 3
      %p234 = scmp.ne.s32.totalorder %s229, %s231
      %p235 = scmp.eq.s32.totalorder %s36, 0
      %p236 = por %p234, %p235
      %p237 = scmp.ne.s32.totalorder %s229, %s231
      %p238 = scmp.eq.s32.totalorder %s41, 3
      %p239 = por %p237, %p238
      %p240 = scmp.ne.s32.totalorder %s231, %s232
      %p241 = scmp.eq.s32.totalorder %s41, 0
      %p242 = por %p240, %p241
      %p243 = scmp.ne.s32.totalorder %s231, %s232
      %p244 = scmp.eq.s32.totalorder %s42, 3
      %p245 = por %p243, %p244
      %p247 = scmp.ne.s32.totalorder %s232, %s246
      %p248 = scmp.eq.s32.totalorder %s42, 0
      %p249 = por %p247, %p248
      %s251 = sadd.s32 %s250, 1
      %p254 = scmp.eq.s32.totalorder %s36, 3
      %p255 = scmp.ne.s32.totalorder %s250, %s252
      %p256 = scmp.eq.s32.totalorder %s36, 0
      %p257 = por %p255, %p256
      %p258 = scmp.ne.s32.totalorder %s250, %s252
      %p259 = scmp.eq.s32.totalorder %s41, 3
      %p260 = por %p258, %p259
      %p261 = scmp.ne.s32.totalorder %s252, %s253
      %p262 = scmp.eq.s32.totalorder %s41, 0
      %p263 = por %p261, %p262
      %p264 = scmp.ne.s32.totalorder %s252, %s253
      %p265 = scmp.eq.s32.totalorder %s42, 3
      %p266 = por %p264, %p265
      %p268 = scmp.ne.s32.totalorder %s253, %s267
      %p269 = scmp.eq.s32.totalorder %s42, 0
      %p270 = por %p268, %p269
      %s272 = sadd.s32 %s271, 1
      %p275 = scmp.eq.s32.totalorder %s36, 3
      %p276 = scmp.ne.s32.totalorder %s271, %s273
      %p277 = scmp.eq.s32.totalorder %s36, 0
      %p278 = por %p276, %p277
      %p279 = scmp.ne.s32.totalorder %s271, %s273
      %p280 = scmp.eq.s32.totalorder %s41, 3
      %p281 = por %p279, %p280
      %p282 = scmp.ne.s32.totalorder %s273, %s274
      %p283 = scmp.eq.s32.totalorder %s41, 0
      %p284 = por %p282, %p283
      %p285 = scmp.ne.s32.totalorder %s273, %s274
      %p286 = scmp.eq.s32.totalorder %s42, 3
      %p287 = por %p285, %p286
      %p289 = scmp.ne.s32.totalorder %s274, %s288
      %p290 = scmp.eq.s32.totalorder %s42, 0
      %p291 = por %p289, %p290
      %s293 = sadd.s32 %s292, 1
      %p296 = scmp.eq.s32.totalorder %s36, 3
      %p297 = scmp.ne.s32.totalorder %s292, %s294
      %p298 = scmp.eq.s32.totalorder %s36, 0
      %p299 = por %p297, %p298
      %p300 = scmp.ne.s32.totalorder %s292, %s294
      %p301 = scmp.eq.s32.totalorder %s41, 3
      %p302 = por %p300, %p301
      %p303 = scmp.ne.s32.totalorder %s294, %s295
      %p304 = scmp.eq.s32.totalorder %s41, 0
      %p305 = por %p303, %p304
      %p306 = scmp.ne.s32.totalorder %s294, %s295
      %p307 = scmp.eq.s32.totalorder %s42, 3
      %p308 = por %p306, %p307
      %p310 = scmp.ne.s32.totalorder %s295, %s309
      %p311 = scmp.eq.s32.totalorder %s42, 0
      %p312 = por %p310, %p311
      %s314 = sadd.s32 %s313, 1
      %p317 = scmp.eq.s32.totalorder %s36, 3
      %p318 = scmp.ne.s32.totalorder %s313, %s315
      %p319 = scmp.eq.s32.totalorder %s36, 0
      %p320 = por %p318, %p319
      %p321 = scmp.ne.s32.totalorder %s313, %s315
      %p322 = scmp.eq.s32.totalorder %s41, 3
      %p323 = por %p321, %p322
      %p324 = scmp.ne.s32.totalorder %s315, %s316
      %p325 = scmp.eq.s32.totalorder %s41, 0
      %p326 = por %p324, %p325
      %p327 = scmp.ne.s32.totalorder %s315, %s316
      %p328 = scmp.eq.s32.totalorder %s42, 3
      %p329 = por %p327, %p328
      %p331 = scmp.ne.s32.totalorder %s316, %s330
      %p332 = scmp.eq.s32.totalorder %s42, 0
      %p333 = por %p331, %p332
      %s335 = sadd.s32 %s334, 1
      %p338 = scmp.eq.s32.totalorder %s36, 3
      %p339 = scmp.ne.s32.totalorder %s334, %s336
      %p340 = scmp.eq.s32.totalorder %s36, 0
      %p341 = por %p339, %p340
      %p342 = scmp.ne.s32.totalorder %s334, %s336
      %p343 = scmp.eq.s32.totalorder %s41, 3
      %p344 = por %p342, %p343
      %p345 = scmp.ne.s32.totalorder %s336, %s337
      %p346 = scmp.eq.s32.totalorder %s41, 0
      %p347 = por %p345, %p346
      %p348 = scmp.ne.s32.totalorder %s336, %s337
      %p349 = scmp.eq.s32.totalorder %s42, 3
      %p350 = por %p348, %p349
      %p352 = scmp.ne.s32.totalorder %s337, %s351
      %p353 = scmp.eq.s32.totalorder %s42, 0
      %p354 = por %p352, %p353
      %s356 = sadd.s32 %s355, 1
      %p359 = scmp.eq.s32.totalorder %s36, 3
      %p360 = scmp.ne.s32.totalorder %s355, %s357
      %p361 = scmp.eq.s32.totalorder %s36, 0
      %p362 = por %p360, %p361
      %p363 = scmp.ne.s32.totalorder %s355, %s357
      %p364 = scmp.eq.s32.totalorder %s41, 3
      %p365 = por %p363, %p364
      %p366 = scmp.ne.s32.totalorder %s357, %s358
      %p367 = scmp.eq.s32.totalorder %s41, 0
      %p368 = por %p366, %p367
      %p369 = scmp.ne.s32.totalorder %s357, %s358
      %p370 = scmp.eq.s32.totalorder %s42, 3
      %p371 = por %p369, %p370
      %p373 = scmp.ne.s32.totalorder %s358, %s372
      %p374 = scmp.eq.s32.totalorder %s42, 0
      %p375 = por %p373, %p374
      %s377 = sadd.s32 %s376, 1
      %p380 = scmp.eq.s32.totalorder %s36, 3
      %p381 = scmp.ne.s32.totalorder %s376, %s378
      %p382 = scmp.eq.s32.totalorder %s36, 0
      %p383 = por %p381, %p382
      %p384 = scmp.ne.s32.totalorder %s376, %s378
      %p385 = scmp.eq.s32.totalorder %s41, 3
      %p386 = por %p384, %p385
      %p387 = scmp.ne.s32.totalorder %s378, %s379
      %p388 = scmp.eq.s32.totalorder %s41, 0
      %p389 = por %p387, %p388
      %p390 = scmp.ne.s32.totalorder %s378, %s379
      %p391 = scmp.eq.s32.totalorder %s42, 3
      %p392 = por %p390, %p391
      %p394 = scmp.ne.s32.totalorder %s379, %s393
      %p395 = scmp.eq.s32.totalorder %s42, 0
      %p396 = por %p394, %p395
      %s397 = ssub.s32 %s43, %s55
      %s398 = ssub.s32 %s44, %s51
      %s399 = sor.u32 %s397, %s398
      %p400 = scmp.eq.s32.totalorder %s399, 0
      %s402 = sadd.s32 %s401, 1
      %s403 = scalar_select %p400, %s401, %s402
      %p406 = pneg %p400
      %p407 = scmp.eq.s32.totalorder %s36, 3
      %p408 = por %p406, %p407
      %p409 = scmp.ne.s32.totalorder %s401, %s404
      %p410 = scmp.eq.s32.totalorder %s36, 0
      %p411 = por %p409, %p410
      %p412 = scmp.ne.s32.totalorder %s401, %s404
      %p413 = scmp.eq.s32.totalorder %s41, 3
      %p414 = por %p412, %p413
      %p415 = scmp.ne.s32.totalorder %s404, %s405
      %p416 = scmp.eq.s32.totalorder %s41, 0
      %p417 = por %p415, %p416
      %p418 = scmp.ne.s32.totalorder %s404, %s405
      %p419 = scmp.eq.s32.totalorder %s42, 3
      %p420 = por %p418, %p419
      %p422 = scmp.ne.s32.totalorder %s405, %s421
      %p423 = scmp.eq.s32.totalorder %s42, 0
      %p424 = por %p422, %p423
      %p425 = scmp.le.s32.totalorder 1, %s36
      %p426 = scmp.lt.s32.totalorder %s36, 5
      %p427 = pnand %p425, %p426
      %p428 = pneg %p427
      // Predicated region
      $region9: #{conv5l_forward.1} parent=5 // pred_check
        _
      $region10: #{conv5l_forward.1} parent=5 // pred_check_branch
        %430 = sbr.rel (%p427) target = $region12
      $region11: #{conv5l_forward.1} parent=5 // pred_region
        %s431 = ssub.s32 %s36, 1
        // Predicated region
        $region13: #{conv5l_forward.1} parent=11 // pred_check
          %p432 = pneg %p95
        $region14: #{conv5l_forward.1} parent=11 // pred_check_branch
          %434 = sbr.rel (%p432) target = $region16
        $region15: #{conv5l_forward.1} parent=11 // pred_region
          %436 = vsyncadd [#allocation9], 0
          %s437 = sshll.u32 %s1, 4
          %s438 = int_to_ptr.hbm [resolvable:$true] %s437
          %s439 = sshll.u32 [#allocation8], 4
          %s440 = int_to_ptr.vmem [resolvable:$true] %s439
          %445 = dma.hbm_to_vmem [thread:$0]  %s438, 12288, %s440, [#allocation9], 256, 256, 16
        $region16: #{conv5l_forward.1} parent=11 // pred_fallthru
          _
        // Predicated region
        $region17: #{conv5l_forward.1} parent=11 // pred_check
          %p446 = pneg %p116
        $region18: #{conv5l_forward.1} parent=11 // pred_check_branch
          %448 = sbr.rel (%p446) target = $region20
        $region19: #{conv5l_forward.1} parent=11 // pred_region
          %450 = vsyncadd [#allocation9], 0
          %s452 = sshll.u32 %s2, 4
          %s453 = int_to_ptr.hbm [resolvable:$true] %s452
          %s454 = sshll.u32 [#allocation10], 4
          %s455 = int_to_ptr.vmem [resolvable:$true] %s454
          %457 = dma.hbm_to_vmem [thread:$0]  %s453, 32, %s455, [#allocation9]
        $region20: #{conv5l_forward.1} parent=11 // pred_fallthru
          _
        // Predicated region
        $region21: #{conv5l_forward.1} parent=11 // pred_check
          %p458 = pneg %p137
        $region22: #{conv5l_forward.1} parent=11 // pred_check_branch
          %460 = sbr.rel (%p458) target = $region24
        $region23: #{conv5l_forward.1} parent=11 // pred_region
          %462 = vsyncadd [#allocation12], 0
          %s464 = sshll.u32 %s3, 4
          %s465 = int_to_ptr.hbm [resolvable:$true] %s464
          %s466 = sshll.u32 [#allocation11], 4
          %s467 = int_to_ptr.vmem [resolvable:$true] %s466
          %469 = dma.hbm_to_vmem [thread:$0]  %s465, 32, %s467, [#allocation12]
        $region24: #{conv5l_forward.1} parent=11 // pred_fallthru
          _
        // Predicated region
        $region25: #{conv5l_forward.1} parent=11 // pred_check
          %p470 = pneg %p158
        $region26: #{conv5l_forward.1} parent=11 // pred_check_branch
          %472 = sbr.rel (%p470) target = $region28
        $region27: #{conv5l_forward.1} parent=11 // pred_region
          %474 = vsyncadd [#allocation12], 0
          %s475 = sshll.u32 %s4, 4
          %s476 = int_to_ptr.hbm [resolvable:$true] %s475
          %s477 = sshll.u32 [#allocation13], 4
          %s478 = int_to_ptr.vmem [resolvable:$true] %s477
          %483 = dma.hbm_to_vmem [thread:$0]  %s476, 36864, %s478, [#allocation12], 128, 128, 8
        $region28: #{conv5l_forward.1} parent=11 // pred_fallthru
          _
        // Predicated region
        $region29: #{conv5l_forward.1} parent=11 // pred_check
          %p484 = pneg %p179
        $region30: #{conv5l_forward.1} parent=11 // pred_check_branch
          %486 = sbr.rel (%p484) target = $region32
        $region31: #{conv5l_forward.1} parent=11 // pred_region
          %488 = vsyncadd [#allocation15], 0
          %s490 = sshll.u32 %s5, 4
          %s491 = int_to_ptr.hbm [resolvable:$true] %s490
          %s492 = sshll.u32 [#allocation14], 4
          %s493 = int_to_ptr.vmem [resolvable:$true] %s492
          %495 = dma.hbm_to_vmem [thread:$0]  %s491, 16, %s493, [#allocation15]
        $region32: #{conv5l_forward.1} parent=11 // pred_fallthru
          _
        // Predicated region
        $region33: #{conv5l_forward.1} parent=11 // pred_check
          %p496 = pneg %p200
        $region34: #{conv5l_forward.1} parent=11 // pred_check_branch
          %498 = sbr.rel (%p496) target = $region36
        $region35: #{conv5l_forward.1} parent=11 // pred_region
          %500 = vsyncadd [#allocation15], 0
          %s502 = sshll.u32 %s6, 4
          %s503 = int_to_ptr.hbm [resolvable:$true] %s502
          %s504 = sshll.u32 [#allocation16], 4
          %s505 = int_to_ptr.vmem [resolvable:$true] %s504
          %507 = dma.hbm_to_vmem [thread:$0]  %s503, 16, %s505, [#allocation15]
        $region36: #{conv5l_forward.1} parent=11 // pred_fallthru
          _
        // Predicated region
        $region37: #{conv5l_forward.1} parent=11 // pred_check
          %p508 = pneg %p221
        $region38: #{conv5l_forward.1} parent=11 // pred_check_branch
          %510 = sbr.rel (%p508) target = $region40
        $region39: #{conv5l_forward.1} parent=11 // pred_region
          %512 = vsyncadd [#allocation18], 0
          %s513 = sshll.u32 %s7, 4
          %s514 = int_to_ptr.hbm [resolvable:$true] %s513
          %s515 = sshll.u32 [#allocation17], 4
          %s516 = int_to_ptr.vmem [resolvable:$true] %s515
          %521 = dma.hbm_to_vmem [thread:$0]  %s514, 4096, %s516, [#allocation18], 256, 256, 16
        $region40: #{conv5l_forward.1} parent=11 // pred_fallthru
          _
        // Predicated region
        $region41: #{conv5l_forward.1} parent=11 // pred_check
          %p522 = pneg %p242
        $region42: #{conv5l_forward.1} parent=11 // pred_check_branch
          %524 = sbr.rel (%p522) target = $region44
        $region43: #{conv5l_forward.1} parent=11 // pred_region
          %526 = vsyncadd [#allocation18], 0
          %s528 = sshll.u32 %s8, 4
          %s529 = int_to_ptr.hbm [resolvable:$true] %s528
          %s530 = sshll.u32 [#allocation19], 4
          %s531 = int_to_ptr.vmem [resolvable:$true] %s530
          %533 = dma.hbm_to_vmem [thread:$0]  %s529, 32, %s531, [#allocation18]
        $region44: #{conv5l_forward.1} parent=11 // pred_fallthru
          _
        // Predicated region
        $region45: #{conv5l_forward.1} parent=11 // pred_check
          %p534 = pneg %p263
        $region46: #{conv5l_forward.1} parent=11 // pred_check_branch
          %536 = sbr.rel (%p534) target = $region48
        $region47: #{conv5l_forward.1} parent=11 // pred_region
          %538 = vsyncadd [#allocation21], 0
          %s540 = sshll.u32 %s9, 4
          %s541 = int_to_ptr.hbm [resolvable:$true] %s540
          %s542 = sshll.u32 [#allocation20], 4
          %s543 = int_to_ptr.vmem [resolvable:$true] %s542
          %545 = dma.hbm_to_vmem [thread:$0]  %s541, 32, %s543, [#allocation21]
        $region48: #{conv5l_forward.1} parent=11 // pred_fallthru
          _
        // Predicated region
        $region49: #{conv5l_forward.1} parent=11 // pred_check
          %p546 = pneg %p284
        $region50: #{conv5l_forward.1} parent=11 // pred_check_branch
          %548 = sbr.rel (%p546) target = $region52
        $region51: #{conv5l_forward.1} parent=11 // pred_region
          %550 = vsyncadd [#allocation21], 0
          %s551 = sshll.u32 %s10, 4
          %s552 = int_to_ptr.hbm [resolvable:$true] %s551
          %s553 = sshll.u32 [#allocation22], 4
          %s554 = int_to_ptr.vmem [resolvable:$true] %s553
          %559 = dma.hbm_to_vmem [thread:$0]  %s552, 36864, %s554, [#allocation21], 128, 128, 8
        $region52: #{conv5l_forward.1} parent=11 // pred_fallthru
          _
        // Predicated region
        $region53: #{conv5l_forward.1} parent=11 // pred_check
          %p560 = pneg %p305
        $region54: #{conv5l_forward.1} parent=11 // pred_check_branch
          %562 = sbr.rel (%p560) target = $region56
        $region55: #{conv5l_forward.1} parent=11 // pred_region
          %564 = vsyncadd [#allocation24], 0
          %s566 = sshll.u32 %s11, 4
          %s567 = int_to_ptr.hbm [resolvable:$true] %s566
          %s568 = sshll.u32 [#allocation23], 4
          %s569 = int_to_ptr.vmem [resolvable:$true] %s568
          %571 = dma.hbm_to_vmem [thread:$0]  %s567, 16, %s569, [#allocation24]
        $region56: #{conv5l_forward.1} parent=11 // pred_fallthru
          _
        // Predicated region
        $region57: #{conv5l_forward.1} parent=11 // pred_check
          %p572 = pneg %p326
        $region58: #{conv5l_forward.1} parent=11 // pred_check_branch
          %574 = sbr.rel (%p572) target = $region60
        $region59: #{conv5l_forward.1} parent=11 // pred_region
          %576 = vsyncadd [#allocation24], 0
          %s578 = sshll.u32 %s12, 4
          %s579 = int_to_ptr.hbm [resolvable:$true] %s578
          %s580 = sshll.u32 [#allocation25], 4
          %s581 = int_to_ptr.vmem [resolvable:$true] %s580
          %583 = dma.hbm_to_vmem [thread:$0]  %s579, 16, %s581, [#allocation24]
        $region60: #{conv5l_forward.1} parent=11 // pred_fallthru
          _
        // Predicated region
        $region61: #{conv5l_forward.1} parent=11 // pred_check
          %p584 = pneg %p347
        $region62: #{conv5l_forward.1} parent=11 // pred_check_branch
          %586 = sbr.rel (%p584) target = $region64
        $region63: #{conv5l_forward.1} parent=11 // pred_region
          %588 = vsyncadd [#allocation27], 0
          %s589 = sshll.u32 %s13, 4
          %s590 = int_to_ptr.hbm [resolvable:$true] %s589
          %s591 = sshll.u32 [#allocation26], 4
          %s592 = int_to_ptr.vmem [resolvable:$true] %s591
          %597 = dma.hbm_to_vmem [thread:$0]  %s590, 2048, %s592, [#allocation27], 128, 128, 8
        $region64: #{conv5l_forward.1} parent=11 // pred_fallthru
          _
        // Predicated region
        $region65: #{conv5l_forward.1} parent=11 // pred_check
          %p598 = pneg %p368
        $region66: #{conv5l_forward.1} parent=11 // pred_check_branch
          %600 = sbr.rel (%p598) target = $region68
        $region67: #{conv5l_forward.1} parent=11 // pred_region
          %602 = vsyncadd [#allocation27], 0
          %s604 = sshll.u32 %s14, 4
          %s605 = int_to_ptr.hbm [resolvable:$true] %s604
          %s606 = sshll.u32 [#allocation28], 4
          %s607 = int_to_ptr.vmem [resolvable:$true] %s606
          %609 = dma.hbm_to_vmem [thread:$0]  %s605, 16, %s607, [#allocation27]
        $region68: #{conv5l_forward.1} parent=11 // pred_fallthru
          _
        // Predicated region
        $region69: #{conv5l_forward.1} parent=11 // pred_check
          %p610 = pneg %p389
        $region70: #{conv5l_forward.1} parent=11 // pred_check_branch
          %612 = sbr.rel (%p610) target = $region72
        $region71: #{conv5l_forward.1} parent=11 // pred_region
          %614 = vsyncadd [#allocation30], 0
          %s616 = sshll.u32 %s15, 4
          %s617 = int_to_ptr.hbm [resolvable:$true] %s616
          %s618 = sshll.u32 [#allocation29], 4
          %s619 = int_to_ptr.vmem [resolvable:$true] %s618
          %621 = dma.hbm_to_vmem [thread:$0]  %s617, 16, %s619, [#allocation30]
        $region72: #{conv5l_forward.1} parent=11 // pred_fallthru
          _
      $region12: #{conv5l_forward.1} parent=5 // pred_fallthru
        _
      %p622 = scmp.lt.s32.totalorder %s36, 4
      // Predicated region
      $region73: #{conv5l_forward.1} parent=5 // pred_check
        %p623 = pneg %p622
      $region74: #{conv5l_forward.1} parent=5 // pred_check_branch
        %625 = sbr.rel (%p623) target = $region76
      $region75: #{conv5l_forward.1} parent=5 // pred_region
        // Predicated region
        $region77: #{conv5l_forward.1} parent=75 // pred_check
          %p626 = pneg %p68
        $region78: #{conv5l_forward.1} parent=75 // pred_check_branch
          %628 = sbr.rel (%p626) target = $region80
        $region79: #{conv5l_forward.1} parent=75 // pred_region
          %s629 = sand.u32 %s58, 1
          %s630 = scalar_lea.sflag [#allocation6], %s629
          %s631 = sand.u32 %s58, 1
          %s632 = smul.addr %s631, 768
          %s633 = scalar_lea.vmem [#allocation5], %s632
          %635 = vsyncadd %s630, 0
          %s636 = smul.addr %s43, 96
          %s637 = smul.addr %s636, 8
          %s638 = scalar_lea.hbm %s0, %s637
          %s639 = sshll.u32 %s638, 4
          %s640 = int_to_ptr.hbm [resolvable:$true] %s639
          %s641 = sshll.u32 %s633, 4
          %s642 = int_to_ptr.vmem [resolvable:$true] %s641
          %647 = dma.hbm_to_vmem [thread:$0]  %s640, 12288, %s642, %s630, 384, 384, 24
        $region80: #{conv5l_forward.1} parent=75 // pred_fallthru
          _
      $region76: #{conv5l_forward.1} parent=5 // pred_fallthru
        _
      %p648 = scmp.le.s32.totalorder 1, %s36
      %p649 = scmp.lt.s32.totalorder %s36, 5
      %p650 = pnand %p648, %p649
      %p651 = pneg %p650
      // Predicated region
      $region81: #{conv5l_forward.1} parent=5 // pred_check
        _
      $region82: #{conv5l_forward.1} parent=5 // pred_check_branch
        %653 = sbr.rel (%p650) target = $region84
      $region83: #{conv5l_forward.1} parent=5 // pred_region
        %s654 = ssub.s32 %s36, 1
        %s655 = sand.u32 %s61, 1
        %s656 = scalar_lea.sflag [#allocation6], %s655
        %s657 = sand.u32 %s61, 1
        %s658 = smul.addr %s657, 768
        %s659 = scalar_lea.vmem [#allocation5], %s658
        // Predicated region
        $region85: #{conv5l_forward.1} parent=83 // pred_check
          %p660 = pneg %p74
        $region86: #{conv5l_forward.1} parent=83 // pred_check_branch
          %662 = sbr.rel (%p660) target = $region88
        $region87: #{conv5l_forward.1} parent=83 // pred_region
          %664 = dma.done %s656, 12288
        $region88: #{conv5l_forward.1} parent=83 // pred_fallthru
          _
        // Predicated region
        $region89: #{conv5l_forward.1} parent=83 // pred_check
          %p665 = pneg %p95
        $region90: #{conv5l_forward.1} parent=83 // pred_check_branch
          %667 = sbr.rel (%p665) target = $region92
        $region91: #{conv5l_forward.1} parent=83 // pred_region
          %669 = dma.done [#allocation9], 12288
        $region92: #{conv5l_forward.1} parent=83 // pred_fallthru
          _
        // Predicated region
        $region93: #{conv5l_forward.1} parent=83 // pred_check
          %p670 = pneg %p116
        $region94: #{conv5l_forward.1} parent=83 // pred_check_branch
          %672 = sbr.rel (%p670) target = $region96
        $region95: #{conv5l_forward.1} parent=83 // pred_region
          %674 = dma.done [#allocation9], 32
        $region96: #{conv5l_forward.1} parent=83 // pred_fallthru
          _
        // Predicated region
        $region97: #{conv5l_forward.1} parent=83 // pred_check
          %p675 = pneg %p137
        $region98: #{conv5l_forward.1} parent=83 // pred_check_branch
          %677 = sbr.rel (%p675) target = $region100
        $region99: #{conv5l_forward.1} parent=83 // pred_region
          %679 = dma.done [#allocation12], 32
        $region100: #{conv5l_forward.1} parent=83 // pred_fallthru
          _
        // Predicated region
        $region101: #{conv5l_forward.1} parent=83 // pred_check
          %p680 = pneg %p158
        $region102: #{conv5l_forward.1} parent=83 // pred_check_branch
          %682 = sbr.rel (%p680) target = $region104
        $region103: #{conv5l_forward.1} parent=83 // pred_region
          %684 = dma.done [#allocation12], 36864
        $region104: #{conv5l_forward.1} parent=83 // pred_fallthru
          _
        // Predicated region
        $region105: #{conv5l_forward.1} parent=83 // pred_check
          %p685 = pneg %p179
        $region106: #{conv5l_forward.1} parent=83 // pred_check_branch
          %687 = sbr.rel (%p685) target = $region108
        $region107: #{conv5l_forward.1} parent=83 // pred_region
          %689 = dma.done [#allocation15], 16
        $region108: #{conv5l_forward.1} parent=83 // pred_fallthru
          _
        // Predicated region
        $region109: #{conv5l_forward.1} parent=83 // pred_check
          %p690 = pneg %p200
        $region110: #{conv5l_forward.1} parent=83 // pred_check_branch
          %692 = sbr.rel (%p690) target = $region112
        $region111: #{conv5l_forward.1} parent=83 // pred_region
          %694 = dma.done [#allocation15], 16
        $region112: #{conv5l_forward.1} parent=83 // pred_fallthru
          _
        // Predicated region
        $region113: #{conv5l_forward.1} parent=83 // pred_check
          %p695 = pneg %p221
        $region114: #{conv5l_forward.1} parent=83 // pred_check_branch
          %697 = sbr.rel (%p695) target = $region116
        $region115: #{conv5l_forward.1} parent=83 // pred_region
          %699 = dma.done [#allocation18], 4096
        $region116: #{conv5l_forward.1} parent=83 // pred_fallthru
          _
        // Predicated region
        $region117: #{conv5l_forward.1} parent=83 // pred_check
          %p700 = pneg %p242
        $region118: #{conv5l_forward.1} parent=83 // pred_check_branch
          %702 = sbr.rel (%p700) target = $region120
        $region119: #{conv5l_forward.1} parent=83 // pred_region
          %704 = dma.done [#allocation18], 32
        $region120: #{conv5l_forward.1} parent=83 // pred_fallthru
          _
        // Predicated region
        $region121: #{conv5l_forward.1} parent=83 // pred_check
          %p705 = pneg %p263
        $region122: #{conv5l_forward.1} parent=83 // pred_check_branch
          %707 = sbr.rel (%p705) target = $region124
        $region123: #{conv5l_forward.1} parent=83 // pred_region
          %709 = dma.done [#allocation21], 32
        $region124: #{conv5l_forward.1} parent=83 // pred_fallthru
          _
        // Predicated region
        $region125: #{conv5l_forward.1} parent=83 // pred_check
          %p710 = pneg %p284
        $region126: #{conv5l_forward.1} parent=83 // pred_check_branch
          %712 = sbr.rel (%p710) target = $region128
        $region127: #{conv5l_forward.1} parent=83 // pred_region
          %714 = dma.done [#allocation21], 36864
        $region128: #{conv5l_forward.1} parent=83 // pred_fallthru
          _
        // Predicated region
        $region129: #{conv5l_forward.1} parent=83 // pred_check
          %p715 = pneg %p305
        $region130: #{conv5l_forward.1} parent=83 // pred_check_branch
          %717 = sbr.rel (%p715) target = $region132
        $region131: #{conv5l_forward.1} parent=83 // pred_region
          %719 = dma.done [#allocation24], 16
        $region132: #{conv5l_forward.1} parent=83 // pred_fallthru
          _
        // Predicated region
        $region133: #{conv5l_forward.1} parent=83 // pred_check
          %p720 = pneg %p326
        $region134: #{conv5l_forward.1} parent=83 // pred_check_branch
          %722 = sbr.rel (%p720) target = $region136
        $region135: #{conv5l_forward.1} parent=83 // pred_region
          %724 = dma.done [#allocation24], 16
        $region136: #{conv5l_forward.1} parent=83 // pred_fallthru
          _
        // Predicated region
        $region137: #{conv5l_forward.1} parent=83 // pred_check
          %p725 = pneg %p347
        $region138: #{conv5l_forward.1} parent=83 // pred_check_branch
          %727 = sbr.rel (%p725) target = $region140
        $region139: #{conv5l_forward.1} parent=83 // pred_region
          %729 = dma.done [#allocation27], 2048
        $region140: #{conv5l_forward.1} parent=83 // pred_fallthru
          _
        // Predicated region
        $region141: #{conv5l_forward.1} parent=83 // pred_check
          %p730 = pneg %p368
        $region142: #{conv5l_forward.1} parent=83 // pred_check_branch
          %732 = sbr.rel (%p730) target = $region144
        $region143: #{conv5l_forward.1} parent=83 // pred_region
          %734 = dma.done [#allocation27], 16
        $region144: #{conv5l_forward.1} parent=83 // pred_fallthru
          _
        // Predicated region
        $region145: #{conv5l_forward.1} parent=83 // pred_check
          %p735 = pneg %p389
        $region146: #{conv5l_forward.1} parent=83 // pred_check_branch
          %737 = sbr.rel (%p735) target = $region148
        $region147: #{conv5l_forward.1} parent=83 // pred_region
          %739 = dma.done [#allocation30], 16
        $region148: #{conv5l_forward.1} parent=83 // pred_fallthru
          _
        %s740 = sand.u32 %s61, 1
        %s741 = scalar_lea.sflag [#allocation6], %s740
        %s742 = sand.u32 %s61, 1
        %s743 = smul.addr %s742, 768
        %s744 = scalar_lea.vmem [#allocation5], %s743
        %p745 = pneg %p74
        %p746 = pneg %p71
        %p747 = pneg %p95
        %p748 = pneg %p92
        %p749 = pneg %p116
        %p750 = pneg %p113
        %p751 = pneg %p137
        %p752 = pneg %p134
        %p753 = pneg %p158
        %p754 = pneg %p155
        %p755 = pneg %p179
        %p756 = pneg %p176
        %p757 = pneg %p200
        %p758 = pneg %p197
        %p759 = pneg %p221
        %p760 = pneg %p218
        %p761 = pneg %p242
        %p762 = pneg %p239
        %p763 = pneg %p263
        %p764 = pneg %p260
        %p765 = pneg %p284
        %p766 = pneg %p281
        %p767 = pneg %p305
        %p768 = pneg %p302
        %p769 = pneg %p326
        %p770 = pneg %p323
        %p771 = pneg %p347
        %p772 = pneg %p344
        %p773 = pneg %p368
        %p774 = pneg %p365
        %p775 = pneg %p389
        %p776 = pneg %p386
        %p777 = pneg %p417
        %p778 = pneg %p414
        %s779 = sand.u32 %s404, 1
        %s780 = scalar_lea.sflag [#allocation7], %s779
        %s781 = sand.u32 %s404, 1
        %s782 = smul.addr %s781, 128
        %s783 = scalar_lea.vmem [#allocation31], %s782
        %s784 = smul.u32 8, %s46
        %s785 = smul.u32 %s46, 8
        %p786 = scmp.eq.s32.totalorder %s46, 0
        // Predicated region
        $region149: #{conv5l_forward.1} parent=83 // pred_check
          %p787 = pneg %p786
        $region150: #{conv5l_forward.1} parent=83 // pred_check_branch
          %789 = sbr.rel (%p787) target = $region152
        $region151: #{conv5l_forward.1} parent=83 // pred_region
          %v790 = vld [vmem:[%s659] sm:$0xff]
          %v791 = vld [vmem:[%s659 + $0x8] sm:$0xff]
          %v792 = vld [vmem:[%s659 + $0x10] sm:$0xff]
          %v793 = vld [vmem:[%s659 + $0x18] sm:$0xff]
          %v794 = vld [vmem:[%s659 + $0x20] sm:$0xff]
          %v795 = vld [vmem:[%s659 + $0x28] sm:$0xff]
          %v796 = vld [vmem:[%s659 + $0x30] sm:$0xff]
          %v797 = vld [vmem:[%s659 + $0x38] sm:$0xff]
          %v798 = vld [vmem:[%s659 + $0x40] sm:$0xff]
          %v799 = vld [vmem:[%s659 + $0x48] sm:$0xff]
          %v800 = vld [vmem:[%s659 + $0x50] sm:$0xff]
          %v801 = vld [vmem:[%s659 + $0x58] sm:$0xff]
          %v802 = vld [vmem:[%s659 + $0x60] sm:$0xff]
          %v803 = vld [vmem:[%s659 + $0x68] sm:$0xff]
          %v804 = vld [vmem:[%s659 + $0x70] sm:$0xff]
          %v805 = vld [vmem:[%s659 + $0x78] sm:$0xff]
          %v806 = vld [vmem:[%s659 + $0x80] sm:$0xff]
          %v807 = vld [vmem:[%s659 + $0x88] sm:$0xff]
          %v808 = vld [vmem:[%s659 + $0x90] sm:$0xff]
          %v809 = vld [vmem:[%s659 + $0x98] sm:$0xff]
          %v810 = vld [vmem:[%s659 + $0xa0] sm:$0xff]
          %v811 = vld [vmem:[%s659 + $0xa8] sm:$0xff]
          %v812 = vld [vmem:[%s659 + $0xb0] sm:$0xff]
          %v813 = vld [vmem:[%s659 + $0xb8] sm:$0xff]
          %v814 = vld [vmem:[%s659 + $0xc0] sm:$0xff]
          %v815 = vld [vmem:[%s659 + $0xc8] sm:$0xff]
          %v816 = vld [vmem:[%s659 + $0xd0] sm:$0xff]
          %v817 = vld [vmem:[%s659 + $0xd8] sm:$0xff]
          %v818 = vld [vmem:[%s659 + $0xe0] sm:$0xff]
          %v819 = vld [vmem:[%s659 + $0xe8] sm:$0xff]
          %v820 = vld [vmem:[%s659 + $0xf0] sm:$0xff]
          %v821 = vld [vmem:[%s659 + $0xf8] sm:$0xff]
          %v822 = vld [vmem:[%s659 + $0x100] sm:$0xff]
          %v823 = vld [vmem:[%s659 + $0x108] sm:$0xff]
          %v824 = vld [vmem:[%s659 + $0x110] sm:$0xff]
          %v825 = vld [vmem:[%s659 + $0x118] sm:$0xff]
          %v826 = vld [vmem:[%s659 + $0x120] sm:$0xff]
          %v827 = vld [vmem:[%s659 + $0x128] sm:$0xff]
          %v828 = vld [vmem:[%s659 + $0x130] sm:$0xff]
          %v829 = vld [vmem:[%s659 + $0x138] sm:$0xff]
          %v830 = vld [vmem:[%s659 + $0x140] sm:$0xff]
          %v831 = vld [vmem:[%s659 + $0x148] sm:$0xff]
          %v832 = vld [vmem:[%s659 + $0x150] sm:$0xff]
          %v833 = vld [vmem:[%s659 + $0x158] sm:$0xff]
          %v834 = vld [vmem:[%s659 + $0x160] sm:$0xff]
          %v835 = vld [vmem:[%s659 + $0x168] sm:$0xff]
          %v836 = vld [vmem:[%s659 + $0x170] sm:$0xff]
          %v837 = vld [vmem:[%s659 + $0x178] sm:$0xff]
          %v838 = vld [vmem:[%s659 + $0x180] sm:$0xff]
          %v839 = vld [vmem:[%s659 + $0x188] sm:$0xff]
          %v840 = vld [vmem:[%s659 + $0x190] sm:$0xff]
          %v841 = vld [vmem:[%s659 + $0x198] sm:$0xff]
          %v842 = vld [vmem:[%s659 + $0x1a0] sm:$0xff]
          %v843 = vld [vmem:[%s659 + $0x1a8] sm:$0xff]
          %v844 = vld [vmem:[%s659 + $0x1b0] sm:$0xff]
          %v845 = vld [vmem:[%s659 + $0x1b8] sm:$0xff]
          %v846 = vld [vmem:[%s659 + $0x1c0] sm:$0xff]
          %v847 = vld [vmem:[%s659 + $0x1c8] sm:$0xff]
          %v848 = vld [vmem:[%s659 + $0x1d0] sm:$0xff]
          %v849 = vld [vmem:[%s659 + $0x1d8] sm:$0xff]
          %s850 = scalar_lea.vmem [#allocation2], 96
          %851 = vst [vmem:[%s850] sm:$0xff] %v790
          %852 = vst [vmem:[%s850 + $0x8] sm:$0xff] %v791
          %853 = vst [vmem:[%s850 + $0x10] sm:$0xff] %v792
          %854 = vst [vmem:[%s850 + $0x18] sm:$0xff] %v793
          %855 = vst [vmem:[%s850 + $0x20] sm:$0xff] %v794
          %856 = vst [vmem:[%s850 + $0x28] sm:$0xff] %v795
          %857 = vst [vmem:[%s850 + $0x30] sm:$0xff] %v796
          %858 = vst [vmem:[%s850 + $0x38] sm:$0xff] %v797
          %859 = vst [vmem:[%s850 + $0x40] sm:$0xff] %v798
          %860 = vst [vmem:[%s850 + $0x48] sm:$0xff] %v799
          %861 = vst [vmem:[%s850 + $0x50] sm:$0xff] %v800
          %862 = vst [vmem:[%s850 + $0x58] sm:$0xff] %v801
          %863 = vst [vmem:[%s850 + $0x60] sm:$0xff] %v802
          %864 = vst [vmem:[%s850 + $0x68] sm:$0xff] %v803
          %865 = vst [vmem:[%s850 + $0x70] sm:$0xff] %v804
          %866 = vst [vmem:[%s850 + $0x78] sm:$0xff] %v805
          %867 = vst [vmem:[%s850 + $0x80] sm:$0xff] %v806
          %868 = vst [vmem:[%s850 + $0x88] sm:$0xff] %v807
          %869 = vst [vmem:[%s850 + $0x90] sm:$0xff] %v808
          %870 = vst [vmem:[%s850 + $0x98] sm:$0xff] %v809
          %871 = vst [vmem:[%s850 + $0xa0] sm:$0xff] %v810
          %872 = vst [vmem:[%s850 + $0xa8] sm:$0xff] %v811
          %873 = vst [vmem:[%s850 + $0xb0] sm:$0xff] %v812
          %874 = vst [vmem:[%s850 + $0xb8] sm:$0xff] %v813
          %875 = vst [vmem:[%s850 + $0xc0] sm:$0xff] %v814
          %876 = vst [vmem:[%s850 + $0xc8] sm:$0xff] %v815
          %877 = vst [vmem:[%s850 + $0xd0] sm:$0xff] %v816
          %878 = vst [vmem:[%s850 + $0xd8] sm:$0xff] %v817
          %879 = vst [vmem:[%s850 + $0xe0] sm:$0xff] %v818
          %880 = vst [vmem:[%s850 + $0xe8] sm:$0xff] %v819
          %881 = vst [vmem:[%s850 + $0xf0] sm:$0xff] %v820
          %882 = vst [vmem:[%s850 + $0xf8] sm:$0xff] %v821
          %883 = vst [vmem:[%s850 + $0x100] sm:$0xff] %v822
          %884 = vst [vmem:[%s850 + $0x108] sm:$0xff] %v823
          %885 = vst [vmem:[%s850 + $0x110] sm:$0xff] %v824
          %886 = vst [vmem:[%s850 + $0x118] sm:$0xff] %v825
          %887 = vst [vmem:[%s850 + $0x120] sm:$0xff] %v826
          %888 = vst [vmem:[%s850 + $0x128] sm:$0xff] %v827
          %889 = vst [vmem:[%s850 + $0x130] sm:$0xff] %v828
          %890 = vst [vmem:[%s850 + $0x138] sm:$0xff] %v829
          %891 = vst [vmem:[%s850 + $0x140] sm:$0xff] %v830
          %892 = vst [vmem:[%s850 + $0x148] sm:$0xff] %v831
          %893 = vst [vmem:[%s850 + $0x150] sm:$0xff] %v832
          %894 = vst [vmem:[%s850 + $0x158] sm:$0xff] %v833
          %895 = vst [vmem:[%s850 + $0x160] sm:$0xff] %v834
          %896 = vst [vmem:[%s850 + $0x168] sm:$0xff] %v835
          %897 = vst [vmem:[%s850 + $0x170] sm:$0xff] %v836
          %898 = vst [vmem:[%s850 + $0x178] sm:$0xff] %v837
          %899 = vst [vmem:[%s850 + $0x180] sm:$0xff] %v838
          %900 = vst [vmem:[%s850 + $0x188] sm:$0xff] %v839
          %901 = vst [vmem:[%s850 + $0x190] sm:$0xff] %v840
          %902 = vst [vmem:[%s850 + $0x198] sm:$0xff] %v841
          %903 = vst [vmem:[%s850 + $0x1a0] sm:$0xff] %v842
          %904 = vst [vmem:[%s850 + $0x1a8] sm:$0xff] %v843
          %905 = vst [vmem:[%s850 + $0x1b0] sm:$0xff] %v844
          %906 = vst [vmem:[%s850 + $0x1b8] sm:$0xff] %v845
          %907 = vst [vmem:[%s850 + $0x1c0] sm:$0xff] %v846
          %908 = vst [vmem:[%s850 + $0x1c8] sm:$0xff] %v847
          %909 = vst [vmem:[%s850 + $0x1d0] sm:$0xff] %v848
          %910 = vst [vmem:[%s850 + $0x1d8] sm:$0xff] %v849
        $region152: #{conv5l_forward.1} parent=83 // pred_fallthru
          _
        %p911 = scmp.gt.s32.totalorder %s46, 0
        %p912 = scmp.lt.s32.totalorder %s46, 1
        %p913 = pnand %p911, %p912
        %p914 = pneg %p913
        // Predicated region
        $region153: #{conv5l_forward.1} parent=83 // pred_check
          _
        $region154: #{conv5l_forward.1} parent=83 // pred_check_branch
          %916 = sbr.rel (%p913) target = $region156
        $region155: #{conv5l_forward.1} parent=83 // pred_region
          %s917 = ssub.s32 %s785, 2
          %s918 = smul.u32 %s917, 6
          %s919 = smul.addr %s918, 8
          %s920 = scalar_lea.vmem %s659, %s919 [#allocation5]
          %v921 = vld [vmem:[%s920] sm:$0xff]
          %v922 = vld [vmem:[%s920 + $0x8] sm:$0xff]
          %v923 = vld [vmem:[%s920 + $0x10] sm:$0xff]
          %v924 = vld [vmem:[%s920 + $0x18] sm:$0xff]
          %v925 = vld [vmem:[%s920 + $0x20] sm:$0xff]
          %v926 = vld [vmem:[%s920 + $0x28] sm:$0xff]
          %v927 = vld [vmem:[%s920 + $0x30] sm:$0xff]
          %v928 = vld [vmem:[%s920 + $0x38] sm:$0xff]
          %v929 = vld [vmem:[%s920 + $0x40] sm:$0xff]
          %v930 = vld [vmem:[%s920 + $0x48] sm:$0xff]
          %v931 = vld [vmem:[%s920 + $0x50] sm:$0xff]
          %v932 = vld [vmem:[%s920 + $0x58] sm:$0xff]
          %v933 = vld [vmem:[%s920 + $0x60] sm:$0xff]
          %v934 = vld [vmem:[%s920 + $0x68] sm:$0xff]
          %v935 = vld [vmem:[%s920 + $0x70] sm:$0xff]
          %v936 = vld [vmem:[%s920 + $0x78] sm:$0xff]
          %v937 = vld [vmem:[%s920 + $0x80] sm:$0xff]
          %v938 = vld [vmem:[%s920 + $0x88] sm:$0xff]
          %v939 = vld [vmem:[%s920 + $0x90] sm:$0xff]
          %v940 = vld [vmem:[%s920 + $0x98] sm:$0xff]
          %v941 = vld [vmem:[%s920 + $0xa0] sm:$0xff]
          %v942 = vld [vmem:[%s920 + $0xa8] sm:$0xff]
          %v943 = vld [vmem:[%s920 + $0xb0] sm:$0xff]
          %v944 = vld [vmem:[%s920 + $0xb8] sm:$0xff]
          %v945 = vld [vmem:[%s920 + $0xc0] sm:$0xff]
          %v946 = vld [vmem:[%s920 + $0xc8] sm:$0xff]
          %v947 = vld [vmem:[%s920 + $0xd0] sm:$0xff]
          %v948 = vld [vmem:[%s920 + $0xd8] sm:$0xff]
          %v949 = vld [vmem:[%s920 + $0xe0] sm:$0xff]
          %v950 = vld [vmem:[%s920 + $0xe8] sm:$0xff]
          %v951 = vld [vmem:[%s920 + $0xf0] sm:$0xff]
          %v952 = vld [vmem:[%s920 + $0xf8] sm:$0xff]
          %v953 = vld [vmem:[%s920 + $0x100] sm:$0xff]
          %v954 = vld [vmem:[%s920 + $0x108] sm:$0xff]
          %v955 = vld [vmem:[%s920 + $0x110] sm:$0xff]
          %v956 = vld [vmem:[%s920 + $0x118] sm:$0xff]
          %v957 = vld [vmem:[%s920 + $0x120] sm:$0xff]
          %v958 = vld [vmem:[%s920 + $0x128] sm:$0xff]
          %v959 = vld [vmem:[%s920 + $0x130] sm:$0xff]
          %v960 = vld [vmem:[%s920 + $0x138] sm:$0xff]
          %v961 = vld [vmem:[%s920 + $0x140] sm:$0xff]
          %v962 = vld [vmem:[%s920 + $0x148] sm:$0xff]
          %v963 = vld [vmem:[%s920 + $0x150] sm:$0xff]
          %v964 = vld [vmem:[%s920 + $0x158] sm:$0xff]
          %v965 = vld [vmem:[%s920 + $0x160] sm:$0xff]
          %v966 = vld [vmem:[%s920 + $0x168] sm:$0xff]
          %v967 = vld [vmem:[%s920 + $0x170] sm:$0xff]
          %v968 = vld [vmem:[%s920 + $0x178] sm:$0xff]
          %v969 = vld [vmem:[%s920 + $0x180] sm:$0xff]
          %v970 = vld [vmem:[%s920 + $0x188] sm:$0xff]
          %v971 = vld [vmem:[%s920 + $0x190] sm:$0xff]
          %v972 = vld [vmem:[%s920 + $0x198] sm:$0xff]
          %v973 = vld [vmem:[%s920 + $0x1a0] sm:$0xff]
          %v974 = vld [vmem:[%s920 + $0x1a8] sm:$0xff]
          %v975 = vld [vmem:[%s920 + $0x1b0] sm:$0xff]
          %v976 = vld [vmem:[%s920 + $0x1b8] sm:$0xff]
          %v977 = vld [vmem:[%s920 + $0x1c0] sm:$0xff]
          %v978 = vld [vmem:[%s920 + $0x1c8] sm:$0xff]
          %v979 = vld [vmem:[%s920 + $0x1d0] sm:$0xff]
          %v980 = vld [vmem:[%s920 + $0x1d8] sm:$0xff]
          %v981 = vld [vmem:[%s920 + $0x1e0] sm:$0xff]
          %v982 = vld [vmem:[%s920 + $0x1e8] sm:$0xff]
          %v983 = vld [vmem:[%s920 + $0x1f0] sm:$0xff]
          %v984 = vld [vmem:[%s920 + $0x1f8] sm:$0xff]
          %v985 = vld [vmem:[%s920 + $0x200] sm:$0xff]
          %v986 = vld [vmem:[%s920 + $0x208] sm:$0xff]
          %v987 = vld [vmem:[%s920 + $0x210] sm:$0xff]
          %v988 = vld [vmem:[%s920 + $0x218] sm:$0xff]
          %v989 = vld [vmem:[%s920 + $0x220] sm:$0xff]
          %v990 = vld [vmem:[%s920 + $0x228] sm:$0xff]
          %v991 = vld [vmem:[%s920 + $0x230] sm:$0xff]
          %v992 = vld [vmem:[%s920 + $0x238] sm:$0xff]
          %993 = vst [vmem:[#allocation2] sm:$0xff] %v921
          %994 = vst [vmem:[#allocation2 + $0x8] sm:$0xff] %v922
          %995 = vst [vmem:[#allocation2 + $0x10] sm:$0xff] %v923
          %996 = vst [vmem:[#allocation2 + $0x18] sm:$0xff] %v924
          %997 = vst [vmem:[#allocation2 + $0x20] sm:$0xff] %v925
          %998 = vst [vmem:[#allocation2 + $0x28] sm:$0xff] %v926
          %999 = vst [vmem:[#allocation2 + $0x30] sm:$0xff] %v927
          %1000 = vst [vmem:[#allocation2 + $0x38] sm:$0xff] %v928
          %1001 = vst [vmem:[#allocation2 + $0x40] sm:$0xff] %v929
          %1002 = vst [vmem:[#allocation2 + $0x48] sm:$0xff] %v930
          %1003 = vst [vmem:[#allocation2 + $0x50] sm:$0xff] %v931
          %1004 = vst [vmem:[#allocation2 + $0x58] sm:$0xff] %v932
          %1005 = vst [vmem:[#allocation2 + $0x60] sm:$0xff] %v933
          %1006 = vst [vmem:[#allocation2 + $0x68] sm:$0xff] %v934
          %1007 = vst [vmem:[#allocation2 + $0x70] sm:$0xff] %v935
          %1008 = vst [vmem:[#allocation2 + $0x78] sm:$0xff] %v936
          %1009 = vst [vmem:[#allocation2 + $0x80] sm:$0xff] %v937
          %1010 = vst [vmem:[#allocation2 + $0x88] sm:$0xff] %v938
          %1011 = vst [vmem:[#allocation2 + $0x90] sm:$0xff] %v939
          %1012 = vst [vmem:[#allocation2 + $0x98] sm:$0xff] %v940
          %1013 = vst [vmem:[#allocation2 + $0xa0] sm:$0xff] %v941
          %1014 = vst [vmem:[#allocation2 + $0xa8] sm:$0xff] %v942
          %1015 = vst [vmem:[#allocation2 + $0xb0] sm:$0xff] %v943
          %1016 = vst [vmem:[#allocation2 + $0xb8] sm:$0xff] %v944
          %1017 = vst [vmem:[#allocation2 + $0xc0] sm:$0xff] %v945
          %1018 = vst [vmem:[#allocation2 + $0xc8] sm:$0xff] %v946
          %1019 = vst [vmem:[#allocation2 + $0xd0] sm:$0xff] %v947
          %1020 = vst [vmem:[#allocation2 + $0xd8] sm:$0xff] %v948
          %1021 = vst [vmem:[#allocation2 + $0xe0] sm:$0xff] %v949
          %1022 = vst [vmem:[#allocation2 + $0xe8] sm:$0xff] %v950
          %1023 = vst [vmem:[#allocation2 + $0xf0] sm:$0xff] %v951
          %1024 = vst [vmem:[#allocation2 + $0xf8] sm:$0xff] %v952
          %1025 = vst [vmem:[#allocation2 + $0x100] sm:$0xff] %v953
          %1026 = vst [vmem:[#allocation2 + $0x108] sm:$0xff] %v954
          %1027 = vst [vmem:[#allocation2 + $0x110] sm:$0xff] %v955
          %1028 = vst [vmem:[#allocation2 + $0x118] sm:$0xff] %v956
          %1029 = vst [vmem:[#allocation2 + $0x120] sm:$0xff] %v957
          %1030 = vst [vmem:[#allocation2 + $0x128] sm:$0xff] %v958
          %1031 = vst [vmem:[#allocation2 + $0x130] sm:$0xff] %v959
          %1032 = vst [vmem:[#allocation2 + $0x138] sm:$0xff] %v960
          %1033 = vst [vmem:[#allocation2 + $0x140] sm:$0xff] %v961
          %1034 = vst [vmem:[#allocation2 + $0x148] sm:$0xff] %v962
          %1035 = vst [vmem:[#allocation2 + $0x150] sm:$0xff] %v963
          %1036 = vst [vmem:[#allocation2 + $0x158] sm:$0xff] %v964
          %1037 = vst [vmem:[#allocation2 + $0x160] sm:$0xff] %v965
          %1038 = vst [vmem:[#allocation2 + $0x168] sm:$0xff] %v966
          %1039 = vst [vmem:[#allocation2 + $0x170] sm:$0xff] %v967
          %1040 = vst [vmem:[#allocation2 + $0x178] sm:$0xff] %v968
          %1041 = vst [vmem:[#allocation2 + $0x180] sm:$0xff] %v969
          %1042 = vst [vmem:[#allocation2 + $0x188] sm:$0xff] %v970
          %1043 = vst [vmem:[#allocation2 + $0x190] sm:$0xff] %v971
          %1044 = vst [vmem:[#allocation2 + $0x198] sm:$0xff] %v972
          %1045 = vst [vmem:[#allocation2 + $0x1a0] sm:$0xff] %v973
          %1046 = vst [vmem:[#allocation2 + $0x1a8] sm:$0xff] %v974
          %1047 = vst [vmem:[#allocation2 + $0x1b0] sm:$0xff] %v975
          %1048 = vst [vmem:[#allocation2 + $0x1b8] sm:$0xff] %v976
          %1049 = vst [vmem:[#allocation2 + $0x1c0] sm:$0xff] %v977
          %1050 = vst [vmem:[#allocation2 + $0x1c8] sm:$0xff] %v978
          %1051 = vst [vmem:[#allocation2 + $0x1d0] sm:$0xff] %v979
          %1052 = vst [vmem:[#allocation2 + $0x1d8] sm:$0xff] %v980
          %1053 = vst [vmem:[#allocation2 + $0x1e0] sm:$0xff] %v981
          %1054 = vst [vmem:[#allocation2 + $0x1e8] sm:$0xff] %v982
          %1055 = vst [vmem:[#allocation2 + $0x1f0] sm:$0xff] %v983
          %1056 = vst [vmem:[#allocation2 + $0x1f8] sm:$0xff] %v984
          %1057 = vst [vmem:[#allocation2 + $0x200] sm:$0xff] %v985
          %1058 = vst [vmem:[#allocation2 + $0x208] sm:$0xff] %v986
          %1059 = vst [vmem:[#allocation2 + $0x210] sm:$0xff] %v987
          %1060 = vst [vmem:[#allocation2 + $0x218] sm:$0xff] %v988
          %1061 = vst [vmem:[#allocation2 + $0x220] sm:$0xff] %v989
          %1062 = vst [vmem:[#allocation2 + $0x228] sm:$0xff] %v990
          %1063 = vst [vmem:[#allocation2 + $0x230] sm:$0xff] %v991
          %1064 = vst [vmem:[#allocation2 + $0x238] sm:$0xff] %v992
        $region156: #{conv5l_forward.1} parent=83 // pred_fallthru
          _
        %p1065 = scmp.eq.s32.totalorder %s46, 1
        // Predicated region
        $region157: #{conv5l_forward.1} parent=83 // pred_check
          %p1066 = pneg %p1065
        $region158: #{conv5l_forward.1} parent=83 // pred_check_branch
          %1068 = sbr.rel (%p1066) target = $region160
        $region159: #{conv5l_forward.1} parent=83 // pred_region
          %s1069 = ssub.s32 %s785, 2
          %s1070 = smul.u32 %s1069, 6
          %s1071 = smul.addr %s1070, 8
          %s1072 = scalar_lea.vmem %s659, %s1071 [#allocation5]
          %v1073 = vld [vmem:[%s1072] sm:$0xff]
          %v1074 = vld [vmem:[%s1072 + $0x8] sm:$0xff]
          %v1075 = vld [vmem:[%s1072 + $0x10] sm:$0xff]
          %v1076 = vld [vmem:[%s1072 + $0x18] sm:$0xff]
          %v1077 = vld [vmem:[%s1072 + $0x20] sm:$0xff]
          %v1078 = vld [vmem:[%s1072 + $0x28] sm:$0xff]
          %v1079 = vld [vmem:[%s1072 + $0x30] sm:$0xff]
          %v1080 = vld [vmem:[%s1072 + $0x38] sm:$0xff]
          %v1081 = vld [vmem:[%s1072 + $0x40] sm:$0xff]
          %v1082 = vld [vmem:[%s1072 + $0x48] sm:$0xff]
          %v1083 = vld [vmem:[%s1072 + $0x50] sm:$0xff]
          %v1084 = vld [vmem:[%s1072 + $0x58] sm:$0xff]
          %v1085 = vld [vmem:[%s1072 + $0x60] sm:$0xff]
          %v1086 = vld [vmem:[%s1072 + $0x68] sm:$0xff]
          %v1087 = vld [vmem:[%s1072 + $0x70] sm:$0xff]
          %v1088 = vld [vmem:[%s1072 + $0x78] sm:$0xff]
          %v1089 = vld [vmem:[%s1072 + $0x80] sm:$0xff]
          %v1090 = vld [vmem:[%s1072 + $0x88] sm:$0xff]
          %v1091 = vld [vmem:[%s1072 + $0x90] sm:$0xff]
          %v1092 = vld [vmem:[%s1072 + $0x98] sm:$0xff]
          %v1093 = vld [vmem:[%s1072 + $0xa0] sm:$0xff]
          %v1094 = vld [vmem:[%s1072 + $0xa8] sm:$0xff]
          %v1095 = vld [vmem:[%s1072 + $0xb0] sm:$0xff]
          %v1096 = vld [vmem:[%s1072 + $0xb8] sm:$0xff]
          %v1097 = vld [vmem:[%s1072 + $0xc0] sm:$0xff]
          %v1098 = vld [vmem:[%s1072 + $0xc8] sm:$0xff]
          %v1099 = vld [vmem:[%s1072 + $0xd0] sm:$0xff]
          %v1100 = vld [vmem:[%s1072 + $0xd8] sm:$0xff]
          %v1101 = vld [vmem:[%s1072 + $0xe0] sm:$0xff]
          %v1102 = vld [vmem:[%s1072 + $0xe8] sm:$0xff]
          %v1103 = vld [vmem:[%s1072 + $0xf0] sm:$0xff]
          %v1104 = vld [vmem:[%s1072 + $0xf8] sm:$0xff]
          %v1105 = vld [vmem:[%s1072 + $0x100] sm:$0xff]
          %v1106 = vld [vmem:[%s1072 + $0x108] sm:$0xff]
          %v1107 = vld [vmem:[%s1072 + $0x110] sm:$0xff]
          %v1108 = vld [vmem:[%s1072 + $0x118] sm:$0xff]
          %v1109 = vld [vmem:[%s1072 + $0x120] sm:$0xff]
          %v1110 = vld [vmem:[%s1072 + $0x128] sm:$0xff]
          %v1111 = vld [vmem:[%s1072 + $0x130] sm:$0xff]
          %v1112 = vld [vmem:[%s1072 + $0x138] sm:$0xff]
          %v1113 = vld [vmem:[%s1072 + $0x140] sm:$0xff]
          %v1114 = vld [vmem:[%s1072 + $0x148] sm:$0xff]
          %v1115 = vld [vmem:[%s1072 + $0x150] sm:$0xff]
          %v1116 = vld [vmem:[%s1072 + $0x158] sm:$0xff]
          %v1117 = vld [vmem:[%s1072 + $0x160] sm:$0xff]
          %v1118 = vld [vmem:[%s1072 + $0x168] sm:$0xff]
          %v1119 = vld [vmem:[%s1072 + $0x170] sm:$0xff]
          %v1120 = vld [vmem:[%s1072 + $0x178] sm:$0xff]
          %v1121 = vld [vmem:[%s1072 + $0x180] sm:$0xff]
          %v1122 = vld [vmem:[%s1072 + $0x188] sm:$0xff]
          %v1123 = vld [vmem:[%s1072 + $0x190] sm:$0xff]
          %v1124 = vld [vmem:[%s1072 + $0x198] sm:$0xff]
          %v1125 = vld [vmem:[%s1072 + $0x1a0] sm:$0xff]
          %v1126 = vld [vmem:[%s1072 + $0x1a8] sm:$0xff]
          %v1127 = vld [vmem:[%s1072 + $0x1b0] sm:$0xff]
          %v1128 = vld [vmem:[%s1072 + $0x1b8] sm:$0xff]
          %v1129 = vld [vmem:[%s1072 + $0x1c0] sm:$0xff]
          %v1130 = vld [vmem:[%s1072 + $0x1c8] sm:$0xff]
          %v1131 = vld [vmem:[%s1072 + $0x1d0] sm:$0xff]
          %v1132 = vld [vmem:[%s1072 + $0x1d8] sm:$0xff]
          %1133 = vst [vmem:[#allocation2] sm:$0xff] %v1073
          %1134 = vst [vmem:[#allocation2 + $0x8] sm:$0xff] %v1074
          %1135 = vst [vmem:[#allocation2 + $0x10] sm:$0xff] %v1075
          %1136 = vst [vmem:[#allocation2 + $0x18] sm:$0xff] %v1076
          %1137 = vst [vmem:[#allocation2 + $0x20] sm:$0xff] %v1077
          %1138 = vst [vmem:[#allocation2 + $0x28] sm:$0xff] %v1078
          %1139 = vst [vmem:[#allocation2 + $0x30] sm:$0xff] %v1079
          %1140 = vst [vmem:[#allocation2 + $0x38] sm:$0xff] %v1080
          %1141 = vst [vmem:[#allocation2 + $0x40] sm:$0xff] %v1081
          %1142 = vst [vmem:[#allocation2 + $0x48] sm:$0xff] %v1082
          %1143 = vst [vmem:[#allocation2 + $0x50] sm:$0xff] %v1083
          %1144 = vst [vmem:[#allocation2 + $0x58] sm:$0xff] %v1084
          %1145 = vst [vmem:[#allocation2 + $0x60] sm:$0xff] %v1085
          %1146 = vst [vmem:[#allocation2 + $0x68] sm:$0xff] %v1086
          %1147 = vst [vmem:[#allocation2 + $0x70] sm:$0xff] %v1087
          %1148 = vst [vmem:[#allocation2 + $0x78] sm:$0xff] %v1088
          %1149 = vst [vmem:[#allocation2 + $0x80] sm:$0xff] %v1089
          %1150 = vst [vmem:[#allocation2 + $0x88] sm:$0xff] %v1090
          %1151 = vst [vmem:[#allocation2 + $0x90] sm:$0xff] %v1091
          %1152 = vst [vmem:[#allocation2 + $0x98] sm:$0xff] %v1092
          %1153 = vst [vmem:[#allocation2 + $0xa0] sm:$0xff] %v1093
          %1154 = vst [vmem:[#allocation2 + $0xa8] sm:$0xff] %v1094
          %1155 = vst [vmem:[#allocation2 + $0xb0] sm:$0xff] %v1095
          %1156 = vst [vmem:[#allocation2 + $0xb8] sm:$0xff] %v1096
          %1157 = vst [vmem:[#allocation2 + $0xc0] sm:$0xff] %v1097
          %1158 = vst [vmem:[#allocation2 + $0xc8] sm:$0xff] %v1098
          %1159 = vst [vmem:[#allocation2 + $0xd0] sm:$0xff] %v1099
          %1160 = vst [vmem:[#allocation2 + $0xd8] sm:$0xff] %v1100
          %1161 = vst [vmem:[#allocation2 + $0xe0] sm:$0xff] %v1101
          %1162 = vst [vmem:[#allocation2 + $0xe8] sm:$0xff] %v1102
          %1163 = vst [vmem:[#allocation2 + $0xf0] sm:$0xff] %v1103
          %1164 = vst [vmem:[#allocation2 + $0xf8] sm:$0xff] %v1104
          %1165 = vst [vmem:[#allocation2 + $0x100] sm:$0xff] %v1105
          %1166 = vst [vmem:[#allocation2 + $0x108] sm:$0xff] %v1106
          %1167 = vst [vmem:[#allocation2 + $0x110] sm:$0xff] %v1107
          %1168 = vst [vmem:[#allocation2 + $0x118] sm:$0xff] %v1108
          %1169 = vst [vmem:[#allocation2 + $0x120] sm:$0xff] %v1109
          %1170 = vst [vmem:[#allocation2 + $0x128] sm:$0xff] %v1110
          %1171 = vst [vmem:[#allocation2 + $0x130] sm:$0xff] %v1111
          %1172 = vst [vmem:[#allocation2 + $0x138] sm:$0xff] %v1112
          %1173 = vst [vmem:[#allocation2 + $0x140] sm:$0xff] %v1113
          %1174 = vst [vmem:[#allocation2 + $0x148] sm:$0xff] %v1114
          %1175 = vst [vmem:[#allocation2 + $0x150] sm:$0xff] %v1115
          %1176 = vst [vmem:[#allocation2 + $0x158] sm:$0xff] %v1116
          %1177 = vst [vmem:[#allocation2 + $0x160] sm:$0xff] %v1117
          %1178 = vst [vmem:[#allocation2 + $0x168] sm:$0xff] %v1118
          %1179 = vst [vmem:[#allocation2 + $0x170] sm:$0xff] %v1119
          %1180 = vst [vmem:[#allocation2 + $0x178] sm:$0xff] %v1120
          %1181 = vst [vmem:[#allocation2 + $0x180] sm:$0xff] %v1121
          %1182 = vst [vmem:[#allocation2 + $0x188] sm:$0xff] %v1122
          %1183 = vst [vmem:[#allocation2 + $0x190] sm:$0xff] %v1123
          %1184 = vst [vmem:[#allocation2 + $0x198] sm:$0xff] %v1124
          %1185 = vst [vmem:[#allocation2 + $0x1a0] sm:$0xff] %v1125
          %1186 = vst [vmem:[#allocation2 + $0x1a8] sm:$0xff] %v1126
          %1187 = vst [vmem:[#allocation2 + $0x1b0] sm:$0xff] %v1127
          %1188 = vst [vmem:[#allocation2 + $0x1b8] sm:$0xff] %v1128
          %1189 = vst [vmem:[#allocation2 + $0x1c0] sm:$0xff] %v1129
          %1190 = vst [vmem:[#allocation2 + $0x1c8] sm:$0xff] %v1130
          %1191 = vst [vmem:[#allocation2 + $0x1d0] sm:$0xff] %v1131
          %1192 = vst [vmem:[#allocation2 + $0x1d8] sm:$0xff] %v1132
        $region160: #{conv5l_forward.1} parent=83 // pred_fallthru
          _
        %v1193 = vld [vmem:[#allocation2] sm:$0xff]
        %v1194 = vld [vmem:[#allocation2 + $0x8] sm:$0xff]
        %v1195 = vld [vmem:[#allocation2 + $0x10] sm:$0xff]
        %v1196 = vld [vmem:[#allocation2 + $0x18] sm:$0xff]
        %v1197 = vld [vmem:[#allocation2 + $0x20] sm:$0xff]
        %v1198 = vld [vmem:[#allocation2 + $0x28] sm:$0xff]
        %v1199 = vld [vmem:[#allocation2 + $0x30] sm:$0xff]
        %v1200 = vld [vmem:[#allocation2 + $0x38] sm:$0xff]
        %v1201 = vld [vmem:[#allocation2 + $0x40] sm:$0xff]
        %v1202 = vld [vmem:[#allocation2 + $0x48] sm:$0xff]
        %v1203 = vld [vmem:[#allocation2 + $0x50] sm:$0xff]
        %v1204 = vld [vmem:[#allocation2 + $0x58] sm:$0xff]
        %v1205 = vld [vmem:[#allocation2 + $0x60] sm:$0xff]
        %v1206 = vld [vmem:[#allocation2 + $0x68] sm:$0xff]
        %v1207 = vld [vmem:[#allocation2 + $0x70] sm:$0xff]
        %v1208 = vld [vmem:[#allocation2 + $0x78] sm:$0xff]
        %v1209 = vld [vmem:[#allocation2 + $0x80] sm:$0xff]
        %v1210 = vld [vmem:[#allocation2 + $0x88] sm:$0xff]
        %v1211 = vld [vmem:[#allocation2 + $0x90] sm:$0xff]
        %v1212 = vld [vmem:[#allocation2 + $0x98] sm:$0xff]
        %v1213 = vld [vmem:[#allocation2 + $0xa0] sm:$0xff]
        %v1214 = vld [vmem:[#allocation2 + $0xa8] sm:$0xff]
        %v1215 = vld [vmem:[#allocation2 + $0xb0] sm:$0xff]
        %v1216 = vld [vmem:[#allocation2 + $0xb8] sm:$0xff]
        %v1217 = vld [vmem:[#allocation2 + $0xc0] sm:$0xff]
        %v1218 = vld [vmem:[#allocation2 + $0xc8] sm:$0xff]
        %v1219 = vld [vmem:[#allocation2 + $0xd0] sm:$0xff]
        %v1220 = vld [vmem:[#allocation2 + $0xd8] sm:$0xff]
        %v1221 = vld [vmem:[#allocation2 + $0xe0] sm:$0xff]
        %v1222 = vld [vmem:[#allocation2 + $0xe8] sm:$0xff]
        %v1223 = vld [vmem:[#allocation2 + $0xf0] sm:$0xff]
        %v1224 = vld [vmem:[#allocation2 + $0xf8] sm:$0xff]
        %v1225 = vld [vmem:[#allocation2 + $0x100] sm:$0xff]
        %v1226 = vld [vmem:[#allocation2 + $0x108] sm:$0xff]
        %v1227 = vld [vmem:[#allocation2 + $0x110] sm:$0xff]
        %v1228 = vld [vmem:[#allocation2 + $0x118] sm:$0xff]
        %v1229 = vld [vmem:[#allocation2 + $0x120] sm:$0xff]
        %v1230 = vld [vmem:[#allocation2 + $0x128] sm:$0xff]
        %v1231 = vld [vmem:[#allocation2 + $0x130] sm:$0xff]
        %v1232 = vld [vmem:[#allocation2 + $0x138] sm:$0xff]
        %v1233 = vld [vmem:[#allocation2 + $0x140] sm:$0xff]
        %v1234 = vld [vmem:[#allocation2 + $0x148] sm:$0xff]
        %v1235 = vld [vmem:[#allocation2 + $0x150] sm:$0xff]
        %v1236 = vld [vmem:[#allocation2 + $0x158] sm:$0xff]
        %v1237 = vld [vmem:[#allocation2 + $0x160] sm:$0xff]
        %v1238 = vld [vmem:[#allocation2 + $0x168] sm:$0xff]
        %v1239 = vld [vmem:[#allocation2 + $0x170] sm:$0xff]
        %v1240 = vld [vmem:[#allocation2 + $0x178] sm:$0xff]
        %v1241 = vld [vmem:[#allocation2 + $0x180] sm:$0xff]
        %v1242 = vld [vmem:[#allocation2 + $0x188] sm:$0xff]
        %v1243 = vld [vmem:[#allocation2 + $0x190] sm:$0xff]
        %v1244 = vld [vmem:[#allocation2 + $0x198] sm:$0xff]
        %v1245 = vld [vmem:[#allocation2 + $0x1a0] sm:$0xff]
        %v1246 = vld [vmem:[#allocation2 + $0x1a8] sm:$0xff]
        %v1247 = vld [vmem:[#allocation2 + $0x1b0] sm:$0xff]
        %v1248 = vld [vmem:[#allocation2 + $0x1b8] sm:$0xff]
        %v1249 = vld [vmem:[#allocation2 + $0x1c0] sm:$0xff]
        %v1250 = vld [vmem:[#allocation2 + $0x1c8] sm:$0xff]
        %v1251 = vld [vmem:[#allocation2 + $0x1d0] sm:$0xff]
        %v1252 = vld [vmem:[#allocation2 + $0x1d8] sm:$0xff]
        %v1253 = vld [vmem:[#allocation2 + $0x1e0] sm:$0xff]
        %v1254 = vld [vmem:[#allocation2 + $0x1e8] sm:$0xff]
        %v1255 = vld [vmem:[#allocation2 + $0x1f0] sm:$0xff]
        %v1256 = vld [vmem:[#allocation2 + $0x1f8] sm:$0xff]
        %v1257 = vld [vmem:[#allocation2 + $0x200] sm:$0xff]
        %v1258 = vld [vmem:[#allocation2 + $0x208] sm:$0xff]
        %v1259 = vld [vmem:[#allocation2 + $0x210] sm:$0xff]
        %v1260 = vld [vmem:[#allocation2 + $0x218] sm:$0xff]
        %v1261 = vld [vmem:[#allocation2 + $0x220] sm:$0xff]
        %v1262 = vld [vmem:[#allocation2 + $0x228] sm:$0xff]
        %v1263 = vld [vmem:[#allocation2 + $0x230] sm:$0xff]
        %v1264 = vld [vmem:[#allocation2 + $0x238] sm:$0xff]
        %v1265 = vld [vmem:[#allocation8] sm:$0xff]
        %v1266 = vld [vmem:[#allocation8 + $0x8] sm:$0xff]
        %v1267 = vld [vmem:[#allocation8 + $0x10] sm:$0xff]
        %v1268 = vld [vmem:[#allocation8 + $0x18] sm:$0xff]
        %v1269 = vld [vmem:[#allocation8 + $0x20] sm:$0xff]
        %v1270 = vld [vmem:[#allocation8 + $0x28] sm:$0xff]
        %v1271 = vld [vmem:[#allocation8 + $0x30] sm:$0xff]
        %v1272 = vld [vmem:[#allocation8 + $0x38] sm:$0xff]
        %v1273 = vld [vmem:[#allocation8 + $0x40] sm:$0xff]
        %v1274 = vld [vmem:[#allocation8 + $0x48] sm:$0xff]
        %v1275 = vld [vmem:[#allocation8 + $0x50] sm:$0xff]
        %v1276 = vld [vmem:[#allocation8 + $0x58] sm:$0xff]
        %v1277 = vld [vmem:[#allocation8 + $0x60] sm:$0xff]
        %v1278 = vld [vmem:[#allocation8 + $0x68] sm:$0xff]
        %v1279 = vld [vmem:[#allocation8 + $0x70] sm:$0xff]
        %v1280 = vld [vmem:[#allocation8 + $0x78] sm:$0xff]
        %v1281 = vld [vmem:[#allocation8 + $0x80] sm:$0xff]
        %v1282 = vld [vmem:[#allocation8 + $0x88] sm:$0xff]
        %v1283 = vld [vmem:[#allocation8 + $0x90] sm:$0xff]
        %v1284 = vld [vmem:[#allocation8 + $0x98] sm:$0xff]
        %v1285 = vld [vmem:[#allocation8 + $0xa0] sm:$0xff]
        %v1286 = vld [vmem:[#allocation8 + $0xa8] sm:$0xff]
        %v1287 = vld [vmem:[#allocation8 + $0xb0] sm:$0xff]
        %v1288 = vld [vmem:[#allocation8 + $0xb8] sm:$0xff]
        %v1289 = vld [vmem:[#allocation8 + $0xc0] sm:$0xff]
        %v1290 = vld [vmem:[#allocation8 + $0xc8] sm:$0xff]
        %v1291 = vld [vmem:[#allocation8 + $0xd0] sm:$0xff]
        %v1292 = vld [vmem:[#allocation8 + $0xd8] sm:$0xff]
        %v1293 = vld [vmem:[#allocation8 + $0xe0] sm:$0xff]
        %v1294 = vld [vmem:[#allocation8 + $0xe8] sm:$0xff]
        %v1295 = vld [vmem:[#allocation8 + $0xf0] sm:$0xff]
        %v1296 = vld [vmem:[#allocation8 + $0xf8] sm:$0xff]
        %v1297 = vld [vmem:[#allocation8 + $0x100] sm:$0xff]
        %v1298 = vld [vmem:[#allocation8 + $0x108] sm:$0xff]
        %v1299 = vld [vmem:[#allocation8 + $0x110] sm:$0xff]
        %v1300 = vld [vmem:[#allocation8 + $0x118] sm:$0xff]
        %v1301 = vld [vmem:[#allocation8 + $0x120] sm:$0xff]
        %v1302 = vld [vmem:[#allocation8 + $0x128] sm:$0xff]
        %v1303 = vld [vmem:[#allocation8 + $0x130] sm:$0xff]
        %v1304 = vld [vmem:[#allocation8 + $0x138] sm:$0xff]
        %v1305 = vld [vmem:[#allocation8 + $0x140] sm:$0xff]
        %v1306 = vld [vmem:[#allocation8 + $0x148] sm:$0xff]
        %v1307 = vld [vmem:[#allocation8 + $0x150] sm:$0xff]
        %v1308 = vld [vmem:[#allocation8 + $0x158] sm:$0xff]
        %v1309 = vld [vmem:[#allocation8 + $0x160] sm:$0xff]
        %v1310 = vld [vmem:[#allocation8 + $0x168] sm:$0xff]
        %v1311 = vld [vmem:[#allocation8 + $0x170] sm:$0xff]
        %v1312 = vld [vmem:[#allocation8 + $0x178] sm:$0xff]
        %v1313 = vld [vmem:[#allocation8 + $0x180] sm:$0xff]
        %v1314 = vld [vmem:[#allocation8 + $0x188] sm:$0xff]
        %v1315 = vld [vmem:[#allocation8 + $0x190] sm:$0xff]
        %v1316 = vld [vmem:[#allocation8 + $0x198] sm:$0xff]
        %v1317 = vld [vmem:[#allocation8 + $0x1a0] sm:$0xff]
        %v1318 = vld [vmem:[#allocation8 + $0x1a8] sm:$0xff]
        %v1319 = vld [vmem:[#allocation8 + $0x1b0] sm:$0xff]
        %v1320 = vld [vmem:[#allocation8 + $0x1b8] sm:$0xff]
        %v1321 = vld [vmem:[#allocation8 + $0x1c0] sm:$0xff]
        %v1322 = vld [vmem:[#allocation8 + $0x1c8] sm:$0xff]
        %v1323 = vld [vmem:[#allocation8 + $0x1d0] sm:$0xff]
        %v1324 = vld [vmem:[#allocation8 + $0x1d8] sm:$0xff]
        %v1325 = vld [vmem:[#allocation8 + $0x1e0] sm:$0xff]
        %v1326 = vld [vmem:[#allocation8 + $0x1e8] sm:$0xff]
        %v1327 = vld [vmem:[#allocation8 + $0x1f0] sm:$0xff]
        %v1328 = vld [vmem:[#allocation8 + $0x1f8] sm:$0xff]
        %v1329 = vld [vmem:[#allocation8 + $0x200] sm:$0xff]
        %v1330 = vld [vmem:[#allocation8 + $0x208] sm:$0xff]
        %v1331 = vld [vmem:[#allocation8 + $0x210] sm:$0xff]
        %v1332 = vld [vmem:[#allocation8 + $0x218] sm:$0xff]
        %v1333 = vld [vmem:[#allocation8 + $0x220] sm:$0xff]
        %v1334 = vld [vmem:[#allocation8 + $0x228] sm:$0xff]
        %v1335 = vld [vmem:[#allocation8 + $0x230] sm:$0xff]
        %v1336 = vld [vmem:[#allocation8 + $0x238] sm:$0xff]
        %v1337 = vld [vmem:[#allocation8 + $0x240] sm:$0xff]
        %v1338 = vld [vmem:[#allocation8 + $0x248] sm:$0xff]
        %v1339 = vld [vmem:[#allocation8 + $0x250] sm:$0xff]
        %v1340 = vld [vmem:[#allocation8 + $0x258] sm:$0xff]
        %v1341 = vld [vmem:[#allocation8 + $0x260] sm:$0xff]
        %v1342 = vld [vmem:[#allocation8 + $0x268] sm:$0xff]
        %v1343 = vld [vmem:[#allocation8 + $0x270] sm:$0xff]
        %v1344 = vld [vmem:[#allocation8 + $0x278] sm:$0xff]
        %v1345 = vld [vmem:[#allocation8 + $0x280] sm:$0xff]
        %v1346 = vld [vmem:[#allocation8 + $0x288] sm:$0xff]
        %v1347 = vld [vmem:[#allocation8 + $0x290] sm:$0xff]
        %v1348 = vld [vmem:[#allocation8 + $0x298] sm:$0xff]
        %v1349 = vld [vmem:[#allocation8 + $0x2a0] sm:$0xff]
        %v1350 = vld [vmem:[#allocation8 + $0x2a8] sm:$0xff]
        %v1351 = vld [vmem:[#allocation8 + $0x2b0] sm:$0xff]
        %v1352 = vld [vmem:[#allocation8 + $0x2b8] sm:$0xff]
        %v1353 = vld [vmem:[#allocation8 + $0x2c0] sm:$0xff]
        %v1354 = vld [vmem:[#allocation8 + $0x2c8] sm:$0xff]
        %v1355 = vld [vmem:[#allocation8 + $0x2d0] sm:$0xff]
        %v1356 = vld [vmem:[#allocation8 + $0x2d8] sm:$0xff]
        %v1357 = vld [vmem:[#allocation8 + $0x2e0] sm:$0xff]
        %v1358 = vld [vmem:[#allocation8 + $0x2e8] sm:$0xff]
        %v1359 = vld [vmem:[#allocation8 + $0x2f0] sm:$0xff]
        %v1360 = vld [vmem:[#allocation8 + $0x2f8] sm:$0xff]
        %1361 = vmatpush.msra.mxu0 %v1295
        %1362 = vmatpush.msra.mxu0 %v1293
        %1363 = vmatpush.msra.mxu0 %v1291
        %1364 = vmatpush.msra.mxu0 %v1289
        %1365 = vmatpush.msra.mxu0 %v1287
        %1366 = vmatpush.msra.mxu0 %v1285
        %1367 = vmatpush.msra.mxu0 %v1283
        %1368 = vmatpush.msra.mxu0 %v1281
        %1369 = vmatpush.msra.mxu0 %v1279
        %1370 = vmatpush.msra.mxu0 %v1277
        %1371 = vmatpush.msra.mxu0 %v1275
        %1372 = vmatpush.msra.mxu0 %v1273
        %1373 = vmatpush.msra.mxu0 %v1271
        %1374 = vmatpush.msra.mxu0 %v1269
        %1375 = vmatpush.msra.mxu0 %v1267
        %1376 = vmatpush.msra.mxu0 %v1265
        %1377 = vmatmul.f32.gmra.mxu0 %v1193
        %v1378 = vpop.f32.mrf.mxu0
        %v1379 = vadd.f32 0.0, %v1378
        %1380 = vmatmul.f32.gmra.mxu0 %v1196
        %v1381 = vpop.f32.mrf.mxu0
        %v1382 = vadd.f32 0.0, %v1381
        %1383 = vmatmul.f32.gmra.mxu0 %v1199
        %v1384 = vpop.f32.mrf.mxu0
        %v1385 = vadd.f32 0.0, %v1384
        %1386 = vmatmul.f32.gmra.mxu0 %v1202
        %v1387 = vpop.f32.mrf.mxu0
        %v1388 = vadd.f32 0.0, %v1387
        %1389 = vmatmul.f32.gmra.mxu0 %v1205
        %v1390 = vpop.f32.mrf.mxu0
        %v1391 = vadd.f32 0.0, %v1390
        %1392 = vmatmul.f32.gmra.mxu0 %v1208
        %v1393 = vpop.f32.mrf.mxu0
        %v1394 = vadd.f32 0.0, %v1393
        %1395 = vmatmul.f32.gmra.mxu0 %v1211
        %v1396 = vpop.f32.mrf.mxu0
        %v1397 = vadd.f32 0.0, %v1396
        %1398 = vmatmul.f32.gmra.mxu0 %v1214
        %v1399 = vpop.f32.mrf.mxu0
        %v1400 = vadd.f32 0.0, %v1399
        %1401 = vmatmul.f32.gmra.mxu0 %v1217
        %v1402 = vpop.f32.mrf.mxu0
        %v1403 = vadd.f32 0.0, %v1402
        %1404 = vmatmul.f32.gmra.mxu0 %v1220
        %v1405 = vpop.f32.mrf.mxu0
        %v1406 = vadd.f32 0.0, %v1405
        %1407 = vmatmul.f32.gmra.mxu0 %v1223
        %v1408 = vpop.f32.mrf.mxu0
        %v1409 = vadd.f32 0.0, %v1408
        %1410 = vmatmul.f32.gmra.mxu0 %v1226
        %v1411 = vpop.f32.mrf.mxu0
        %v1412 = vadd.f32 0.0, %v1411
        %1413 = vmatmul.f32.gmra.mxu0 %v1229
        %v1414 = vpop.f32.mrf.mxu0
        %v1415 = vadd.f32 0.0, %v1414
        %1416 = vmatmul.f32.gmra.mxu0 %v1232
        %v1417 = vpop.f32.mrf.mxu0
        %v1418 = vadd.f32 0.0, %v1417
        %1419 = vmatmul.f32.gmra.mxu0 %v1235
        %v1420 = vpop.f32.mrf.mxu0
        %v1421 = vadd.f32 0.0, %v1420
        %1422 = vmatmul.f32.gmra.mxu0 %v1238
        %v1423 = vpop.f32.mrf.mxu0
        %v1424 = vadd.f32 0.0, %v1423
        %1425 = vmatmul.f32.gmra.mxu0 %v1241
        %v1426 = vpop.f32.mrf.mxu0
        %v1427 = vadd.f32 0.0, %v1426
        %1428 = vmatmul.f32.gmra.mxu0 %v1244
        %v1429 = vpop.f32.mrf.mxu0
        %v1430 = vadd.f32 0.0, %v1429
        %1431 = vmatmul.f32.gmra.mxu0 %v1247
        %v1432 = vpop.f32.mrf.mxu0
        %v1433 = vadd.f32 0.0, %v1432
        %1434 = vmatmul.f32.gmra.mxu0 %v1250
        %v1435 = vpop.f32.mrf.mxu0
        %v1436 = vadd.f32 0.0, %v1435
        %1437 = vmatmul.f32.gmra.mxu0 %v1253
        %v1438 = vpop.f32.mrf.mxu0
        %v1439 = vadd.f32 0.0, %v1438
        %1440 = vmatmul.f32.gmra.mxu0 %v1256
        %v1441 = vpop.f32.mrf.mxu0
        %v1442 = vadd.f32 0.0, %v1441
        %1443 = vmatmul.f32.gmra.mxu0 %v1259
        %v1444 = vpop.f32.mrf.mxu0
        %v1445 = vadd.f32 0.0, %v1444
        %1446 = vmatmul.f32.gmra.mxu0 %v1262
        %v1447 = vpop.f32.mrf.mxu0
        %v1448 = vadd.f32 0.0, %v1447
        %1449 = vdwg.mxu0
        %1450 = vmatpush.msra.mxu0 %v1327
        %1451 = vmatpush.msra.mxu0 %v1325
        %1452 = vmatpush.msra.mxu0 %v1323
        %1453 = vmatpush.msra.mxu0 %v1321
        %1454 = vmatpush.msra.mxu0 %v1319
        %1455 = vmatpush.msra.mxu0 %v1317
        %1456 = vmatpush.msra.mxu0 %v1315
        %1457 = vmatpush.msra.mxu0 %v1313
        %1458 = vmatpush.msra.mxu0 %v1311
        %1459 = vmatpush.msra.mxu0 %v1309
        %1460 = vmatpush.msra.mxu0 %v1307
        %1461 = vmatpush.msra.mxu0 %v1305
        %1462 = vmatpush.msra.mxu0 %v1303
        %1463 = vmatpush.msra.mxu0 %v1301
        %1464 = vmatpush.msra.mxu0 %v1299
        %1465 = vmatpush.msra.mxu0 %v1297
        %1466 = vmatmul.f32.gmra.mxu0 %v1194
        %v1467 = vpop.f32.mrf.mxu0
        %v1468 = vadd.f32 %v1379, %v1467
        %1469 = vmatmul.f32.gmra.mxu0 %v1197
        %v1470 = vpop.f32.mrf.mxu0
        %v1471 = vadd.f32 %v1382, %v1470
        %1472 = vmatmul.f32.gmra.mxu0 %v1200
        %v1473 = vpop.f32.mrf.mxu0
        %v1474 = vadd.f32 %v1385, %v1473
        %1475 = vmatmul.f32.gmra.mxu0 %v1203
        %v1476 = vpop.f32.mrf.mxu0
        %v1477 = vadd.f32 %v1388, %v1476
        %1478 = vmatmul.f32.gmra.mxu0 %v1206
        %v1479 = vpop.f32.mrf.mxu0
        %v1480 = vadd.f32 %v1391, %v1479
        %1481 = vmatmul.f32.gmra.mxu0 %v1209
        %v1482 = vpop.f32.mrf.mxu0
        %v1483 = vadd.f32 %v1394, %v1482
        %1484 = vmatmul.f32.gmra.mxu0 %v1212
        %v1485 = vpop.f32.mrf.mxu0
        %v1486 = vadd.f32 %v1397, %v1485
        %1487 = vmatmul.f32.gmra.mxu0 %v1215
        %v1488 = vpop.f32.mrf.mxu0
        %v1489 = vadd.f32 %v1400, %v1488
        %1490 = vmatmul.f32.gmra.mxu0 %v1218
        %v1491 = vpop.f32.mrf.mxu0
        %v1492 = vadd.f32 %v1403, %v1491
        %1493 = vmatmul.f32.gmra.mxu0 %v1221
        %v1494 = vpop.f32.mrf.mxu0
        %v1495 = vadd.f32 %v1406, %v1494
        %1496 = vmatmul.f32.gmra.mxu0 %v1224
        %v1497 = vpop.f32.mrf.mxu0
        %v1498 = vadd.f32 %v1409, %v1497
        %1499 = vmatmul.f32.gmra.mxu0 %v1227
        %v1500 = vpop.f32.mrf.mxu0
        %v1501 = vadd.f32 %v1412, %v1500
        %1502 = vmatmul.f32.gmra.mxu0 %v1230
        %v1503 = vpop.f32.mrf.mxu0
        %v1504 = vadd.f32 %v1415, %v1503
        %1505 = vmatmul.f32.gmra.mxu0 %v1233
        %v1506 = vpop.f32.mrf.mxu0
        %v1507 = vadd.f32 %v1418, %v1506
        %1508 = vmatmul.f32.gmra.mxu0 %v1236
        %v1509 = vpop.f32.mrf.mxu0
        %v1510 = vadd.f32 %v1421, %v1509
        %1511 = vmatmul.f32.gmra.mxu0 %v1239
        %v1512 = vpop.f32.mrf.mxu0
        %v1513 = vadd.f32 %v1424, %v1512
        %1514 = vmatmul.f32.gmra.mxu0 %v1242
        %v1515 = vpop.f32.mrf.mxu0
        %v1516 = vadd.f32 %v1427, %v1515
        %1517 = vmatmul.f32.gmra.mxu0 %v1245
        %v1518 = vpop.f32.mrf.mxu0
        %v1519 = vadd.f32 %v1430, %v1518
        %1520 = vmatmul.f32.gmra.mxu0 %v1248
        %v1521 = vpop.f32.mrf.mxu0
        %v1522 = vadd.f32 %v1433, %v1521
        %1523 = vmatmul.f32.gmra.mxu0 %v1251
        %v1524 = vpop.f32.mrf.mxu0
        %v1525 = vadd.f32 %v1436, %v1524
        %1526 = vmatmul.f32.gmra.mxu0 %v1254
        %v1527 = vpop.f32.mrf.mxu0
        %v1528 = vadd.f32 %v1439, %v1527
        %1529 = vmatmul.f32.gmra.mxu0 %v1257
        %v1530 = vpop.f32.mrf.mxu0
        %v1531 = vadd.f32 %v1442, %v1530
        %1532 = vmatmul.f32.gmra.mxu0 %v1260
        %v1533 = vpop.f32.mrf.mxu0
        %v1534 = vadd.f32 %v1445, %v1533
        %1535 = vmatmul.f32.gmra.mxu0 %v1263
        %v1536 = vpop.f32.mrf.mxu0
        %v1537 = vadd.f32 %v1448, %v1536
        %1538 = vdwg.mxu0
        %1539 = vmatpush.msra.mxu0 %v1359
        %1540 = vmatpush.msra.mxu0 %v1357
        %1541 = vmatpush.msra.mxu0 %v1355
        %1542 = vmatpush.msra.mxu0 %v1353
        %1543 = vmatpush.msra.mxu0 %v1351
        %1544 = vmatpush.msra.mxu0 %v1349
        %1545 = vmatpush.msra.mxu0 %v1347
        %1546 = vmatpush.msra.mxu0 %v1345
        %1547 = vmatpush.msra.mxu0 %v1343
        %1548 = vmatpush.msra.mxu0 %v1341
        %1549 = vmatpush.msra.mxu0 %v1339
        %1550 = vmatpush.msra.mxu0 %v1337
        %1551 = vmatpush.msra.mxu0 %v1335
        %1552 = vmatpush.msra.mxu0 %v1333
        %1553 = vmatpush.msra.mxu0 %v1331
        %1554 = vmatpush.msra.mxu0 %v1329
        %1555 = vmatmul.f32.gmra.mxu0 %v1195
        %v1556 = vpop.f32.mrf.mxu0
        %v1557 = vadd.f32 %v1468, %v1556
        %1558 = vmatmul.f32.gmra.mxu0 %v1198
        %v1559 = vpop.f32.mrf.mxu0
        %v1560 = vadd.f32 %v1471, %v1559
        %1561 = vmatmul.f32.gmra.mxu0 %v1201
        %v1562 = vpop.f32.mrf.mxu0
        %v1563 = vadd.f32 %v1474, %v1562
        %1564 = vmatmul.f32.gmra.mxu0 %v1204
        %v1565 = vpop.f32.mrf.mxu0
        %v1566 = vadd.f32 %v1477, %v1565
        %1567 = vmatmul.f32.gmra.mxu0 %v1207
        %v1568 = vpop.f32.mrf.mxu0
        %v1569 = vadd.f32 %v1480, %v1568
        %1570 = vmatmul.f32.gmra.mxu0 %v1210
        %v1571 = vpop.f32.mrf.mxu0
        %v1572 = vadd.f32 %v1483, %v1571
        %1573 = vmatmul.f32.gmra.mxu0 %v1213
        %v1574 = vpop.f32.mrf.mxu0
        %v1575 = vadd.f32 %v1486, %v1574
        %1576 = vmatmul.f32.gmra.mxu0 %v1216
        %v1577 = vpop.f32.mrf.mxu0
        %v1578 = vadd.f32 %v1489, %v1577
        %1579 = vmatmul.f32.gmra.mxu0 %v1219
        %v1580 = vpop.f32.mrf.mxu0
        %v1581 = vadd.f32 %v1492, %v1580
        %1582 = vmatmul.f32.gmra.mxu0 %v1222
        %v1583 = vpop.f32.mrf.mxu0
        %v1584 = vadd.f32 %v1495, %v1583
        %1585 = vmatmul.f32.gmra.mxu0 %v1225
        %v1586 = vpop.f32.mrf.mxu0
        %v1587 = vadd.f32 %v1498, %v1586
        %1588 = vmatmul.f32.gmra.mxu0 %v1228
        %v1589 = vpop.f32.mrf.mxu0
        %v1590 = vadd.f32 %v1501, %v1589
        %1591 = vmatmul.f32.gmra.mxu0 %v1231
        %v1592 = vpop.f32.mrf.mxu0
        %v1593 = vadd.f32 %v1504, %v1592
        %1594 = vmatmul.f32.gmra.mxu0 %v1234
        %v1595 = vpop.f32.mrf.mxu0
        %v1596 = vadd.f32 %v1507, %v1595
        %1597 = vmatmul.f32.gmra.mxu0 %v1237
        %v1598 = vpop.f32.mrf.mxu0
        %v1599 = vadd.f32 %v1510, %v1598
        %1600 = vmatmul.f32.gmra.mxu0 %v1240
        %v1601 = vpop.f32.mrf.mxu0
        %v1602 = vadd.f32 %v1513, %v1601
        %1603 = vmatmul.f32.gmra.mxu0 %v1243
        %v1604 = vpop.f32.mrf.mxu0
        %v1605 = vadd.f32 %v1516, %v1604
        %1606 = vmatmul.f32.gmra.mxu0 %v1246
        %v1607 = vpop.f32.mrf.mxu0
        %v1608 = vadd.f32 %v1519, %v1607
        %1609 = vmatmul.f32.gmra.mxu0 %v1249
        %v1610 = vpop.f32.mrf.mxu0
        %v1611 = vadd.f32 %v1522, %v1610
        %1612 = vmatmul.f32.gmra.mxu0 %v1252
        %v1613 = vpop.f32.mrf.mxu0
        %v1614 = vadd.f32 %v1525, %v1613
        %1615 = vmatmul.f32.gmra.mxu0 %v1255
        %v1616 = vpop.f32.mrf.mxu0
        %v1617 = vadd.f32 %v1528, %v1616
        %1618 = vmatmul.f32.gmra.mxu0 %v1258
        %v1619 = vpop.f32.mrf.mxu0
        %v1620 = vadd.f32 %v1531, %v1619
        %1621 = vmatmul.f32.gmra.mxu0 %v1261
        %v1622 = vpop.f32.mrf.mxu0
        %v1623 = vadd.f32 %v1534, %v1622
        %1624 = vmatmul.f32.gmra.mxu0 %v1264
        %v1625 = vpop.f32.mrf.mxu0
        %v1626 = vadd.f32 %v1537, %v1625
        %1627 = vdwg.mxu0
        %1628 = vmatpush.msra.mxu0 %v1296
        %1629 = vmatpush.msra.mxu0 %v1294
        %1630 = vmatpush.msra.mxu0 %v1292
        %1631 = vmatpush.msra.mxu0 %v1290
        %1632 = vmatpush.msra.mxu0 %v1288
        %1633 = vmatpush.msra.mxu0 %v1286
        %1634 = vmatpush.msra.mxu0 %v1284
        %1635 = vmatpush.msra.mxu0 %v1282
        %1636 = vmatpush.msra.mxu0 %v1280
        %1637 = vmatpush.msra.mxu0 %v1278
        %1638 = vmatpush.msra.mxu0 %v1276
        %1639 = vmatpush.msra.mxu0 %v1274
        %1640 = vmatpush.msra.mxu0 %v1272
        %1641 = vmatpush.msra.mxu0 %v1270
        %1642 = vmatpush.msra.mxu0 %v1268
        %1643 = vmatpush.msra.mxu0 %v1266
        %1644 = vmatmul.f32.gmra.mxu0 %v1193
        %v1645 = vpop.f32.mrf.mxu0
        %v1646 = vadd.f32 0.0, %v1645
        %1647 = vmatmul.f32.gmra.mxu0 %v1196
        %v1648 = vpop.f32.mrf.mxu0
        %v1649 = vadd.f32 0.0, %v1648
        %1650 = vmatmul.f32.gmra.mxu0 %v1199
        %v1651 = vpop.f32.mrf.mxu0
        %v1652 = vadd.f32 0.0, %v1651
        %1653 = vmatmul.f32.gmra.mxu0 %v1202
        %v1654 = vpop.f32.mrf.mxu0
        %v1655 = vadd.f32 0.0, %v1654
        %1656 = vmatmul.f32.gmra.mxu0 %v1205
        %v1657 = vpop.f32.mrf.mxu0
        %v1658 = vadd.f32 0.0, %v1657
        %1659 = vmatmul.f32.gmra.mxu0 %v1208
        %v1660 = vpop.f32.mrf.mxu0
        %v1661 = vadd.f32 0.0, %v1660
        %1662 = vmatmul.f32.gmra.mxu0 %v1211
        %v1663 = vpop.f32.mrf.mxu0
        %v1664 = vadd.f32 0.0, %v1663
        %1665 = vmatmul.f32.gmra.mxu0 %v1214
        %v1666 = vpop.f32.mrf.mxu0
        %v1667 = vadd.f32 0.0, %v1666
        %1668 = vmatmul.f32.gmra.mxu0 %v1217
        %v1669 = vpop.f32.mrf.mxu0
        %v1670 = vadd.f32 0.0, %v1669
        %1671 = vmatmul.f32.gmra.mxu0 %v1220
        %v1672 = vpop.f32.mrf.mxu0
        %v1673 = vadd.f32 0.0, %v1672
        %1674 = vmatmul.f32.gmra.mxu0 %v1223
        %v1675 = vpop.f32.mrf.mxu0
        %v1676 = vadd.f32 0.0, %v1675
        %1677 = vmatmul.f32.gmra.mxu0 %v1226
        %v1678 = vpop.f32.mrf.mxu0
        %v1679 = vadd.f32 0.0, %v1678
        %1680 = vmatmul.f32.gmra.mxu0 %v1229
        %v1681 = vpop.f32.mrf.mxu0
        %v1682 = vadd.f32 0.0, %v1681
        %1683 = vmatmul.f32.gmra.mxu0 %v1232
        %v1684 = vpop.f32.mrf.mxu0
        %v1685 = vadd.f32 0.0, %v1684
        %1686 = vmatmul.f32.gmra.mxu0 %v1235
        %v1687 = vpop.f32.mrf.mxu0
        %v1688 = vadd.f32 0.0, %v1687
        %1689 = vmatmul.f32.gmra.mxu0 %v1238
        %v1690 = vpop.f32.mrf.mxu0
        %v1691 = vadd.f32 0.0, %v1690
        %1692 = vmatmul.f32.gmra.mxu0 %v1241
        %v1693 = vpop.f32.mrf.mxu0
        %v1694 = vadd.f32 0.0, %v1693
        %1695 = vmatmul.f32.gmra.mxu0 %v1244
        %v1696 = vpop.f32.mrf.mxu0
        %v1697 = vadd.f32 0.0, %v1696
        %1698 = vmatmul.f32.gmra.mxu0 %v1247
        %v1699 = vpop.f32.mrf.mxu0
        %v1700 = vadd.f32 0.0, %v1699
        %1701 = vmatmul.f32.gmra.mxu0 %v1250
        %v1702 = vpop.f32.mrf.mxu0
        %v1703 = vadd.f32 0.0, %v1702
        %1704 = vmatmul.f32.gmra.mxu0 %v1253
        %v1705 = vpop.f32.mrf.mxu0
        %v1706 = vadd.f32 0.0, %v1705
        %1707 = vmatmul.f32.gmra.mxu0 %v1256
        %v1708 = vpop.f32.mrf.mxu0
        %v1709 = vadd.f32 0.0, %v1708
        %1710 = vmatmul.f32.gmra.mxu0 %v1259
        %v1711 = vpop.f32.mrf.mxu0
        %v1712 = vadd.f32 0.0, %v1711
        %1713 = vmatmul.f32.gmra.mxu0 %v1262
        %v1714 = vpop.f32.mrf.mxu0
        %v1715 = vadd.f32 0.0, %v1714
        %1716 = vdwg.mxu0
        %1717 = vmatpush.msra.mxu0 %v1328
        %1718 = vmatpush.msra.mxu0 %v1326
        %1719 = vmatpush.msra.mxu0 %v1324
        %1720 = vmatpush.msra.mxu0 %v1322
        %1721 = vmatpush.msra.mxu0 %v1320
        %1722 = vmatpush.msra.mxu0 %v1318
        %1723 = vmatpush.msra.mxu0 %v1316
        %1724 = vmatpush.msra.mxu0 %v1314
        %1725 = vmatpush.msra.mxu0 %v1312
        %1726 = vmatpush.msra.mxu0 %v1310
        %1727 = vmatpush.msra.mxu0 %v1308
        %1728 = vmatpush.msra.mxu0 %v1306
        %1729 = vmatpush.msra.mxu0 %v1304
        %1730 = vmatpush.msra.mxu0 %v1302
        %1731 = vmatpush.msra.mxu0 %v1300
        %1732 = vmatpush.msra.mxu0 %v1298
        %1733 = vmatmul.f32.gmra.mxu0 %v1194
        %v1734 = vpop.f32.mrf.mxu0
        %v1735 = vadd.f32 %v1646, %v1734
        %1736 = vmatmul.f32.gmra.mxu0 %v1197
        %v1737 = vpop.f32.mrf.mxu0
        %v1738 = vadd.f32 %v1649, %v1737
        %1739 = vmatmul.f32.gmra.mxu0 %v1200
        %v1740 = vpop.f32.mrf.mxu0
        %v1741 = vadd.f32 %v1652, %v1740
        %1742 = vmatmul.f32.gmra.mxu0 %v1203
        %v1743 = vpop.f32.mrf.mxu0
        %v1744 = vadd.f32 %v1655, %v1743
        %1745 = vmatmul.f32.gmra.mxu0 %v1206
        %v1746 = vpop.f32.mrf.mxu0
        %v1747 = vadd.f32 %v1658, %v1746
        %1748 = vmatmul.f32.gmra.mxu0 %v1209
        %v1749 = vpop.f32.mrf.mxu0
        %v1750 = vadd.f32 %v1661, %v1749
        %1751 = vmatmul.f32.gmra.mxu0 %v1212
        %v1752 = vpop.f32.mrf.mxu0
        %v1753 = vadd.f32 %v1664, %v1752
        %1754 = vmatmul.f32.gmra.mxu0 %v1215
        %v1755 = vpop.f32.mrf.mxu0
        %v1756 = vadd.f32 %v1667, %v1755
        %1757 = vmatmul.f32.gmra.mxu0 %v1218
        %v1758 = vpop.f32.mrf.mxu0
        %v1759 = vadd.f32 %v1670, %v1758
        %1760 = vmatmul.f32.gmra.mxu0 %v1221
        %v1761 = vpop.f32.mrf.mxu0
        %v1762 = vadd.f32 %v1673, %v1761
        %1763 = vmatmul.f32.gmra.mxu0 %v1224
        %v1764 = vpop.f32.mrf.mxu0
        %v1765 = vadd.f32 %v1676, %v1764
        %1766 = vmatmul.f32.gmra.mxu0 %v1227
        %v1767 = vpop.f32.mrf.mxu0
        %v1768 = vadd.f32 %v1679, %v1767
        %1769 = vmatmul.f32.gmra.mxu0 %v1230
        %v1770 = vpop.f32.mrf.mxu0
        %v1771 = vadd.f32 %v1682, %v1770
        %1772 = vmatmul.f32.gmra.mxu0 %v1233
        %v1773 = vpop.f32.mrf.mxu0
        %v1774 = vadd.f32 %v1685, %v1773
        %1775 = vmatmul.f32.gmra.mxu0 %v1236
        %v1776 = vpop.f32.mrf.mxu0
        %v1777 = vadd.f32 %v1688, %v1776
        %1778 = vmatmul.f32.gmra.mxu0 %v1239
        %v1779 = vpop.f32.mrf.mxu0
        %v1780 = vadd.f32 %v1691, %v1779
        %1781 = vmatmul.f32.gmra.mxu0 %v1242
        %v1782 = vpop.f32.mrf.mxu0
        %v1783 = vadd.f32 %v1694, %v1782
        %1784 = vmatmul.f32.gmra.mxu0 %v1245
        %v1785 = vpop.f32.mrf.mxu0
        %v1786 = vadd.f32 %v1697, %v1785
        %1787 = vmatmul.f32.gmra.mxu0 %v1248
        %v1788 = vpop.f32.mrf.mxu0
        %v1789 = vadd.f32 %v1700, %v1788
        %1790 = vmatmul.f32.gmra.mxu0 %v1251
        %v1791 = vpop.f32.mrf.mxu0
        %v1792 = vadd.f32 %v1703, %v1791
        %1793 = vmatmul.f32.gmra.mxu0 %v1254
        %v1794 = vpop.f32.mrf.mxu0
        %v1795 = vadd.f32 %v1706, %v1794
        %1796 = vmatmul.f32.gmra.mxu0 %v1257
        %v1797 = vpop.f32.mrf.mxu0
        %v1798 = vadd.f32 %v1709, %v1797
        %1799 = vmatmul.f32.gmra.mxu0 %v1260
        %v1800 = vpop.f32.mrf.mxu0
        %v1801 = vadd.f32 %v1712, %v1800
        %1802 = vmatmul.f32.gmra.mxu0 %v1263
        %v1803 = vpop.f32.mrf.mxu0
        %v1804 = vadd.f32 %v1715, %v1803
        %1805 = vdwg.mxu0
        %1806 = vmatpush.msra.mxu0 %v1360
        %1807 = vmatpush.msra.mxu0 %v1358
        %1808 = vmatpush.msra.mxu0 %v1356
        %1809 = vmatpush.msra.mxu0 %v1354
        %1810 = vmatpush.msra.mxu0 %v1352
        %1811 = vmatpush.msra.mxu0 %v1350
        %1812 = vmatpush.msra.mxu0 %v1348
        %1813 = vmatpush.msra.mxu0 %v1346
        %1814 = vmatpush.msra.mxu0 %v1344
        %1815 = vmatpush.msra.mxu0 %v1342
        %1816 = vmatpush.msra.mxu0 %v1340
        %1817 = vmatpush.msra.mxu0 %v1338
        %1818 = vmatpush.msra.mxu0 %v1336
        %1819 = vmatpush.msra.mxu0 %v1334
        %1820 = vmatpush.msra.mxu0 %v1332
        %1821 = vmatpush.msra.mxu0 %v1330
        %1822 = vmatmul.f32.gmra.mxu0 %v1195
        %v1823 = vpop.f32.mrf.mxu0
        %v1824 = vadd.f32 %v1735, %v1823
        %1825 = vmatmul.f32.gmra.mxu0 %v1198
        %v1826 = vpop.f32.mrf.mxu0
        %v1827 = vadd.f32 %v1738, %v1826
        %1828 = vmatmul.f32.gmra.mxu0 %v1201
        %v1829 = vpop.f32.mrf.mxu0
        %v1830 = vadd.f32 %v1741, %v1829
        %1831 = vmatmul.f32.gmra.mxu0 %v1204
        %v1832 = vpop.f32.mrf.mxu0
        %v1833 = vadd.f32 %v1744, %v1832
        %1834 = vmatmul.f32.gmra.mxu0 %v1207
        %v1835 = vpop.f32.mrf.mxu0
        %v1836 = vadd.f32 %v1747, %v1835
        %1837 = vmatmul.f32.gmra.mxu0 %v1210
        %v1838 = vpop.f32.mrf.mxu0
        %v1839 = vadd.f32 %v1750, %v1838
        %1840 = vmatmul.f32.gmra.mxu0 %v1213
        %v1841 = vpop.f32.mrf.mxu0
        %v1842 = vadd.f32 %v1753, %v1841
        %1843 = vmatmul.f32.gmra.mxu0 %v1216
        %v1844 = vpop.f32.mrf.mxu0
        %v1845 = vadd.f32 %v1756, %v1844
        %1846 = vmatmul.f32.gmra.mxu0 %v1219
        %v1847 = vpop.f32.mrf.mxu0
        %v1848 = vadd.f32 %v1759, %v1847
        %1849 = vmatmul.f32.gmra.mxu0 %v1222
        %v1850 = vpop.f32.mrf.mxu0
        %v1851 = vadd.f32 %v1762, %v1850
        %1852 = vmatmul.f32.gmra.mxu0 %v1225
        %v1853 = vpop.f32.mrf.mxu0
        %v1854 = vadd.f32 %v1765, %v1853
        %1855 = vmatmul.f32.gmra.mxu0 %v1228
        %v1856 = vpop.f32.mrf.mxu0
        %v1857 = vadd.f32 %v1768, %v1856
        %1858 = vmatmul.f32.gmra.mxu0 %v1231
        %v1859 = vpop.f32.mrf.mxu0
        %v1860 = vadd.f32 %v1771, %v1859
        %1861 = vmatmul.f32.gmra.mxu0 %v1234
        %v1862 = vpop.f32.mrf.mxu0
        %v1863 = vadd.f32 %v1774, %v1862
        %1864 = vmatmul.f32.gmra.mxu0 %v1237
        %v1865 = vpop.f32.mrf.mxu0
        %v1866 = vadd.f32 %v1777, %v1865
        %1867 = vmatmul.f32.gmra.mxu0 %v1240
        %v1868 = vpop.f32.mrf.mxu0
        %v1869 = vadd.f32 %v1780, %v1868
        %1870 = vmatmul.f32.gmra.mxu0 %v1243
        %v1871 = vpop.f32.mrf.mxu0
        %v1872 = vadd.f32 %v1783, %v1871
        %1873 = vmatmul.f32.gmra.mxu0 %v1246
        %v1874 = vpop.f32.mrf.mxu0
        %v1875 = vadd.f32 %v1786, %v1874
        %1876 = vmatmul.f32.gmra.mxu0 %v1249
        %v1877 = vpop.f32.mrf.mxu0
        %v1878 = vadd.f32 %v1789, %v1877
        %1879 = vmatmul.f32.gmra.mxu0 %v1252
        %v1880 = vpop.f32.mrf.mxu0
        %v1881 = vadd.f32 %v1792, %v1880
        %1882 = vmatmul.f32.gmra.mxu0 %v1255
        %v1883 = vpop.f32.mrf.mxu0
        %v1884 = vadd.f32 %v1795, %v1883
        %1885 = vmatmul.f32.gmra.mxu0 %v1258
        %v1886 = vpop.f32.mrf.mxu0
        %v1887 = vadd.f32 %v1798, %v1886
        %1888 = vmatmul.f32.gmra.mxu0 %v1261
        %v1889 = vpop.f32.mrf.mxu0
        %v1890 = vadd.f32 %v1801, %v1889
        %1891 = vmatmul.f32.gmra.mxu0 %v1264
        %v1892 = vpop.f32.mrf.mxu0
        %v1893 = vadd.f32 %v1804, %v1892
        %1894 = vdwg.mxu0
        %v1895 = vld [vmem:[#allocation10] sm:$0x3]
        %v1897 = vperm.slane %v1895, 0
        %v1898 = vperm.slane %v1895, 1
        %v1901 = vmul.f32 %v1557, %v1897
        %v1902 = vmul.f32 %v1824, %v1898
        %v1903 = vmul.f32 %v1560, %v1897
        %v1904 = vmul.f32 %v1827, %v1898
        %v1905 = vmul.f32 %v1563, %v1897
        %v1906 = vmul.f32 %v1830, %v1898
        %v1907 = vmul.f32 %v1566, %v1897
        %v1908 = vmul.f32 %v1833, %v1898
        %v1909 = vmul.f32 %v1569, %v1897
        %v1910 = vmul.f32 %v1836, %v1898
        %v1911 = vmul.f32 %v1572, %v1897
        %v1912 = vmul.f32 %v1839, %v1898
        %v1913 = vmul.f32 %v1575, %v1897
        %v1914 = vmul.f32 %v1842, %v1898
        %v1915 = vmul.f32 %v1578, %v1897
        %v1916 = vmul.f32 %v1845, %v1898
        %v1917 = vmul.f32 %v1581, %v1897
        %v1918 = vmul.f32 %v1848, %v1898
        %v1919 = vmul.f32 %v1584, %v1897
        %v1920 = vmul.f32 %v1851, %v1898
        %v1921 = vmul.f32 %v1587, %v1897
        %v1922 = vmul.f32 %v1854, %v1898
        %v1923 = vmul.f32 %v1590, %v1897
        %v1924 = vmul.f32 %v1857, %v1898
        %v1925 = vmul.f32 %v1593, %v1897
        %v1926 = vmul.f32 %v1860, %v1898
        %v1927 = vmul.f32 %v1596, %v1897
        %v1928 = vmul.f32 %v1863, %v1898
        %v1929 = vmul.f32 %v1599, %v1897
        %v1930 = vmul.f32 %v1866, %v1898
        %v1931 = vmul.f32 %v1602, %v1897
        %v1932 = vmul.f32 %v1869, %v1898
        %v1933 = vmul.f32 %v1605, %v1897
        %v1934 = vmul.f32 %v1872, %v1898
        %v1935 = vmul.f32 %v1608, %v1897
        %v1936 = vmul.f32 %v1875, %v1898
        %v1937 = vmul.f32 %v1611, %v1897
        %v1938 = vmul.f32 %v1878, %v1898
        %v1939 = vmul.f32 %v1614, %v1897
        %v1940 = vmul.f32 %v1881, %v1898
        %v1941 = vmul.f32 %v1617, %v1897
        %v1942 = vmul.f32 %v1884, %v1898
        %v1943 = vmul.f32 %v1620, %v1897
        %v1944 = vmul.f32 %v1887, %v1898
        %v1945 = vmul.f32 %v1623, %v1897
        %v1946 = vmul.f32 %v1890, %v1898
        %v1947 = vmul.f32 %v1626, %v1897
        %v1948 = vmul.f32 %v1893, %v1898
        %v1949 = vld [vmem:[#allocation11] sm:$0x3]
        %v1951 = vperm.slane %v1949, 0
        %v1952 = vperm.slane %v1949, 1
        %v1955 = vadd.f32 %v1901, %v1951
        %v1956 = vadd.f32 %v1902, %v1952
        %v1957 = vadd.f32 %v1903, %v1951
        %v1958 = vadd.f32 %v1904, %v1952
        %v1959 = vadd.f32 %v1905, %v1951
        %v1960 = vadd.f32 %v1906, %v1952
        %v1961 = vadd.f32 %v1907, %v1951
        %v1962 = vadd.f32 %v1908, %v1952
        %v1963 = vadd.f32 %v1909, %v1951
        %v1964 = vadd.f32 %v1910, %v1952
        %v1965 = vadd.f32 %v1911, %v1951
        %v1966 = vadd.f32 %v1912, %v1952
        %v1967 = vadd.f32 %v1913, %v1951
        %v1968 = vadd.f32 %v1914, %v1952
        %v1969 = vadd.f32 %v1915, %v1951
        %v1970 = vadd.f32 %v1916, %v1952
        %v1971 = vadd.f32 %v1917, %v1951
        %v1972 = vadd.f32 %v1918, %v1952
        %v1973 = vadd.f32 %v1919, %v1951
        %v1974 = vadd.f32 %v1920, %v1952
        %v1975 = vadd.f32 %v1921, %v1951
        %v1976 = vadd.f32 %v1922, %v1952
        %v1977 = vadd.f32 %v1923, %v1951
        %v1978 = vadd.f32 %v1924, %v1952
        %v1979 = vadd.f32 %v1925, %v1951
        %v1980 = vadd.f32 %v1926, %v1952
        %v1981 = vadd.f32 %v1927, %v1951
        %v1982 = vadd.f32 %v1928, %v1952
        %v1983 = vadd.f32 %v1929, %v1951
        %v1984 = vadd.f32 %v1930, %v1952
        %v1985 = vadd.f32 %v1931, %v1951
        %v1986 = vadd.f32 %v1932, %v1952
        %v1987 = vadd.f32 %v1933, %v1951
        %v1988 = vadd.f32 %v1934, %v1952
        %v1989 = vadd.f32 %v1935, %v1951
        %v1990 = vadd.f32 %v1936, %v1952
        %v1991 = vadd.f32 %v1937, %v1951
        %v1992 = vadd.f32 %v1938, %v1952
        %v1993 = vadd.f32 %v1939, %v1951
        %v1994 = vadd.f32 %v1940, %v1952
        %v1995 = vadd.f32 %v1941, %v1951
        %v1996 = vadd.f32 %v1942, %v1952
        %v1997 = vadd.f32 %v1943, %v1951
        %v1998 = vadd.f32 %v1944, %v1952
        %v1999 = vadd.f32 %v1945, %v1951
        %v2000 = vadd.f32 %v1946, %v1952
        %v2001 = vadd.f32 %v1947, %v1951
        %v2002 = vadd.f32 %v1948, %v1952
        %vm2003 = vcmp.gt.f32.partialorder %v1955, 0.0
        %vm2004 = vcmp.gt.f32.partialorder %v1956, 0.0
        %vm2005 = vcmp.gt.f32.partialorder %v1957, 0.0
        %vm2006 = vcmp.gt.f32.partialorder %v1958, 0.0
        %vm2007 = vcmp.gt.f32.partialorder %v1959, 0.0
        %vm2008 = vcmp.gt.f32.partialorder %v1960, 0.0
        %vm2009 = vcmp.gt.f32.partialorder %v1961, 0.0
        %vm2010 = vcmp.gt.f32.partialorder %v1962, 0.0
        %vm2011 = vcmp.gt.f32.partialorder %v1963, 0.0
        %vm2012 = vcmp.gt.f32.partialorder %v1964, 0.0
        %vm2013 = vcmp.gt.f32.partialorder %v1965, 0.0
        %vm2014 = vcmp.gt.f32.partialorder %v1966, 0.0
        %vm2015 = vcmp.gt.f32.partialorder %v1967, 0.0
        %vm2016 = vcmp.gt.f32.partialorder %v1968, 0.0
        %vm2017 = vcmp.gt.f32.partialorder %v1969, 0.0
        %vm2018 = vcmp.gt.f32.partialorder %v1970, 0.0
        %vm2019 = vcmp.gt.f32.partialorder %v1971, 0.0
        %vm2020 = vcmp.gt.f32.partialorder %v1972, 0.0
        %vm2021 = vcmp.gt.f32.partialorder %v1973, 0.0
        %vm2022 = vcmp.gt.f32.partialorder %v1974, 0.0
        %vm2023 = vcmp.gt.f32.partialorder %v1975, 0.0
        %vm2024 = vcmp.gt.f32.partialorder %v1976, 0.0
        %vm2025 = vcmp.gt.f32.partialorder %v1977, 0.0
        %vm2026 = vcmp.gt.f32.partialorder %v1978, 0.0
        %vm2027 = vcmp.gt.f32.partialorder %v1979, 0.0
        %vm2028 = vcmp.gt.f32.partialorder %v1980, 0.0
        %vm2029 = vcmp.gt.f32.partialorder %v1981, 0.0
        %vm2030 = vcmp.gt.f32.partialorder %v1982, 0.0
        %vm2031 = vcmp.gt.f32.partialorder %v1983, 0.0
        %vm2032 = vcmp.gt.f32.partialorder %v1984, 0.0
        %vm2033 = vcmp.gt.f32.partialorder %v1985, 0.0
        %vm2034 = vcmp.gt.f32.partialorder %v1986, 0.0
        %vm2035 = vcmp.gt.f32.partialorder %v1987, 0.0
        %vm2036 = vcmp.gt.f32.partialorder %v1988, 0.0
        %vm2037 = vcmp.gt.f32.partialorder %v1989, 0.0
        %vm2038 = vcmp.gt.f32.partialorder %v1990, 0.0
        %vm2039 = vcmp.gt.f32.partialorder %v1991, 0.0
        %vm2040 = vcmp.gt.f32.partialorder %v1992, 0.0
        %vm2041 = vcmp.gt.f32.partialorder %v1993, 0.0
        %vm2042 = vcmp.gt.f32.partialorder %v1994, 0.0
        %vm2043 = vcmp.gt.f32.partialorder %v1995, 0.0
        %vm2044 = vcmp.gt.f32.partialorder %v1996, 0.0
        %vm2045 = vcmp.gt.f32.partialorder %v1997, 0.0
        %vm2046 = vcmp.gt.f32.partialorder %v1998, 0.0
        %vm2047 = vcmp.gt.f32.partialorder %v1999, 0.0
        %vm2048 = vcmp.gt.f32.partialorder %v2000, 0.0
        %vm2049 = vcmp.gt.f32.partialorder %v2001, 0.0
        %vm2050 = vcmp.gt.f32.partialorder %v2002, 0.0
        %v2051 = vmul.f32 %v1955, 0.01
        %v2052 = vmul.f32 %v1956, 0.01
        %v2053 = vmul.f32 %v1957, 0.01
        %v2054 = vmul.f32 %v1958, 0.01
        %v2055 = vmul.f32 %v1959, 0.01
        %v2056 = vmul.f32 %v1960, 0.01
        %v2057 = vmul.f32 %v1961, 0.01
        %v2058 = vmul.f32 %v1962, 0.01
        %v2059 = vmul.f32 %v1963, 0.01
        %v2060 = vmul.f32 %v1964, 0.01
        %v2061 = vmul.f32 %v1965, 0.01
        %v2062 = vmul.f32 %v1966, 0.01
        %v2063 = vmul.f32 %v1967, 0.01
        %v2064 = vmul.f32 %v1968, 0.01
        %v2065 = vmul.f32 %v1969, 0.01
        %v2066 = vmul.f32 %v1970, 0.01
        %v2067 = vmul.f32 %v1971, 0.01
        %v2068 = vmul.f32 %v1972, 0.01
        %v2069 = vmul.f32 %v1973, 0.01
        %v2070 = vmul.f32 %v1974, 0.01
        %v2071 = vmul.f32 %v1975, 0.01
        %v2072 = vmul.f32 %v1976, 0.01
        %v2073 = vmul.f32 %v1977, 0.01
        %v2074 = vmul.f32 %v1978, 0.01
        %v2075 = vmul.f32 %v1979, 0.01
        %v2076 = vmul.f32 %v1980, 0.01
        %v2077 = vmul.f32 %v1981, 0.01
        %v2078 = vmul.f32 %v1982, 0.01
        %v2079 = vmul.f32 %v1983, 0.01
        %v2080 = vmul.f32 %v1984, 0.01
        %v2081 = vmul.f32 %v1985, 0.01
        %v2082 = vmul.f32 %v1986, 0.01
        %v2083 = vmul.f32 %v1987, 0.01
        %v2084 = vmul.f32 %v1988, 0.01
        %v2085 = vmul.f32 %v1989, 0.01
        %v2086 = vmul.f32 %v1990, 0.01
        %v2087 = vmul.f32 %v1991, 0.01
        %v2088 = vmul.f32 %v1992, 0.01
        %v2089 = vmul.f32 %v1993, 0.01
        %v2090 = vmul.f32 %v1994, 0.01
        %v2091 = vmul.f32 %v1995, 0.01
        %v2092 = vmul.f32 %v1996, 0.01
        %v2093 = vmul.f32 %v1997, 0.01
        %v2094 = vmul.f32 %v1998, 0.01
        %v2095 = vmul.f32 %v1999, 0.01
        %v2096 = vmul.f32 %v2000, 0.01
        %v2097 = vmul.f32 %v2001, 0.01
        %v2098 = vmul.f32 %v2002, 0.01
        %v2099 = vsel %vm2003, %v1955, %v2051
        %v2100 = vsel %vm2004, %v1956, %v2052
        %v2101 = vsel %vm2005, %v1957, %v2053
        %v2102 = vsel %vm2006, %v1958, %v2054
        %v2103 = vsel %vm2007, %v1959, %v2055
        %v2104 = vsel %vm2008, %v1960, %v2056
        %v2105 = vsel %vm2009, %v1961, %v2057
        %v2106 = vsel %vm2010, %v1962, %v2058
        %v2107 = vsel %vm2011, %v1963, %v2059
        %v2108 = vsel %vm2012, %v1964, %v2060
        %v2109 = vsel %vm2013, %v1965, %v2061
        %v2110 = vsel %vm2014, %v1966, %v2062
        %v2111 = vsel %vm2015, %v1967, %v2063
        %v2112 = vsel %vm2016, %v1968, %v2064
        %v2113 = vsel %vm2017, %v1969, %v2065
        %v2114 = vsel %vm2018, %v1970, %v2066
        %v2115 = vsel %vm2019, %v1971, %v2067
        %v2116 = vsel %vm2020, %v1972, %v2068
        %v2117 = vsel %vm2021, %v1973, %v2069
        %v2118 = vsel %vm2022, %v1974, %v2070
        %v2119 = vsel %vm2023, %v1975, %v2071
        %v2120 = vsel %vm2024, %v1976, %v2072
        %v2121 = vsel %vm2025, %v1977, %v2073
        %v2122 = vsel %vm2026, %v1978, %v2074
        %v2123 = vsel %vm2027, %v1979, %v2075
        %v2124 = vsel %vm2028, %v1980, %v2076
        %v2125 = vsel %vm2029, %v1981, %v2077
        %v2126 = vsel %vm2030, %v1982, %v2078
        %v2127 = vsel %vm2031, %v1983, %v2079
        %v2128 = vsel %vm2032, %v1984, %v2080
        %v2129 = vsel %vm2033, %v1985, %v2081
        %v2130 = vsel %vm2034, %v1986, %v2082
        %v2131 = vsel %vm2035, %v1987, %v2083
        %v2132 = vsel %vm2036, %v1988, %v2084
        %v2133 = vsel %vm2037, %v1989, %v2085
        %v2134 = vsel %vm2038, %v1990, %v2086
        %v2135 = vsel %vm2039, %v1991, %v2087
        %v2136 = vsel %vm2040, %v1992, %v2088
        %v2137 = vsel %vm2041, %v1993, %v2089
        %v2138 = vsel %vm2042, %v1994, %v2090
        %v2139 = vsel %vm2043, %v1995, %v2091
        %v2140 = vsel %vm2044, %v1996, %v2092
        %v2141 = vsel %vm2045, %v1997, %v2093
        %v2142 = vsel %vm2046, %v1998, %v2094
        %v2143 = vsel %vm2047, %v1999, %v2095
        %v2144 = vsel %vm2048, %v2000, %v2096
        %v2145 = vsel %vm2049, %v2001, %v2097
        %v2146 = vsel %vm2050, %v2002, %v2098
        %v2147 = vlaneseq
        %vm2148 = vcmp.ge.s32.totalorder %v2147, 0
        %vm2149 = vcmp.lt.s32.totalorder %v2147, 256
        %vm2150 = vmand %vm2148, %vm2149
        %2151 = vst.msk [vmem:[#allocation3] ss:$8 sm:$0x3] %vm2150, 0.0
        %2152 = vst.msk [vmem:[#allocation3] ss:$8 sm:$0x0] %vm2150, 0.0
        %s2153 = scalar_lea.vmem [#allocation3], 48
        %2154 = vst.msk [vmem:[%s2153] ss:$8 sm:$0x3] %vm2150, 0.0
        %2155 = vst.msk [vmem:[%s2153] ss:$8 sm:$0x0] %vm2150, 0.0
        %s2156 = scalar_lea.vmem [#allocation3], 96
        %2157 = vst.msk [vmem:[%s2156] ss:$8 sm:$0x3] %vm2150, 0.0
        %2158 = vst.msk [vmem:[%s2156] ss:$8 sm:$0x0] %vm2150, 0.0
        %s2159 = scalar_lea.vmem [#allocation3], 144
        %2160 = vst.msk [vmem:[%s2159] ss:$8 sm:$0x3] %vm2150, 0.0
        %2161 = vst.msk [vmem:[%s2159] ss:$8 sm:$0x0] %vm2150, 0.0
        %s2162 = scalar_lea.vmem [#allocation3], 192
        %2163 = vst.msk [vmem:[%s2162] ss:$8 sm:$0x3] %vm2150, 0.0
        %2164 = vst.msk [vmem:[%s2162] ss:$8 sm:$0x0] %vm2150, 0.0
        %s2165 = scalar_lea.vmem [#allocation3], 240
        %2166 = vst.msk [vmem:[%s2165] ss:$8 sm:$0x3] %vm2150, 0.0
        %2167 = vst.msk [vmem:[%s2165] ss:$8 sm:$0x0] %vm2150, 0.0
        %s2168 = scalar_lea.vmem [#allocation3], 288
        %2169 = vst.msk [vmem:[%s2168] ss:$8 sm:$0x3] %vm2150, 0.0
        %2170 = vst.msk [vmem:[%s2168] ss:$8 sm:$0x0] %vm2150, 0.0
        %s2171 = scalar_lea.vmem [#allocation3], 336
        %2172 = vst.msk [vmem:[%s2171] ss:$8 sm:$0x3] %vm2150, 0.0
        %2173 = vst.msk [vmem:[%s2171] ss:$8 sm:$0x0] %vm2150, 0.0
        %s2174 = scalar_lea.vmem [#allocation3], 384
        %2175 = vst.msk [vmem:[%s2174] ss:$8 sm:$0x3] %vm2150, 0.0
        %2176 = vst.msk [vmem:[%s2174] ss:$8 sm:$0x0] %vm2150, 0.0
        %s2177 = scalar_lea.vmem [#allocation3], 432
        %2178 = vst.msk [vmem:[%s2177] ss:$8 sm:$0x3] %vm2150, 0.0
        %2179 = vst.msk [vmem:[%s2177] ss:$8 sm:$0x0] %vm2150, 0.0
        %s2180 = scalar_lea.vmem [#allocation3], 480
        %2181 = vst.msk [vmem:[%s2180] ss:$8 sm:$0x3] %vm2150, 0.0
        %2182 = vst.msk [vmem:[%s2180] ss:$8 sm:$0x0] %vm2150, 0.0
        %s2183 = scalar_lea.vmem [#allocation3], 528
        %2184 = vst.msk [vmem:[%s2183] ss:$8 sm:$0x3] %vm2150, 0.0
        %2185 = vst.msk [vmem:[%s2183] ss:$8 sm:$0x0] %vm2150, 0.0
        %s2186 = scalar_lea.vmem [#allocation3], 33
        %2187 = vst.msk [vmem:[%s2186] ss:$8 sm:$0x3] %vm2150, 0.0
        %2188 = vst.msk [vmem:[%s2186] ss:$8 sm:$0x0] %vm2150, 0.0
        %s2189 = scalar_lea.vmem [#allocation3], 81
        %2190 = vst.msk [vmem:[%s2189] ss:$8 sm:$0x3] %vm2150, 0.0
        %2191 = vst.msk [vmem:[%s2189] ss:$8 sm:$0x0] %vm2150, 0.0
        %s2192 = scalar_lea.vmem [#allocation3], 129
        %2193 = vst.msk [vmem:[%s2192] ss:$8 sm:$0x3] %vm2150, 0.0
        %2194 = vst.msk [vmem:[%s2192] ss:$8 sm:$0x0] %vm2150, 0.0
        %s2195 = scalar_lea.vmem [#allocation3], 177
        %2196 = vst.msk [vmem:[%s2195] ss:$8 sm:$0x3] %vm2150, 0.0
        %2197 = vst.msk [vmem:[%s2195] ss:$8 sm:$0x0] %vm2150, 0.0
        %s2198 = scalar_lea.vmem [#allocation3], 225
        %2199 = vst.msk [vmem:[%s2198] ss:$8 sm:$0x3] %vm2150, 0.0
        %2200 = vst.msk [vmem:[%s2198] ss:$8 sm:$0x0] %vm2150, 0.0
        %s2201 = scalar_lea.vmem [#allocation3], 273
        %2202 = vst.msk [vmem:[%s2201] ss:$8 sm:$0x3] %vm2150, 0.0
        %2203 = vst.msk [vmem:[%s2201] ss:$8 sm:$0x0] %vm2150, 0.0
        %s2204 = scalar_lea.vmem [#allocation3], 321
        %2205 = vst.msk [vmem:[%s2204] ss:$8 sm:$0x3] %vm2150, 0.0
        %2206 = vst.msk [vmem:[%s2204] ss:$8 sm:$0x0] %vm2150, 0.0
        %s2207 = scalar_lea.vmem [#allocation3], 369
        %2208 = vst.msk [vmem:[%s2207] ss:$8 sm:$0x3] %vm2150, 0.0
        %2209 = vst.msk [vmem:[%s2207] ss:$8 sm:$0x0] %vm2150, 0.0
        %s2210 = scalar_lea.vmem [#allocation3], 417
        %2211 = vst.msk [vmem:[%s2210] ss:$8 sm:$0x3] %vm2150, 0.0
        %2212 = vst.msk [vmem:[%s2210] ss:$8 sm:$0x0] %vm2150, 0.0
        %s2213 = scalar_lea.vmem [#allocation3], 465
        %2214 = vst.msk [vmem:[%s2213] ss:$8 sm:$0x3] %vm2150, 0.0
        %2215 = vst.msk [vmem:[%s2213] ss:$8 sm:$0x0] %vm2150, 0.0
        %s2216 = scalar_lea.vmem [#allocation3], 513
        %2217 = vst.msk [vmem:[%s2216] ss:$8 sm:$0x3] %vm2150, 0.0
        %2218 = vst.msk [vmem:[%s2216] ss:$8 sm:$0x0] %vm2150, 0.0
        %s2219 = scalar_lea.vmem [#allocation3], 561
        %2220 = vst.msk [vmem:[%s2219] ss:$8 sm:$0x3] %vm2150, 0.0
        %2221 = vst.msk [vmem:[%s2219] ss:$8 sm:$0x0] %vm2150, 0.0
        %vm2270 = vcmask 1040384
        %v2271 = vrot.slane %v2099, 7
        %v2272 = vrot.slane %v2100, 7
        %v2273 = vrot.slane %v2101, 7
        %v2274 = vsel %vm2270, %v2271, %v2273
        %v2275 = vrot.slane %v2102, 7
        %v2276 = vsel %vm2270, %v2272, %v2275
        %v2277 = vrot.slane %v2103, 7
        %v2278 = vrot.slane %v2104, 7
        %v2279 = vrot.slane %v2105, 7
        %v2280 = vsel %vm2270, %v2277, %v2279
        %v2281 = vrot.slane %v2106, 7
        %v2282 = vsel %vm2270, %v2278, %v2281
        %v2283 = vrot.slane %v2107, 7
        %v2284 = vrot.slane %v2108, 7
        %v2285 = vrot.slane %v2109, 7
        %v2286 = vsel %vm2270, %v2283, %v2285
        %v2287 = vrot.slane %v2110, 7
        %v2288 = vsel %vm2270, %v2284, %v2287
        %v2289 = vrot.slane %v2111, 7
        %v2290 = vrot.slane %v2112, 7
        %v2291 = vrot.slane %v2113, 7
        %v2292 = vsel %vm2270, %v2289, %v2291
        %v2293 = vrot.slane %v2114, 7
        %v2294 = vsel %vm2270, %v2290, %v2293
        %v2295 = vrot.slane %v2115, 7
        %v2296 = vrot.slane %v2116, 7
        %v2297 = vrot.slane %v2117, 7
        %v2298 = vsel %vm2270, %v2295, %v2297
        %v2299 = vrot.slane %v2118, 7
        %v2300 = vsel %vm2270, %v2296, %v2299
        %v2301 = vrot.slane %v2119, 7
        %v2302 = vrot.slane %v2120, 7
        %v2303 = vrot.slane %v2121, 7
        %v2304 = vsel %vm2270, %v2301, %v2303
        %v2305 = vrot.slane %v2122, 7
        %v2306 = vsel %vm2270, %v2302, %v2305
        %v2307 = vrot.slane %v2123, 7
        %v2308 = vrot.slane %v2124, 7
        %v2309 = vrot.slane %v2125, 7
        %v2310 = vsel %vm2270, %v2307, %v2309
        %v2311 = vrot.slane %v2126, 7
        %v2312 = vsel %vm2270, %v2308, %v2311
        %v2313 = vrot.slane %v2127, 7
        %v2314 = vrot.slane %v2128, 7
        %v2315 = vrot.slane %v2129, 7
        %v2316 = vsel %vm2270, %v2313, %v2315
        %v2317 = vrot.slane %v2130, 7
        %v2318 = vsel %vm2270, %v2314, %v2317
        %v2319 = vrot.slane %v2131, 7
        %v2320 = vrot.slane %v2132, 7
        %v2321 = vrot.slane %v2133, 7
        %v2322 = vsel %vm2270, %v2319, %v2321
        %v2323 = vrot.slane %v2134, 7
        %v2324 = vsel %vm2270, %v2320, %v2323
        %v2325 = vrot.slane %v2135, 7
        %v2326 = vrot.slane %v2136, 7
        %v2327 = vrot.slane %v2137, 7
        %v2328 = vsel %vm2270, %v2325, %v2327
        %v2329 = vrot.slane %v2138, 7
        %v2330 = vsel %vm2270, %v2326, %v2329
        %v2331 = vrot.slane %v2139, 7
        %v2332 = vrot.slane %v2140, 7
        %v2333 = vrot.slane %v2141, 7
        %v2334 = vsel %vm2270, %v2331, %v2333
        %v2335 = vrot.slane %v2142, 7
        %v2336 = vsel %vm2270, %v2332, %v2335
        %v2337 = vrot.slane %v2143, 7
        %v2338 = vrot.slane %v2144, 7
        %v2339 = vrot.slane %v2145, 7
        %v2340 = vsel %vm2270, %v2337, %v2339
        %v2341 = vrot.slane %v2146, 7
        %v2342 = vsel %vm2270, %v2338, %v2341
        %2415 = vst [vmem:[#allocation3] sm:$0xfe] %v2271
        %2416 = vst [vmem:[#allocation3 + $0x8] sm:$0xfe] %v2272
        %2417 = vst [vmem:[#allocation3 + $0x10] sm:$0xff] %v2274
        %2418 = vst [vmem:[#allocation3 + $0x18] sm:$0xff] %v2276
        %2419 = vst [vmem:[#allocation3 + $0x20] sm:$0x1] %v2273
        %2420 = vst [vmem:[#allocation3 + $0x28] sm:$0x1] %v2275
        %2421 = vst [vmem:[#allocation3 + $0x30] sm:$0xfe] %v2277
        %2422 = vst [vmem:[#allocation3 + $0x38] sm:$0xfe] %v2278
        %2423 = vst [vmem:[#allocation3 + $0x40] sm:$0xff] %v2280
        %2424 = vst [vmem:[#allocation3 + $0x48] sm:$0xff] %v2282
        %2425 = vst [vmem:[#allocation3 + $0x50] sm:$0x1] %v2279
        %2426 = vst [vmem:[#allocation3 + $0x58] sm:$0x1] %v2281
        %2427 = vst [vmem:[#allocation3 + $0x60] sm:$0xfe] %v2283
        %2428 = vst [vmem:[#allocation3 + $0x68] sm:$0xfe] %v2284
        %2429 = vst [vmem:[#allocation3 + $0x70] sm:$0xff] %v2286
        %2430 = vst [vmem:[#allocation3 + $0x78] sm:$0xff] %v2288
        %2431 = vst [vmem:[#allocation3 + $0x80] sm:$0x1] %v2285
        %2432 = vst [vmem:[#allocation3 + $0x88] sm:$0x1] %v2287
        %2433 = vst [vmem:[#allocation3 + $0x90] sm:$0xfe] %v2289
        %2434 = vst [vmem:[#allocation3 + $0x98] sm:$0xfe] %v2290
        %2435 = vst [vmem:[#allocation3 + $0xa0] sm:$0xff] %v2292
        %2436 = vst [vmem:[#allocation3 + $0xa8] sm:$0xff] %v2294
        %2437 = vst [vmem:[#allocation3 + $0xb0] sm:$0x1] %v2291
        %2438 = vst [vmem:[#allocation3 + $0xb8] sm:$0x1] %v2293
        %2439 = vst [vmem:[#allocation3 + $0xc0] sm:$0xfe] %v2295
        %2440 = vst [vmem:[#allocation3 + $0xc8] sm:$0xfe] %v2296
        %2441 = vst [vmem:[#allocation3 + $0xd0] sm:$0xff] %v2298
        %2442 = vst [vmem:[#allocation3 + $0xd8] sm:$0xff] %v2300
        %2443 = vst [vmem:[#allocation3 + $0xe0] sm:$0x1] %v2297
        %2444 = vst [vmem:[#allocation3 + $0xe8] sm:$0x1] %v2299
        %2445 = vst [vmem:[#allocation3 + $0xf0] sm:$0xfe] %v2301
        %2446 = vst [vmem:[#allocation3 + $0xf8] sm:$0xfe] %v2302
        %2447 = vst [vmem:[#allocation3 + $0x100] sm:$0xff] %v2304
        %2448 = vst [vmem:[#allocation3 + $0x108] sm:$0xff] %v2306
        %2449 = vst [vmem:[#allocation3 + $0x110] sm:$0x1] %v2303
        %2450 = vst [vmem:[#allocation3 + $0x118] sm:$0x1] %v2305
        %2451 = vst [vmem:[#allocation3 + $0x120] sm:$0xfe] %v2307
        %2452 = vst [vmem:[#allocation3 + $0x128] sm:$0xfe] %v2308
        %2453 = vst [vmem:[#allocation3 + $0x130] sm:$0xff] %v2310
        %2454 = vst [vmem:[#allocation3 + $0x138] sm:$0xff] %v2312
        %2455 = vst [vmem:[#allocation3 + $0x140] sm:$0x1] %v2309
        %2456 = vst [vmem:[#allocation3 + $0x148] sm:$0x1] %v2311
        %2457 = vst [vmem:[#allocation3 + $0x150] sm:$0xfe] %v2313
        %2458 = vst [vmem:[#allocation3 + $0x158] sm:$0xfe] %v2314
        %2459 = vst [vmem:[#allocation3 + $0x160] sm:$0xff] %v2316
        %2460 = vst [vmem:[#allocation3 + $0x168] sm:$0xff] %v2318
        %2461 = vst [vmem:[#allocation3 + $0x170] sm:$0x1] %v2315
        %2462 = vst [vmem:[#allocation3 + $0x178] sm:$0x1] %v2317
        %2463 = vst [vmem:[#allocation3 + $0x180] sm:$0xfe] %v2319
        %2464 = vst [vmem:[#allocation3 + $0x188] sm:$0xfe] %v2320
        %2465 = vst [vmem:[#allocation3 + $0x190] sm:$0xff] %v2322
        %2466 = vst [vmem:[#allocation3 + $0x198] sm:$0xff] %v2324
        %2467 = vst [vmem:[#allocation3 + $0x1a0] sm:$0x1] %v2321
        %2468 = vst [vmem:[#allocation3 + $0x1a8] sm:$0x1] %v2323
        %2469 = vst [vmem:[#allocation3 + $0x1b0] sm:$0xfe] %v2325
        %2470 = vst [vmem:[#allocation3 + $0x1b8] sm:$0xfe] %v2326
        %2471 = vst [vmem:[#allocation3 + $0x1c0] sm:$0xff] %v2328
        %2472 = vst [vmem:[#allocation3 + $0x1c8] sm:$0xff] %v2330
        %2473 = vst [vmem:[#allocation3 + $0x1d0] sm:$0x1] %v2327
        %2474 = vst [vmem:[#allocation3 + $0x1d8] sm:$0x1] %v2329
        %2475 = vst [vmem:[#allocation3 + $0x1e0] sm:$0xfe] %v2331
        %2476 = vst [vmem:[#allocation3 + $0x1e8] sm:$0xfe] %v2332
        %2477 = vst [vmem:[#allocation3 + $0x1f0] sm:$0xff] %v2334
        %2478 = vst [vmem:[#allocation3 + $0x1f8] sm:$0xff] %v2336
        %2479 = vst [vmem:[#allocation3 + $0x200] sm:$0x1] %v2333
        %2480 = vst [vmem:[#allocation3 + $0x208] sm:$0x1] %v2335
        %2481 = vst [vmem:[#allocation3 + $0x210] sm:$0xfe] %v2337
        %2482 = vst [vmem:[#allocation3 + $0x218] sm:$0xfe] %v2338
        %2483 = vst [vmem:[#allocation3 + $0x220] sm:$0xff] %v2340
        %2484 = vst [vmem:[#allocation3 + $0x228] sm:$0xff] %v2342
        %2485 = vst [vmem:[#allocation3 + $0x230] sm:$0x1] %v2339
        %2486 = vst [vmem:[#allocation3 + $0x238] sm:$0x1] %v2341
        // Predicated region
        $region161: #{conv5l_forward.1} parent=83 // pred_check
          %p2487 = pneg %p786
        $region162: #{conv5l_forward.1} parent=83 // pred_check_branch
          %2489 = sbr.rel (%p2487) target = $region164
        $region163: #{conv5l_forward.1} parent=83 // pred_region
          %2490 = vst [vmem:[#allocation3] sm:$0xff] 0.0
          %2491 = vst [vmem:[#allocation3 + $0x8] sm:$0xff] 0.0
          %2492 = vst [vmem:[#allocation3 + $0x10] sm:$0xff] 0.0
          %2493 = vst [vmem:[#allocation3 + $0x18] sm:$0xff] 0.0
          %2494 = vst [vmem:[#allocation3 + $0x20] sm:$0x3] 0.0
          %2495 = vst [vmem:[#allocation3 + $0x28] sm:$0x3] 0.0
          %2496 = vst [vmem:[#allocation3 + $0x30] sm:$0xff] 0.0
          %2497 = vst [vmem:[#allocation3 + $0x38] sm:$0xff] 0.0
          %2498 = vst [vmem:[#allocation3 + $0x40] sm:$0xff] 0.0
          %2499 = vst [vmem:[#allocation3 + $0x48] sm:$0xff] 0.0
          %2500 = vst [vmem:[#allocation3 + $0x50] sm:$0x3] 0.0
          %2501 = vst [vmem:[#allocation3 + $0x58] sm:$0x3] 0.0
        $region164: #{conv5l_forward.1} parent=83 // pred_fallthru
          _
        // Predicated region
        $region165: #{conv5l_forward.1} parent=83 // pred_check
          %p2502 = pneg %p1065
        $region166: #{conv5l_forward.1} parent=83 // pred_check_branch
          %2504 = sbr.rel (%p2502) target = $region168
        $region167: #{conv5l_forward.1} parent=83 // pred_region
          %s2505 = scalar_lea.vmem [#allocation3], 480
          %2506 = vst [vmem:[%s2505] sm:$0xff] 0.0
          %2507 = vst [vmem:[%s2505 + $0x8] sm:$0xff] 0.0
          %2508 = vst [vmem:[%s2505 + $0x10] sm:$0xff] 0.0
          %2509 = vst [vmem:[%s2505 + $0x18] sm:$0xff] 0.0
          %2510 = vst [vmem:[%s2505 + $0x20] sm:$0x3] 0.0
          %2511 = vst [vmem:[%s2505 + $0x28] sm:$0x3] 0.0
          %2512 = vst [vmem:[%s2505 + $0x30] sm:$0xff] 0.0
          %2513 = vst [vmem:[%s2505 + $0x38] sm:$0xff] 0.0
          %2514 = vst [vmem:[%s2505 + $0x40] sm:$0xff] 0.0
          %2515 = vst [vmem:[%s2505 + $0x48] sm:$0xff] 0.0
          %2516 = vst [vmem:[%s2505 + $0x50] sm:$0x3] 0.0
          %2517 = vst [vmem:[%s2505 + $0x58] sm:$0x3] 0.0
        $region168: #{conv5l_forward.1} parent=83 // pred_fallthru
          _
        %v2518 = vld [vmem:[#allocation3] sm:$0xff]
        %v2519 = vld [vmem:[#allocation3 + $0x8] sm:$0xff]
        %v2520 = vld [vmem:[#allocation3 + $0x10] sm:$0xff]
        %v2521 = vld [vmem:[#allocation3 + $0x18] sm:$0xff]
        %v2522 = vld [vmem:[#allocation3 + $0x30] sm:$0xff]
        %v2523 = vld [vmem:[#allocation3 + $0x38] sm:$0xff]
        %v2524 = vld [vmem:[#allocation3 + $0x40] sm:$0xff]
        %v2525 = vld [vmem:[#allocation3 + $0x48] sm:$0xff]
        %v2526 = vld [vmem:[#allocation3 + $0x60] sm:$0xff]
        %v2527 = vld [vmem:[#allocation3 + $0x68] sm:$0xff]
        %v2528 = vld [vmem:[#allocation3 + $0x70] sm:$0xff]
        %v2529 = vld [vmem:[#allocation3 + $0x78] sm:$0xff]
        %v2530 = vld [vmem:[#allocation3 + $0x90] sm:$0xff]
        %v2531 = vld [vmem:[#allocation3 + $0x98] sm:$0xff]
        %v2532 = vld [vmem:[#allocation3 + $0xa0] sm:$0xff]
        %v2533 = vld [vmem:[#allocation3 + $0xa8] sm:$0xff]
        %v2534 = vld [vmem:[#allocation3 + $0xc0] sm:$0xff]
        %v2535 = vld [vmem:[#allocation3 + $0xc8] sm:$0xff]
        %v2536 = vld [vmem:[#allocation3 + $0xd0] sm:$0xff]
        %v2537 = vld [vmem:[#allocation3 + $0xd8] sm:$0xff]
        %v2538 = vld [vmem:[#allocation3 + $0xf0] sm:$0xff]
        %v2539 = vld [vmem:[#allocation3 + $0xf8] sm:$0xff]
        %v2540 = vld [vmem:[#allocation3 + $0x100] sm:$0xff]
        %v2541 = vld [vmem:[#allocation3 + $0x108] sm:$0xff]
        %v2542 = vld [vmem:[#allocation3 + $0x120] sm:$0xff]
        %v2543 = vld [vmem:[#allocation3 + $0x128] sm:$0xff]
        %v2544 = vld [vmem:[#allocation3 + $0x130] sm:$0xff]
        %v2545 = vld [vmem:[#allocation3 + $0x138] sm:$0xff]
        %v2546 = vld [vmem:[#allocation3 + $0x150] sm:$0xff]
        %v2547 = vld [vmem:[#allocation3 + $0x158] sm:$0xff]
        %v2548 = vld [vmem:[#allocation3 + $0x160] sm:$0xff]
        %v2549 = vld [vmem:[#allocation3 + $0x168] sm:$0xff]
        %v2550 = vld [vmem:[#allocation3 + $0x180] sm:$0xff]
        %v2551 = vld [vmem:[#allocation3 + $0x188] sm:$0xff]
        %v2552 = vld [vmem:[#allocation3 + $0x190] sm:$0xff]
        %v2553 = vld [vmem:[#allocation3 + $0x198] sm:$0xff]
        %v2554 = vld [vmem:[#allocation3 + $0x1b0] sm:$0xff]
        %v2555 = vld [vmem:[#allocation3 + $0x1b8] sm:$0xff]
        %v2556 = vld [vmem:[#allocation3 + $0x1c0] sm:$0xff]
        %v2557 = vld [vmem:[#allocation3 + $0x1c8] sm:$0xff]
        %v2558 = vld [vmem:[#allocation3] sm:$0xfe]
        %v2559 = vld [vmem:[#allocation3 + $0x8] sm:$0xfe]
        %v2560 = vld [vmem:[#allocation3 + $0x20] sm:$0x1]
        %v2561 = vld [vmem:[#allocation3 + $0x28] sm:$0x1]
        %v2562 = vld [vmem:[#allocation3 + $0x30] sm:$0xfe]
        %v2563 = vld [vmem:[#allocation3 + $0x38] sm:$0xfe]
        %v2564 = vld [vmem:[#allocation3 + $0x50] sm:$0x1]
        %v2565 = vld [vmem:[#allocation3 + $0x58] sm:$0x1]
        %v2566 = vld [vmem:[#allocation3 + $0x60] sm:$0xfe]
        %v2567 = vld [vmem:[#allocation3 + $0x68] sm:$0xfe]
        %v2568 = vld [vmem:[#allocation3 + $0x80] sm:$0x1]
        %v2569 = vld [vmem:[#allocation3 + $0x88] sm:$0x1]
        %v2570 = vld [vmem:[#allocation3 + $0x90] sm:$0xfe]
        %v2571 = vld [vmem:[#allocation3 + $0x98] sm:$0xfe]
        %v2572 = vld [vmem:[#allocation3 + $0xb0] sm:$0x1]
        %v2573 = vld [vmem:[#allocation3 + $0xb8] sm:$0x1]
        %v2574 = vld [vmem:[#allocation3 + $0xc0] sm:$0xfe]
        %v2575 = vld [vmem:[#allocation3 + $0xc8] sm:$0xfe]
        %v2576 = vld [vmem:[#allocation3 + $0xe0] sm:$0x1]
        %v2577 = vld [vmem:[#allocation3 + $0xe8] sm:$0x1]
        %v2578 = vld [vmem:[#allocation3 + $0xf0] sm:$0xfe]
        %v2579 = vld [vmem:[#allocation3 + $0xf8] sm:$0xfe]
        %v2580 = vld [vmem:[#allocation3 + $0x110] sm:$0x1]
        %v2581 = vld [vmem:[#allocation3 + $0x118] sm:$0x1]
        %v2582 = vld [vmem:[#allocation3 + $0x120] sm:$0xfe]
        %v2583 = vld [vmem:[#allocation3 + $0x128] sm:$0xfe]
        %v2584 = vld [vmem:[#allocation3 + $0x140] sm:$0x1]
        %v2585 = vld [vmem:[#allocation3 + $0x148] sm:$0x1]
        %v2586 = vld [vmem:[#allocation3 + $0x150] sm:$0xfe]
        %v2587 = vld [vmem:[#allocation3 + $0x158] sm:$0xfe]
        %v2588 = vld [vmem:[#allocation3 + $0x170] sm:$0x1]
        %v2589 = vld [vmem:[#allocation3 + $0x178] sm:$0x1]
        %v2590 = vld [vmem:[#allocation3 + $0x180] sm:$0xfe]
        %v2591 = vld [vmem:[#allocation3 + $0x188] sm:$0xfe]
        %v2592 = vld [vmem:[#allocation3 + $0x1a0] sm:$0x1]
        %v2593 = vld [vmem:[#allocation3 + $0x1a8] sm:$0x1]
        %v2594 = vld [vmem:[#allocation3 + $0x1b0] sm:$0xfe]
        %v2595 = vld [vmem:[#allocation3 + $0x1b8] sm:$0xfe]
        %v2596 = vld [vmem:[#allocation3 + $0x1d0] sm:$0x1]
        %v2597 = vld [vmem:[#allocation3 + $0x1d8] sm:$0x1]
        %vm2658 = vcmask 1046528
        %v2659 = vrot.slane %v2558, 1
        %v2660 = vrot.slane %v2520, 1
        %v2661 = vsel %vm2658, %v2659, %v2660
        %v2662 = vrot.slane %v2559, 1
        %v2663 = vrot.slane %v2521, 1
        %v2664 = vsel %vm2658, %v2662, %v2663
        %v2665 = vrot.slane %v2560, 1
        %v2666 = vsel %vm2658, %v2660, %v2665
        %v2667 = vrot.slane %v2561, 1
        %v2668 = vsel %vm2658, %v2663, %v2667
        %v2669 = vrot.slane %v2562, 1
        %v2670 = vrot.slane %v2524, 1
        %v2671 = vsel %vm2658, %v2669, %v2670
        %v2672 = vrot.slane %v2563, 1
        %v2673 = vrot.slane %v2525, 1
        %v2674 = vsel %vm2658, %v2672, %v2673
        %v2675 = vrot.slane %v2564, 1
        %v2676 = vsel %vm2658, %v2670, %v2675
        %v2677 = vrot.slane %v2565, 1
        %v2678 = vsel %vm2658, %v2673, %v2677
        %v2679 = vrot.slane %v2566, 1
        %v2680 = vrot.slane %v2528, 1
        %v2681 = vsel %vm2658, %v2679, %v2680
        %v2682 = vrot.slane %v2567, 1
        %v2683 = vrot.slane %v2529, 1
        %v2684 = vsel %vm2658, %v2682, %v2683
        %v2685 = vrot.slane %v2568, 1
        %v2686 = vsel %vm2658, %v2680, %v2685
        %v2687 = vrot.slane %v2569, 1
        %v2688 = vsel %vm2658, %v2683, %v2687
        %v2689 = vrot.slane %v2570, 1
        %v2690 = vrot.slane %v2532, 1
        %v2691 = vsel %vm2658, %v2689, %v2690
        %v2692 = vrot.slane %v2571, 1
        %v2693 = vrot.slane %v2533, 1
        %v2694 = vsel %vm2658, %v2692, %v2693
        %v2695 = vrot.slane %v2572, 1
        %v2696 = vsel %vm2658, %v2690, %v2695
        %v2697 = vrot.slane %v2573, 1
        %v2698 = vsel %vm2658, %v2693, %v2697
        %v2699 = vrot.slane %v2574, 1
        %v2700 = vrot.slane %v2536, 1
        %v2701 = vsel %vm2658, %v2699, %v2700
        %v2702 = vrot.slane %v2575, 1
        %v2703 = vrot.slane %v2537, 1
        %v2704 = vsel %vm2658, %v2702, %v2703
        %v2705 = vrot.slane %v2576, 1
        %v2706 = vsel %vm2658, %v2700, %v2705
        %v2707 = vrot.slane %v2577, 1
        %v2708 = vsel %vm2658, %v2703, %v2707
        %v2709 = vrot.slane %v2578, 1
        %v2710 = vrot.slane %v2540, 1
        %v2711 = vsel %vm2658, %v2709, %v2710
        %v2712 = vrot.slane %v2579, 1
        %v2713 = vrot.slane %v2541, 1
        %v2714 = vsel %vm2658, %v2712, %v2713
        %v2715 = vrot.slane %v2580, 1
        %v2716 = vsel %vm2658, %v2710, %v2715
        %v2717 = vrot.slane %v2581, 1
        %v2718 = vsel %vm2658, %v2713, %v2717
        %v2719 = vrot.slane %v2582, 1
        %v2720 = vrot.slane %v2544, 1
        %v2721 = vsel %vm2658, %v2719, %v2720
        %v2722 = vrot.slane %v2583, 1
        %v2723 = vrot.slane %v2545, 1
        %v2724 = vsel %vm2658, %v2722, %v2723
        %v2725 = vrot.slane %v2584, 1
        %v2726 = vsel %vm2658, %v2720, %v2725
        %v2727 = vrot.slane %v2585, 1
        %v2728 = vsel %vm2658, %v2723, %v2727
        %v2729 = vrot.slane %v2586, 1
        %v2730 = vrot.slane %v2548, 1
        %v2731 = vsel %vm2658, %v2729, %v2730
        %v2732 = vrot.slane %v2587, 1
        %v2733 = vrot.slane %v2549, 1
        %v2734 = vsel %vm2658, %v2732, %v2733
        %v2735 = vrot.slane %v2588, 1
        %v2736 = vsel %vm2658, %v2730, %v2735
        %v2737 = vrot.slane %v2589, 1
        %v2738 = vsel %vm2658, %v2733, %v2737
        %v2739 = vrot.slane %v2590, 1
        %v2740 = vrot.slane %v2552, 1
        %v2741 = vsel %vm2658, %v2739, %v2740
        %v2742 = vrot.slane %v2591, 1
        %v2743 = vrot.slane %v2553, 1
        %v2744 = vsel %vm2658, %v2742, %v2743
        %v2745 = vrot.slane %v2592, 1
        %v2746 = vsel %vm2658, %v2740, %v2745
        %v2747 = vrot.slane %v2593, 1
        %v2748 = vsel %vm2658, %v2743, %v2747
        %v2749 = vrot.slane %v2594, 1
        %v2750 = vrot.slane %v2556, 1
        %v2751 = vsel %vm2658, %v2749, %v2750
        %v2752 = vrot.slane %v2595, 1
        %v2753 = vrot.slane %v2557, 1
        %v2754 = vsel %vm2658, %v2752, %v2753
        %v2755 = vrot.slane %v2596, 1
        %v2756 = vsel %vm2658, %v2750, %v2755
        %v2757 = vrot.slane %v2597, 1
        %v2758 = vsel %vm2658, %v2753, %v2757
        %v2799 = vld [vmem:[#allocation3] sm:$0xfc]
        %v2800 = vld [vmem:[#allocation3 + $0x8] sm:$0xfc]
        %v2801 = vld [vmem:[#allocation3 + $0x20] sm:$0x3]
        %v2802 = vld [vmem:[#allocation3 + $0x28] sm:$0x3]
        %v2803 = vld [vmem:[#allocation3 + $0x30] sm:$0xfc]
        %v2804 = vld [vmem:[#allocation3 + $0x38] sm:$0xfc]
        %v2805 = vld [vmem:[#allocation3 + $0x50] sm:$0x3]
        %v2806 = vld [vmem:[#allocation3 + $0x58] sm:$0x3]
        %v2807 = vld [vmem:[#allocation3 + $0x60] sm:$0xfc]
        %v2808 = vld [vmem:[#allocation3 + $0x68] sm:$0xfc]
        %v2809 = vld [vmem:[#allocation3 + $0x80] sm:$0x3]
        %v2810 = vld [vmem:[#allocation3 + $0x88] sm:$0x3]
        %v2811 = vld [vmem:[#allocation3 + $0x90] sm:$0xfc]
        %v2812 = vld [vmem:[#allocation3 + $0x98] sm:$0xfc]
        %v2813 = vld [vmem:[#allocation3 + $0xb0] sm:$0x3]
        %v2814 = vld [vmem:[#allocation3 + $0xb8] sm:$0x3]
        %v2815 = vld [vmem:[#allocation3 + $0xc0] sm:$0xfc]
        %v2816 = vld [vmem:[#allocation3 + $0xc8] sm:$0xfc]
        %v2817 = vld [vmem:[#allocation3 + $0xe0] sm:$0x3]
        %v2818 = vld [vmem:[#allocation3 + $0xe8] sm:$0x3]
        %v2819 = vld [vmem:[#allocation3 + $0xf0] sm:$0xfc]
        %v2820 = vld [vmem:[#allocation3 + $0xf8] sm:$0xfc]
        %v2821 = vld [vmem:[#allocation3 + $0x110] sm:$0x3]
        %v2822 = vld [vmem:[#allocation3 + $0x118] sm:$0x3]
        %v2823 = vld [vmem:[#allocation3 + $0x120] sm:$0xfc]
        %v2824 = vld [vmem:[#allocation3 + $0x128] sm:$0xfc]
        %v2825 = vld [vmem:[#allocation3 + $0x140] sm:$0x3]
        %v2826 = vld [vmem:[#allocation3 + $0x148] sm:$0x3]
        %v2827 = vld [vmem:[#allocation3 + $0x150] sm:$0xfc]
        %v2828 = vld [vmem:[#allocation3 + $0x158] sm:$0xfc]
        %v2829 = vld [vmem:[#allocation3 + $0x170] sm:$0x3]
        %v2830 = vld [vmem:[#allocation3 + $0x178] sm:$0x3]
        %v2831 = vld [vmem:[#allocation3 + $0x180] sm:$0xfc]
        %v2832 = vld [vmem:[#allocation3 + $0x188] sm:$0xfc]
        %v2833 = vld [vmem:[#allocation3 + $0x1a0] sm:$0x3]
        %v2834 = vld [vmem:[#allocation3 + $0x1a8] sm:$0x3]
        %v2835 = vld [vmem:[#allocation3 + $0x1b0] sm:$0xfc]
        %v2836 = vld [vmem:[#allocation3 + $0x1b8] sm:$0xfc]
        %v2837 = vld [vmem:[#allocation3 + $0x1d0] sm:$0x3]
        %v2838 = vld [vmem:[#allocation3 + $0x1d8] sm:$0x3]
        %vm2879 = vcmask 1045504
        %v2880 = vrot.slane %v2799, 2
        %v2881 = vrot.slane %v2520, 2
        %v2882 = vsel %vm2879, %v2880, %v2881
        %v2883 = vrot.slane %v2800, 2
        %v2884 = vrot.slane %v2521, 2
        %v2885 = vsel %vm2879, %v2883, %v2884
        %v2886 = vrot.slane %v2801, 2
        %v2887 = vsel %vm2879, %v2881, %v2886
        %v2888 = vrot.slane %v2802, 2
        %v2889 = vsel %vm2879, %v2884, %v2888
        %v2890 = vrot.slane %v2803, 2
        %v2891 = vrot.slane %v2524, 2
        %v2892 = vsel %vm2879, %v2890, %v2891
        %v2893 = vrot.slane %v2804, 2
        %v2894 = vrot.slane %v2525, 2
        %v2895 = vsel %vm2879, %v2893, %v2894
        %v2896 = vrot.slane %v2805, 2
        %v2897 = vsel %vm2879, %v2891, %v2896
        %v2898 = vrot.slane %v2806, 2
        %v2899 = vsel %vm2879, %v2894, %v2898
        %v2900 = vrot.slane %v2807, 2
        %v2901 = vrot.slane %v2528, 2
        %v2902 = vsel %vm2879, %v2900, %v2901
        %v2903 = vrot.slane %v2808, 2
        %v2904 = vrot.slane %v2529, 2
        %v2905 = vsel %vm2879, %v2903, %v2904
        %v2906 = vrot.slane %v2809, 2
        %v2907 = vsel %vm2879, %v2901, %v2906
        %v2908 = vrot.slane %v2810, 2
        %v2909 = vsel %vm2879, %v2904, %v2908
        %v2910 = vrot.slane %v2811, 2
        %v2911 = vrot.slane %v2532, 2
        %v2912 = vsel %vm2879, %v2910, %v2911
        %v2913 = vrot.slane %v2812, 2
        %v2914 = vrot.slane %v2533, 2
        %v2915 = vsel %vm2879, %v2913, %v2914
        %v2916 = vrot.slane %v2813, 2
        %v2917 = vsel %vm2879, %v2911, %v2916
        %v2918 = vrot.slane %v2814, 2
        %v2919 = vsel %vm2879, %v2914, %v2918
        %v2920 = vrot.slane %v2815, 2
        %v2921 = vrot.slane %v2536, 2
        %v2922 = vsel %vm2879, %v2920, %v2921
        %v2923 = vrot.slane %v2816, 2
        %v2924 = vrot.slane %v2537, 2
        %v2925 = vsel %vm2879, %v2923, %v2924
        %v2926 = vrot.slane %v2817, 2
        %v2927 = vsel %vm2879, %v2921, %v2926
        %v2928 = vrot.slane %v2818, 2
        %v2929 = vsel %vm2879, %v2924, %v2928
        %v2930 = vrot.slane %v2819, 2
        %v2931 = vrot.slane %v2540, 2
        %v2932 = vsel %vm2879, %v2930, %v2931
        %v2933 = vrot.slane %v2820, 2
        %v2934 = vrot.slane %v2541, 2
        %v2935 = vsel %vm2879, %v2933, %v2934
        %v2936 = vrot.slane %v2821, 2
        %v2937 = vsel %vm2879, %v2931, %v2936
        %v2938 = vrot.slane %v2822, 2
        %v2939 = vsel %vm2879, %v2934, %v2938
        %v2940 = vrot.slane %v2823, 2
        %v2941 = vrot.slane %v2544, 2
        %v2942 = vsel %vm2879, %v2940, %v2941
        %v2943 = vrot.slane %v2824, 2
        %v2944 = vrot.slane %v2545, 2
        %v2945 = vsel %vm2879, %v2943, %v2944
        %v2946 = vrot.slane %v2825, 2
        %v2947 = vsel %vm2879, %v2941, %v2946
        %v2948 = vrot.slane %v2826, 2
        %v2949 = vsel %vm2879, %v2944, %v2948
        %v2950 = vrot.slane %v2827, 2
        %v2951 = vrot.slane %v2548, 2
        %v2952 = vsel %vm2879, %v2950, %v2951
        %v2953 = vrot.slane %v2828, 2
        %v2954 = vrot.slane %v2549, 2
        %v2955 = vsel %vm2879, %v2953, %v2954
        %v2956 = vrot.slane %v2829, 2
        %v2957 = vsel %vm2879, %v2951, %v2956
        %v2958 = vrot.slane %v2830, 2
        %v2959 = vsel %vm2879, %v2954, %v2958
        %v2960 = vrot.slane %v2831, 2
        %v2961 = vrot.slane %v2552, 2
        %v2962 = vsel %vm2879, %v2960, %v2961
        %v2963 = vrot.slane %v2832, 2
        %v2964 = vrot.slane %v2553, 2
        %v2965 = vsel %vm2879, %v2963, %v2964
        %v2966 = vrot.slane %v2833, 2
        %v2967 = vsel %vm2879, %v2961, %v2966
        %v2968 = vrot.slane %v2834, 2
        %v2969 = vsel %vm2879, %v2964, %v2968
        %v2970 = vrot.slane %v2835, 2
        %v2971 = vrot.slane %v2556, 2
        %v2972 = vsel %vm2879, %v2970, %v2971
        %v2973 = vrot.slane %v2836, 2
        %v2974 = vrot.slane %v2557, 2
        %v2975 = vsel %vm2879, %v2973, %v2974
        %v2976 = vrot.slane %v2837, 2
        %v2977 = vsel %vm2879, %v2971, %v2976
        %v2978 = vrot.slane %v2838, 2
        %v2979 = vsel %vm2879, %v2974, %v2978
        %s3020 = scalar_lea.vmem [#allocation3], 48
        %v3021 = vld [vmem:[%s3020] sm:$0xff]
        %v3022 = vld [vmem:[%s3020 + $0x8] sm:$0xff]
        %v3023 = vld [vmem:[%s3020 + $0x10] sm:$0xff]
        %v3024 = vld [vmem:[%s3020 + $0x18] sm:$0xff]
        %v3025 = vld [vmem:[%s3020 + $0x30] sm:$0xff]
        %v3026 = vld [vmem:[%s3020 + $0x38] sm:$0xff]
        %v3027 = vld [vmem:[%s3020 + $0x40] sm:$0xff]
        %v3028 = vld [vmem:[%s3020 + $0x48] sm:$0xff]
        %v3029 = vld [vmem:[%s3020 + $0x60] sm:$0xff]
        %v3030 = vld [vmem:[%s3020 + $0x68] sm:$0xff]
        %v3031 = vld [vmem:[%s3020 + $0x70] sm:$0xff]
        %v3032 = vld [vmem:[%s3020 + $0x78] sm:$0xff]
        %v3033 = vld [vmem:[%s3020 + $0x90] sm:$0xff]
        %v3034 = vld [vmem:[%s3020 + $0x98] sm:$0xff]
        %v3035 = vld [vmem:[%s3020 + $0xa0] sm:$0xff]
        %v3036 = vld [vmem:[%s3020 + $0xa8] sm:$0xff]
        %v3037 = vld [vmem:[%s3020 + $0xc0] sm:$0xff]
        %v3038 = vld [vmem:[%s3020 + $0xc8] sm:$0xff]
        %v3039 = vld [vmem:[%s3020 + $0xd0] sm:$0xff]
        %v3040 = vld [vmem:[%s3020 + $0xd8] sm:$0xff]
        %v3041 = vld [vmem:[%s3020 + $0xf0] sm:$0xff]
        %v3042 = vld [vmem:[%s3020 + $0xf8] sm:$0xff]
        %v3043 = vld [vmem:[%s3020 + $0x100] sm:$0xff]
        %v3044 = vld [vmem:[%s3020 + $0x108] sm:$0xff]
        %v3045 = vld [vmem:[%s3020 + $0x120] sm:$0xff]
        %v3046 = vld [vmem:[%s3020 + $0x128] sm:$0xff]
        %v3047 = vld [vmem:[%s3020 + $0x130] sm:$0xff]
        %v3048 = vld [vmem:[%s3020 + $0x138] sm:$0xff]
        %v3049 = vld [vmem:[%s3020 + $0x150] sm:$0xff]
        %v3050 = vld [vmem:[%s3020 + $0x158] sm:$0xff]
        %v3051 = vld [vmem:[%s3020 + $0x160] sm:$0xff]
        %v3052 = vld [vmem:[%s3020 + $0x168] sm:$0xff]
        %v3053 = vld [vmem:[%s3020 + $0x180] sm:$0xff]
        %v3054 = vld [vmem:[%s3020 + $0x188] sm:$0xff]
        %v3055 = vld [vmem:[%s3020 + $0x190] sm:$0xff]
        %v3056 = vld [vmem:[%s3020 + $0x198] sm:$0xff]
        %v3057 = vld [vmem:[%s3020 + $0x1b0] sm:$0xff]
        %v3058 = vld [vmem:[%s3020 + $0x1b8] sm:$0xff]
        %v3059 = vld [vmem:[%s3020 + $0x1c0] sm:$0xff]
        %v3060 = vld [vmem:[%s3020 + $0x1c8] sm:$0xff]
        %v3061 = vld [vmem:[%s3020] sm:$0xfe]
        %v3062 = vld [vmem:[%s3020 + $0x8] sm:$0xfe]
        %v3063 = vld [vmem:[%s3020 + $0x20] sm:$0x1]
        %v3064 = vld [vmem:[%s3020 + $0x28] sm:$0x1]
        %v3065 = vld [vmem:[%s3020 + $0x30] sm:$0xfe]
        %v3066 = vld [vmem:[%s3020 + $0x38] sm:$0xfe]
        %v3067 = vld [vmem:[%s3020 + $0x50] sm:$0x1]
        %v3068 = vld [vmem:[%s3020 + $0x58] sm:$0x1]
        %v3069 = vld [vmem:[%s3020 + $0x60] sm:$0xfe]
        %v3070 = vld [vmem:[%s3020 + $0x68] sm:$0xfe]
        %v3071 = vld [vmem:[%s3020 + $0x80] sm:$0x1]
        %v3072 = vld [vmem:[%s3020 + $0x88] sm:$0x1]
        %v3073 = vld [vmem:[%s3020 + $0x90] sm:$0xfe]
        %v3074 = vld [vmem:[%s3020 + $0x98] sm:$0xfe]
        %v3075 = vld [vmem:[%s3020 + $0xb0] sm:$0x1]
        %v3076 = vld [vmem:[%s3020 + $0xb8] sm:$0x1]
        %v3077 = vld [vmem:[%s3020 + $0xc0] sm:$0xfe]
        %v3078 = vld [vmem:[%s3020 + $0xc8] sm:$0xfe]
        %v3079 = vld [vmem:[%s3020 + $0xe0] sm:$0x1]
        %v3080 = vld [vmem:[%s3020 + $0xe8] sm:$0x1]
        %v3081 = vld [vmem:[%s3020 + $0xf0] sm:$0xfe]
        %v3082 = vld [vmem:[%s3020 + $0xf8] sm:$0xfe]
        %v3083 = vld [vmem:[%s3020 + $0x110] sm:$0x1]
        %v3084 = vld [vmem:[%s3020 + $0x118] sm:$0x1]
        %v3085 = vld [vmem:[%s3020 + $0x120] sm:$0xfe]
        %v3086 = vld [vmem:[%s3020 + $0x128] sm:$0xfe]
        %v3087 = vld [vmem:[%s3020 + $0x140] sm:$0x1]
        %v3088 = vld [vmem:[%s3020 + $0x148] sm:$0x1]
        %v3089 = vld [vmem:[%s3020 + $0x150] sm:$0xfe]
        %v3090 = vld [vmem:[%s3020 + $0x158] sm:$0xfe]
        %v3091 = vld [vmem:[%s3020 + $0x170] sm:$0x1]
        %v3092 = vld [vmem:[%s3020 + $0x178] sm:$0x1]
        %v3093 = vld [vmem:[%s3020 + $0x180] sm:$0xfe]
        %v3094 = vld [vmem:[%s3020 + $0x188] sm:$0xfe]
        %v3095 = vld [vmem:[%s3020 + $0x1a0] sm:$0x1]
        %v3096 = vld [vmem:[%s3020 + $0x1a8] sm:$0x1]
        %v3097 = vld [vmem:[%s3020 + $0x1b0] sm:$0xfe]
        %v3098 = vld [vmem:[%s3020 + $0x1b8] sm:$0xfe]
        %v3099 = vld [vmem:[%s3020 + $0x1d0] sm:$0x1]
        %v3100 = vld [vmem:[%s3020 + $0x1d8] sm:$0x1]
        %v3161 = vrot.slane %v3061, 1
        %v3162 = vrot.slane %v3023, 1
        %v3163 = vsel %vm2658, %v3161, %v3162
        %v3164 = vrot.slane %v3062, 1
        %v3165 = vrot.slane %v3024, 1
        %v3166 = vsel %vm2658, %v3164, %v3165
        %v3167 = vrot.slane %v3063, 1
        %v3168 = vsel %vm2658, %v3162, %v3167
        %v3169 = vrot.slane %v3064, 1
        %v3170 = vsel %vm2658, %v3165, %v3169
        %v3171 = vrot.slane %v3065, 1
        %v3172 = vrot.slane %v3027, 1
        %v3173 = vsel %vm2658, %v3171, %v3172
        %v3174 = vrot.slane %v3066, 1
        %v3175 = vrot.slane %v3028, 1
        %v3176 = vsel %vm2658, %v3174, %v3175
        %v3177 = vrot.slane %v3067, 1
        %v3178 = vsel %vm2658, %v3172, %v3177
        %v3179 = vrot.slane %v3068, 1
        %v3180 = vsel %vm2658, %v3175, %v3179
        %v3181 = vrot.slane %v3069, 1
        %v3182 = vrot.slane %v3031, 1
        %v3183 = vsel %vm2658, %v3181, %v3182
        %v3184 = vrot.slane %v3070, 1
        %v3185 = vrot.slane %v3032, 1
        %v3186 = vsel %vm2658, %v3184, %v3185
        %v3187 = vrot.slane %v3071, 1
        %v3188 = vsel %vm2658, %v3182, %v3187
        %v3189 = vrot.slane %v3072, 1
        %v3190 = vsel %vm2658, %v3185, %v3189
        %v3191 = vrot.slane %v3073, 1
        %v3192 = vrot.slane %v3035, 1
        %v3193 = vsel %vm2658, %v3191, %v3192
        %v3194 = vrot.slane %v3074, 1
        %v3195 = vrot.slane %v3036, 1
        %v3196 = vsel %vm2658, %v3194, %v3195
        %v3197 = vrot.slane %v3075, 1
        %v3198 = vsel %vm2658, %v3192, %v3197
        %v3199 = vrot.slane %v3076, 1
        %v3200 = vsel %vm2658, %v3195, %v3199
        %v3201 = vrot.slane %v3077, 1
        %v3202 = vrot.slane %v3039, 1
        %v3203 = vsel %vm2658, %v3201, %v3202
        %v3204 = vrot.slane %v3078, 1
        %v3205 = vrot.slane %v3040, 1
        %v3206 = vsel %vm2658, %v3204, %v3205
        %v3207 = vrot.slane %v3079, 1
        %v3208 = vsel %vm2658, %v3202, %v3207
        %v3209 = vrot.slane %v3080, 1
        %v3210 = vsel %vm2658, %v3205, %v3209
        %v3211 = vrot.slane %v3081, 1
        %v3212 = vrot.slane %v3043, 1
        %v3213 = vsel %vm2658, %v3211, %v3212
        %v3214 = vrot.slane %v3082, 1
        %v3215 = vrot.slane %v3044, 1
        %v3216 = vsel %vm2658, %v3214, %v3215
        %v3217 = vrot.slane %v3083, 1
        %v3218 = vsel %vm2658, %v3212, %v3217
        %v3219 = vrot.slane %v3084, 1
        %v3220 = vsel %vm2658, %v3215, %v3219
        %v3221 = vrot.slane %v3085, 1
        %v3222 = vrot.slane %v3047, 1
        %v3223 = vsel %vm2658, %v3221, %v3222
        %v3224 = vrot.slane %v3086, 1
        %v3225 = vrot.slane %v3048, 1
        %v3226 = vsel %vm2658, %v3224, %v3225
        %v3227 = vrot.slane %v3087, 1
        %v3228 = vsel %vm2658, %v3222, %v3227
        %v3229 = vrot.slane %v3088, 1
        %v3230 = vsel %vm2658, %v3225, %v3229
        %v3231 = vrot.slane %v3089, 1
        %v3232 = vrot.slane %v3051, 1
        %v3233 = vsel %vm2658, %v3231, %v3232
        %v3234 = vrot.slane %v3090, 1
        %v3235 = vrot.slane %v3052, 1
        %v3236 = vsel %vm2658, %v3234, %v3235
        %v3237 = vrot.slane %v3091, 1
        %v3238 = vsel %vm2658, %v3232, %v3237
        %v3239 = vrot.slane %v3092, 1
        %v3240 = vsel %vm2658, %v3235, %v3239
        %v3241 = vrot.slane %v3093, 1
        %v3242 = vrot.slane %v3055, 1
        %v3243 = vsel %vm2658, %v3241, %v3242
        %v3244 = vrot.slane %v3094, 1
        %v3245 = vrot.slane %v3056, 1
        %v3246 = vsel %vm2658, %v3244, %v3245
        %v3247 = vrot.slane %v3095, 1
        %v3248 = vsel %vm2658, %v3242, %v3247
        %v3249 = vrot.slane %v3096, 1
        %v3250 = vsel %vm2658, %v3245, %v3249
        %v3251 = vrot.slane %v3097, 1
        %v3252 = vrot.slane %v3059, 1
        %v3253 = vsel %vm2658, %v3251, %v3252
        %v3254 = vrot.slane %v3098, 1
        %v3255 = vrot.slane %v3060, 1
        %v3256 = vsel %vm2658, %v3254, %v3255
        %v3257 = vrot.slane %v3099, 1
        %v3258 = vsel %vm2658, %v3252, %v3257
        %v3259 = vrot.slane %v3100, 1
        %v3260 = vsel %vm2658, %v3255, %v3259
        %v3301 = vld [vmem:[%s3020] sm:$0xfc]
        %v3302 = vld [vmem:[%s3020 + $0x8] sm:$0xfc]
        %v3303 = vld [vmem:[%s3020 + $0x20] sm:$0x3]
        %v3304 = vld [vmem:[%s3020 + $0x28] sm:$0x3]
        %v3305 = vld [vmem:[%s3020 + $0x30] sm:$0xfc]
        %v3306 = vld [vmem:[%s3020 + $0x38] sm:$0xfc]
        %v3307 = vld [vmem:[%s3020 + $0x50] sm:$0x3]
        %v3308 = vld [vmem:[%s3020 + $0x58] sm:$0x3]
        %v3309 = vld [vmem:[%s3020 + $0x60] sm:$0xfc]
        %v3310 = vld [vmem:[%s3020 + $0x68] sm:$0xfc]
        %v3311 = vld [vmem:[%s3020 + $0x80] sm:$0x3]
        %v3312 = vld [vmem:[%s3020 + $0x88] sm:$0x3]
        %v3313 = vld [vmem:[%s3020 + $0x90] sm:$0xfc]
        %v3314 = vld [vmem:[%s3020 + $0x98] sm:$0xfc]
        %v3315 = vld [vmem:[%s3020 + $0xb0] sm:$0x3]
        %v3316 = vld [vmem:[%s3020 + $0xb8] sm:$0x3]
        %v3317 = vld [vmem:[%s3020 + $0xc0] sm:$0xfc]
        %v3318 = vld [vmem:[%s3020 + $0xc8] sm:$0xfc]
        %v3319 = vld [vmem:[%s3020 + $0xe0] sm:$0x3]
        %v3320 = vld [vmem:[%s3020 + $0xe8] sm:$0x3]
        %v3321 = vld [vmem:[%s3020 + $0xf0] sm:$0xfc]
        %v3322 = vld [vmem:[%s3020 + $0xf8] sm:$0xfc]
        %v3323 = vld [vmem:[%s3020 + $0x110] sm:$0x3]
        %v3324 = vld [vmem:[%s3020 + $0x118] sm:$0x3]
        %v3325 = vld [vmem:[%s3020 + $0x120] sm:$0xfc]
        %v3326 = vld [vmem:[%s3020 + $0x128] sm:$0xfc]
        %v3327 = vld [vmem:[%s3020 + $0x140] sm:$0x3]
        %v3328 = vld [vmem:[%s3020 + $0x148] sm:$0x3]
        %v3329 = vld [vmem:[%s3020 + $0x150] sm:$0xfc]
        %v3330 = vld [vmem:[%s3020 + $0x158] sm:$0xfc]
        %v3331 = vld [vmem:[%s3020 + $0x170] sm:$0x3]
        %v3332 = vld [vmem:[%s3020 + $0x178] sm:$0x3]
        %v3333 = vld [vmem:[%s3020 + $0x180] sm:$0xfc]
        %v3334 = vld [vmem:[%s3020 + $0x188] sm:$0xfc]
        %v3335 = vld [vmem:[%s3020 + $0x1a0] sm:$0x3]
        %v3336 = vld [vmem:[%s3020 + $0x1a8] sm:$0x3]
        %v3337 = vld [vmem:[%s3020 + $0x1b0] sm:$0xfc]
        %v3338 = vld [vmem:[%s3020 + $0x1b8] sm:$0xfc]
        %v3339 = vld [vmem:[%s3020 + $0x1d0] sm:$0x3]
        %v3340 = vld [vmem:[%s3020 + $0x1d8] sm:$0x3]
        %v3381 = vrot.slane %v3301, 2
        %v3382 = vrot.slane %v3023, 2
        %v3383 = vsel %vm2879, %v3381, %v3382
        %v3384 = vrot.slane %v3302, 2
        %v3385 = vrot.slane %v3024, 2
        %v3386 = vsel %vm2879, %v3384, %v3385
        %v3387 = vrot.slane %v3303, 2
        %v3388 = vsel %vm2879, %v3382, %v3387
        %v3389 = vrot.slane %v3304, 2
        %v3390 = vsel %vm2879, %v3385, %v3389
        %v3391 = vrot.slane %v3305, 2
        %v3392 = vrot.slane %v3027, 2
        %v3393 = vsel %vm2879, %v3391, %v3392
        %v3394 = vrot.slane %v3306, 2
        %v3395 = vrot.slane %v3028, 2
        %v3396 = vsel %vm2879, %v3394, %v3395
        %v3397 = vrot.slane %v3307, 2
        %v3398 = vsel %vm2879, %v3392, %v3397
        %v3399 = vrot.slane %v3308, 2
        %v3400 = vsel %vm2879, %v3395, %v3399
        %v3401 = vrot.slane %v3309, 2
        %v3402 = vrot.slane %v3031, 2
        %v3403 = vsel %vm2879, %v3401, %v3402
        %v3404 = vrot.slane %v3310, 2
        %v3405 = vrot.slane %v3032, 2
        %v3406 = vsel %vm2879, %v3404, %v3405
        %v3407 = vrot.slane %v3311, 2
        %v3408 = vsel %vm2879, %v3402, %v3407
        %v3409 = vrot.slane %v3312, 2
        %v3410 = vsel %vm2879, %v3405, %v3409
        %v3411 = vrot.slane %v3313, 2
        %v3412 = vrot.slane %v3035, 2
        %v3413 = vsel %vm2879, %v3411, %v3412
        %v3414 = vrot.slane %v3314, 2
        %v3415 = vrot.slane %v3036, 2
        %v3416 = vsel %vm2879, %v3414, %v3415
        %v3417 = vrot.slane %v3315, 2
        %v3418 = vsel %vm2879, %v3412, %v3417
        %v3419 = vrot.slane %v3316, 2
        %v3420 = vsel %vm2879, %v3415, %v3419
        %v3421 = vrot.slane %v3317, 2
        %v3422 = vrot.slane %v3039, 2
        %v3423 = vsel %vm2879, %v3421, %v3422
        %v3424 = vrot.slane %v3318, 2
        %v3425 = vrot.slane %v3040, 2
        %v3426 = vsel %vm2879, %v3424, %v3425
        %v3427 = vrot.slane %v3319, 2
        %v3428 = vsel %vm2879, %v3422, %v3427
        %v3429 = vrot.slane %v3320, 2
        %v3430 = vsel %vm2879, %v3425, %v3429
        %v3431 = vrot.slane %v3321, 2
        %v3432 = vrot.slane %v3043, 2
        %v3433 = vsel %vm2879, %v3431, %v3432
        %v3434 = vrot.slane %v3322, 2
        %v3435 = vrot.slane %v3044, 2
        %v3436 = vsel %vm2879, %v3434, %v3435
        %v3437 = vrot.slane %v3323, 2
        %v3438 = vsel %vm2879, %v3432, %v3437
        %v3439 = vrot.slane %v3324, 2
        %v3440 = vsel %vm2879, %v3435, %v3439
        %v3441 = vrot.slane %v3325, 2
        %v3442 = vrot.slane %v3047, 2
        %v3443 = vsel %vm2879, %v3441, %v3442
        %v3444 = vrot.slane %v3326, 2
        %v3445 = vrot.slane %v3048, 2
        %v3446 = vsel %vm2879, %v3444, %v3445
        %v3447 = vrot.slane %v3327, 2
        %v3448 = vsel %vm2879, %v3442, %v3447
        %v3449 = vrot.slane %v3328, 2
        %v3450 = vsel %vm2879, %v3445, %v3449
        %v3451 = vrot.slane %v3329, 2
        %v3452 = vrot.slane %v3051, 2
        %v3453 = vsel %vm2879, %v3451, %v3452
        %v3454 = vrot.slane %v3330, 2
        %v3455 = vrot.slane %v3052, 2
        %v3456 = vsel %vm2879, %v3454, %v3455
        %v3457 = vrot.slane %v3331, 2
        %v3458 = vsel %vm2879, %v3452, %v3457
        %v3459 = vrot.slane %v3332, 2
        %v3460 = vsel %vm2879, %v3455, %v3459
        %v3461 = vrot.slane %v3333, 2
        %v3462 = vrot.slane %v3055, 2
        %v3463 = vsel %vm2879, %v3461, %v3462
        %v3464 = vrot.slane %v3334, 2
        %v3465 = vrot.slane %v3056, 2
        %v3466 = vsel %vm2879, %v3464, %v3465
        %v3467 = vrot.slane %v3335, 2
        %v3468 = vsel %vm2879, %v3462, %v3467
        %v3469 = vrot.slane %v3336, 2
        %v3470 = vsel %vm2879, %v3465, %v3469
        %v3471 = vrot.slane %v3337, 2
        %v3472 = vrot.slane %v3059, 2
        %v3473 = vsel %vm2879, %v3471, %v3472
        %v3474 = vrot.slane %v3338, 2
        %v3475 = vrot.slane %v3060, 2
        %v3476 = vsel %vm2879, %v3474, %v3475
        %v3477 = vrot.slane %v3339, 2
        %v3478 = vsel %vm2879, %v3472, %v3477
        %v3479 = vrot.slane %v3340, 2
        %v3480 = vsel %vm2879, %v3475, %v3479
        %s3521 = scalar_lea.vmem [#allocation3], 96
        %v3522 = vld [vmem:[%s3521] sm:$0xff]
        %v3523 = vld [vmem:[%s3521 + $0x8] sm:$0xff]
        %v3524 = vld [vmem:[%s3521 + $0x10] sm:$0xff]
        %v3525 = vld [vmem:[%s3521 + $0x18] sm:$0xff]
        %v3526 = vld [vmem:[%s3521 + $0x30] sm:$0xff]
        %v3527 = vld [vmem:[%s3521 + $0x38] sm:$0xff]
        %v3528 = vld [vmem:[%s3521 + $0x40] sm:$0xff]
        %v3529 = vld [vmem:[%s3521 + $0x48] sm:$0xff]
        %v3530 = vld [vmem:[%s3521 + $0x60] sm:$0xff]
        %v3531 = vld [vmem:[%s3521 + $0x68] sm:$0xff]
        %v3532 = vld [vmem:[%s3521 + $0x70] sm:$0xff]
        %v3533 = vld [vmem:[%s3521 + $0x78] sm:$0xff]
        %v3534 = vld [vmem:[%s3521 + $0x90] sm:$0xff]
        %v3535 = vld [vmem:[%s3521 + $0x98] sm:$0xff]
        %v3536 = vld [vmem:[%s3521 + $0xa0] sm:$0xff]
        %v3537 = vld [vmem:[%s3521 + $0xa8] sm:$0xff]
        %v3538 = vld [vmem:[%s3521 + $0xc0] sm:$0xff]
        %v3539 = vld [vmem:[%s3521 + $0xc8] sm:$0xff]
        %v3540 = vld [vmem:[%s3521 + $0xd0] sm:$0xff]
        %v3541 = vld [vmem:[%s3521 + $0xd8] sm:$0xff]
        %v3542 = vld [vmem:[%s3521 + $0xf0] sm:$0xff]
        %v3543 = vld [vmem:[%s3521 + $0xf8] sm:$0xff]
        %v3544 = vld [vmem:[%s3521 + $0x100] sm:$0xff]
        %v3545 = vld [vmem:[%s3521 + $0x108] sm:$0xff]
        %v3546 = vld [vmem:[%s3521 + $0x120] sm:$0xff]
        %v3547 = vld [vmem:[%s3521 + $0x128] sm:$0xff]
        %v3548 = vld [vmem:[%s3521 + $0x130] sm:$0xff]
        %v3549 = vld [vmem:[%s3521 + $0x138] sm:$0xff]
        %v3550 = vld [vmem:[%s3521 + $0x150] sm:$0xff]
        %v3551 = vld [vmem:[%s3521 + $0x158] sm:$0xff]
        %v3552 = vld [vmem:[%s3521 + $0x160] sm:$0xff]
        %v3553 = vld [vmem:[%s3521 + $0x168] sm:$0xff]
        %v3554 = vld [vmem:[%s3521 + $0x180] sm:$0xff]
        %v3555 = vld [vmem:[%s3521 + $0x188] sm:$0xff]
        %v3556 = vld [vmem:[%s3521 + $0x190] sm:$0xff]
        %v3557 = vld [vmem:[%s3521 + $0x198] sm:$0xff]
        %v3558 = vld [vmem:[%s3521 + $0x1b0] sm:$0xff]
        %v3559 = vld [vmem:[%s3521 + $0x1b8] sm:$0xff]
        %v3560 = vld [vmem:[%s3521 + $0x1c0] sm:$0xff]
        %v3561 = vld [vmem:[%s3521 + $0x1c8] sm:$0xff]
        %v3562 = vld [vmem:[%s3521] sm:$0xfe]
        %v3563 = vld [vmem:[%s3521 + $0x8] sm:$0xfe]
        %v3564 = vld [vmem:[%s3521 + $0x20] sm:$0x1]
        %v3565 = vld [vmem:[%s3521 + $0x28] sm:$0x1]
        %v3566 = vld [vmem:[%s3521 + $0x30] sm:$0xfe]
        %v3567 = vld [vmem:[%s3521 + $0x38] sm:$0xfe]
        %v3568 = vld [vmem:[%s3521 + $0x50] sm:$0x1]
        %v3569 = vld [vmem:[%s3521 + $0x58] sm:$0x1]
        %v3570 = vld [vmem:[%s3521 + $0x60] sm:$0xfe]
        %v3571 = vld [vmem:[%s3521 + $0x68] sm:$0xfe]
        %v3572 = vld [vmem:[%s3521 + $0x80] sm:$0x1]
        %v3573 = vld [vmem:[%s3521 + $0x88] sm:$0x1]
        %v3574 = vld [vmem:[%s3521 + $0x90] sm:$0xfe]
        %v3575 = vld [vmem:[%s3521 + $0x98] sm:$0xfe]
        %v3576 = vld [vmem:[%s3521 + $0xb0] sm:$0x1]
        %v3577 = vld [vmem:[%s3521 + $0xb8] sm:$0x1]
        %v3578 = vld [vmem:[%s3521 + $0xc0] sm:$0xfe]
        %v3579 = vld [vmem:[%s3521 + $0xc8] sm:$0xfe]
        %v3580 = vld [vmem:[%s3521 + $0xe0] sm:$0x1]
        %v3581 = vld [vmem:[%s3521 + $0xe8] sm:$0x1]
        %v3582 = vld [vmem:[%s3521 + $0xf0] sm:$0xfe]
        %v3583 = vld [vmem:[%s3521 + $0xf8] sm:$0xfe]
        %v3584 = vld [vmem:[%s3521 + $0x110] sm:$0x1]
        %v3585 = vld [vmem:[%s3521 + $0x118] sm:$0x1]
        %v3586 = vld [vmem:[%s3521 + $0x120] sm:$0xfe]
        %v3587 = vld [vmem:[%s3521 + $0x128] sm:$0xfe]
        %v3588 = vld [vmem:[%s3521 + $0x140] sm:$0x1]
        %v3589 = vld [vmem:[%s3521 + $0x148] sm:$0x1]
        %v3590 = vld [vmem:[%s3521 + $0x150] sm:$0xfe]
        %v3591 = vld [vmem:[%s3521 + $0x158] sm:$0xfe]
        %v3592 = vld [vmem:[%s3521 + $0x170] sm:$0x1]
        %v3593 = vld [vmem:[%s3521 + $0x178] sm:$0x1]
        %v3594 = vld [vmem:[%s3521 + $0x180] sm:$0xfe]
        %v3595 = vld [vmem:[%s3521 + $0x188] sm:$0xfe]
        %v3596 = vld [vmem:[%s3521 + $0x1a0] sm:$0x1]
        %v3597 = vld [vmem:[%s3521 + $0x1a8] sm:$0x1]
        %v3598 = vld [vmem:[%s3521 + $0x1b0] sm:$0xfe]
        %v3599 = vld [vmem:[%s3521 + $0x1b8] sm:$0xfe]
        %v3600 = vld [vmem:[%s3521 + $0x1d0] sm:$0x1]
        %v3601 = vld [vmem:[%s3521 + $0x1d8] sm:$0x1]
        %v3662 = vrot.slane %v3562, 1
        %v3663 = vrot.slane %v3524, 1
        %v3664 = vsel %vm2658, %v3662, %v3663
        %v3665 = vrot.slane %v3563, 1
        %v3666 = vrot.slane %v3525, 1
        %v3667 = vsel %vm2658, %v3665, %v3666
        %v3668 = vrot.slane %v3564, 1
        %v3669 = vsel %vm2658, %v3663, %v3668
        %v3670 = vrot.slane %v3565, 1
        %v3671 = vsel %vm2658, %v3666, %v3670
        %v3672 = vrot.slane %v3566, 1
        %v3673 = vrot.slane %v3528, 1
        %v3674 = vsel %vm2658, %v3672, %v3673
        %v3675 = vrot.slane %v3567, 1
        %v3676 = vrot.slane %v3529, 1
        %v3677 = vsel %vm2658, %v3675, %v3676
        %v3678 = vrot.slane %v3568, 1
        %v3679 = vsel %vm2658, %v3673, %v3678
        %v3680 = vrot.slane %v3569, 1
        %v3681 = vsel %vm2658, %v3676, %v3680
        %v3682 = vrot.slane %v3570, 1
        %v3683 = vrot.slane %v3532, 1
        %v3684 = vsel %vm2658, %v3682, %v3683
        %v3685 = vrot.slane %v3571, 1
        %v3686 = vrot.slane %v3533, 1
        %v3687 = vsel %vm2658, %v3685, %v3686
        %v3688 = vrot.slane %v3572, 1
        %v3689 = vsel %vm2658, %v3683, %v3688
        %v3690 = vrot.slane %v3573, 1
        %v3691 = vsel %vm2658, %v3686, %v3690
        %v3692 = vrot.slane %v3574, 1
        %v3693 = vrot.slane %v3536, 1
        %v3694 = vsel %vm2658, %v3692, %v3693
        %v3695 = vrot.slane %v3575, 1
        %v3696 = vrot.slane %v3537, 1
        %v3697 = vsel %vm2658, %v3695, %v3696
        %v3698 = vrot.slane %v3576, 1
        %v3699 = vsel %vm2658, %v3693, %v3698
        %v3700 = vrot.slane %v3577, 1
        %v3701 = vsel %vm2658, %v3696, %v3700
        %v3702 = vrot.slane %v3578, 1
        %v3703 = vrot.slane %v3540, 1
        %v3704 = vsel %vm2658, %v3702, %v3703
        %v3705 = vrot.slane %v3579, 1
        %v3706 = vrot.slane %v3541, 1
        %v3707 = vsel %vm2658, %v3705, %v3706
        %v3708 = vrot.slane %v3580, 1
        %v3709 = vsel %vm2658, %v3703, %v3708
        %v3710 = vrot.slane %v3581, 1
        %v3711 = vsel %vm2658, %v3706, %v3710
        %v3712 = vrot.slane %v3582, 1
        %v3713 = vrot.slane %v3544, 1
        %v3714 = vsel %vm2658, %v3712, %v3713
        %v3715 = vrot.slane %v3583, 1
        %v3716 = vrot.slane %v3545, 1
        %v3717 = vsel %vm2658, %v3715, %v3716
        %v3718 = vrot.slane %v3584, 1
        %v3719 = vsel %vm2658, %v3713, %v3718
        %v3720 = vrot.slane %v3585, 1
        %v3721 = vsel %vm2658, %v3716, %v3720
        %v3722 = vrot.slane %v3586, 1
        %v3723 = vrot.slane %v3548, 1
        %v3724 = vsel %vm2658, %v3722, %v3723
        %v3725 = vrot.slane %v3587, 1
        %v3726 = vrot.slane %v3549, 1
        %v3727 = vsel %vm2658, %v3725, %v3726
        %v3728 = vrot.slane %v3588, 1
        %v3729 = vsel %vm2658, %v3723, %v3728
        %v3730 = vrot.slane %v3589, 1
        %v3731 = vsel %vm2658, %v3726, %v3730
        %v3732 = vrot.slane %v3590, 1
        %v3733 = vrot.slane %v3552, 1
        %v3734 = vsel %vm2658, %v3732, %v3733
        %v3735 = vrot.slane %v3591, 1
        %v3736 = vrot.slane %v3553, 1
        %v3737 = vsel %vm2658, %v3735, %v3736
        %v3738 = vrot.slane %v3592, 1
        %v3739 = vsel %vm2658, %v3733, %v3738
        %v3740 = vrot.slane %v3593, 1
        %v3741 = vsel %vm2658, %v3736, %v3740
        %v3742 = vrot.slane %v3594, 1
        %v3743 = vrot.slane %v3556, 1
        %v3744 = vsel %vm2658, %v3742, %v3743
        %v3745 = vrot.slane %v3595, 1
        %v3746 = vrot.slane %v3557, 1
        %v3747 = vsel %vm2658, %v3745, %v3746
        %v3748 = vrot.slane %v3596, 1
        %v3749 = vsel %vm2658, %v3743, %v3748
        %v3750 = vrot.slane %v3597, 1
        %v3751 = vsel %vm2658, %v3746, %v3750
        %v3752 = vrot.slane %v3598, 1
        %v3753 = vrot.slane %v3560, 1
        %v3754 = vsel %vm2658, %v3752, %v3753
        %v3755 = vrot.slane %v3599, 1
        %v3756 = vrot.slane %v3561, 1
        %v3757 = vsel %vm2658, %v3755, %v3756
        %v3758 = vrot.slane %v3600, 1
        %v3759 = vsel %vm2658, %v3753, %v3758
        %v3760 = vrot.slane %v3601, 1
        %v3761 = vsel %vm2658, %v3756, %v3760
        %v3802 = vld [vmem:[%s3521] sm:$0xfc]
        %v3803 = vld [vmem:[%s3521 + $0x8] sm:$0xfc]
        %v3804 = vld [vmem:[%s3521 + $0x20] sm:$0x3]
        %v3805 = vld [vmem:[%s3521 + $0x28] sm:$0x3]
        %v3806 = vld [vmem:[%s3521 + $0x30] sm:$0xfc]
        %v3807 = vld [vmem:[%s3521 + $0x38] sm:$0xfc]
        %v3808 = vld [vmem:[%s3521 + $0x50] sm:$0x3]
        %v3809 = vld [vmem:[%s3521 + $0x58] sm:$0x3]
        %v3810 = vld [vmem:[%s3521 + $0x60] sm:$0xfc]
        %v3811 = vld [vmem:[%s3521 + $0x68] sm:$0xfc]
        %v3812 = vld [vmem:[%s3521 + $0x80] sm:$0x3]
        %v3813 = vld [vmem:[%s3521 + $0x88] sm:$0x3]
        %v3814 = vld [vmem:[%s3521 + $0x90] sm:$0xfc]
        %v3815 = vld [vmem:[%s3521 + $0x98] sm:$0xfc]
        %v3816 = vld [vmem:[%s3521 + $0xb0] sm:$0x3]
        %v3817 = vld [vmem:[%s3521 + $0xb8] sm:$0x3]
        %v3818 = vld [vmem:[%s3521 + $0xc0] sm:$0xfc]
        %v3819 = vld [vmem:[%s3521 + $0xc8] sm:$0xfc]
        %v3820 = vld [vmem:[%s3521 + $0xe0] sm:$0x3]
        %v3821 = vld [vmem:[%s3521 + $0xe8] sm:$0x3]
        %v3822 = vld [vmem:[%s3521 + $0xf0] sm:$0xfc]
        %v3823 = vld [vmem:[%s3521 + $0xf8] sm:$0xfc]
        %v3824 = vld [vmem:[%s3521 + $0x110] sm:$0x3]
        %v3825 = vld [vmem:[%s3521 + $0x118] sm:$0x3]
        %v3826 = vld [vmem:[%s3521 + $0x120] sm:$0xfc]
        %v3827 = vld [vmem:[%s3521 + $0x128] sm:$0xfc]
        %v3828 = vld [vmem:[%s3521 + $0x140] sm:$0x3]
        %v3829 = vld [vmem:[%s3521 + $0x148] sm:$0x3]
        %v3830 = vld [vmem:[%s3521 + $0x150] sm:$0xfc]
        %v3831 = vld [vmem:[%s3521 + $0x158] sm:$0xfc]
        %v3832 = vld [vmem:[%s3521 + $0x170] sm:$0x3]
        %v3833 = vld [vmem:[%s3521 + $0x178] sm:$0x3]
        %v3834 = vld [vmem:[%s3521 + $0x180] sm:$0xfc]
        %v3835 = vld [vmem:[%s3521 + $0x188] sm:$0xfc]
        %v3836 = vld [vmem:[%s3521 + $0x1a0] sm:$0x3]
        %v3837 = vld [vmem:[%s3521 + $0x1a8] sm:$0x3]
        %v3838 = vld [vmem:[%s3521 + $0x1b0] sm:$0xfc]
        %v3839 = vld [vmem:[%s3521 + $0x1b8] sm:$0xfc]
        %v3840 = vld [vmem:[%s3521 + $0x1d0] sm:$0x3]
        %v3841 = vld [vmem:[%s3521 + $0x1d8] sm:$0x3]
        %v3882 = vrot.slane %v3802, 2
        %v3883 = vrot.slane %v3524, 2
        %v3884 = vsel %vm2879, %v3882, %v3883
        %v3885 = vrot.slane %v3803, 2
        %v3886 = vrot.slane %v3525, 2
        %v3887 = vsel %vm2879, %v3885, %v3886
        %v3888 = vrot.slane %v3804, 2
        %v3889 = vsel %vm2879, %v3883, %v3888
        %v3890 = vrot.slane %v3805, 2
        %v3891 = vsel %vm2879, %v3886, %v3890
        %v3892 = vrot.slane %v3806, 2
        %v3893 = vrot.slane %v3528, 2
        %v3894 = vsel %vm2879, %v3892, %v3893
        %v3895 = vrot.slane %v3807, 2
        %v3896 = vrot.slane %v3529, 2
        %v3897 = vsel %vm2879, %v3895, %v3896
        %v3898 = vrot.slane %v3808, 2
        %v3899 = vsel %vm2879, %v3893, %v3898
        %v3900 = vrot.slane %v3809, 2
        %v3901 = vsel %vm2879, %v3896, %v3900
        %v3902 = vrot.slane %v3810, 2
        %v3903 = vrot.slane %v3532, 2
        %v3904 = vsel %vm2879, %v3902, %v3903
        %v3905 = vrot.slane %v3811, 2
        %v3906 = vrot.slane %v3533, 2
        %v3907 = vsel %vm2879, %v3905, %v3906
        %v3908 = vrot.slane %v3812, 2
        %v3909 = vsel %vm2879, %v3903, %v3908
        %v3910 = vrot.slane %v3813, 2
        %v3911 = vsel %vm2879, %v3906, %v3910
        %v3912 = vrot.slane %v3814, 2
        %v3913 = vrot.slane %v3536, 2
        %v3914 = vsel %vm2879, %v3912, %v3913
        %v3915 = vrot.slane %v3815, 2
        %v3916 = vrot.slane %v3537, 2
        %v3917 = vsel %vm2879, %v3915, %v3916
        %v3918 = vrot.slane %v3816, 2
        %v3919 = vsel %vm2879, %v3913, %v3918
        %v3920 = vrot.slane %v3817, 2
        %v3921 = vsel %vm2879, %v3916, %v3920
        %v3922 = vrot.slane %v3818, 2
        %v3923 = vrot.slane %v3540, 2
        %v3924 = vsel %vm2879, %v3922, %v3923
        %v3925 = vrot.slane %v3819, 2
        %v3926 = vrot.slane %v3541, 2
        %v3927 = vsel %vm2879, %v3925, %v3926
        %v3928 = vrot.slane %v3820, 2
        %v3929 = vsel %vm2879, %v3923, %v3928
        %v3930 = vrot.slane %v3821, 2
        %v3931 = vsel %vm2879, %v3926, %v3930
        %v3932 = vrot.slane %v3822, 2
        %v3933 = vrot.slane %v3544, 2
        %v3934 = vsel %vm2879, %v3932, %v3933
        %v3935 = vrot.slane %v3823, 2
        %v3936 = vrot.slane %v3545, 2
        %v3937 = vsel %vm2879, %v3935, %v3936
        %v3938 = vrot.slane %v3824, 2
        %v3939 = vsel %vm2879, %v3933, %v3938
        %v3940 = vrot.slane %v3825, 2
        %v3941 = vsel %vm2879, %v3936, %v3940
        %v3942 = vrot.slane %v3826, 2
        %v3943 = vrot.slane %v3548, 2
        %v3944 = vsel %vm2879, %v3942, %v3943
        %v3945 = vrot.slane %v3827, 2
        %v3946 = vrot.slane %v3549, 2
        %v3947 = vsel %vm2879, %v3945, %v3946
        %v3948 = vrot.slane %v3828, 2
        %v3949 = vsel %vm2879, %v3943, %v3948
        %v3950 = vrot.slane %v3829, 2
        %v3951 = vsel %vm2879, %v3946, %v3950
        %v3952 = vrot.slane %v3830, 2
        %v3953 = vrot.slane %v3552, 2
        %v3954 = vsel %vm2879, %v3952, %v3953
        %v3955 = vrot.slane %v3831, 2
        %v3956 = vrot.slane %v3553, 2
        %v3957 = vsel %vm2879, %v3955, %v3956
        %v3958 = vrot.slane %v3832, 2
        %v3959 = vsel %vm2879, %v3953, %v3958
        %v3960 = vrot.slane %v3833, 2
        %v3961 = vsel %vm2879, %v3956, %v3960
        %v3962 = vrot.slane %v3834, 2
        %v3963 = vrot.slane %v3556, 2
        %v3964 = vsel %vm2879, %v3962, %v3963
        %v3965 = vrot.slane %v3835, 2
        %v3966 = vrot.slane %v3557, 2
        %v3967 = vsel %vm2879, %v3965, %v3966
        %v3968 = vrot.slane %v3836, 2
        %v3969 = vsel %vm2879, %v3963, %v3968
        %v3970 = vrot.slane %v3837, 2
        %v3971 = vsel %vm2879, %v3966, %v3970
        %v3972 = vrot.slane %v3838, 2
        %v3973 = vrot.slane %v3560, 2
        %v3974 = vsel %vm2879, %v3972, %v3973
        %v3975 = vrot.slane %v3839, 2
        %v3976 = vrot.slane %v3561, 2
        %v3977 = vsel %vm2879, %v3975, %v3976
        %v3978 = vrot.slane %v3840, 2
        %v3979 = vsel %vm2879, %v3973, %v3978
        %v3980 = vrot.slane %v3841, 2
        %v3981 = vsel %vm2879, %v3976, %v3980
        %v4022 = vld [vmem:[#allocation13] sm:$0xff]
        %v4023 = vld [vmem:[#allocation13 + $0x8] sm:$0xff]
        %v4024 = vld [vmem:[#allocation13 + $0x10] sm:$0xff]
        %v4025 = vld [vmem:[#allocation13 + $0x18] sm:$0xff]
        %v4026 = vld [vmem:[#allocation13 + $0x20] sm:$0xff]
        %v4027 = vld [vmem:[#allocation13 + $0x28] sm:$0xff]
        %v4028 = vld [vmem:[#allocation13 + $0x30] sm:$0xff]
        %v4029 = vld [vmem:[#allocation13 + $0x38] sm:$0xff]
        %v4030 = vld [vmem:[#allocation13 + $0x40] sm:$0xff]
        %v4031 = vld [vmem:[#allocation13 + $0x48] sm:$0xff]
        %v4032 = vld [vmem:[#allocation13 + $0x50] sm:$0xff]
        %v4033 = vld [vmem:[#allocation13 + $0x58] sm:$0xff]
        %v4034 = vld [vmem:[#allocation13 + $0x60] sm:$0xff]
        %v4035 = vld [vmem:[#allocation13 + $0x68] sm:$0xff]
        %v4036 = vld [vmem:[#allocation13 + $0x70] sm:$0xff]
        %v4037 = vld [vmem:[#allocation13 + $0x78] sm:$0xff]
        %v4038 = vld [vmem:[#allocation13 + $0x80] sm:$0xff]
        %v4039 = vld [vmem:[#allocation13 + $0x88] sm:$0xff]
        %v4040 = vld [vmem:[#allocation13 + $0x90] sm:$0xff]
        %v4041 = vld [vmem:[#allocation13 + $0x98] sm:$0xff]
        %v4042 = vld [vmem:[#allocation13 + $0xa0] sm:$0xff]
        %v4043 = vld [vmem:[#allocation13 + $0xa8] sm:$0xff]
        %v4044 = vld [vmem:[#allocation13 + $0xb0] sm:$0xff]
        %v4045 = vld [vmem:[#allocation13 + $0xb8] sm:$0xff]
        %v4046 = vld [vmem:[#allocation13 + $0xc0] sm:$0xff]
        %v4047 = vld [vmem:[#allocation13 + $0xc8] sm:$0xff]
        %v4048 = vld [vmem:[#allocation13 + $0xd0] sm:$0xff]
        %v4049 = vld [vmem:[#allocation13 + $0xd8] sm:$0xff]
        %v4050 = vld [vmem:[#allocation13 + $0xe0] sm:$0xff]
        %v4051 = vld [vmem:[#allocation13 + $0xe8] sm:$0xff]
        %v4052 = vld [vmem:[#allocation13 + $0xf0] sm:$0xff]
        %v4053 = vld [vmem:[#allocation13 + $0xf8] sm:$0xff]
        %v4054 = vld [vmem:[#allocation13 + $0x100] sm:$0xff]
        %v4055 = vld [vmem:[#allocation13 + $0x108] sm:$0xff]
        %v4056 = vld [vmem:[#allocation13 + $0x110] sm:$0xff]
        %v4057 = vld [vmem:[#allocation13 + $0x118] sm:$0xff]
        %v4058 = vld [vmem:[#allocation13 + $0x120] sm:$0xff]
        %v4059 = vld [vmem:[#allocation13 + $0x128] sm:$0xff]
        %v4060 = vld [vmem:[#allocation13 + $0x130] sm:$0xff]
        %v4061 = vld [vmem:[#allocation13 + $0x138] sm:$0xff]
        %v4062 = vld [vmem:[#allocation13 + $0x140] sm:$0xff]
        %v4063 = vld [vmem:[#allocation13 + $0x148] sm:$0xff]
        %v4064 = vld [vmem:[#allocation13 + $0x150] sm:$0xff]
        %v4065 = vld [vmem:[#allocation13 + $0x158] sm:$0xff]
        %v4066 = vld [vmem:[#allocation13 + $0x160] sm:$0xff]
        %v4067 = vld [vmem:[#allocation13 + $0x168] sm:$0xff]
        %v4068 = vld [vmem:[#allocation13 + $0x170] sm:$0xff]
        %v4069 = vld [vmem:[#allocation13 + $0x178] sm:$0xff]
        %v4070 = vld [vmem:[#allocation13 + $0x180] sm:$0xff]
        %v4071 = vld [vmem:[#allocation13 + $0x188] sm:$0xff]
        %v4072 = vld [vmem:[#allocation13 + $0x190] sm:$0xff]
        %v4073 = vld [vmem:[#allocation13 + $0x198] sm:$0xff]
        %v4074 = vld [vmem:[#allocation13 + $0x1a0] sm:$0xff]
        %v4075 = vld [vmem:[#allocation13 + $0x1a8] sm:$0xff]
        %v4076 = vld [vmem:[#allocation13 + $0x1b0] sm:$0xff]
        %v4077 = vld [vmem:[#allocation13 + $0x1b8] sm:$0xff]
        %v4078 = vld [vmem:[#allocation13 + $0x1c0] sm:$0xff]
        %v4079 = vld [vmem:[#allocation13 + $0x1c8] sm:$0xff]
        %v4080 = vld [vmem:[#allocation13 + $0x1d0] sm:$0xff]
        %v4081 = vld [vmem:[#allocation13 + $0x1d8] sm:$0xff]
        %v4082 = vld [vmem:[#allocation13 + $0x1e0] sm:$0xff]
        %v4083 = vld [vmem:[#allocation13 + $0x1e8] sm:$0xff]
        %v4084 = vld [vmem:[#allocation13 + $0x1f0] sm:$0xff]
        %v4085 = vld [vmem:[#allocation13 + $0x1f8] sm:$0xff]
        %v4086 = vld [vmem:[#allocation13 + $0x200] sm:$0xff]
        %v4087 = vld [vmem:[#allocation13 + $0x208] sm:$0xff]
        %v4088 = vld [vmem:[#allocation13 + $0x210] sm:$0xff]
        %v4089 = vld [vmem:[#allocation13 + $0x218] sm:$0xff]
        %v4090 = vld [vmem:[#allocation13 + $0x220] sm:$0xff]
        %v4091 = vld [vmem:[#allocation13 + $0x228] sm:$0xff]
        %v4092 = vld [vmem:[#allocation13 + $0x230] sm:$0xff]
        %v4093 = vld [vmem:[#allocation13 + $0x238] sm:$0xff]
        %v4094 = vld [vmem:[#allocation13 + $0x240] sm:$0xff]
        %v4095 = vld [vmem:[#allocation13 + $0x248] sm:$0xff]
        %v4096 = vld [vmem:[#allocation13 + $0x250] sm:$0xff]
        %v4097 = vld [vmem:[#allocation13 + $0x258] sm:$0xff]
        %v4098 = vld [vmem:[#allocation13 + $0x260] sm:$0xff]
        %v4099 = vld [vmem:[#allocation13 + $0x268] sm:$0xff]
        %v4100 = vld [vmem:[#allocation13 + $0x270] sm:$0xff]
        %v4101 = vld [vmem:[#allocation13 + $0x278] sm:$0xff]
        %v4102 = vld [vmem:[#allocation13 + $0x280] sm:$0xff]
        %v4103 = vld [vmem:[#allocation13 + $0x288] sm:$0xff]
        %v4104 = vld [vmem:[#allocation13 + $0x290] sm:$0xff]
        %v4105 = vld [vmem:[#allocation13 + $0x298] sm:$0xff]
        %v4106 = vld [vmem:[#allocation13 + $0x2a0] sm:$0xff]
        %v4107 = vld [vmem:[#allocation13 + $0x2a8] sm:$0xff]
        %v4108 = vld [vmem:[#allocation13 + $0x2b0] sm:$0xff]
        %v4109 = vld [vmem:[#allocation13 + $0x2b8] sm:$0xff]
        %v4110 = vld [vmem:[#allocation13 + $0x2c0] sm:$0xff]
        %v4111 = vld [vmem:[#allocation13 + $0x2c8] sm:$0xff]
        %v4112 = vld [vmem:[#allocation13 + $0x2d0] sm:$0xff]
        %v4113 = vld [vmem:[#allocation13 + $0x2d8] sm:$0xff]
        %v4114 = vld [vmem:[#allocation13 + $0x2e0] sm:$0xff]
        %v4115 = vld [vmem:[#allocation13 + $0x2e8] sm:$0xff]
        %v4116 = vld [vmem:[#allocation13 + $0x2f0] sm:$0xff]
        %v4117 = vld [vmem:[#allocation13 + $0x2f8] sm:$0xff]
        %v4118 = vld [vmem:[#allocation13 + $0x300] sm:$0xff]
        %v4119 = vld [vmem:[#allocation13 + $0x308] sm:$0xff]
        %v4120 = vld [vmem:[#allocation13 + $0x310] sm:$0xff]
        %v4121 = vld [vmem:[#allocation13 + $0x318] sm:$0xff]
        %v4122 = vld [vmem:[#allocation13 + $0x320] sm:$0xff]
        %v4123 = vld [vmem:[#allocation13 + $0x328] sm:$0xff]
        %v4124 = vld [vmem:[#allocation13 + $0x330] sm:$0xff]
        %v4125 = vld [vmem:[#allocation13 + $0x338] sm:$0xff]
        %v4126 = vld [vmem:[#allocation13 + $0x340] sm:$0xff]
        %v4127 = vld [vmem:[#allocation13 + $0x348] sm:$0xff]
        %v4128 = vld [vmem:[#allocation13 + $0x350] sm:$0xff]
        %v4129 = vld [vmem:[#allocation13 + $0x358] sm:$0xff]
        %v4130 = vld [vmem:[#allocation13 + $0x360] sm:$0xff]
        %v4131 = vld [vmem:[#allocation13 + $0x368] sm:$0xff]
        %v4132 = vld [vmem:[#allocation13 + $0x370] sm:$0xff]
        %v4133 = vld [vmem:[#allocation13 + $0x378] sm:$0xff]
        %v4134 = vld [vmem:[#allocation13 + $0x380] sm:$0xff]
        %v4135 = vld [vmem:[#allocation13 + $0x388] sm:$0xff]
        %v4136 = vld [vmem:[#allocation13 + $0x390] sm:$0xff]
        %v4137 = vld [vmem:[#allocation13 + $0x398] sm:$0xff]
        %v4138 = vld [vmem:[#allocation13 + $0x3a0] sm:$0xff]
        %v4139 = vld [vmem:[#allocation13 + $0x3a8] sm:$0xff]
        %v4140 = vld [vmem:[#allocation13 + $0x3b0] sm:$0xff]
        %v4141 = vld [vmem:[#allocation13 + $0x3b8] sm:$0xff]
        %v4142 = vld [vmem:[#allocation13 + $0x3c0] sm:$0xff]
        %v4143 = vld [vmem:[#allocation13 + $0x3c8] sm:$0xff]
        %v4144 = vld [vmem:[#allocation13 + $0x3d0] sm:$0xff]
        %v4145 = vld [vmem:[#allocation13 + $0x3d8] sm:$0xff]
        %v4146 = vld [vmem:[#allocation13 + $0x3e0] sm:$0xff]
        %v4147 = vld [vmem:[#allocation13 + $0x3e8] sm:$0xff]
        %v4148 = vld [vmem:[#allocation13 + $0x3f0] sm:$0xff]
        %v4149 = vld [vmem:[#allocation13 + $0x3f8] sm:$0xff]
        %v4150 = vld [vmem:[#allocation13 + $0x400] sm:$0xff]
        %v4151 = vld [vmem:[#allocation13 + $0x408] sm:$0xff]
        %v4152 = vld [vmem:[#allocation13 + $0x410] sm:$0xff]
        %v4153 = vld [vmem:[#allocation13 + $0x418] sm:$0xff]
        %v4154 = vld [vmem:[#allocation13 + $0x420] sm:$0xff]
        %v4155 = vld [vmem:[#allocation13 + $0x428] sm:$0xff]
        %v4156 = vld [vmem:[#allocation13 + $0x430] sm:$0xff]
        %v4157 = vld [vmem:[#allocation13 + $0x438] sm:$0xff]
        %v4158 = vld [vmem:[#allocation13 + $0x440] sm:$0xff]
        %v4159 = vld [vmem:[#allocation13 + $0x448] sm:$0xff]
        %v4160 = vld [vmem:[#allocation13 + $0x450] sm:$0xff]
        %v4161 = vld [vmem:[#allocation13 + $0x458] sm:$0xff]
        %v4162 = vld [vmem:[#allocation13 + $0x460] sm:$0xff]
        %v4163 = vld [vmem:[#allocation13 + $0x468] sm:$0xff]
        %v4164 = vld [vmem:[#allocation13 + $0x470] sm:$0xff]
        %v4165 = vld [vmem:[#allocation13 + $0x478] sm:$0xff]
        %v4166 = vld [vmem:[#allocation13 + $0x480] sm:$0xff]
        %v4167 = vld [vmem:[#allocation13 + $0x488] sm:$0xff]
        %v4168 = vld [vmem:[#allocation13 + $0x490] sm:$0xff]
        %v4169 = vld [vmem:[#allocation13 + $0x498] sm:$0xff]
        %v4170 = vld [vmem:[#allocation13 + $0x4a0] sm:$0xff]
        %v4171 = vld [vmem:[#allocation13 + $0x4a8] sm:$0xff]
        %v4172 = vld [vmem:[#allocation13 + $0x4b0] sm:$0xff]
        %v4173 = vld [vmem:[#allocation13 + $0x4b8] sm:$0xff]
        %v4174 = vld [vmem:[#allocation13 + $0x4c0] sm:$0xff]
        %v4175 = vld [vmem:[#allocation13 + $0x4c8] sm:$0xff]
        %v4176 = vld [vmem:[#allocation13 + $0x4d0] sm:$0xff]
        %v4177 = vld [vmem:[#allocation13 + $0x4d8] sm:$0xff]
        %v4178 = vld [vmem:[#allocation13 + $0x4e0] sm:$0xff]
        %v4179 = vld [vmem:[#allocation13 + $0x4e8] sm:$0xff]
        %v4180 = vld [vmem:[#allocation13 + $0x4f0] sm:$0xff]
        %v4181 = vld [vmem:[#allocation13 + $0x4f8] sm:$0xff]
        %v4182 = vld [vmem:[#allocation13 + $0x500] sm:$0xff]
        %v4183 = vld [vmem:[#allocation13 + $0x508] sm:$0xff]
        %v4184 = vld [vmem:[#allocation13 + $0x510] sm:$0xff]
        %v4185 = vld [vmem:[#allocation13 + $0x518] sm:$0xff]
        %v4186 = vld [vmem:[#allocation13 + $0x520] sm:$0xff]
        %v4187 = vld [vmem:[#allocation13 + $0x528] sm:$0xff]
        %v4188 = vld [vmem:[#allocation13 + $0x530] sm:$0xff]
        %v4189 = vld [vmem:[#allocation13 + $0x538] sm:$0xff]
        %v4190 = vld [vmem:[#allocation13 + $0x540] sm:$0xff]
        %v4191 = vld [vmem:[#allocation13 + $0x548] sm:$0xff]
        %v4192 = vld [vmem:[#allocation13 + $0x550] sm:$0xff]
        %v4193 = vld [vmem:[#allocation13 + $0x558] sm:$0xff]
        %v4194 = vld [vmem:[#allocation13 + $0x560] sm:$0xff]
        %v4195 = vld [vmem:[#allocation13 + $0x568] sm:$0xff]
        %v4196 = vld [vmem:[#allocation13 + $0x570] sm:$0xff]
        %v4197 = vld [vmem:[#allocation13 + $0x578] sm:$0xff]
        %v4198 = vld [vmem:[#allocation13 + $0x580] sm:$0xff]
        %v4199 = vld [vmem:[#allocation13 + $0x588] sm:$0xff]
        %v4200 = vld [vmem:[#allocation13 + $0x590] sm:$0xff]
        %v4201 = vld [vmem:[#allocation13 + $0x598] sm:$0xff]
        %v4202 = vld [vmem:[#allocation13 + $0x5a0] sm:$0xff]
        %v4203 = vld [vmem:[#allocation13 + $0x5a8] sm:$0xff]
        %v4204 = vld [vmem:[#allocation13 + $0x5b0] sm:$0xff]
        %v4205 = vld [vmem:[#allocation13 + $0x5b8] sm:$0xff]
        %v4206 = vld [vmem:[#allocation13 + $0x5c0] sm:$0xff]
        %v4207 = vld [vmem:[#allocation13 + $0x5c8] sm:$0xff]
        %v4208 = vld [vmem:[#allocation13 + $0x5d0] sm:$0xff]
        %v4209 = vld [vmem:[#allocation13 + $0x5d8] sm:$0xff]
        %v4210 = vld [vmem:[#allocation13 + $0x5e0] sm:$0xff]
        %v4211 = vld [vmem:[#allocation13 + $0x5e8] sm:$0xff]
        %v4212 = vld [vmem:[#allocation13 + $0x5f0] sm:$0xff]
        %v4213 = vld [vmem:[#allocation13 + $0x5f8] sm:$0xff]
        %v4214 = vld [vmem:[#allocation13 + $0x600] sm:$0xff]
        %v4215 = vld [vmem:[#allocation13 + $0x608] sm:$0xff]
        %v4216 = vld [vmem:[#allocation13 + $0x610] sm:$0xff]
        %v4217 = vld [vmem:[#allocation13 + $0x618] sm:$0xff]
        %v4218 = vld [vmem:[#allocation13 + $0x620] sm:$0xff]
        %v4219 = vld [vmem:[#allocation13 + $0x628] sm:$0xff]
        %v4220 = vld [vmem:[#allocation13 + $0x630] sm:$0xff]
        %v4221 = vld [vmem:[#allocation13 + $0x638] sm:$0xff]
        %v4222 = vld [vmem:[#allocation13 + $0x640] sm:$0xff]
        %v4223 = vld [vmem:[#allocation13 + $0x648] sm:$0xff]
        %v4224 = vld [vmem:[#allocation13 + $0x650] sm:$0xff]
        %v4225 = vld [vmem:[#allocation13 + $0x658] sm:$0xff]
        %v4226 = vld [vmem:[#allocation13 + $0x660] sm:$0xff]
        %v4227 = vld [vmem:[#allocation13 + $0x668] sm:$0xff]
        %v4228 = vld [vmem:[#allocation13 + $0x670] sm:$0xff]
        %v4229 = vld [vmem:[#allocation13 + $0x678] sm:$0xff]
        %v4230 = vld [vmem:[#allocation13 + $0x680] sm:$0xff]
        %v4231 = vld [vmem:[#allocation13 + $0x688] sm:$0xff]
        %v4232 = vld [vmem:[#allocation13 + $0x690] sm:$0xff]
        %v4233 = vld [vmem:[#allocation13 + $0x698] sm:$0xff]
        %v4234 = vld [vmem:[#allocation13 + $0x6a0] sm:$0xff]
        %v4235 = vld [vmem:[#allocation13 + $0x6a8] sm:$0xff]
        %v4236 = vld [vmem:[#allocation13 + $0x6b0] sm:$0xff]
        %v4237 = vld [vmem:[#allocation13 + $0x6b8] sm:$0xff]
        %v4238 = vld [vmem:[#allocation13 + $0x6c0] sm:$0xff]
        %v4239 = vld [vmem:[#allocation13 + $0x6c8] sm:$0xff]
        %v4240 = vld [vmem:[#allocation13 + $0x6d0] sm:$0xff]
        %v4241 = vld [vmem:[#allocation13 + $0x6d8] sm:$0xff]
        %v4242 = vld [vmem:[#allocation13 + $0x6e0] sm:$0xff]
        %v4243 = vld [vmem:[#allocation13 + $0x6e8] sm:$0xff]
        %v4244 = vld [vmem:[#allocation13 + $0x6f0] sm:$0xff]
        %v4245 = vld [vmem:[#allocation13 + $0x6f8] sm:$0xff]
        %v4246 = vld [vmem:[#allocation13 + $0x700] sm:$0xff]
        %v4247 = vld [vmem:[#allocation13 + $0x708] sm:$0xff]
        %v4248 = vld [vmem:[#allocation13 + $0x710] sm:$0xff]
        %v4249 = vld [vmem:[#allocation13 + $0x718] sm:$0xff]
        %v4250 = vld [vmem:[#allocation13 + $0x720] sm:$0xff]
        %v4251 = vld [vmem:[#allocation13 + $0x728] sm:$0xff]
        %v4252 = vld [vmem:[#allocation13 + $0x730] sm:$0xff]
        %v4253 = vld [vmem:[#allocation13 + $0x738] sm:$0xff]
        %v4254 = vld [vmem:[#allocation13 + $0x740] sm:$0xff]
        %v4255 = vld [vmem:[#allocation13 + $0x748] sm:$0xff]
        %v4256 = vld [vmem:[#allocation13 + $0x750] sm:$0xff]
        %v4257 = vld [vmem:[#allocation13 + $0x758] sm:$0xff]
        %v4258 = vld [vmem:[#allocation13 + $0x760] sm:$0xff]
        %v4259 = vld [vmem:[#allocation13 + $0x768] sm:$0xff]
        %v4260 = vld [vmem:[#allocation13 + $0x770] sm:$0xff]
        %v4261 = vld [vmem:[#allocation13 + $0x778] sm:$0xff]
        %v4262 = vld [vmem:[#allocation13 + $0x780] sm:$0xff]
        %v4263 = vld [vmem:[#allocation13 + $0x788] sm:$0xff]
        %v4264 = vld [vmem:[#allocation13 + $0x790] sm:$0xff]
        %v4265 = vld [vmem:[#allocation13 + $0x798] sm:$0xff]
        %v4266 = vld [vmem:[#allocation13 + $0x7a0] sm:$0xff]
        %v4267 = vld [vmem:[#allocation13 + $0x7a8] sm:$0xff]
        %v4268 = vld [vmem:[#allocation13 + $0x7b0] sm:$0xff]
        %v4269 = vld [vmem:[#allocation13 + $0x7b8] sm:$0xff]
        %v4270 = vld [vmem:[#allocation13 + $0x7c0] sm:$0xff]
        %v4271 = vld [vmem:[#allocation13 + $0x7c8] sm:$0xff]
        %v4272 = vld [vmem:[#allocation13 + $0x7d0] sm:$0xff]
        %v4273 = vld [vmem:[#allocation13 + $0x7d8] sm:$0xff]
        %v4274 = vld [vmem:[#allocation13 + $0x7e0] sm:$0xff]
        %v4275 = vld [vmem:[#allocation13 + $0x7e8] sm:$0xff]
        %v4276 = vld [vmem:[#allocation13 + $0x7f0] sm:$0xff]
        %v4277 = vld [vmem:[#allocation13 + $0x7f8] sm:$0xff]
        %v4278 = vld [vmem:[#allocation13 + $0x800] sm:$0xff]
        %v4279 = vld [vmem:[#allocation13 + $0x808] sm:$0xff]
        %v4280 = vld [vmem:[#allocation13 + $0x810] sm:$0xff]
        %v4281 = vld [vmem:[#allocation13 + $0x818] sm:$0xff]
        %v4282 = vld [vmem:[#allocation13 + $0x820] sm:$0xff]
        %v4283 = vld [vmem:[#allocation13 + $0x828] sm:$0xff]
        %v4284 = vld [vmem:[#allocation13 + $0x830] sm:$0xff]
        %v4285 = vld [vmem:[#allocation13 + $0x838] sm:$0xff]
        %v4286 = vld [vmem:[#allocation13 + $0x840] sm:$0xff]
        %v4287 = vld [vmem:[#allocation13 + $0x848] sm:$0xff]
        %v4288 = vld [vmem:[#allocation13 + $0x850] sm:$0xff]
        %v4289 = vld [vmem:[#allocation13 + $0x858] sm:$0xff]
        %v4290 = vld [vmem:[#allocation13 + $0x860] sm:$0xff]
        %v4291 = vld [vmem:[#allocation13 + $0x868] sm:$0xff]
        %v4292 = vld [vmem:[#allocation13 + $0x870] sm:$0xff]
        %v4293 = vld [vmem:[#allocation13 + $0x878] sm:$0xff]
        %v4294 = vld [vmem:[#allocation13 + $0x880] sm:$0xff]
        %v4295 = vld [vmem:[#allocation13 + $0x888] sm:$0xff]
        %v4296 = vld [vmem:[#allocation13 + $0x890] sm:$0xff]
        %v4297 = vld [vmem:[#allocation13 + $0x898] sm:$0xff]
        %v4298 = vld [vmem:[#allocation13 + $0x8a0] sm:$0xff]
        %v4299 = vld [vmem:[#allocation13 + $0x8a8] sm:$0xff]
        %v4300 = vld [vmem:[#allocation13 + $0x8b0] sm:$0xff]
        %v4301 = vld [vmem:[#allocation13 + $0x8b8] sm:$0xff]
        %v4302 = vld [vmem:[#allocation13 + $0x8c0] sm:$0xff]
        %v4303 = vld [vmem:[#allocation13 + $0x8c8] sm:$0xff]
        %v4304 = vld [vmem:[#allocation13 + $0x8d0] sm:$0xff]
        %v4305 = vld [vmem:[#allocation13 + $0x8d8] sm:$0xff]
        %v4306 = vld [vmem:[#allocation13 + $0x8e0] sm:$0xff]
        %v4307 = vld [vmem:[#allocation13 + $0x8e8] sm:$0xff]
        %v4308 = vld [vmem:[#allocation13 + $0x8f0] sm:$0xff]
        %v4309 = vld [vmem:[#allocation13 + $0x8f8] sm:$0xff]
        %4310 = vmatpush.msra.mxu0 %v4037
        %4311 = vmatpush.msra.mxu0 %v4036
        %4312 = vmatpush.msra.mxu0 %v4035
        %4313 = vmatpush.msra.mxu0 %v4034
        %4314 = vmatpush.msra.mxu0 %v4033
        %4315 = vmatpush.msra.mxu0 %v4032
        %4316 = vmatpush.msra.mxu0 %v4031
        %4317 = vmatpush.msra.mxu0 %v4030
        %4318 = vmatpush.msra.mxu0 %v4029
        %4319 = vmatpush.msra.mxu0 %v4028
        %4320 = vmatpush.msra.mxu0 %v4027
        %4321 = vmatpush.msra.mxu0 %v4026
        %4322 = vmatpush.msra.mxu0 %v4025
        %4323 = vmatpush.msra.mxu0 %v4024
        %4324 = vmatpush.msra.mxu0 %v4023
        %4325 = vmatpush.msra.mxu0 %v4022
        %4326 = vmatmul.f32.gmra.mxu0 %v2518
        %v4327 = vpop.f32.mrf.mxu0
        %v4328 = vadd.f32 0.0, %v4327
        %4329 = vmatmul.f32.gmra.mxu0 %v2520
        %v4330 = vpop.f32.mrf.mxu0
        %v4331 = vadd.f32 0.0, %v4330
        %4332 = vmatmul.f32.gmra.mxu0 %v2522
        %v4333 = vpop.f32.mrf.mxu0
        %v4334 = vadd.f32 0.0, %v4333
        %4335 = vmatmul.f32.gmra.mxu0 %v2524
        %v4336 = vpop.f32.mrf.mxu0
        %v4337 = vadd.f32 0.0, %v4336
        %4338 = vmatmul.f32.gmra.mxu0 %v2526
        %v4339 = vpop.f32.mrf.mxu0
        %v4340 = vadd.f32 0.0, %v4339
        %4341 = vmatmul.f32.gmra.mxu0 %v2528
        %v4342 = vpop.f32.mrf.mxu0
        %v4343 = vadd.f32 0.0, %v4342
        %4344 = vmatmul.f32.gmra.mxu0 %v2530
        %v4345 = vpop.f32.mrf.mxu0
        %v4346 = vadd.f32 0.0, %v4345
        %4347 = vmatmul.f32.gmra.mxu0 %v2532
        %v4348 = vpop.f32.mrf.mxu0
        %v4349 = vadd.f32 0.0, %v4348
        %4350 = vmatmul.f32.gmra.mxu0 %v2534
        %v4351 = vpop.f32.mrf.mxu0
        %v4352 = vadd.f32 0.0, %v4351
        %4353 = vmatmul.f32.gmra.mxu0 %v2536
        %v4354 = vpop.f32.mrf.mxu0
        %v4355 = vadd.f32 0.0, %v4354
        %4356 = vmatmul.f32.gmra.mxu0 %v2538
        %v4357 = vpop.f32.mrf.mxu0
        %v4358 = vadd.f32 0.0, %v4357
        %4359 = vmatmul.f32.gmra.mxu0 %v2540
        %v4360 = vpop.f32.mrf.mxu0
        %v4361 = vadd.f32 0.0, %v4360
        %4362 = vmatmul.f32.gmra.mxu0 %v2542
        %v4363 = vpop.f32.mrf.mxu0
        %v4364 = vadd.f32 0.0, %v4363
        %4365 = vmatmul.f32.gmra.mxu0 %v2544
        %v4366 = vpop.f32.mrf.mxu0
        %v4367 = vadd.f32 0.0, %v4366
        %4368 = vmatmul.f32.gmra.mxu0 %v2546
        %v4369 = vpop.f32.mrf.mxu0
        %v4370 = vadd.f32 0.0, %v4369
        %4371 = vmatmul.f32.gmra.mxu0 %v2548
        %v4372 = vpop.f32.mrf.mxu0
        %v4373 = vadd.f32 0.0, %v4372
        %4374 = vmatmul.f32.gmra.mxu0 %v2550
        %v4375 = vpop.f32.mrf.mxu0
        %v4376 = vadd.f32 0.0, %v4375
        %4377 = vmatmul.f32.gmra.mxu0 %v2552
        %v4378 = vpop.f32.mrf.mxu0
        %v4379 = vadd.f32 0.0, %v4378
        %4380 = vmatmul.f32.gmra.mxu0 %v2554
        %v4381 = vpop.f32.mrf.mxu0
        %v4382 = vadd.f32 0.0, %v4381
        %4383 = vmatmul.f32.gmra.mxu0 %v2556
        %v4384 = vpop.f32.mrf.mxu0
        %v4385 = vadd.f32 0.0, %v4384
        %4386 = vdwg.mxu0
        %4387 = vmatpush.msra.mxu0 %v4053
        %4388 = vmatpush.msra.mxu0 %v4052
        %4389 = vmatpush.msra.mxu0 %v4051
        %4390 = vmatpush.msra.mxu0 %v4050
        %4391 = vmatpush.msra.mxu0 %v4049
        %4392 = vmatpush.msra.mxu0 %v4048
        %4393 = vmatpush.msra.mxu0 %v4047
        %4394 = vmatpush.msra.mxu0 %v4046
        %4395 = vmatpush.msra.mxu0 %v4045
        %4396 = vmatpush.msra.mxu0 %v4044
        %4397 = vmatpush.msra.mxu0 %v4043
        %4398 = vmatpush.msra.mxu0 %v4042
        %4399 = vmatpush.msra.mxu0 %v4041
        %4400 = vmatpush.msra.mxu0 %v4040
        %4401 = vmatpush.msra.mxu0 %v4039
        %4402 = vmatpush.msra.mxu0 %v4038
        %4403 = vmatmul.f32.gmra.mxu0 %v2519
        %v4404 = vpop.f32.mrf.mxu0
        %v4405 = vadd.f32 %v4328, %v4404
        %4406 = vmatmul.f32.gmra.mxu0 %v2521
        %v4407 = vpop.f32.mrf.mxu0
        %v4408 = vadd.f32 %v4331, %v4407
        %4409 = vmatmul.f32.gmra.mxu0 %v2523
        %v4410 = vpop.f32.mrf.mxu0
        %v4411 = vadd.f32 %v4334, %v4410
        %4412 = vmatmul.f32.gmra.mxu0 %v2525
        %v4413 = vpop.f32.mrf.mxu0
        %v4414 = vadd.f32 %v4337, %v4413
        %4415 = vmatmul.f32.gmra.mxu0 %v2527
        %v4416 = vpop.f32.mrf.mxu0
        %v4417 = vadd.f32 %v4340, %v4416
        %4418 = vmatmul.f32.gmra.mxu0 %v2529
        %v4419 = vpop.f32.mrf.mxu0
        %v4420 = vadd.f32 %v4343, %v4419
        %4421 = vmatmul.f32.gmra.mxu0 %v2531
        %v4422 = vpop.f32.mrf.mxu0
        %v4423 = vadd.f32 %v4346, %v4422
        %4424 = vmatmul.f32.gmra.mxu0 %v2533
        %v4425 = vpop.f32.mrf.mxu0
        %v4426 = vadd.f32 %v4349, %v4425
        %4427 = vmatmul.f32.gmra.mxu0 %v2535
        %v4428 = vpop.f32.mrf.mxu0
        %v4429 = vadd.f32 %v4352, %v4428
        %4430 = vmatmul.f32.gmra.mxu0 %v2537
        %v4431 = vpop.f32.mrf.mxu0
        %v4432 = vadd.f32 %v4355, %v4431
        %4433 = vmatmul.f32.gmra.mxu0 %v2539
        %v4434 = vpop.f32.mrf.mxu0
        %v4435 = vadd.f32 %v4358, %v4434
        %4436 = vmatmul.f32.gmra.mxu0 %v2541
        %v4437 = vpop.f32.mrf.mxu0
        %v4438 = vadd.f32 %v4361, %v4437
        %4439 = vmatmul.f32.gmra.mxu0 %v2543
        %v4440 = vpop.f32.mrf.mxu0
        %v4441 = vadd.f32 %v4364, %v4440
        %4442 = vmatmul.f32.gmra.mxu0 %v2545
        %v4443 = vpop.f32.mrf.mxu0
        %v4444 = vadd.f32 %v4367, %v4443
        %4445 = vmatmul.f32.gmra.mxu0 %v2547
        %v4446 = vpop.f32.mrf.mxu0
        %v4447 = vadd.f32 %v4370, %v4446
        %4448 = vmatmul.f32.gmra.mxu0 %v2549
        %v4449 = vpop.f32.mrf.mxu0
        %v4450 = vadd.f32 %v4373, %v4449
        %4451 = vmatmul.f32.gmra.mxu0 %v2551
        %v4452 = vpop.f32.mrf.mxu0
        %v4453 = vadd.f32 %v4376, %v4452
        %4454 = vmatmul.f32.gmra.mxu0 %v2553
        %v4455 = vpop.f32.mrf.mxu0
        %v4456 = vadd.f32 %v4379, %v4455
        %4457 = vmatmul.f32.gmra.mxu0 %v2555
        %v4458 = vpop.f32.mrf.mxu0
        %v4459 = vadd.f32 %v4382, %v4458
        %4460 = vmatmul.f32.gmra.mxu0 %v2557
        %v4461 = vpop.f32.mrf.mxu0
        %v4462 = vadd.f32 %v4385, %v4461
        %4463 = vdwg.mxu0
        %4464 = vmatpush.msra.mxu0 %v4069
        %4465 = vmatpush.msra.mxu0 %v4068
        %4466 = vmatpush.msra.mxu0 %v4067
        %4467 = vmatpush.msra.mxu0 %v4066
        %4468 = vmatpush.msra.mxu0 %v4065
        %4469 = vmatpush.msra.mxu0 %v4064
        %4470 = vmatpush.msra.mxu0 %v4063
        %4471 = vmatpush.msra.mxu0 %v4062
        %4472 = vmatpush.msra.mxu0 %v4061
        %4473 = vmatpush.msra.mxu0 %v4060
        %4474 = vmatpush.msra.mxu0 %v4059
        %4475 = vmatpush.msra.mxu0 %v4058
        %4476 = vmatpush.msra.mxu0 %v4057
        %4477 = vmatpush.msra.mxu0 %v4056
        %4478 = vmatpush.msra.mxu0 %v4055
        %4479 = vmatpush.msra.mxu0 %v4054
        %4480 = vmatmul.f32.gmra.mxu0 %v2661
        %v4481 = vpop.f32.mrf.mxu0
        %v4482 = vadd.f32 %v4405, %v4481
        %4483 = vmatmul.f32.gmra.mxu0 %v2666
        %v4484 = vpop.f32.mrf.mxu0
        %v4485 = vadd.f32 %v4408, %v4484
        %4486 = vmatmul.f32.gmra.mxu0 %v2671
        %v4487 = vpop.f32.mrf.mxu0
        %v4488 = vadd.f32 %v4411, %v4487
        %4489 = vmatmul.f32.gmra.mxu0 %v2676
        %v4490 = vpop.f32.mrf.mxu0
        %v4491 = vadd.f32 %v4414, %v4490
        %4492 = vmatmul.f32.gmra.mxu0 %v2681
        %v4493 = vpop.f32.mrf.mxu0
        %v4494 = vadd.f32 %v4417, %v4493
        %4495 = vmatmul.f32.gmra.mxu0 %v2686
        %v4496 = vpop.f32.mrf.mxu0
        %v4497 = vadd.f32 %v4420, %v4496
        %4498 = vmatmul.f32.gmra.mxu0 %v2691
        %v4499 = vpop.f32.mrf.mxu0
        %v4500 = vadd.f32 %v4423, %v4499
        %4501 = vmatmul.f32.gmra.mxu0 %v2696
        %v4502 = vpop.f32.mrf.mxu0
        %v4503 = vadd.f32 %v4426, %v4502
        %4504 = vmatmul.f32.gmra.mxu0 %v2701
        %v4505 = vpop.f32.mrf.mxu0
        %v4506 = vadd.f32 %v4429, %v4505
        %4507 = vmatmul.f32.gmra.mxu0 %v2706
        %v4508 = vpop.f32.mrf.mxu0
        %v4509 = vadd.f32 %v4432, %v4508
        %4510 = vmatmul.f32.gmra.mxu0 %v2711
        %v4511 = vpop.f32.mrf.mxu0
        %v4512 = vadd.f32 %v4435, %v4511
        %4513 = vmatmul.f32.gmra.mxu0 %v2716
        %v4514 = vpop.f32.mrf.mxu0
        %v4515 = vadd.f32 %v4438, %v4514
        %4516 = vmatmul.f32.gmra.mxu0 %v2721
        %v4517 = vpop.f32.mrf.mxu0
        %v4518 = vadd.f32 %v4441, %v4517
        %4519 = vmatmul.f32.gmra.mxu0 %v2726
        %v4520 = vpop.f32.mrf.mxu0
        %v4521 = vadd.f32 %v4444, %v4520
        %4522 = vmatmul.f32.gmra.mxu0 %v2731
        %v4523 = vpop.f32.mrf.mxu0
        %v4524 = vadd.f32 %v4447, %v4523
        %4525 = vmatmul.f32.gmra.mxu0 %v2736
        %v4526 = vpop.f32.mrf.mxu0
        %v4527 = vadd.f32 %v4450, %v4526
        %4528 = vmatmul.f32.gmra.mxu0 %v2741
        %v4529 = vpop.f32.mrf.mxu0
        %v4530 = vadd.f32 %v4453, %v4529
        %4531 = vmatmul.f32.gmra.mxu0 %v2746
        %v4532 = vpop.f32.mrf.mxu0
        %v4533 = vadd.f32 %v4456, %v4532
        %4534 = vmatmul.f32.gmra.mxu0 %v2751
        %v4535 = vpop.f32.mrf.mxu0
        %v4536 = vadd.f32 %v4459, %v4535
        %4537 = vmatmul.f32.gmra.mxu0 %v2756
        %v4538 = vpop.f32.mrf.mxu0
        %v4539 = vadd.f32 %v4462, %v4538
        %4540 = vdwg.mxu0
        %4541 = vmatpush.msra.mxu0 %v4085
        %4542 = vmatpush.msra.mxu0 %v4084
        %4543 = vmatpush.msra.mxu0 %v4083
        %4544 = vmatpush.msra.mxu0 %v4082
        %4545 = vmatpush.msra.mxu0 %v4081
        %4546 = vmatpush.msra.mxu0 %v4080
        %4547 = vmatpush.msra.mxu0 %v4079
        %4548 = vmatpush.msra.mxu0 %v4078
        %4549 = vmatpush.msra.mxu0 %v4077
        %4550 = vmatpush.msra.mxu0 %v4076
        %4551 = vmatpush.msra.mxu0 %v4075
        %4552 = vmatpush.msra.mxu0 %v4074
        %4553 = vmatpush.msra.mxu0 %v4073
        %4554 = vmatpush.msra.mxu0 %v4072
        %4555 = vmatpush.msra.mxu0 %v4071
        %4556 = vmatpush.msra.mxu0 %v4070
        %4557 = vmatmul.f32.gmra.mxu0 %v2664
        %v4558 = vpop.f32.mrf.mxu0
        %v4559 = vadd.f32 %v4482, %v4558
        %4560 = vmatmul.f32.gmra.mxu0 %v2668
        %v4561 = vpop.f32.mrf.mxu0
        %v4562 = vadd.f32 %v4485, %v4561
        %4563 = vmatmul.f32.gmra.mxu0 %v2674
        %v4564 = vpop.f32.mrf.mxu0
        %v4565 = vadd.f32 %v4488, %v4564
        %4566 = vmatmul.f32.gmra.mxu0 %v2678
        %v4567 = vpop.f32.mrf.mxu0
        %v4568 = vadd.f32 %v4491, %v4567
        %4569 = vmatmul.f32.gmra.mxu0 %v2684
        %v4570 = vpop.f32.mrf.mxu0
        %v4571 = vadd.f32 %v4494, %v4570
        %4572 = vmatmul.f32.gmra.mxu0 %v2688
        %v4573 = vpop.f32.mrf.mxu0
        %v4574 = vadd.f32 %v4497, %v4573
        %4575 = vmatmul.f32.gmra.mxu0 %v2694
        %v4576 = vpop.f32.mrf.mxu0
        %v4577 = vadd.f32 %v4500, %v4576
        %4578 = vmatmul.f32.gmra.mxu0 %v2698
        %v4579 = vpop.f32.mrf.mxu0
        %v4580 = vadd.f32 %v4503, %v4579
        %4581 = vmatmul.f32.gmra.mxu0 %v2704
        %v4582 = vpop.f32.mrf.mxu0
        %v4583 = vadd.f32 %v4506, %v4582
        %4584 = vmatmul.f32.gmra.mxu0 %v2708
        %v4585 = vpop.f32.mrf.mxu0
        %v4586 = vadd.f32 %v4509, %v4585
        %4587 = vmatmul.f32.gmra.mxu0 %v2714
        %v4588 = vpop.f32.mrf.mxu0
        %v4589 = vadd.f32 %v4512, %v4588
        %4590 = vmatmul.f32.gmra.mxu0 %v2718
        %v4591 = vpop.f32.mrf.mxu0
        %v4592 = vadd.f32 %v4515, %v4591
        %4593 = vmatmul.f32.gmra.mxu0 %v2724
        %v4594 = vpop.f32.mrf.mxu0
        %v4595 = vadd.f32 %v4518, %v4594
        %4596 = vmatmul.f32.gmra.mxu0 %v2728
        %v4597 = vpop.f32.mrf.mxu0
        %v4598 = vadd.f32 %v4521, %v4597
        %4599 = vmatmul.f32.gmra.mxu0 %v2734
        %v4600 = vpop.f32.mrf.mxu0
        %v4601 = vadd.f32 %v4524, %v4600
        %4602 = vmatmul.f32.gmra.mxu0 %v2738
        %v4603 = vpop.f32.mrf.mxu0
        %v4604 = vadd.f32 %v4527, %v4603
        %4605 = vmatmul.f32.gmra.mxu0 %v2744
        %v4606 = vpop.f32.mrf.mxu0
        %v4607 = vadd.f32 %v4530, %v4606
        %4608 = vmatmul.f32.gmra.mxu0 %v2748
        %v4609 = vpop.f32.mrf.mxu0
        %v4610 = vadd.f32 %v4533, %v4609
        %4611 = vmatmul.f32.gmra.mxu0 %v2754
        %v4612 = vpop.f32.mrf.mxu0
        %v4613 = vadd.f32 %v4536, %v4612
        %4614 = vmatmul.f32.gmra.mxu0 %v2758
        %v4615 = vpop.f32.mrf.mxu0
        %v4616 = vadd.f32 %v4539, %v4615
        %4617 = vdwg.mxu0
        %4618 = vmatpush.msra.mxu0 %v4101
        %4619 = vmatpush.msra.mxu0 %v4100
        %4620 = vmatpush.msra.mxu0 %v4099
        %4621 = vmatpush.msra.mxu0 %v4098
        %4622 = vmatpush.msra.mxu0 %v4097
        %4623 = vmatpush.msra.mxu0 %v4096
        %4624 = vmatpush.msra.mxu0 %v4095
        %4625 = vmatpush.msra.mxu0 %v4094
        %4626 = vmatpush.msra.mxu0 %v4093
        %4627 = vmatpush.msra.mxu0 %v4092
        %4628 = vmatpush.msra.mxu0 %v4091
        %4629 = vmatpush.msra.mxu0 %v4090
        %4630 = vmatpush.msra.mxu0 %v4089
        %4631 = vmatpush.msra.mxu0 %v4088
        %4632 = vmatpush.msra.mxu0 %v4087
        %4633 = vmatpush.msra.mxu0 %v4086
        %4634 = vmatmul.f32.gmra.mxu0 %v2882
        %v4635 = vpop.f32.mrf.mxu0
        %v4636 = vadd.f32 %v4559, %v4635
        %4637 = vmatmul.f32.gmra.mxu0 %v2887
        %v4638 = vpop.f32.mrf.mxu0
        %v4639 = vadd.f32 %v4562, %v4638
        %4640 = vmatmul.f32.gmra.mxu0 %v2892
        %v4641 = vpop.f32.mrf.mxu0
        %v4642 = vadd.f32 %v4565, %v4641
        %4643 = vmatmul.f32.gmra.mxu0 %v2897
        %v4644 = vpop.f32.mrf.mxu0
        %v4645 = vadd.f32 %v4568, %v4644
        %4646 = vmatmul.f32.gmra.mxu0 %v2902
        %v4647 = vpop.f32.mrf.mxu0
        %v4648 = vadd.f32 %v4571, %v4647
        %4649 = vmatmul.f32.gmra.mxu0 %v2907
        %v4650 = vpop.f32.mrf.mxu0
        %v4651 = vadd.f32 %v4574, %v4650
        %4652 = vmatmul.f32.gmra.mxu0 %v2912
        %v4653 = vpop.f32.mrf.mxu0
        %v4654 = vadd.f32 %v4577, %v4653
        %4655 = vmatmul.f32.gmra.mxu0 %v2917
        %v4656 = vpop.f32.mrf.mxu0
        %v4657 = vadd.f32 %v4580, %v4656
        %4658 = vmatmul.f32.gmra.mxu0 %v2922
        %v4659 = vpop.f32.mrf.mxu0
        %v4660 = vadd.f32 %v4583, %v4659
        %4661 = vmatmul.f32.gmra.mxu0 %v2927
        %v4662 = vpop.f32.mrf.mxu0
        %v4663 = vadd.f32 %v4586, %v4662
        %4664 = vmatmul.f32.gmra.mxu0 %v2932
        %v4665 = vpop.f32.mrf.mxu0
        %v4666 = vadd.f32 %v4589, %v4665
        %4667 = vmatmul.f32.gmra.mxu0 %v2937
        %v4668 = vpop.f32.mrf.mxu0
        %v4669 = vadd.f32 %v4592, %v4668
        %4670 = vmatmul.f32.gmra.mxu0 %v2942
        %v4671 = vpop.f32.mrf.mxu0
        %v4672 = vadd.f32 %v4595, %v4671
        %4673 = vmatmul.f32.gmra.mxu0 %v2947
        %v4674 = vpop.f32.mrf.mxu0
        %v4675 = vadd.f32 %v4598, %v4674
        %4676 = vmatmul.f32.gmra.mxu0 %v2952
        %v4677 = vpop.f32.mrf.mxu0
        %v4678 = vadd.f32 %v4601, %v4677
        %4679 = vmatmul.f32.gmra.mxu0 %v2957
        %v4680 = vpop.f32.mrf.mxu0
        %v4681 = vadd.f32 %v4604, %v4680
        %4682 = vmatmul.f32.gmra.mxu0 %v2962
        %v4683 = vpop.f32.mrf.mxu0
        %v4684 = vadd.f32 %v4607, %v4683
        %4685 = vmatmul.f32.gmra.mxu0 %v2967
        %v4686 = vpop.f32.mrf.mxu0
        %v4687 = vadd.f32 %v4610, %v4686
        %4688 = vmatmul.f32.gmra.mxu0 %v2972
        %v4689 = vpop.f32.mrf.mxu0
        %v4690 = vadd.f32 %v4613, %v4689
        %4691 = vmatmul.f32.gmra.mxu0 %v2977
        %v4692 = vpop.f32.mrf.mxu0
        %v4693 = vadd.f32 %v4616, %v4692
        %4694 = vdwg.mxu0
        %4695 = vmatpush.msra.mxu0 %v4117
        %4696 = vmatpush.msra.mxu0 %v4116
        %4697 = vmatpush.msra.mxu0 %v4115
        %4698 = vmatpush.msra.mxu0 %v4114
        %4699 = vmatpush.msra.mxu0 %v4113
        %4700 = vmatpush.msra.mxu0 %v4112
        %4701 = vmatpush.msra.mxu0 %v4111
        %4702 = vmatpush.msra.mxu0 %v4110
        %4703 = vmatpush.msra.mxu0 %v4109
        %4704 = vmatpush.msra.mxu0 %v4108
        %4705 = vmatpush.msra.mxu0 %v4107
        %4706 = vmatpush.msra.mxu0 %v4106
        %4707 = vmatpush.msra.mxu0 %v4105
        %4708 = vmatpush.msra.mxu0 %v4104
        %4709 = vmatpush.msra.mxu0 %v4103
        %4710 = vmatpush.msra.mxu0 %v4102
        %4711 = vmatmul.f32.gmra.mxu0 %v2885
        %v4712 = vpop.f32.mrf.mxu0
        %v4713 = vadd.f32 %v4636, %v4712
        %4714 = vmatmul.f32.gmra.mxu0 %v2889
        %v4715 = vpop.f32.mrf.mxu0
        %v4716 = vadd.f32 %v4639, %v4715
        %4717 = vmatmul.f32.gmra.mxu0 %v2895
        %v4718 = vpop.f32.mrf.mxu0
        %v4719 = vadd.f32 %v4642, %v4718
        %4720 = vmatmul.f32.gmra.mxu0 %v2899
        %v4721 = vpop.f32.mrf.mxu0
        %v4722 = vadd.f32 %v4645, %v4721
        %4723 = vmatmul.f32.gmra.mxu0 %v2905
        %v4724 = vpop.f32.mrf.mxu0
        %v4725 = vadd.f32 %v4648, %v4724
        %4726 = vmatmul.f32.gmra.mxu0 %v2909
        %v4727 = vpop.f32.mrf.mxu0
        %v4728 = vadd.f32 %v4651, %v4727
        %4729 = vmatmul.f32.gmra.mxu0 %v2915
        %v4730 = vpop.f32.mrf.mxu0
        %v4731 = vadd.f32 %v4654, %v4730
        %4732 = vmatmul.f32.gmra.mxu0 %v2919
        %v4733 = vpop.f32.mrf.mxu0
        %v4734 = vadd.f32 %v4657, %v4733
        %4735 = vmatmul.f32.gmra.mxu0 %v2925
        %v4736 = vpop.f32.mrf.mxu0
        %v4737 = vadd.f32 %v4660, %v4736
        %4738 = vmatmul.f32.gmra.mxu0 %v2929
        %v4739 = vpop.f32.mrf.mxu0
        %v4740 = vadd.f32 %v4663, %v4739
        %4741 = vmatmul.f32.gmra.mxu0 %v2935
        %v4742 = vpop.f32.mrf.mxu0
        %v4743 = vadd.f32 %v4666, %v4742
        %4744 = vmatmul.f32.gmra.mxu0 %v2939
        %v4745 = vpop.f32.mrf.mxu0
        %v4746 = vadd.f32 %v4669, %v4745
        %4747 = vmatmul.f32.gmra.mxu0 %v2945
        %v4748 = vpop.f32.mrf.mxu0
        %v4749 = vadd.f32 %v4672, %v4748
        %4750 = vmatmul.f32.gmra.mxu0 %v2949
        %v4751 = vpop.f32.mrf.mxu0
        %v4752 = vadd.f32 %v4675, %v4751
        %4753 = vmatmul.f32.gmra.mxu0 %v2955
        %v4754 = vpop.f32.mrf.mxu0
        %v4755 = vadd.f32 %v4678, %v4754
        %4756 = vmatmul.f32.gmra.mxu0 %v2959
        %v4757 = vpop.f32.mrf.mxu0
        %v4758 = vadd.f32 %v4681, %v4757
        %4759 = vmatmul.f32.gmra.mxu0 %v2965
        %v4760 = vpop.f32.mrf.mxu0
        %v4761 = vadd.f32 %v4684, %v4760
        %4762 = vmatmul.f32.gmra.mxu0 %v2969
        %v4763 = vpop.f32.mrf.mxu0
        %v4764 = vadd.f32 %v4687, %v4763
        %4765 = vmatmul.f32.gmra.mxu0 %v2975
        %v4766 = vpop.f32.mrf.mxu0
        %v4767 = vadd.f32 %v4690, %v4766
        %4768 = vmatmul.f32.gmra.mxu0 %v2979
        %v4769 = vpop.f32.mrf.mxu0
        %v4770 = vadd.f32 %v4693, %v4769
        %4771 = vdwg.mxu0
        %4772 = vmatpush.msra.mxu0 %v4133
        %4773 = vmatpush.msra.mxu0 %v4132
        %4774 = vmatpush.msra.mxu0 %v4131
        %4775 = vmatpush.msra.mxu0 %v4130
        %4776 = vmatpush.msra.mxu0 %v4129
        %4777 = vmatpush.msra.mxu0 %v4128
        %4778 = vmatpush.msra.mxu0 %v4127
        %4779 = vmatpush.msra.mxu0 %v4126
        %4780 = vmatpush.msra.mxu0 %v4125
        %4781 = vmatpush.msra.mxu0 %v4124
        %4782 = vmatpush.msra.mxu0 %v4123
        %4783 = vmatpush.msra.mxu0 %v4122
        %4784 = vmatpush.msra.mxu0 %v4121
        %4785 = vmatpush.msra.mxu0 %v4120
        %4786 = vmatpush.msra.mxu0 %v4119
        %4787 = vmatpush.msra.mxu0 %v4118
        %4788 = vmatmul.f32.gmra.mxu0 %v3021
        %v4789 = vpop.f32.mrf.mxu0
        %v4790 = vadd.f32 %v4713, %v4789
        %4791 = vmatmul.f32.gmra.mxu0 %v3023
        %v4792 = vpop.f32.mrf.mxu0
        %v4793 = vadd.f32 %v4716, %v4792
        %4794 = vmatmul.f32.gmra.mxu0 %v3025
        %v4795 = vpop.f32.mrf.mxu0
        %v4796 = vadd.f32 %v4719, %v4795
        %4797 = vmatmul.f32.gmra.mxu0 %v3027
        %v4798 = vpop.f32.mrf.mxu0
        %v4799 = vadd.f32 %v4722, %v4798
        %4800 = vmatmul.f32.gmra.mxu0 %v3029
        %v4801 = vpop.f32.mrf.mxu0
        %v4802 = vadd.f32 %v4725, %v4801
        %4803 = vmatmul.f32.gmra.mxu0 %v3031
        %v4804 = vpop.f32.mrf.mxu0
        %v4805 = vadd.f32 %v4728, %v4804
        %4806 = vmatmul.f32.gmra.mxu0 %v3033
        %v4807 = vpop.f32.mrf.mxu0
        %v4808 = vadd.f32 %v4731, %v4807
        %4809 = vmatmul.f32.gmra.mxu0 %v3035
        %v4810 = vpop.f32.mrf.mxu0
        %v4811 = vadd.f32 %v4734, %v4810
        %4812 = vmatmul.f32.gmra.mxu0 %v3037
        %v4813 = vpop.f32.mrf.mxu0
        %v4814 = vadd.f32 %v4737, %v4813
        %4815 = vmatmul.f32.gmra.mxu0 %v3039
        %v4816 = vpop.f32.mrf.mxu0
        %v4817 = vadd.f32 %v4740, %v4816
        %4818 = vmatmul.f32.gmra.mxu0 %v3041
        %v4819 = vpop.f32.mrf.mxu0
        %v4820 = vadd.f32 %v4743, %v4819
        %4821 = vmatmul.f32.gmra.mxu0 %v3043
        %v4822 = vpop.f32.mrf.mxu0
        %v4823 = vadd.f32 %v4746, %v4822
        %4824 = vmatmul.f32.gmra.mxu0 %v3045
        %v4825 = vpop.f32.mrf.mxu0
        %v4826 = vadd.f32 %v4749, %v4825
        %4827 = vmatmul.f32.gmra.mxu0 %v3047
        %v4828 = vpop.f32.mrf.mxu0
        %v4829 = vadd.f32 %v4752, %v4828
        %4830 = vmatmul.f32.gmra.mxu0 %v3049
        %v4831 = vpop.f32.mrf.mxu0
        %v4832 = vadd.f32 %v4755, %v4831
        %4833 = vmatmul.f32.gmra.mxu0 %v3051
        %v4834 = vpop.f32.mrf.mxu0
        %v4835 = vadd.f32 %v4758, %v4834
        %4836 = vmatmul.f32.gmra.mxu0 %v3053
        %v4837 = vpop.f32.mrf.mxu0
        %v4838 = vadd.f32 %v4761, %v4837
        %4839 = vmatmul.f32.gmra.mxu0 %v3055
        %v4840 = vpop.f32.mrf.mxu0
        %v4841 = vadd.f32 %v4764, %v4840
        %4842 = vmatmul.f32.gmra.mxu0 %v3057
        %v4843 = vpop.f32.mrf.mxu0
        %v4844 = vadd.f32 %v4767, %v4843
        %4845 = vmatmul.f32.gmra.mxu0 %v3059
        %v4846 = vpop.f32.mrf.mxu0
        %v4847 = vadd.f32 %v4770, %v4846
        %4848 = vdwg.mxu0
        %4849 = vmatpush.msra.mxu0 %v4149
        %4850 = vmatpush.msra.mxu0 %v4148
        %4851 = vmatpush.msra.mxu0 %v4147
        %4852 = vmatpush.msra.mxu0 %v4146
        %4853 = vmatpush.msra.mxu0 %v4145
        %4854 = vmatpush.msra.mxu0 %v4144
        %4855 = vmatpush.msra.mxu0 %v4143
        %4856 = vmatpush.msra.mxu0 %v4142
        %4857 = vmatpush.msra.mxu0 %v4141
        %4858 = vmatpush.msra.mxu0 %v4140
        %4859 = vmatpush.msra.mxu0 %v4139
        %4860 = vmatpush.msra.mxu0 %v4138
        %4861 = vmatpush.msra.mxu0 %v4137
        %4862 = vmatpush.msra.mxu0 %v4136
        %4863 = vmatpush.msra.mxu0 %v4135
        %4864 = vmatpush.msra.mxu0 %v4134
        %4865 = vmatmul.f32.gmra.mxu0 %v3022
        %v4866 = vpop.f32.mrf.mxu0
        %v4867 = vadd.f32 %v4790, %v4866
        %4868 = vmatmul.f32.gmra.mxu0 %v3024
        %v4869 = vpop.f32.mrf.mxu0
        %v4870 = vadd.f32 %v4793, %v4869
        %4871 = vmatmul.f32.gmra.mxu0 %v3026
        %v4872 = vpop.f32.mrf.mxu0
        %v4873 = vadd.f32 %v4796, %v4872
        %4874 = vmatmul.f32.gmra.mxu0 %v3028
        %v4875 = vpop.f32.mrf.mxu0
        %v4876 = vadd.f32 %v4799, %v4875
        %4877 = vmatmul.f32.gmra.mxu0 %v3030
        %v4878 = vpop.f32.mrf.mxu0
        %v4879 = vadd.f32 %v4802, %v4878
        %4880 = vmatmul.f32.gmra.mxu0 %v3032
        %v4881 = vpop.f32.mrf.mxu0
        %v4882 = vadd.f32 %v4805, %v4881
        %4883 = vmatmul.f32.gmra.mxu0 %v3034
        %v4884 = vpop.f32.mrf.mxu0
        %v4885 = vadd.f32 %v4808, %v4884
        %4886 = vmatmul.f32.gmra.mxu0 %v3036
        %v4887 = vpop.f32.mrf.mxu0
        %v4888 = vadd.f32 %v4811, %v4887
        %4889 = vmatmul.f32.gmra.mxu0 %v3038
        %v4890 = vpop.f32.mrf.mxu0
        %v4891 = vadd.f32 %v4814, %v4890
        %4892 = vmatmul.f32.gmra.mxu0 %v3040
        %v4893 = vpop.f32.mrf.mxu0
        %v4894 = vadd.f32 %v4817, %v4893
        %4895 = vmatmul.f32.gmra.mxu0 %v3042
        %v4896 = vpop.f32.mrf.mxu0
        %v4897 = vadd.f32 %v4820, %v4896
        %4898 = vmatmul.f32.gmra.mxu0 %v3044
        %v4899 = vpop.f32.mrf.mxu0
        %v4900 = vadd.f32 %v4823, %v4899
        %4901 = vmatmul.f32.gmra.mxu0 %v3046
        %v4902 = vpop.f32.mrf.mxu0
        %v4903 = vadd.f32 %v4826, %v4902
        %4904 = vmatmul.f32.gmra.mxu0 %v3048
        %v4905 = vpop.f32.mrf.mxu0
        %v4906 = vadd.f32 %v4829, %v4905
        %4907 = vmatmul.f32.gmra.mxu0 %v3050
        %v4908 = vpop.f32.mrf.mxu0
        %v4909 = vadd.f32 %v4832, %v4908
        %4910 = vmatmul.f32.gmra.mxu0 %v3052
        %v4911 = vpop.f32.mrf.mxu0
        %v4912 = vadd.f32 %v4835, %v4911
        %4913 = vmatmul.f32.gmra.mxu0 %v3054
        %v4914 = vpop.f32.mrf.mxu0
        %v4915 = vadd.f32 %v4838, %v4914
        %4916 = vmatmul.f32.gmra.mxu0 %v3056
        %v4917 = vpop.f32.mrf.mxu0
        %v4918 = vadd.f32 %v4841, %v4917
        %4919 = vmatmul.f32.gmra.mxu0 %v3058
        %v4920 = vpop.f32.mrf.mxu0
        %v4921 = vadd.f32 %v4844, %v4920
        %4922 = vmatmul.f32.gmra.mxu0 %v3060
        %v4923 = vpop.f32.mrf.mxu0
        %v4924 = vadd.f32 %v4847, %v4923
        %4925 = vdwg.mxu0
        %4926 = vmatpush.msra.mxu0 %v4165
        %4927 = vmatpush.msra.mxu0 %v4164
        %4928 = vmatpush.msra.mxu0 %v4163
        %4929 = vmatpush.msra.mxu0 %v4162
        %4930 = vmatpush.msra.mxu0 %v4161
        %4931 = vmatpush.msra.mxu0 %v4160
        %4932 = vmatpush.msra.mxu0 %v4159
        %4933 = vmatpush.msra.mxu0 %v4158
        %4934 = vmatpush.msra.mxu0 %v4157
        %4935 = vmatpush.msra.mxu0 %v4156
        %4936 = vmatpush.msra.mxu0 %v4155
        %4937 = vmatpush.msra.mxu0 %v4154
        %4938 = vmatpush.msra.mxu0 %v4153
        %4939 = vmatpush.msra.mxu0 %v4152
        %4940 = vmatpush.msra.mxu0 %v4151
        %4941 = vmatpush.msra.mxu0 %v4150
        %4942 = vmatmul.f32.gmra.mxu0 %v3163
        %v4943 = vpop.f32.mrf.mxu0
        %v4944 = vadd.f32 %v4867, %v4943
        %4945 = vmatmul.f32.gmra.mxu0 %v3168
        %v4946 = vpop.f32.mrf.mxu0
        %v4947 = vadd.f32 %v4870, %v4946
        %4948 = vmatmul.f32.gmra.mxu0 %v3173
        %v4949 = vpop.f32.mrf.mxu0
        %v4950 = vadd.f32 %v4873, %v4949
        %4951 = vmatmul.f32.gmra.mxu0 %v3178
        %v4952 = vpop.f32.mrf.mxu0
        %v4953 = vadd.f32 %v4876, %v4952
        %4954 = vmatmul.f32.gmra.mxu0 %v3183
        %v4955 = vpop.f32.mrf.mxu0
        %v4956 = vadd.f32 %v4879, %v4955
        %4957 = vmatmul.f32.gmra.mxu0 %v3188
        %v4958 = vpop.f32.mrf.mxu0
        %v4959 = vadd.f32 %v4882, %v4958
        %4960 = vmatmul.f32.gmra.mxu0 %v3193
        %v4961 = vpop.f32.mrf.mxu0
        %v4962 = vadd.f32 %v4885, %v4961
        %4963 = vmatmul.f32.gmra.mxu0 %v3198
        %v4964 = vpop.f32.mrf.mxu0
        %v4965 = vadd.f32 %v4888, %v4964
        %4966 = vmatmul.f32.gmra.mxu0 %v3203
        %v4967 = vpop.f32.mrf.mxu0
        %v4968 = vadd.f32 %v4891, %v4967
        %4969 = vmatmul.f32.gmra.mxu0 %v3208
        %v4970 = vpop.f32.mrf.mxu0
        %v4971 = vadd.f32 %v4894, %v4970
        %4972 = vmatmul.f32.gmra.mxu0 %v3213
        %v4973 = vpop.f32.mrf.mxu0
        %v4974 = vadd.f32 %v4897, %v4973
        %4975 = vmatmul.f32.gmra.mxu0 %v3218
        %v4976 = vpop.f32.mrf.mxu0
        %v4977 = vadd.f32 %v4900, %v4976
        %4978 = vmatmul.f32.gmra.mxu0 %v3223
        %v4979 = vpop.f32.mrf.mxu0
        %v4980 = vadd.f32 %v4903, %v4979
        %4981 = vmatmul.f32.gmra.mxu0 %v3228
        %v4982 = vpop.f32.mrf.mxu0
        %v4983 = vadd.f32 %v4906, %v4982
        %4984 = vmatmul.f32.gmra.mxu0 %v3233
        %v4985 = vpop.f32.mrf.mxu0
        %v4986 = vadd.f32 %v4909, %v4985
        %4987 = vmatmul.f32.gmra.mxu0 %v3238
        %v4988 = vpop.f32.mrf.mxu0
        %v4989 = vadd.f32 %v4912, %v4988
        %4990 = vmatmul.f32.gmra.mxu0 %v3243
        %v4991 = vpop.f32.mrf.mxu0
        %v4992 = vadd.f32 %v4915, %v4991
        %4993 = vmatmul.f32.gmra.mxu0 %v3248
        %v4994 = vpop.f32.mrf.mxu0
        %v4995 = vadd.f32 %v4918, %v4994
        %4996 = vmatmul.f32.gmra.mxu0 %v3253
        %v4997 = vpop.f32.mrf.mxu0
        %v4998 = vadd.f32 %v4921, %v4997
        %4999 = vmatmul.f32.gmra.mxu0 %v3258
        %v5000 = vpop.f32.mrf.mxu0
        %v5001 = vadd.f32 %v4924, %v5000
        %5002 = vdwg.mxu0
        %5003 = vmatpush.msra.mxu0 %v4181
        %5004 = vmatpush.msra.mxu0 %v4180
        %5005 = vmatpush.msra.mxu0 %v4179
        %5006 = vmatpush.msra.mxu0 %v4178
        %5007 = vmatpush.msra.mxu0 %v4177
        %5008 = vmatpush.msra.mxu0 %v4176
        %5009 = vmatpush.msra.mxu0 %v4175
        %5010 = vmatpush.msra.mxu0 %v4174
        %5011 = vmatpush.msra.mxu0 %v4173
        %5012 = vmatpush.msra.mxu0 %v4172
        %5013 = vmatpush.msra.mxu0 %v4171
        %5014 = vmatpush.msra.mxu0 %v4170
        %5015 = vmatpush.msra.mxu0 %v4169
        %5016 = vmatpush.msra.mxu0 %v4168
        %5017 = vmatpush.msra.mxu0 %v4167
        %5018 = vmatpush.msra.mxu0 %v4166
        %5019 = vmatmul.f32.gmra.mxu0 %v3166
        %v5020 = vpop.f32.mrf.mxu0
        %v5021 = vadd.f32 %v4944, %v5020
        %5022 = vmatmul.f32.gmra.mxu0 %v3170
        %v5023 = vpop.f32.mrf.mxu0
        %v5024 = vadd.f32 %v4947, %v5023
        %5025 = vmatmul.f32.gmra.mxu0 %v3176
        %v5026 = vpop.f32.mrf.mxu0
        %v5027 = vadd.f32 %v4950, %v5026
        %5028 = vmatmul.f32.gmra.mxu0 %v3180
        %v5029 = vpop.f32.mrf.mxu0
        %v5030 = vadd.f32 %v4953, %v5029
        %5031 = vmatmul.f32.gmra.mxu0 %v3186
        %v5032 = vpop.f32.mrf.mxu0
        %v5033 = vadd.f32 %v4956, %v5032
        %5034 = vmatmul.f32.gmra.mxu0 %v3190
        %v5035 = vpop.f32.mrf.mxu0
        %v5036 = vadd.f32 %v4959, %v5035
        %5037 = vmatmul.f32.gmra.mxu0 %v3196
        %v5038 = vpop.f32.mrf.mxu0
        %v5039 = vadd.f32 %v4962, %v5038
        %5040 = vmatmul.f32.gmra.mxu0 %v3200
        %v5041 = vpop.f32.mrf.mxu0
        %v5042 = vadd.f32 %v4965, %v5041
        %5043 = vmatmul.f32.gmra.mxu0 %v3206
        %v5044 = vpop.f32.mrf.mxu0
        %v5045 = vadd.f32 %v4968, %v5044
        %5046 = vmatmul.f32.gmra.mxu0 %v3210
        %v5047 = vpop.f32.mrf.mxu0
        %v5048 = vadd.f32 %v4971, %v5047
        %5049 = vmatmul.f32.gmra.mxu0 %v3216
        %v5050 = vpop.f32.mrf.mxu0
        %v5051 = vadd.f32 %v4974, %v5050
        %5052 = vmatmul.f32.gmra.mxu0 %v3220
        %v5053 = vpop.f32.mrf.mxu0
        %v5054 = vadd.f32 %v4977, %v5053
        %5055 = vmatmul.f32.gmra.mxu0 %v3226
        %v5056 = vpop.f32.mrf.mxu0
        %v5057 = vadd.f32 %v4980, %v5056
        %5058 = vmatmul.f32.gmra.mxu0 %v3230
        %v5059 = vpop.f32.mrf.mxu0
        %v5060 = vadd.f32 %v4983, %v5059
        %5061 = vmatmul.f32.gmra.mxu0 %v3236
        %v5062 = vpop.f32.mrf.mxu0
        %v5063 = vadd.f32 %v4986, %v5062
        %5064 = vmatmul.f32.gmra.mxu0 %v3240
        %v5065 = vpop.f32.mrf.mxu0
        %v5066 = vadd.f32 %v4989, %v5065
        %5067 = vmatmul.f32.gmra.mxu0 %v3246
        %v5068 = vpop.f32.mrf.mxu0
        %v5069 = vadd.f32 %v4992, %v5068
        %5070 = vmatmul.f32.gmra.mxu0 %v3250
        %v5071 = vpop.f32.mrf.mxu0
        %v5072 = vadd.f32 %v4995, %v5071
        %5073 = vmatmul.f32.gmra.mxu0 %v3256
        %v5074 = vpop.f32.mrf.mxu0
        %v5075 = vadd.f32 %v4998, %v5074
        %5076 = vmatmul.f32.gmra.mxu0 %v3260
        %v5077 = vpop.f32.mrf.mxu0
        %v5078 = vadd.f32 %v5001, %v5077
        %5079 = vdwg.mxu0
        %5080 = vmatpush.msra.mxu0 %v4197
        %5081 = vmatpush.msra.mxu0 %v4196
        %5082 = vmatpush.msra.mxu0 %v4195
        %5083 = vmatpush.msra.mxu0 %v4194
        %5084 = vmatpush.msra.mxu0 %v4193
        %5085 = vmatpush.msra.mxu0 %v4192
        %5086 = vmatpush.msra.mxu0 %v4191
        %5087 = vmatpush.msra.mxu0 %v4190
        %5088 = vmatpush.msra.mxu0 %v4189
        %5089 = vmatpush.msra.mxu0 %v4188
        %5090 = vmatpush.msra.mxu0 %v4187
        %5091 = vmatpush.msra.mxu0 %v4186
        %5092 = vmatpush.msra.mxu0 %v4185
        %5093 = vmatpush.msra.mxu0 %v4184
        %5094 = vmatpush.msra.mxu0 %v4183
        %5095 = vmatpush.msra.mxu0 %v4182
        %5096 = vmatmul.f32.gmra.mxu0 %v3383
        %v5097 = vpop.f32.mrf.mxu0
        %v5098 = vadd.f32 %v5021, %v5097
        %5099 = vmatmul.f32.gmra.mxu0 %v3388
        %v5100 = vpop.f32.mrf.mxu0
        %v5101 = vadd.f32 %v5024, %v5100
        %5102 = vmatmul.f32.gmra.mxu0 %v3393
        %v5103 = vpop.f32.mrf.mxu0
        %v5104 = vadd.f32 %v5027, %v5103
        %5105 = vmatmul.f32.gmra.mxu0 %v3398
        %v5106 = vpop.f32.mrf.mxu0
        %v5107 = vadd.f32 %v5030, %v5106
        %5108 = vmatmul.f32.gmra.mxu0 %v3403
        %v5109 = vpop.f32.mrf.mxu0
        %v5110 = vadd.f32 %v5033, %v5109
        %5111 = vmatmul.f32.gmra.mxu0 %v3408
        %v5112 = vpop.f32.mrf.mxu0
        %v5113 = vadd.f32 %v5036, %v5112
        %5114 = vmatmul.f32.gmra.mxu0 %v3413
        %v5115 = vpop.f32.mrf.mxu0
        %v5116 = vadd.f32 %v5039, %v5115
        %5117 = vmatmul.f32.gmra.mxu0 %v3418
        %v5118 = vpop.f32.mrf.mxu0
        %v5119 = vadd.f32 %v5042, %v5118
        %5120 = vmatmul.f32.gmra.mxu0 %v3423
        %v5121 = vpop.f32.mrf.mxu0
        %v5122 = vadd.f32 %v5045, %v5121
        %5123 = vmatmul.f32.gmra.mxu0 %v3428
        %v5124 = vpop.f32.mrf.mxu0
        %v5125 = vadd.f32 %v5048, %v5124
        %5126 = vmatmul.f32.gmra.mxu0 %v3433
        %v5127 = vpop.f32.mrf.mxu0
        %v5128 = vadd.f32 %v5051, %v5127
        %5129 = vmatmul.f32.gmra.mxu0 %v3438
        %v5130 = vpop.f32.mrf.mxu0
        %v5131 = vadd.f32 %v5054, %v5130
        %5132 = vmatmul.f32.gmra.mxu0 %v3443
        %v5133 = vpop.f32.mrf.mxu0
        %v5134 = vadd.f32 %v5057, %v5133
        %5135 = vmatmul.f32.gmra.mxu0 %v3448
        %v5136 = vpop.f32.mrf.mxu0
        %v5137 = vadd.f32 %v5060, %v5136
        %5138 = vmatmul.f32.gmra.mxu0 %v3453
        %v5139 = vpop.f32.mrf.mxu0
        %v5140 = vadd.f32 %v5063, %v5139
        %5141 = vmatmul.f32.gmra.mxu0 %v3458
        %v5142 = vpop.f32.mrf.mxu0
        %v5143 = vadd.f32 %v5066, %v5142
        %5144 = vmatmul.f32.gmra.mxu0 %v3463
        %v5145 = vpop.f32.mrf.mxu0
        %v5146 = vadd.f32 %v5069, %v5145
        %5147 = vmatmul.f32.gmra.mxu0 %v3468
        %v5148 = vpop.f32.mrf.mxu0
        %v5149 = vadd.f32 %v5072, %v5148
        %5150 = vmatmul.f32.gmra.mxu0 %v3473
        %v5151 = vpop.f32.mrf.mxu0
        %v5152 = vadd.f32 %v5075, %v5151
        %5153 = vmatmul.f32.gmra.mxu0 %v3478
        %v5154 = vpop.f32.mrf.mxu0
        %v5155 = vadd.f32 %v5078, %v5154
        %5156 = vdwg.mxu0
        %5157 = vmatpush.msra.mxu0 %v4213
        %5158 = vmatpush.msra.mxu0 %v4212
        %5159 = vmatpush.msra.mxu0 %v4211
        %5160 = vmatpush.msra.mxu0 %v4210
        %5161 = vmatpush.msra.mxu0 %v4209
        %5162 = vmatpush.msra.mxu0 %v4208
        %5163 = vmatpush.msra.mxu0 %v4207
        %5164 = vmatpush.msra.mxu0 %v4206
        %5165 = vmatpush.msra.mxu0 %v4205
        %5166 = vmatpush.msra.mxu0 %v4204
        %5167 = vmatpush.msra.mxu0 %v4203
        %5168 = vmatpush.msra.mxu0 %v4202
        %5169 = vmatpush.msra.mxu0 %v4201
        %5170 = vmatpush.msra.mxu0 %v4200
        %5171 = vmatpush.msra.mxu0 %v4199
        %5172 = vmatpush.msra.mxu0 %v4198
        %5173 = vmatmul.f32.gmra.mxu0 %v3386
        %v5174 = vpop.f32.mrf.mxu0
        %v5175 = vadd.f32 %v5098, %v5174
        %5176 = vmatmul.f32.gmra.mxu0 %v3390
        %v5177 = vpop.f32.mrf.mxu0
        %v5178 = vadd.f32 %v5101, %v5177
        %5179 = vmatmul.f32.gmra.mxu0 %v3396
        %v5180 = vpop.f32.mrf.mxu0
        %v5181 = vadd.f32 %v5104, %v5180
        %5182 = vmatmul.f32.gmra.mxu0 %v3400
        %v5183 = vpop.f32.mrf.mxu0
        %v5184 = vadd.f32 %v5107, %v5183
        %5185 = vmatmul.f32.gmra.mxu0 %v3406
        %v5186 = vpop.f32.mrf.mxu0
        %v5187 = vadd.f32 %v5110, %v5186
        %5188 = vmatmul.f32.gmra.mxu0 %v3410
        %v5189 = vpop.f32.mrf.mxu0
        %v5190 = vadd.f32 %v5113, %v5189
        %5191 = vmatmul.f32.gmra.mxu0 %v3416
        %v5192 = vpop.f32.mrf.mxu0
        %v5193 = vadd.f32 %v5116, %v5192
        %5194 = vmatmul.f32.gmra.mxu0 %v3420
        %v5195 = vpop.f32.mrf.mxu0
        %v5196 = vadd.f32 %v5119, %v5195
        %5197 = vmatmul.f32.gmra.mxu0 %v3426
        %v5198 = vpop.f32.mrf.mxu0
        %v5199 = vadd.f32 %v5122, %v5198
        %5200 = vmatmul.f32.gmra.mxu0 %v3430
        %v5201 = vpop.f32.mrf.mxu0
        %v5202 = vadd.f32 %v5125, %v5201
        %5203 = vmatmul.f32.gmra.mxu0 %v3436
        %v5204 = vpop.f32.mrf.mxu0
        %v5205 = vadd.f32 %v5128, %v5204
        %5206 = vmatmul.f32.gmra.mxu0 %v3440
        %v5207 = vpop.f32.mrf.mxu0
        %v5208 = vadd.f32 %v5131, %v5207
        %5209 = vmatmul.f32.gmra.mxu0 %v3446
        %v5210 = vpop.f32.mrf.mxu0
        %v5211 = vadd.f32 %v5134, %v5210
        %5212 = vmatmul.f32.gmra.mxu0 %v3450
        %v5213 = vpop.f32.mrf.mxu0
        %v5214 = vadd.f32 %v5137, %v5213
        %5215 = vmatmul.f32.gmra.mxu0 %v3456
        %v5216 = vpop.f32.mrf.mxu0
        %v5217 = vadd.f32 %v5140, %v5216
        %5218 = vmatmul.f32.gmra.mxu0 %v3460
        %v5219 = vpop.f32.mrf.mxu0
        %v5220 = vadd.f32 %v5143, %v5219
        %5221 = vmatmul.f32.gmra.mxu0 %v3466
        %v5222 = vpop.f32.mrf.mxu0
        %v5223 = vadd.f32 %v5146, %v5222
        %5224 = vmatmul.f32.gmra.mxu0 %v3470
        %v5225 = vpop.f32.mrf.mxu0
        %v5226 = vadd.f32 %v5149, %v5225
        %5227 = vmatmul.f32.gmra.mxu0 %v3476
        %v5228 = vpop.f32.mrf.mxu0
        %v5229 = vadd.f32 %v5152, %v5228
        %5230 = vmatmul.f32.gmra.mxu0 %v3480
        %v5231 = vpop.f32.mrf.mxu0
        %v5232 = vadd.f32 %v5155, %v5231
        %5233 = vdwg.mxu0
        %5234 = vmatpush.msra.mxu0 %v4229
        %5235 = vmatpush.msra.mxu0 %v4228
        %5236 = vmatpush.msra.mxu0 %v4227
        %5237 = vmatpush.msra.mxu0 %v4226
        %5238 = vmatpush.msra.mxu0 %v4225
        %5239 = vmatpush.msra.mxu0 %v4224
        %5240 = vmatpush.msra.mxu0 %v4223
        %5241 = vmatpush.msra.mxu0 %v4222
        %5242 = vmatpush.msra.mxu0 %v4221
        %5243 = vmatpush.msra.mxu0 %v4220
        %5244 = vmatpush.msra.mxu0 %v4219
        %5245 = vmatpush.msra.mxu0 %v4218
        %5246 = vmatpush.msra.mxu0 %v4217
        %5247 = vmatpush.msra.mxu0 %v4216
        %5248 = vmatpush.msra.mxu0 %v4215
        %5249 = vmatpush.msra.mxu0 %v4214
        %5250 = vmatmul.f32.gmra.mxu0 %v3522
        %v5251 = vpop.f32.mrf.mxu0
        %v5252 = vadd.f32 %v5175, %v5251
        %5253 = vmatmul.f32.gmra.mxu0 %v3524
        %v5254 = vpop.f32.mrf.mxu0
        %v5255 = vadd.f32 %v5178, %v5254
        %5256 = vmatmul.f32.gmra.mxu0 %v3526
        %v5257 = vpop.f32.mrf.mxu0
        %v5258 = vadd.f32 %v5181, %v5257
        %5259 = vmatmul.f32.gmra.mxu0 %v3528
        %v5260 = vpop.f32.mrf.mxu0
        %v5261 = vadd.f32 %v5184, %v5260
        %5262 = vmatmul.f32.gmra.mxu0 %v3530
        %v5263 = vpop.f32.mrf.mxu0
        %v5264 = vadd.f32 %v5187, %v5263
        %5265 = vmatmul.f32.gmra.mxu0 %v3532
        %v5266 = vpop.f32.mrf.mxu0
        %v5267 = vadd.f32 %v5190, %v5266
        %5268 = vmatmul.f32.gmra.mxu0 %v3534
        %v5269 = vpop.f32.mrf.mxu0
        %v5270 = vadd.f32 %v5193, %v5269
        %5271 = vmatmul.f32.gmra.mxu0 %v3536
        %v5272 = vpop.f32.mrf.mxu0
        %v5273 = vadd.f32 %v5196, %v5272
        %5274 = vmatmul.f32.gmra.mxu0 %v3538
        %v5275 = vpop.f32.mrf.mxu0
        %v5276 = vadd.f32 %v5199, %v5275
        %5277 = vmatmul.f32.gmra.mxu0 %v3540
        %v5278 = vpop.f32.mrf.mxu0
        %v5279 = vadd.f32 %v5202, %v5278
        %5280 = vmatmul.f32.gmra.mxu0 %v3542
        %v5281 = vpop.f32.mrf.mxu0
        %v5282 = vadd.f32 %v5205, %v5281
        %5283 = vmatmul.f32.gmra.mxu0 %v3544
        %v5284 = vpop.f32.mrf.mxu0
        %v5285 = vadd.f32 %v5208, %v5284
        %5286 = vmatmul.f32.gmra.mxu0 %v3546
        %v5287 = vpop.f32.mrf.mxu0
        %v5288 = vadd.f32 %v5211, %v5287
        %5289 = vmatmul.f32.gmra.mxu0 %v3548
        %v5290 = vpop.f32.mrf.mxu0
        %v5291 = vadd.f32 %v5214, %v5290
        %5292 = vmatmul.f32.gmra.mxu0 %v3550
        %v5293 = vpop.f32.mrf.mxu0
        %v5294 = vadd.f32 %v5217, %v5293
        %5295 = vmatmul.f32.gmra.mxu0 %v3552
        %v5296 = vpop.f32.mrf.mxu0
        %v5297 = vadd.f32 %v5220, %v5296
        %5298 = vmatmul.f32.gmra.mxu0 %v3554
        %v5299 = vpop.f32.mrf.mxu0
        %v5300 = vadd.f32 %v5223, %v5299
        %5301 = vmatmul.f32.gmra.mxu0 %v3556
        %v5302 = vpop.f32.mrf.mxu0
        %v5303 = vadd.f32 %v5226, %v5302
        %5304 = vmatmul.f32.gmra.mxu0 %v3558
        %v5305 = vpop.f32.mrf.mxu0
        %v5306 = vadd.f32 %v5229, %v5305
        %5307 = vmatmul.f32.gmra.mxu0 %v3560
        %v5308 = vpop.f32.mrf.mxu0
        %v5309 = vadd.f32 %v5232, %v5308
        %5310 = vdwg.mxu0
        %5311 = vmatpush.msra.mxu0 %v4245
        %5312 = vmatpush.msra.mxu0 %v4244
        %5313 = vmatpush.msra.mxu0 %v4243
        %5314 = vmatpush.msra.mxu0 %v4242
        %5315 = vmatpush.msra.mxu0 %v4241
        %5316 = vmatpush.msra.mxu0 %v4240
        %5317 = vmatpush.msra.mxu0 %v4239
        %5318 = vmatpush.msra.mxu0 %v4238
        %5319 = vmatpush.msra.mxu0 %v4237
        %5320 = vmatpush.msra.mxu0 %v4236
        %5321 = vmatpush.msra.mxu0 %v4235
        %5322 = vmatpush.msra.mxu0 %v4234
        %5323 = vmatpush.msra.mxu0 %v4233
        %5324 = vmatpush.msra.mxu0 %v4232
        %5325 = vmatpush.msra.mxu0 %v4231
        %5326 = vmatpush.msra.mxu0 %v4230
        %5327 = vmatmul.f32.gmra.mxu0 %v3523
        %v5328 = vpop.f32.mrf.mxu0
        %v5329 = vadd.f32 %v5252, %v5328
        %5330 = vmatmul.f32.gmra.mxu0 %v3525
        %v5331 = vpop.f32.mrf.mxu0
        %v5332 = vadd.f32 %v5255, %v5331
        %5333 = vmatmul.f32.gmra.mxu0 %v3527
        %v5334 = vpop.f32.mrf.mxu0
        %v5335 = vadd.f32 %v5258, %v5334
        %5336 = vmatmul.f32.gmra.mxu0 %v3529
        %v5337 = vpop.f32.mrf.mxu0
        %v5338 = vadd.f32 %v5261, %v5337
        %5339 = vmatmul.f32.gmra.mxu0 %v3531
        %v5340 = vpop.f32.mrf.mxu0
        %v5341 = vadd.f32 %v5264, %v5340
        %5342 = vmatmul.f32.gmra.mxu0 %v3533
        %v5343 = vpop.f32.mrf.mxu0
        %v5344 = vadd.f32 %v5267, %v5343
        %5345 = vmatmul.f32.gmra.mxu0 %v3535
        %v5346 = vpop.f32.mrf.mxu0
        %v5347 = vadd.f32 %v5270, %v5346
        %5348 = vmatmul.f32.gmra.mxu0 %v3537
        %v5349 = vpop.f32.mrf.mxu0
        %v5350 = vadd.f32 %v5273, %v5349
        %5351 = vmatmul.f32.gmra.mxu0 %v3539
        %v5352 = vpop.f32.mrf.mxu0
        %v5353 = vadd.f32 %v5276, %v5352
        %5354 = vmatmul.f32.gmra.mxu0 %v3541
        %v5355 = vpop.f32.mrf.mxu0
        %v5356 = vadd.f32 %v5279, %v5355
        %5357 = vmatmul.f32.gmra.mxu0 %v3543
        %v5358 = vpop.f32.mrf.mxu0
        %v5359 = vadd.f32 %v5282, %v5358
        %5360 = vmatmul.f32.gmra.mxu0 %v3545
        %v5361 = vpop.f32.mrf.mxu0
        %v5362 = vadd.f32 %v5285, %v5361
        %5363 = vmatmul.f32.gmra.mxu0 %v3547
        %v5364 = vpop.f32.mrf.mxu0
        %v5365 = vadd.f32 %v5288, %v5364
        %5366 = vmatmul.f32.gmra.mxu0 %v3549
        %v5367 = vpop.f32.mrf.mxu0
        %v5368 = vadd.f32 %v5291, %v5367
        %5369 = vmatmul.f32.gmra.mxu0 %v3551
        %v5370 = vpop.f32.mrf.mxu0
        %v5371 = vadd.f32 %v5294, %v5370
        %5372 = vmatmul.f32.gmra.mxu0 %v3553
        %v5373 = vpop.f32.mrf.mxu0
        %v5374 = vadd.f32 %v5297, %v5373
        %5375 = vmatmul.f32.gmra.mxu0 %v3555
        %v5376 = vpop.f32.mrf.mxu0
        %v5377 = vadd.f32 %v5300, %v5376
        %5378 = vmatmul.f32.gmra.mxu0 %v3557
        %v5379 = vpop.f32.mrf.mxu0
        %v5380 = vadd.f32 %v5303, %v5379
        %5381 = vmatmul.f32.gmra.mxu0 %v3559
        %v5382 = vpop.f32.mrf.mxu0
        %v5383 = vadd.f32 %v5306, %v5382
        %5384 = vmatmul.f32.gmra.mxu0 %v3561
        %v5385 = vpop.f32.mrf.mxu0
        %v5386 = vadd.f32 %v5309, %v5385
        %5387 = vdwg.mxu0
        %5388 = vmatpush.msra.mxu0 %v4261
        %5389 = vmatpush.msra.mxu0 %v4260
        %5390 = vmatpush.msra.mxu0 %v4259
        %5391 = vmatpush.msra.mxu0 %v4258
        %5392 = vmatpush.msra.mxu0 %v4257
        %5393 = vmatpush.msra.mxu0 %v4256
        %5394 = vmatpush.msra.mxu0 %v4255
        %5395 = vmatpush.msra.mxu0 %v4254
        %5396 = vmatpush.msra.mxu0 %v4253
        %5397 = vmatpush.msra.mxu0 %v4252
        %5398 = vmatpush.msra.mxu0 %v4251
        %5399 = vmatpush.msra.mxu0 %v4250
        %5400 = vmatpush.msra.mxu0 %v4249
        %5401 = vmatpush.msra.mxu0 %v4248
        %5402 = vmatpush.msra.mxu0 %v4247
        %5403 = vmatpush.msra.mxu0 %v4246
        %5404 = vmatmul.f32.gmra.mxu0 %v3664
        %v5405 = vpop.f32.mrf.mxu0
        %v5406 = vadd.f32 %v5329, %v5405
        %5407 = vmatmul.f32.gmra.mxu0 %v3669
        %v5408 = vpop.f32.mrf.mxu0
        %v5409 = vadd.f32 %v5332, %v5408
        %5410 = vmatmul.f32.gmra.mxu0 %v3674
        %v5411 = vpop.f32.mrf.mxu0
        %v5412 = vadd.f32 %v5335, %v5411
        %5413 = vmatmul.f32.gmra.mxu0 %v3679
        %v5414 = vpop.f32.mrf.mxu0
        %v5415 = vadd.f32 %v5338, %v5414
        %5416 = vmatmul.f32.gmra.mxu0 %v3684
        %v5417 = vpop.f32.mrf.mxu0
        %v5418 = vadd.f32 %v5341, %v5417
        %5419 = vmatmul.f32.gmra.mxu0 %v3689
        %v5420 = vpop.f32.mrf.mxu0
        %v5421 = vadd.f32 %v5344, %v5420
        %5422 = vmatmul.f32.gmra.mxu0 %v3694
        %v5423 = vpop.f32.mrf.mxu0
        %v5424 = vadd.f32 %v5347, %v5423
        %5425 = vmatmul.f32.gmra.mxu0 %v3699
        %v5426 = vpop.f32.mrf.mxu0
        %v5427 = vadd.f32 %v5350, %v5426
        %5428 = vmatmul.f32.gmra.mxu0 %v3704
        %v5429 = vpop.f32.mrf.mxu0
        %v5430 = vadd.f32 %v5353, %v5429
        %5431 = vmatmul.f32.gmra.mxu0 %v3709
        %v5432 = vpop.f32.mrf.mxu0
        %v5433 = vadd.f32 %v5356, %v5432
        %5434 = vmatmul.f32.gmra.mxu0 %v3714
        %v5435 = vpop.f32.mrf.mxu0
        %v5436 = vadd.f32 %v5359, %v5435
        %5437 = vmatmul.f32.gmra.mxu0 %v3719
        %v5438 = vpop.f32.mrf.mxu0
        %v5439 = vadd.f32 %v5362, %v5438
        %5440 = vmatmul.f32.gmra.mxu0 %v3724
        %v5441 = vpop.f32.mrf.mxu0
        %v5442 = vadd.f32 %v5365, %v5441
        %5443 = vmatmul.f32.gmra.mxu0 %v3729
        %v5444 = vpop.f32.mrf.mxu0
        %v5445 = vadd.f32 %v5368, %v5444
        %5446 = vmatmul.f32.gmra.mxu0 %v3734
        %v5447 = vpop.f32.mrf.mxu0
        %v5448 = vadd.f32 %v5371, %v5447
        %5449 = vmatmul.f32.gmra.mxu0 %v3739
        %v5450 = vpop.f32.mrf.mxu0
        %v5451 = vadd.f32 %v5374, %v5450
        %5452 = vmatmul.f32.gmra.mxu0 %v3744
        %v5453 = vpop.f32.mrf.mxu0
        %v5454 = vadd.f32 %v5377, %v5453
        %5455 = vmatmul.f32.gmra.mxu0 %v3749
        %v5456 = vpop.f32.mrf.mxu0
        %v5457 = vadd.f32 %v5380, %v5456
        %5458 = vmatmul.f32.gmra.mxu0 %v3754
        %v5459 = vpop.f32.mrf.mxu0
        %v5460 = vadd.f32 %v5383, %v5459
        %5461 = vmatmul.f32.gmra.mxu0 %v3759
        %v5462 = vpop.f32.mrf.mxu0
        %v5463 = vadd.f32 %v5386, %v5462
        %5464 = vdwg.mxu0
        %5465 = vmatpush.msra.mxu0 %v4277
        %5466 = vmatpush.msra.mxu0 %v4276
        %5467 = vmatpush.msra.mxu0 %v4275
        %5468 = vmatpush.msra.mxu0 %v4274
        %5469 = vmatpush.msra.mxu0 %v4273
        %5470 = vmatpush.msra.mxu0 %v4272
        %5471 = vmatpush.msra.mxu0 %v4271
        %5472 = vmatpush.msra.mxu0 %v4270
        %5473 = vmatpush.msra.mxu0 %v4269
        %5474 = vmatpush.msra.mxu0 %v4268
        %5475 = vmatpush.msra.mxu0 %v4267
        %5476 = vmatpush.msra.mxu0 %v4266
        %5477 = vmatpush.msra.mxu0 %v4265
        %5478 = vmatpush.msra.mxu0 %v4264
        %5479 = vmatpush.msra.mxu0 %v4263
        %5480 = vmatpush.msra.mxu0 %v4262
        %5481 = vmatmul.f32.gmra.mxu0 %v3667
        %v5482 = vpop.f32.mrf.mxu0
        %v5483 = vadd.f32 %v5406, %v5482
        %5484 = vmatmul.f32.gmra.mxu0 %v3671
        %v5485 = vpop.f32.mrf.mxu0
        %v5486 = vadd.f32 %v5409, %v5485
        %5487 = vmatmul.f32.gmra.mxu0 %v3677
        %v5488 = vpop.f32.mrf.mxu0
        %v5489 = vadd.f32 %v5412, %v5488
        %5490 = vmatmul.f32.gmra.mxu0 %v3681
        %v5491 = vpop.f32.mrf.mxu0
        %v5492 = vadd.f32 %v5415, %v5491
        %5493 = vmatmul.f32.gmra.mxu0 %v3687
        %v5494 = vpop.f32.mrf.mxu0
        %v5495 = vadd.f32 %v5418, %v5494
        %5496 = vmatmul.f32.gmra.mxu0 %v3691
        %v5497 = vpop.f32.mrf.mxu0
        %v5498 = vadd.f32 %v5421, %v5497
        %5499 = vmatmul.f32.gmra.mxu0 %v3697
        %v5500 = vpop.f32.mrf.mxu0
        %v5501 = vadd.f32 %v5424, %v5500
        %5502 = vmatmul.f32.gmra.mxu0 %v3701
        %v5503 = vpop.f32.mrf.mxu0
        %v5504 = vadd.f32 %v5427, %v5503
        %5505 = vmatmul.f32.gmra.mxu0 %v3707
        %v5506 = vpop.f32.mrf.mxu0
        %v5507 = vadd.f32 %v5430, %v5506
        %5508 = vmatmul.f32.gmra.mxu0 %v3711
        %v5509 = vpop.f32.mrf.mxu0
        %v5510 = vadd.f32 %v5433, %v5509
        %5511 = vmatmul.f32.gmra.mxu0 %v3717
        %v5512 = vpop.f32.mrf.mxu0
        %v5513 = vadd.f32 %v5436, %v5512
        %5514 = vmatmul.f32.gmra.mxu0 %v3721
        %v5515 = vpop.f32.mrf.mxu0
        %v5516 = vadd.f32 %v5439, %v5515
        %5517 = vmatmul.f32.gmra.mxu0 %v3727
        %v5518 = vpop.f32.mrf.mxu0
        %v5519 = vadd.f32 %v5442, %v5518
        %5520 = vmatmul.f32.gmra.mxu0 %v3731
        %v5521 = vpop.f32.mrf.mxu0
        %v5522 = vadd.f32 %v5445, %v5521
        %5523 = vmatmul.f32.gmra.mxu0 %v3737
        %v5524 = vpop.f32.mrf.mxu0
        %v5525 = vadd.f32 %v5448, %v5524
        %5526 = vmatmul.f32.gmra.mxu0 %v3741
        %v5527 = vpop.f32.mrf.mxu0
        %v5528 = vadd.f32 %v5451, %v5527
        %5529 = vmatmul.f32.gmra.mxu0 %v3747
        %v5530 = vpop.f32.mrf.mxu0
        %v5531 = vadd.f32 %v5454, %v5530
        %5532 = vmatmul.f32.gmra.mxu0 %v3751
        %v5533 = vpop.f32.mrf.mxu0
        %v5534 = vadd.f32 %v5457, %v5533
        %5535 = vmatmul.f32.gmra.mxu0 %v3757
        %v5536 = vpop.f32.mrf.mxu0
        %v5537 = vadd.f32 %v5460, %v5536
        %5538 = vmatmul.f32.gmra.mxu0 %v3761
        %v5539 = vpop.f32.mrf.mxu0
        %v5540 = vadd.f32 %v5463, %v5539
        %5541 = vdwg.mxu0
        %5542 = vmatpush.msra.mxu0 %v4293
        %5543 = vmatpush.msra.mxu0 %v4292
        %5544 = vmatpush.msra.mxu0 %v4291
        %5545 = vmatpush.msra.mxu0 %v4290
        %5546 = vmatpush.msra.mxu0 %v4289
        %5547 = vmatpush.msra.mxu0 %v4288
        %5548 = vmatpush.msra.mxu0 %v4287
        %5549 = vmatpush.msra.mxu0 %v4286
        %5550 = vmatpush.msra.mxu0 %v4285
        %5551 = vmatpush.msra.mxu0 %v4284
        %5552 = vmatpush.msra.mxu0 %v4283
        %5553 = vmatpush.msra.mxu0 %v4282
        %5554 = vmatpush.msra.mxu0 %v4281
        %5555 = vmatpush.msra.mxu0 %v4280
        %5556 = vmatpush.msra.mxu0 %v4279
        %5557 = vmatpush.msra.mxu0 %v4278
        %5558 = vmatmul.f32.gmra.mxu0 %v3884
        %v5559 = vpop.f32.mrf.mxu0
        %v5560 = vadd.f32 %v5483, %v5559
        %5561 = vmatmul.f32.gmra.mxu0 %v3889
        %v5562 = vpop.f32.mrf.mxu0
        %v5563 = vadd.f32 %v5486, %v5562
        %5564 = vmatmul.f32.gmra.mxu0 %v3894
        %v5565 = vpop.f32.mrf.mxu0
        %v5566 = vadd.f32 %v5489, %v5565
        %5567 = vmatmul.f32.gmra.mxu0 %v3899
        %v5568 = vpop.f32.mrf.mxu0
        %v5569 = vadd.f32 %v5492, %v5568
        %5570 = vmatmul.f32.gmra.mxu0 %v3904
        %v5571 = vpop.f32.mrf.mxu0
        %v5572 = vadd.f32 %v5495, %v5571
        %5573 = vmatmul.f32.gmra.mxu0 %v3909
        %v5574 = vpop.f32.mrf.mxu0
        %v5575 = vadd.f32 %v5498, %v5574
        %5576 = vmatmul.f32.gmra.mxu0 %v3914
        %v5577 = vpop.f32.mrf.mxu0
        %v5578 = vadd.f32 %v5501, %v5577
        %5579 = vmatmul.f32.gmra.mxu0 %v3919
        %v5580 = vpop.f32.mrf.mxu0
        %v5581 = vadd.f32 %v5504, %v5580
        %5582 = vmatmul.f32.gmra.mxu0 %v3924
        %v5583 = vpop.f32.mrf.mxu0
        %v5584 = vadd.f32 %v5507, %v5583
        %5585 = vmatmul.f32.gmra.mxu0 %v3929
        %v5586 = vpop.f32.mrf.mxu0
        %v5587 = vadd.f32 %v5510, %v5586
        %5588 = vmatmul.f32.gmra.mxu0 %v3934
        %v5589 = vpop.f32.mrf.mxu0
        %v5590 = vadd.f32 %v5513, %v5589
        %5591 = vmatmul.f32.gmra.mxu0 %v3939
        %v5592 = vpop.f32.mrf.mxu0
        %v5593 = vadd.f32 %v5516, %v5592
        %5594 = vmatmul.f32.gmra.mxu0 %v3944
        %v5595 = vpop.f32.mrf.mxu0
        %v5596 = vadd.f32 %v5519, %v5595
        %5597 = vmatmul.f32.gmra.mxu0 %v3949
        %v5598 = vpop.f32.mrf.mxu0
        %v5599 = vadd.f32 %v5522, %v5598
        %5600 = vmatmul.f32.gmra.mxu0 %v3954
        %v5601 = vpop.f32.mrf.mxu0
        %v5602 = vadd.f32 %v5525, %v5601
        %5603 = vmatmul.f32.gmra.mxu0 %v3959
        %v5604 = vpop.f32.mrf.mxu0
        %v5605 = vadd.f32 %v5528, %v5604
        %5606 = vmatmul.f32.gmra.mxu0 %v3964
        %v5607 = vpop.f32.mrf.mxu0
        %v5608 = vadd.f32 %v5531, %v5607
        %5609 = vmatmul.f32.gmra.mxu0 %v3969
        %v5610 = vpop.f32.mrf.mxu0
        %v5611 = vadd.f32 %v5534, %v5610
        %5612 = vmatmul.f32.gmra.mxu0 %v3974
        %v5613 = vpop.f32.mrf.mxu0
        %v5614 = vadd.f32 %v5537, %v5613
        %5615 = vmatmul.f32.gmra.mxu0 %v3979
        %v5616 = vpop.f32.mrf.mxu0
        %v5617 = vadd.f32 %v5540, %v5616
        %5618 = vdwg.mxu0
        %5619 = vmatpush.msra.mxu0 %v4309
        %5620 = vmatpush.msra.mxu0 %v4308
        %5621 = vmatpush.msra.mxu0 %v4307
        %5622 = vmatpush.msra.mxu0 %v4306
        %5623 = vmatpush.msra.mxu0 %v4305
        %5624 = vmatpush.msra.mxu0 %v4304
        %5625 = vmatpush.msra.mxu0 %v4303
        %5626 = vmatpush.msra.mxu0 %v4302
        %5627 = vmatpush.msra.mxu0 %v4301
        %5628 = vmatpush.msra.mxu0 %v4300
        %5629 = vmatpush.msra.mxu0 %v4299
        %5630 = vmatpush.msra.mxu0 %v4298
        %5631 = vmatpush.msra.mxu0 %v4297
        %5632 = vmatpush.msra.mxu0 %v4296
        %5633 = vmatpush.msra.mxu0 %v4295
        %5634 = vmatpush.msra.mxu0 %v4294
        %5635 = vmatmul.f32.gmra.mxu0 %v3887
        %v5636 = vpop.f32.mrf.mxu0
        %v5637 = vadd.f32 %v5560, %v5636
        %5638 = vmatmul.f32.gmra.mxu0 %v3891
        %v5639 = vpop.f32.mrf.mxu0
        %v5640 = vadd.f32 %v5563, %v5639
        %5641 = vmatmul.f32.gmra.mxu0 %v3897
        %v5642 = vpop.f32.mrf.mxu0
        %v5643 = vadd.f32 %v5566, %v5642
        %5644 = vmatmul.f32.gmra.mxu0 %v3901
        %v5645 = vpop.f32.mrf.mxu0
        %v5646 = vadd.f32 %v5569, %v5645
        %5647 = vmatmul.f32.gmra.mxu0 %v3907
        %v5648 = vpop.f32.mrf.mxu0
        %v5649 = vadd.f32 %v5572, %v5648
        %5650 = vmatmul.f32.gmra.mxu0 %v3911
        %v5651 = vpop.f32.mrf.mxu0
        %v5652 = vadd.f32 %v5575, %v5651
        %5653 = vmatmul.f32.gmra.mxu0 %v3917
        %v5654 = vpop.f32.mrf.mxu0
        %v5655 = vadd.f32 %v5578, %v5654
        %5656 = vmatmul.f32.gmra.mxu0 %v3921
        %v5657 = vpop.f32.mrf.mxu0
        %v5658 = vadd.f32 %v5581, %v5657
        %5659 = vmatmul.f32.gmra.mxu0 %v3927
        %v5660 = vpop.f32.mrf.mxu0
        %v5661 = vadd.f32 %v5584, %v5660
        %5662 = vmatmul.f32.gmra.mxu0 %v3931
        %v5663 = vpop.f32.mrf.mxu0
        %v5664 = vadd.f32 %v5587, %v5663
        %5665 = vmatmul.f32.gmra.mxu0 %v3937
        %v5666 = vpop.f32.mrf.mxu0
        %v5667 = vadd.f32 %v5590, %v5666
        %5668 = vmatmul.f32.gmra.mxu0 %v3941
        %v5669 = vpop.f32.mrf.mxu0
        %v5670 = vadd.f32 %v5593, %v5669
        %5671 = vmatmul.f32.gmra.mxu0 %v3947
        %v5672 = vpop.f32.mrf.mxu0
        %v5673 = vadd.f32 %v5596, %v5672
        %5674 = vmatmul.f32.gmra.mxu0 %v3951
        %v5675 = vpop.f32.mrf.mxu0
        %v5676 = vadd.f32 %v5599, %v5675
        %5677 = vmatmul.f32.gmra.mxu0 %v3957
        %v5678 = vpop.f32.mrf.mxu0
        %v5679 = vadd.f32 %v5602, %v5678
        %5680 = vmatmul.f32.gmra.mxu0 %v3961
        %v5681 = vpop.f32.mrf.mxu0
        %v5682 = vadd.f32 %v5605, %v5681
        %5683 = vmatmul.f32.gmra.mxu0 %v3967
        %v5684 = vpop.f32.mrf.mxu0
        %v5685 = vadd.f32 %v5608, %v5684
        %5686 = vmatmul.f32.gmra.mxu0 %v3971
        %v5687 = vpop.f32.mrf.mxu0
        %v5688 = vadd.f32 %v5611, %v5687
        %5689 = vmatmul.f32.gmra.mxu0 %v3977
        %v5690 = vpop.f32.mrf.mxu0
        %v5691 = vadd.f32 %v5614, %v5690
        %5692 = vmatmul.f32.gmra.mxu0 %v3981
        %v5693 = vpop.f32.mrf.mxu0
        %v5694 = vadd.f32 %v5617, %v5693
        %5695 = vdwg.mxu0
        %v5696 = vld [vmem:[#allocation14] sm:$0x1]
        %v5698 = vperm.slane %v5696, 0
        %v5700 = vmul.f32 %v5637, %v5698
        %v5701 = vmul.f32 %v5640, %v5698
        %v5702 = vmul.f32 %v5643, %v5698
        %v5703 = vmul.f32 %v5646, %v5698
        %v5704 = vmul.f32 %v5649, %v5698
        %v5705 = vmul.f32 %v5652, %v5698
        %v5706 = vmul.f32 %v5655, %v5698
        %v5707 = vmul.f32 %v5658, %v5698
        %v5708 = vmul.f32 %v5661, %v5698
        %v5709 = vmul.f32 %v5664, %v5698
        %v5710 = vmul.f32 %v5667, %v5698
        %v5711 = vmul.f32 %v5670, %v5698
        %v5712 = vmul.f32 %v5673, %v5698
        %v5713 = vmul.f32 %v5676, %v5698
        %v5714 = vmul.f32 %v5679, %v5698
        %v5715 = vmul.f32 %v5682, %v5698
        %v5716 = vmul.f32 %v5685, %v5698
        %v5717 = vmul.f32 %v5688, %v5698
        %v5718 = vmul.f32 %v5691, %v5698
        %v5719 = vmul.f32 %v5694, %v5698
        %v5720 = vld [vmem:[#allocation16] sm:$0x1]
        %v5722 = vperm.slane %v5720, 0
        %v5724 = vadd.f32 %v5700, %v5722
        %v5725 = vadd.f32 %v5701, %v5722
        %v5726 = vadd.f32 %v5702, %v5722
        %v5727 = vadd.f32 %v5703, %v5722
        %v5728 = vadd.f32 %v5704, %v5722
        %v5729 = vadd.f32 %v5705, %v5722
        %v5730 = vadd.f32 %v5706, %v5722
        %v5731 = vadd.f32 %v5707, %v5722
        %v5732 = vadd.f32 %v5708, %v5722
        %v5733 = vadd.f32 %v5709, %v5722
        %v5734 = vadd.f32 %v5710, %v5722
        %v5735 = vadd.f32 %v5711, %v5722
        %v5736 = vadd.f32 %v5712, %v5722
        %v5737 = vadd.f32 %v5713, %v5722
        %v5738 = vadd.f32 %v5714, %v5722
        %v5739 = vadd.f32 %v5715, %v5722
        %v5740 = vadd.f32 %v5716, %v5722
        %v5741 = vadd.f32 %v5717, %v5722
        %v5742 = vadd.f32 %v5718, %v5722
        %v5743 = vadd.f32 %v5719, %v5722
        %vm5744 = vcmp.gt.f32.partialorder %v5724, 0.0
        %vm5745 = vcmp.gt.f32.partialorder %v5725, 0.0
        %vm5746 = vcmp.gt.f32.partialorder %v5726, 0.0
        %vm5747 = vcmp.gt.f32.partialorder %v5727, 0.0
        %vm5748 = vcmp.gt.f32.partialorder %v5728, 0.0
        %vm5749 = vcmp.gt.f32.partialorder %v5729, 0.0
        %vm5750 = vcmp.gt.f32.partialorder %v5730, 0.0
        %vm5751 = vcmp.gt.f32.partialorder %v5731, 0.0
        %vm5752 = vcmp.gt.f32.partialorder %v5732, 0.0
        %vm5753 = vcmp.gt.f32.partialorder %v5733, 0.0
        %vm5754 = vcmp.gt.f32.partialorder %v5734, 0.0
        %vm5755 = vcmp.gt.f32.partialorder %v5735, 0.0
        %vm5756 = vcmp.gt.f32.partialorder %v5736, 0.0
        %vm5757 = vcmp.gt.f32.partialorder %v5737, 0.0
        %vm5758 = vcmp.gt.f32.partialorder %v5738, 0.0
        %vm5759 = vcmp.gt.f32.partialorder %v5739, 0.0
        %vm5760 = vcmp.gt.f32.partialorder %v5740, 0.0
        %vm5761 = vcmp.gt.f32.partialorder %v5741, 0.0
        %vm5762 = vcmp.gt.f32.partialorder %v5742, 0.0
        %vm5763 = vcmp.gt.f32.partialorder %v5743, 0.0
        %v5764 = vmul.f32 %v5724, 0.01
        %v5765 = vmul.f32 %v5725, 0.01
        %v5766 = vmul.f32 %v5726, 0.01
        %v5767 = vmul.f32 %v5727, 0.01
        %v5768 = vmul.f32 %v5728, 0.01
        %v5769 = vmul.f32 %v5729, 0.01
        %v5770 = vmul.f32 %v5730, 0.01
        %v5771 = vmul.f32 %v5731, 0.01
        %v5772 = vmul.f32 %v5732, 0.01
        %v5773 = vmul.f32 %v5733, 0.01
        %v5774 = vmul.f32 %v5734, 0.01
        %v5775 = vmul.f32 %v5735, 0.01
        %v5776 = vmul.f32 %v5736, 0.01
        %v5777 = vmul.f32 %v5737, 0.01
        %v5778 = vmul.f32 %v5738, 0.01
        %v5779 = vmul.f32 %v5739, 0.01
        %v5780 = vmul.f32 %v5740, 0.01
        %v5781 = vmul.f32 %v5741, 0.01
        %v5782 = vmul.f32 %v5742, 0.01
        %v5783 = vmul.f32 %v5743, 0.01
        %v5784 = vsel %vm5744, %v5724, %v5764
        %v5785 = vsel %vm5745, %v5725, %v5765
        %v5786 = vsel %vm5746, %v5726, %v5766
        %v5787 = vsel %vm5747, %v5727, %v5767
        %v5788 = vsel %vm5748, %v5728, %v5768
        %v5789 = vsel %vm5749, %v5729, %v5769
        %v5790 = vsel %vm5750, %v5730, %v5770
        %v5791 = vsel %vm5751, %v5731, %v5771
        %v5792 = vsel %vm5752, %v5732, %v5772
        %v5793 = vsel %vm5753, %v5733, %v5773
        %v5794 = vsel %vm5754, %v5734, %v5774
        %v5795 = vsel %vm5755, %v5735, %v5775
        %v5796 = vsel %vm5756, %v5736, %v5776
        %v5797 = vsel %vm5757, %v5737, %v5777
        %v5798 = vsel %vm5758, %v5738, %v5778
        %v5799 = vsel %vm5759, %v5739, %v5779
        %v5800 = vsel %vm5760, %v5740, %v5780
        %v5801 = vsel %vm5761, %v5741, %v5781
        %v5802 = vsel %vm5762, %v5742, %v5782
        %v5803 = vsel %vm5763, %v5743, %v5783
        %v5804 = vld [vmem:[#allocation17] sm:$0xff]
        %v5805 = vld [vmem:[#allocation17 + $0x8] sm:$0xff]
        %v5806 = vld [vmem:[#allocation17 + $0x10] sm:$0xff]
        %v5807 = vld [vmem:[#allocation17 + $0x18] sm:$0xff]
        %v5808 = vld [vmem:[#allocation17 + $0x20] sm:$0xff]
        %v5809 = vld [vmem:[#allocation17 + $0x28] sm:$0xff]
        %v5810 = vld [vmem:[#allocation17 + $0x30] sm:$0xff]
        %v5811 = vld [vmem:[#allocation17 + $0x38] sm:$0xff]
        %v5812 = vld [vmem:[#allocation17 + $0x40] sm:$0xff]
        %v5813 = vld [vmem:[#allocation17 + $0x48] sm:$0xff]
        %v5814 = vld [vmem:[#allocation17 + $0x50] sm:$0xff]
        %v5815 = vld [vmem:[#allocation17 + $0x58] sm:$0xff]
        %v5816 = vld [vmem:[#allocation17 + $0x60] sm:$0xff]
        %v5817 = vld [vmem:[#allocation17 + $0x68] sm:$0xff]
        %v5818 = vld [vmem:[#allocation17 + $0x70] sm:$0xff]
        %v5819 = vld [vmem:[#allocation17 + $0x78] sm:$0xff]
        %v5820 = vld [vmem:[#allocation17 + $0x80] sm:$0xff]
        %v5821 = vld [vmem:[#allocation17 + $0x88] sm:$0xff]
        %v5822 = vld [vmem:[#allocation17 + $0x90] sm:$0xff]
        %v5823 = vld [vmem:[#allocation17 + $0x98] sm:$0xff]
        %v5824 = vld [vmem:[#allocation17 + $0xa0] sm:$0xff]
        %v5825 = vld [vmem:[#allocation17 + $0xa8] sm:$0xff]
        %v5826 = vld [vmem:[#allocation17 + $0xb0] sm:$0xff]
        %v5827 = vld [vmem:[#allocation17 + $0xb8] sm:$0xff]
        %v5828 = vld [vmem:[#allocation17 + $0xc0] sm:$0xff]
        %v5829 = vld [vmem:[#allocation17 + $0xc8] sm:$0xff]
        %v5830 = vld [vmem:[#allocation17 + $0xd0] sm:$0xff]
        %v5831 = vld [vmem:[#allocation17 + $0xd8] sm:$0xff]
        %v5832 = vld [vmem:[#allocation17 + $0xe0] sm:$0xff]
        %v5833 = vld [vmem:[#allocation17 + $0xe8] sm:$0xff]
        %v5834 = vld [vmem:[#allocation17 + $0xf0] sm:$0xff]
        %v5835 = vld [vmem:[#allocation17 + $0xf8] sm:$0xff]
        %5836 = vmatpush.msra.mxu0 %v5834
        %5837 = vmatpush.msra.mxu0 %v5832
        %5838 = vmatpush.msra.mxu0 %v5830
        %5839 = vmatpush.msra.mxu0 %v5828
        %5840 = vmatpush.msra.mxu0 %v5826
        %5841 = vmatpush.msra.mxu0 %v5824
        %5842 = vmatpush.msra.mxu0 %v5822
        %5843 = vmatpush.msra.mxu0 %v5820
        %5844 = vmatpush.msra.mxu0 %v5818
        %5845 = vmatpush.msra.mxu0 %v5816
        %5846 = vmatpush.msra.mxu0 %v5814
        %5847 = vmatpush.msra.mxu0 %v5812
        %5848 = vmatpush.msra.mxu0 %v5810
        %5849 = vmatpush.msra.mxu0 %v5808
        %5850 = vmatpush.msra.mxu0 %v5806
        %5851 = vmatpush.msra.mxu0 %v5804
        %5852 = vmatmul.f32.gmra.mxu0 %v5784
        %v5853 = vpop.f32.mrf.mxu0
        %v5854 = vadd.f32 0.0, %v5853
        %5855 = vmatmul.f32.gmra.mxu0 %v5785
        %v5856 = vpop.f32.mrf.mxu0
        %v5857 = vadd.f32 0.0, %v5856
        %5858 = vmatmul.f32.gmra.mxu0 %v5786
        %v5859 = vpop.f32.mrf.mxu0
        %v5860 = vadd.f32 0.0, %v5859
        %5861 = vmatmul.f32.gmra.mxu0 %v5787
        %v5862 = vpop.f32.mrf.mxu0
        %v5863 = vadd.f32 0.0, %v5862
        %5864 = vmatmul.f32.gmra.mxu0 %v5788
        %v5865 = vpop.f32.mrf.mxu0
        %v5866 = vadd.f32 0.0, %v5865
        %5867 = vmatmul.f32.gmra.mxu0 %v5789
        %v5868 = vpop.f32.mrf.mxu0
        %v5869 = vadd.f32 0.0, %v5868
        %5870 = vmatmul.f32.gmra.mxu0 %v5790
        %v5871 = vpop.f32.mrf.mxu0
        %v5872 = vadd.f32 0.0, %v5871
        %5873 = vmatmul.f32.gmra.mxu0 %v5791
        %v5874 = vpop.f32.mrf.mxu0
        %v5875 = vadd.f32 0.0, %v5874
        %5876 = vmatmul.f32.gmra.mxu0 %v5792
        %v5877 = vpop.f32.mrf.mxu0
        %v5878 = vadd.f32 0.0, %v5877
        %5879 = vmatmul.f32.gmra.mxu0 %v5793
        %v5880 = vpop.f32.mrf.mxu0
        %v5881 = vadd.f32 0.0, %v5880
        %5882 = vmatmul.f32.gmra.mxu0 %v5794
        %v5883 = vpop.f32.mrf.mxu0
        %v5884 = vadd.f32 0.0, %v5883
        %5885 = vmatmul.f32.gmra.mxu0 %v5795
        %v5886 = vpop.f32.mrf.mxu0
        %v5887 = vadd.f32 0.0, %v5886
        %5888 = vmatmul.f32.gmra.mxu0 %v5796
        %v5889 = vpop.f32.mrf.mxu0
        %v5890 = vadd.f32 0.0, %v5889
        %5891 = vmatmul.f32.gmra.mxu0 %v5797
        %v5892 = vpop.f32.mrf.mxu0
        %v5893 = vadd.f32 0.0, %v5892
        %5894 = vmatmul.f32.gmra.mxu0 %v5798
        %v5895 = vpop.f32.mrf.mxu0
        %v5896 = vadd.f32 0.0, %v5895
        %5897 = vmatmul.f32.gmra.mxu0 %v5799
        %v5898 = vpop.f32.mrf.mxu0
        %v5899 = vadd.f32 0.0, %v5898
        %5900 = vmatmul.f32.gmra.mxu0 %v5800
        %v5901 = vpop.f32.mrf.mxu0
        %v5902 = vadd.f32 0.0, %v5901
        %5903 = vmatmul.f32.gmra.mxu0 %v5801
        %v5904 = vpop.f32.mrf.mxu0
        %v5905 = vadd.f32 0.0, %v5904
        %5906 = vmatmul.f32.gmra.mxu0 %v5802
        %v5907 = vpop.f32.mrf.mxu0
        %v5908 = vadd.f32 0.0, %v5907
        %5909 = vmatmul.f32.gmra.mxu0 %v5803
        %v5910 = vpop.f32.mrf.mxu0
        %v5911 = vadd.f32 0.0, %v5910
        %5912 = vdwg.mxu0
        %5913 = vmatpush.msra.mxu0 %v5835
        %5914 = vmatpush.msra.mxu0 %v5833
        %5915 = vmatpush.msra.mxu0 %v5831
        %5916 = vmatpush.msra.mxu0 %v5829
        %5917 = vmatpush.msra.mxu0 %v5827
        %5918 = vmatpush.msra.mxu0 %v5825
        %5919 = vmatpush.msra.mxu0 %v5823
        %5920 = vmatpush.msra.mxu0 %v5821
        %5921 = vmatpush.msra.mxu0 %v5819
        %5922 = vmatpush.msra.mxu0 %v5817
        %5923 = vmatpush.msra.mxu0 %v5815
        %5924 = vmatpush.msra.mxu0 %v5813
        %5925 = vmatpush.msra.mxu0 %v5811
        %5926 = vmatpush.msra.mxu0 %v5809
        %5927 = vmatpush.msra.mxu0 %v5807
        %5928 = vmatpush.msra.mxu0 %v5805
        %5929 = vmatmul.f32.gmra.mxu0 %v5784
        %v5930 = vpop.f32.mrf.mxu0
        %v5931 = vadd.f32 0.0, %v5930
        %5932 = vmatmul.f32.gmra.mxu0 %v5785
        %v5933 = vpop.f32.mrf.mxu0
        %v5934 = vadd.f32 0.0, %v5933
        %5935 = vmatmul.f32.gmra.mxu0 %v5786
        %v5936 = vpop.f32.mrf.mxu0
        %v5937 = vadd.f32 0.0, %v5936
        %5938 = vmatmul.f32.gmra.mxu0 %v5787
        %v5939 = vpop.f32.mrf.mxu0
        %v5940 = vadd.f32 0.0, %v5939
        %5941 = vmatmul.f32.gmra.mxu0 %v5788
        %v5942 = vpop.f32.mrf.mxu0
        %v5943 = vadd.f32 0.0, %v5942
        %5944 = vmatmul.f32.gmra.mxu0 %v5789
        %v5945 = vpop.f32.mrf.mxu0
        %v5946 = vadd.f32 0.0, %v5945
        %5947 = vmatmul.f32.gmra.mxu0 %v5790
        %v5948 = vpop.f32.mrf.mxu0
        %v5949 = vadd.f32 0.0, %v5948
        %5950 = vmatmul.f32.gmra.mxu0 %v5791
        %v5951 = vpop.f32.mrf.mxu0
        %v5952 = vadd.f32 0.0, %v5951
        %5953 = vmatmul.f32.gmra.mxu0 %v5792
        %v5954 = vpop.f32.mrf.mxu0
        %v5955 = vadd.f32 0.0, %v5954
        %5956 = vmatmul.f32.gmra.mxu0 %v5793
        %v5957 = vpop.f32.mrf.mxu0
        %v5958 = vadd.f32 0.0, %v5957
        %5959 = vmatmul.f32.gmra.mxu0 %v5794
        %v5960 = vpop.f32.mrf.mxu0
        %v5961 = vadd.f32 0.0, %v5960
        %5962 = vmatmul.f32.gmra.mxu0 %v5795
        %v5963 = vpop.f32.mrf.mxu0
        %v5964 = vadd.f32 0.0, %v5963
        %5965 = vmatmul.f32.gmra.mxu0 %v5796
        %v5966 = vpop.f32.mrf.mxu0
        %v5967 = vadd.f32 0.0, %v5966
        %5968 = vmatmul.f32.gmra.mxu0 %v5797
        %v5969 = vpop.f32.mrf.mxu0
        %v5970 = vadd.f32 0.0, %v5969
        %5971 = vmatmul.f32.gmra.mxu0 %v5798
        %v5972 = vpop.f32.mrf.mxu0
        %v5973 = vadd.f32 0.0, %v5972
        %5974 = vmatmul.f32.gmra.mxu0 %v5799
        %v5975 = vpop.f32.mrf.mxu0
        %v5976 = vadd.f32 0.0, %v5975
        %5977 = vmatmul.f32.gmra.mxu0 %v5800
        %v5978 = vpop.f32.mrf.mxu0
        %v5979 = vadd.f32 0.0, %v5978
        %5980 = vmatmul.f32.gmra.mxu0 %v5801
        %v5981 = vpop.f32.mrf.mxu0
        %v5982 = vadd.f32 0.0, %v5981
        %5983 = vmatmul.f32.gmra.mxu0 %v5802
        %v5984 = vpop.f32.mrf.mxu0
        %v5985 = vadd.f32 0.0, %v5984
        %5986 = vmatmul.f32.gmra.mxu0 %v5803
        %v5987 = vpop.f32.mrf.mxu0
        %v5988 = vadd.f32 0.0, %v5987
        %5989 = vdwg.mxu0
        %v5990 = vld [vmem:[#allocation19] sm:$0x3]
        %v5992 = vperm.slane %v5990, 0
        %v5993 = vperm.slane %v5990, 1
        %v5996 = vmul.f32 %v5854, %v5992
        %v5997 = vmul.f32 %v5931, %v5993
        %v5998 = vmul.f32 %v5857, %v5992
        %v5999 = vmul.f32 %v5934, %v5993
        %v6000 = vmul.f32 %v5860, %v5992
        %v6001 = vmul.f32 %v5937, %v5993
        %v6002 = vmul.f32 %v5863, %v5992
        %v6003 = vmul.f32 %v5940, %v5993
        %v6004 = vmul.f32 %v5866, %v5992
        %v6005 = vmul.f32 %v5943, %v5993
        %v6006 = vmul.f32 %v5869, %v5992
        %v6007 = vmul.f32 %v5946, %v5993
        %v6008 = vmul.f32 %v5872, %v5992
        %v6009 = vmul.f32 %v5949, %v5993
        %v6010 = vmul.f32 %v5875, %v5992
        %v6011 = vmul.f32 %v5952, %v5993
        %v6012 = vmul.f32 %v5878, %v5992
        %v6013 = vmul.f32 %v5955, %v5993
        %v6014 = vmul.f32 %v5881, %v5992
        %v6015 = vmul.f32 %v5958, %v5993
        %v6016 = vmul.f32 %v5884, %v5992
        %v6017 = vmul.f32 %v5961, %v5993
        %v6018 = vmul.f32 %v5887, %v5992
        %v6019 = vmul.f32 %v5964, %v5993
        %v6020 = vmul.f32 %v5890, %v5992
        %v6021 = vmul.f32 %v5967, %v5993
        %v6022 = vmul.f32 %v5893, %v5992
        %v6023 = vmul.f32 %v5970, %v5993
        %v6024 = vmul.f32 %v5896, %v5992
        %v6025 = vmul.f32 %v5973, %v5993
        %v6026 = vmul.f32 %v5899, %v5992
        %v6027 = vmul.f32 %v5976, %v5993
        %v6028 = vmul.f32 %v5902, %v5992
        %v6029 = vmul.f32 %v5979, %v5993
        %v6030 = vmul.f32 %v5905, %v5992
        %v6031 = vmul.f32 %v5982, %v5993
        %v6032 = vmul.f32 %v5908, %v5992
        %v6033 = vmul.f32 %v5985, %v5993
        %v6034 = vmul.f32 %v5911, %v5992
        %v6035 = vmul.f32 %v5988, %v5993
        %v6036 = vld [vmem:[#allocation20] sm:$0x3]
        %v6038 = vperm.slane %v6036, 0
        %v6039 = vperm.slane %v6036, 1
        %v6042 = vadd.f32 %v5996, %v6038
        %v6043 = vadd.f32 %v5997, %v6039
        %v6044 = vadd.f32 %v5998, %v6038
        %v6045 = vadd.f32 %v5999, %v6039
        %v6046 = vadd.f32 %v6000, %v6038
        %v6047 = vadd.f32 %v6001, %v6039
        %v6048 = vadd.f32 %v6002, %v6038
        %v6049 = vadd.f32 %v6003, %v6039
        %v6050 = vadd.f32 %v6004, %v6038
        %v6051 = vadd.f32 %v6005, %v6039
        %v6052 = vadd.f32 %v6006, %v6038
        %v6053 = vadd.f32 %v6007, %v6039
        %v6054 = vadd.f32 %v6008, %v6038
        %v6055 = vadd.f32 %v6009, %v6039
        %v6056 = vadd.f32 %v6010, %v6038
        %v6057 = vadd.f32 %v6011, %v6039
        %v6058 = vadd.f32 %v6012, %v6038
        %v6059 = vadd.f32 %v6013, %v6039
        %v6060 = vadd.f32 %v6014, %v6038
        %v6061 = vadd.f32 %v6015, %v6039
        %v6062 = vadd.f32 %v6016, %v6038
        %v6063 = vadd.f32 %v6017, %v6039
        %v6064 = vadd.f32 %v6018, %v6038
        %v6065 = vadd.f32 %v6019, %v6039
        %v6066 = vadd.f32 %v6020, %v6038
        %v6067 = vadd.f32 %v6021, %v6039
        %v6068 = vadd.f32 %v6022, %v6038
        %v6069 = vadd.f32 %v6023, %v6039
        %v6070 = vadd.f32 %v6024, %v6038
        %v6071 = vadd.f32 %v6025, %v6039
        %v6072 = vadd.f32 %v6026, %v6038
        %v6073 = vadd.f32 %v6027, %v6039
        %v6074 = vadd.f32 %v6028, %v6038
        %v6075 = vadd.f32 %v6029, %v6039
        %v6076 = vadd.f32 %v6030, %v6038
        %v6077 = vadd.f32 %v6031, %v6039
        %v6078 = vadd.f32 %v6032, %v6038
        %v6079 = vadd.f32 %v6033, %v6039
        %v6080 = vadd.f32 %v6034, %v6038
        %v6081 = vadd.f32 %v6035, %v6039
        %vm6082 = vcmp.gt.f32.partialorder %v6042, 0.0
        %vm6083 = vcmp.gt.f32.partialorder %v6043, 0.0
        %vm6084 = vcmp.gt.f32.partialorder %v6044, 0.0
        %vm6085 = vcmp.gt.f32.partialorder %v6045, 0.0
        %vm6086 = vcmp.gt.f32.partialorder %v6046, 0.0
        %vm6087 = vcmp.gt.f32.partialorder %v6047, 0.0
        %vm6088 = vcmp.gt.f32.partialorder %v6048, 0.0
        %vm6089 = vcmp.gt.f32.partialorder %v6049, 0.0
        %vm6090 = vcmp.gt.f32.partialorder %v6050, 0.0
        %vm6091 = vcmp.gt.f32.partialorder %v6051, 0.0
        %vm6092 = vcmp.gt.f32.partialorder %v6052, 0.0
        %vm6093 = vcmp.gt.f32.partialorder %v6053, 0.0
        %vm6094 = vcmp.gt.f32.partialorder %v6054, 0.0
        %vm6095 = vcmp.gt.f32.partialorder %v6055, 0.0
        %vm6096 = vcmp.gt.f32.partialorder %v6056, 0.0
        %vm6097 = vcmp.gt.f32.partialorder %v6057, 0.0
        %vm6098 = vcmp.gt.f32.partialorder %v6058, 0.0
        %vm6099 = vcmp.gt.f32.partialorder %v6059, 0.0
        %vm6100 = vcmp.gt.f32.partialorder %v6060, 0.0
        %vm6101 = vcmp.gt.f32.partialorder %v6061, 0.0
        %vm6102 = vcmp.gt.f32.partialorder %v6062, 0.0
        %vm6103 = vcmp.gt.f32.partialorder %v6063, 0.0
        %vm6104 = vcmp.gt.f32.partialorder %v6064, 0.0
        %vm6105 = vcmp.gt.f32.partialorder %v6065, 0.0
        %vm6106 = vcmp.gt.f32.partialorder %v6066, 0.0
        %vm6107 = vcmp.gt.f32.partialorder %v6067, 0.0
        %vm6108 = vcmp.gt.f32.partialorder %v6068, 0.0
        %vm6109 = vcmp.gt.f32.partialorder %v6069, 0.0
        %vm6110 = vcmp.gt.f32.partialorder %v6070, 0.0
        %vm6111 = vcmp.gt.f32.partialorder %v6071, 0.0
        %vm6112 = vcmp.gt.f32.partialorder %v6072, 0.0
        %vm6113 = vcmp.gt.f32.partialorder %v6073, 0.0
        %vm6114 = vcmp.gt.f32.partialorder %v6074, 0.0
        %vm6115 = vcmp.gt.f32.partialorder %v6075, 0.0
        %vm6116 = vcmp.gt.f32.partialorder %v6076, 0.0
        %vm6117 = vcmp.gt.f32.partialorder %v6077, 0.0
        %vm6118 = vcmp.gt.f32.partialorder %v6078, 0.0
        %vm6119 = vcmp.gt.f32.partialorder %v6079, 0.0
        %vm6120 = vcmp.gt.f32.partialorder %v6080, 0.0
        %vm6121 = vcmp.gt.f32.partialorder %v6081, 0.0
        %v6122 = vmul.f32 %v6042, 0.01
        %v6123 = vmul.f32 %v6043, 0.01
        %v6124 = vmul.f32 %v6044, 0.01
        %v6125 = vmul.f32 %v6045, 0.01
        %v6126 = vmul.f32 %v6046, 0.01
        %v6127 = vmul.f32 %v6047, 0.01
        %v6128 = vmul.f32 %v6048, 0.01
        %v6129 = vmul.f32 %v6049, 0.01
        %v6130 = vmul.f32 %v6050, 0.01
        %v6131 = vmul.f32 %v6051, 0.01
        %v6132 = vmul.f32 %v6052, 0.01
        %v6133 = vmul.f32 %v6053, 0.01
        %v6134 = vmul.f32 %v6054, 0.01
        %v6135 = vmul.f32 %v6055, 0.01
        %v6136 = vmul.f32 %v6056, 0.01
        %v6137 = vmul.f32 %v6057, 0.01
        %v6138 = vmul.f32 %v6058, 0.01
        %v6139 = vmul.f32 %v6059, 0.01
        %v6140 = vmul.f32 %v6060, 0.01
        %v6141 = vmul.f32 %v6061, 0.01
        %v6142 = vmul.f32 %v6062, 0.01
        %v6143 = vmul.f32 %v6063, 0.01
        %v6144 = vmul.f32 %v6064, 0.01
        %v6145 = vmul.f32 %v6065, 0.01
        %v6146 = vmul.f32 %v6066, 0.01
        %v6147 = vmul.f32 %v6067, 0.01
        %v6148 = vmul.f32 %v6068, 0.01
        %v6149 = vmul.f32 %v6069, 0.01
        %v6150 = vmul.f32 %v6070, 0.01
        %v6151 = vmul.f32 %v6071, 0.01
        %v6152 = vmul.f32 %v6072, 0.01
        %v6153 = vmul.f32 %v6073, 0.01
        %v6154 = vmul.f32 %v6074, 0.01
        %v6155 = vmul.f32 %v6075, 0.01
        %v6156 = vmul.f32 %v6076, 0.01
        %v6157 = vmul.f32 %v6077, 0.01
        %v6158 = vmul.f32 %v6078, 0.01
        %v6159 = vmul.f32 %v6079, 0.01
        %v6160 = vmul.f32 %v6080, 0.01
        %v6161 = vmul.f32 %v6081, 0.01
        %v6162 = vsel %vm6082, %v6042, %v6122
        %v6163 = vsel %vm6083, %v6043, %v6123
        %v6164 = vsel %vm6084, %v6044, %v6124
        %v6165 = vsel %vm6085, %v6045, %v6125
        %v6166 = vsel %vm6086, %v6046, %v6126
        %v6167 = vsel %vm6087, %v6047, %v6127
        %v6168 = vsel %vm6088, %v6048, %v6128
        %v6169 = vsel %vm6089, %v6049, %v6129
        %v6170 = vsel %vm6090, %v6050, %v6130
        %v6171 = vsel %vm6091, %v6051, %v6131
        %v6172 = vsel %vm6092, %v6052, %v6132
        %v6173 = vsel %vm6093, %v6053, %v6133
        %v6174 = vsel %vm6094, %v6054, %v6134
        %v6175 = vsel %vm6095, %v6055, %v6135
        %v6176 = vsel %vm6096, %v6056, %v6136
        %v6177 = vsel %vm6097, %v6057, %v6137
        %v6178 = vsel %vm6098, %v6058, %v6138
        %v6179 = vsel %vm6099, %v6059, %v6139
        %v6180 = vsel %vm6100, %v6060, %v6140
        %v6181 = vsel %vm6101, %v6061, %v6141
        %v6182 = vsel %vm6102, %v6062, %v6142
        %v6183 = vsel %vm6103, %v6063, %v6143
        %v6184 = vsel %vm6104, %v6064, %v6144
        %v6185 = vsel %vm6105, %v6065, %v6145
        %v6186 = vsel %vm6106, %v6066, %v6146
        %v6187 = vsel %vm6107, %v6067, %v6147
        %v6188 = vsel %vm6108, %v6068, %v6148
        %v6189 = vsel %vm6109, %v6069, %v6149
        %v6190 = vsel %vm6110, %v6070, %v6150
        %v6191 = vsel %vm6111, %v6071, %v6151
        %v6192 = vsel %vm6112, %v6072, %v6152
        %v6193 = vsel %vm6113, %v6073, %v6153
        %v6194 = vsel %vm6114, %v6074, %v6154
        %v6195 = vsel %vm6115, %v6075, %v6155
        %v6196 = vsel %vm6116, %v6076, %v6156
        %v6197 = vsel %vm6117, %v6077, %v6157
        %v6198 = vsel %vm6118, %v6078, %v6158
        %v6199 = vsel %vm6119, %v6079, %v6159
        %v6200 = vsel %vm6120, %v6080, %v6160
        %v6201 = vsel %vm6121, %v6081, %v6161
        %6202 = vst.msk [vmem:[#allocation4] ss:$8 sm:$0x3] %vm2150, 0.0
        %6203 = vst.msk [vmem:[#allocation4] ss:$8 sm:$0x0] %vm2150, 0.0
        %s6204 = scalar_lea.vmem [#allocation4], 48
        %6205 = vst.msk [vmem:[%s6204] ss:$8 sm:$0x3] %vm2150, 0.0
        %6206 = vst.msk [vmem:[%s6204] ss:$8 sm:$0x0] %vm2150, 0.0
        %s6207 = scalar_lea.vmem [#allocation4], 96
        %6208 = vst.msk [vmem:[%s6207] ss:$8 sm:$0x3] %vm2150, 0.0
        %6209 = vst.msk [vmem:[%s6207] ss:$8 sm:$0x0] %vm2150, 0.0
        %s6210 = scalar_lea.vmem [#allocation4], 144
        %6211 = vst.msk [vmem:[%s6210] ss:$8 sm:$0x3] %vm2150, 0.0
        %6212 = vst.msk [vmem:[%s6210] ss:$8 sm:$0x0] %vm2150, 0.0
        %s6213 = scalar_lea.vmem [#allocation4], 192
        %6214 = vst.msk [vmem:[%s6213] ss:$8 sm:$0x3] %vm2150, 0.0
        %6215 = vst.msk [vmem:[%s6213] ss:$8 sm:$0x0] %vm2150, 0.0
        %s6216 = scalar_lea.vmem [#allocation4], 240
        %6217 = vst.msk [vmem:[%s6216] ss:$8 sm:$0x3] %vm2150, 0.0
        %6218 = vst.msk [vmem:[%s6216] ss:$8 sm:$0x0] %vm2150, 0.0
        %s6219 = scalar_lea.vmem [#allocation4], 288
        %6220 = vst.msk [vmem:[%s6219] ss:$8 sm:$0x3] %vm2150, 0.0
        %6221 = vst.msk [vmem:[%s6219] ss:$8 sm:$0x0] %vm2150, 0.0
        %s6222 = scalar_lea.vmem [#allocation4], 336
        %6223 = vst.msk [vmem:[%s6222] ss:$8 sm:$0x3] %vm2150, 0.0
        %6224 = vst.msk [vmem:[%s6222] ss:$8 sm:$0x0] %vm2150, 0.0
        %s6225 = scalar_lea.vmem [#allocation4], 384
        %6226 = vst.msk [vmem:[%s6225] ss:$8 sm:$0x3] %vm2150, 0.0
        %6227 = vst.msk [vmem:[%s6225] ss:$8 sm:$0x0] %vm2150, 0.0
        %s6228 = scalar_lea.vmem [#allocation4], 432
        %6229 = vst.msk [vmem:[%s6228] ss:$8 sm:$0x3] %vm2150, 0.0
        %6230 = vst.msk [vmem:[%s6228] ss:$8 sm:$0x0] %vm2150, 0.0
        %s6231 = scalar_lea.vmem [#allocation4], 33
        %6232 = vst.msk [vmem:[%s6231] ss:$8 sm:$0x3] %vm2150, 0.0
        %6233 = vst.msk [vmem:[%s6231] ss:$8 sm:$0x0] %vm2150, 0.0
        %s6234 = scalar_lea.vmem [#allocation4], 81
        %6235 = vst.msk [vmem:[%s6234] ss:$8 sm:$0x3] %vm2150, 0.0
        %6236 = vst.msk [vmem:[%s6234] ss:$8 sm:$0x0] %vm2150, 0.0
        %s6237 = scalar_lea.vmem [#allocation4], 129
        %6238 = vst.msk [vmem:[%s6237] ss:$8 sm:$0x3] %vm2150, 0.0
        %6239 = vst.msk [vmem:[%s6237] ss:$8 sm:$0x0] %vm2150, 0.0
        %s6240 = scalar_lea.vmem [#allocation4], 177
        %6241 = vst.msk [vmem:[%s6240] ss:$8 sm:$0x3] %vm2150, 0.0
        %6242 = vst.msk [vmem:[%s6240] ss:$8 sm:$0x0] %vm2150, 0.0
        %s6243 = scalar_lea.vmem [#allocation4], 225
        %6244 = vst.msk [vmem:[%s6243] ss:$8 sm:$0x3] %vm2150, 0.0
        %6245 = vst.msk [vmem:[%s6243] ss:$8 sm:$0x0] %vm2150, 0.0
        %s6246 = scalar_lea.vmem [#allocation4], 273
        %6247 = vst.msk [vmem:[%s6246] ss:$8 sm:$0x3] %vm2150, 0.0
        %6248 = vst.msk [vmem:[%s6246] ss:$8 sm:$0x0] %vm2150, 0.0
        %s6249 = scalar_lea.vmem [#allocation4], 321
        %6250 = vst.msk [vmem:[%s6249] ss:$8 sm:$0x3] %vm2150, 0.0
        %6251 = vst.msk [vmem:[%s6249] ss:$8 sm:$0x0] %vm2150, 0.0
        %s6252 = scalar_lea.vmem [#allocation4], 369
        %6253 = vst.msk [vmem:[%s6252] ss:$8 sm:$0x3] %vm2150, 0.0
        %6254 = vst.msk [vmem:[%s6252] ss:$8 sm:$0x0] %vm2150, 0.0
        %s6255 = scalar_lea.vmem [#allocation4], 417
        %6256 = vst.msk [vmem:[%s6255] ss:$8 sm:$0x3] %vm2150, 0.0
        %6257 = vst.msk [vmem:[%s6255] ss:$8 sm:$0x0] %vm2150, 0.0
        %s6258 = scalar_lea.vmem [#allocation4], 465
        %6259 = vst.msk [vmem:[%s6258] ss:$8 sm:$0x3] %vm2150, 0.0
        %6260 = vst.msk [vmem:[%s6258] ss:$8 sm:$0x0] %vm2150, 0.0
        %v6301 = vrot.slane %v6162, 7
        %v6302 = vrot.slane %v6163, 7
        %v6303 = vrot.slane %v6164, 7
        %v6304 = vsel %vm2270, %v6301, %v6303
        %v6305 = vrot.slane %v6165, 7
        %v6306 = vsel %vm2270, %v6302, %v6305
        %v6307 = vrot.slane %v6166, 7
        %v6308 = vrot.slane %v6167, 7
        %v6309 = vrot.slane %v6168, 7
        %v6310 = vsel %vm2270, %v6307, %v6309
        %v6311 = vrot.slane %v6169, 7
        %v6312 = vsel %vm2270, %v6308, %v6311
        %v6313 = vrot.slane %v6170, 7
        %v6314 = vrot.slane %v6171, 7
        %v6315 = vrot.slane %v6172, 7
        %v6316 = vsel %vm2270, %v6313, %v6315
        %v6317 = vrot.slane %v6173, 7
        %v6318 = vsel %vm2270, %v6314, %v6317
        %v6319 = vrot.slane %v6174, 7
        %v6320 = vrot.slane %v6175, 7
        %v6321 = vrot.slane %v6176, 7
        %v6322 = vsel %vm2270, %v6319, %v6321
        %v6323 = vrot.slane %v6177, 7
        %v6324 = vsel %vm2270, %v6320, %v6323
        %v6325 = vrot.slane %v6178, 7
        %v6326 = vrot.slane %v6179, 7
        %v6327 = vrot.slane %v6180, 7
        %v6328 = vsel %vm2270, %v6325, %v6327
        %v6329 = vrot.slane %v6181, 7
        %v6330 = vsel %vm2270, %v6326, %v6329
        %v6331 = vrot.slane %v6182, 7
        %v6332 = vrot.slane %v6183, 7
        %v6333 = vrot.slane %v6184, 7
        %v6334 = vsel %vm2270, %v6331, %v6333
        %v6335 = vrot.slane %v6185, 7
        %v6336 = vsel %vm2270, %v6332, %v6335
        %v6337 = vrot.slane %v6186, 7
        %v6338 = vrot.slane %v6187, 7
        %v6339 = vrot.slane %v6188, 7
        %v6340 = vsel %vm2270, %v6337, %v6339
        %v6341 = vrot.slane %v6189, 7
        %v6342 = vsel %vm2270, %v6338, %v6341
        %v6343 = vrot.slane %v6190, 7
        %v6344 = vrot.slane %v6191, 7
        %v6345 = vrot.slane %v6192, 7
        %v6346 = vsel %vm2270, %v6343, %v6345
        %v6347 = vrot.slane %v6193, 7
        %v6348 = vsel %vm2270, %v6344, %v6347
        %v6349 = vrot.slane %v6194, 7
        %v6350 = vrot.slane %v6195, 7
        %v6351 = vrot.slane %v6196, 7
        %v6352 = vsel %vm2270, %v6349, %v6351
        %v6353 = vrot.slane %v6197, 7
        %v6354 = vsel %vm2270, %v6350, %v6353
        %v6355 = vrot.slane %v6198, 7
        %v6356 = vrot.slane %v6199, 7
        %v6357 = vrot.slane %v6200, 7
        %v6358 = vsel %vm2270, %v6355, %v6357
        %v6359 = vrot.slane %v6201, 7
        %v6360 = vsel %vm2270, %v6356, %v6359
        %6421 = vst [vmem:[#allocation4] sm:$0xfe] %v6301
        %6422 = vst [vmem:[#allocation4 + $0x8] sm:$0xfe] %v6302
        %6423 = vst [vmem:[#allocation4 + $0x10] sm:$0xff] %v6304
        %6424 = vst [vmem:[#allocation4 + $0x18] sm:$0xff] %v6306
        %6425 = vst [vmem:[#allocation4 + $0x20] sm:$0x1] %v6303
        %6426 = vst [vmem:[#allocation4 + $0x28] sm:$0x1] %v6305
        %6427 = vst [vmem:[#allocation4 + $0x30] sm:$0xfe] %v6307
        %6428 = vst [vmem:[#allocation4 + $0x38] sm:$0xfe] %v6308
        %6429 = vst [vmem:[#allocation4 + $0x40] sm:$0xff] %v6310
        %6430 = vst [vmem:[#allocation4 + $0x48] sm:$0xff] %v6312
        %6431 = vst [vmem:[#allocation4 + $0x50] sm:$0x1] %v6309
        %6432 = vst [vmem:[#allocation4 + $0x58] sm:$0x1] %v6311
        %6433 = vst [vmem:[#allocation4 + $0x60] sm:$0xfe] %v6313
        %6434 = vst [vmem:[#allocation4 + $0x68] sm:$0xfe] %v6314
        %6435 = vst [vmem:[#allocation4 + $0x70] sm:$0xff] %v6316
        %6436 = vst [vmem:[#allocation4 + $0x78] sm:$0xff] %v6318
        %6437 = vst [vmem:[#allocation4 + $0x80] sm:$0x1] %v6315
        %6438 = vst [vmem:[#allocation4 + $0x88] sm:$0x1] %v6317
        %6439 = vst [vmem:[#allocation4 + $0x90] sm:$0xfe] %v6319
        %6440 = vst [vmem:[#allocation4 + $0x98] sm:$0xfe] %v6320
        %6441 = vst [vmem:[#allocation4 + $0xa0] sm:$0xff] %v6322
        %6442 = vst [vmem:[#allocation4 + $0xa8] sm:$0xff] %v6324
        %6443 = vst [vmem:[#allocation4 + $0xb0] sm:$0x1] %v6321
        %6444 = vst [vmem:[#allocation4 + $0xb8] sm:$0x1] %v6323
        %6445 = vst [vmem:[#allocation4 + $0xc0] sm:$0xfe] %v6325
        %6446 = vst [vmem:[#allocation4 + $0xc8] sm:$0xfe] %v6326
        %6447 = vst [vmem:[#allocation4 + $0xd0] sm:$0xff] %v6328
        %6448 = vst [vmem:[#allocation4 + $0xd8] sm:$0xff] %v6330
        %6449 = vst [vmem:[#allocation4 + $0xe0] sm:$0x1] %v6327
        %6450 = vst [vmem:[#allocation4 + $0xe8] sm:$0x1] %v6329
        %6451 = vst [vmem:[#allocation4 + $0xf0] sm:$0xfe] %v6331
        %6452 = vst [vmem:[#allocation4 + $0xf8] sm:$0xfe] %v6332
        %6453 = vst [vmem:[#allocation4 + $0x100] sm:$0xff] %v6334
        %6454 = vst [vmem:[#allocation4 + $0x108] sm:$0xff] %v6336
        %6455 = vst [vmem:[#allocation4 + $0x110] sm:$0x1] %v6333
        %6456 = vst [vmem:[#allocation4 + $0x118] sm:$0x1] %v6335
        %6457 = vst [vmem:[#allocation4 + $0x120] sm:$0xfe] %v6337
        %6458 = vst [vmem:[#allocation4 + $0x128] sm:$0xfe] %v6338
        %6459 = vst [vmem:[#allocation4 + $0x130] sm:$0xff] %v6340
        %6460 = vst [vmem:[#allocation4 + $0x138] sm:$0xff] %v6342
        %6461 = vst [vmem:[#allocation4 + $0x140] sm:$0x1] %v6339
        %6462 = vst [vmem:[#allocation4 + $0x148] sm:$0x1] %v6341
        %6463 = vst [vmem:[#allocation4 + $0x150] sm:$0xfe] %v6343
        %6464 = vst [vmem:[#allocation4 + $0x158] sm:$0xfe] %v6344
        %6465 = vst [vmem:[#allocation4 + $0x160] sm:$0xff] %v6346
        %6466 = vst [vmem:[#allocation4 + $0x168] sm:$0xff] %v6348
        %6467 = vst [vmem:[#allocation4 + $0x170] sm:$0x1] %v6345
        %6468 = vst [vmem:[#allocation4 + $0x178] sm:$0x1] %v6347
        %6469 = vst [vmem:[#allocation4 + $0x180] sm:$0xfe] %v6349
        %6470 = vst [vmem:[#allocation4 + $0x188] sm:$0xfe] %v6350
        %6471 = vst [vmem:[#allocation4 + $0x190] sm:$0xff] %v6352
        %6472 = vst [vmem:[#allocation4 + $0x198] sm:$0xff] %v6354
        %6473 = vst [vmem:[#allocation4 + $0x1a0] sm:$0x1] %v6351
        %6474 = vst [vmem:[#allocation4 + $0x1a8] sm:$0x1] %v6353
        %6475 = vst [vmem:[#allocation4 + $0x1b0] sm:$0xfe] %v6355
        %6476 = vst [vmem:[#allocation4 + $0x1b8] sm:$0xfe] %v6356
        %6477 = vst [vmem:[#allocation4 + $0x1c0] sm:$0xff] %v6358
        %6478 = vst [vmem:[#allocation4 + $0x1c8] sm:$0xff] %v6360
        %6479 = vst [vmem:[#allocation4 + $0x1d0] sm:$0x1] %v6357
        %6480 = vst [vmem:[#allocation4 + $0x1d8] sm:$0x1] %v6359
        // Predicated region
        $region169: #{conv5l_forward.1} parent=83 // pred_check
          %p6481 = pneg %p786
        $region170: #{conv5l_forward.1} parent=83 // pred_check_branch
          %6483 = sbr.rel (%p6481) target = $region172
        $region171: #{conv5l_forward.1} parent=83 // pred_region
          %6484 = vst [vmem:[#allocation4] sm:$0xff] 0.0
          %6485 = vst [vmem:[#allocation4 + $0x8] sm:$0xff] 0.0
          %6486 = vst [vmem:[#allocation4 + $0x10] sm:$0xff] 0.0
          %6487 = vst [vmem:[#allocation4 + $0x18] sm:$0xff] 0.0
          %6488 = vst [vmem:[#allocation4 + $0x20] sm:$0x3] 0.0
          %6489 = vst [vmem:[#allocation4 + $0x28] sm:$0x3] 0.0
        $region172: #{conv5l_forward.1} parent=83 // pred_fallthru
          _
        // Predicated region
        $region173: #{conv5l_forward.1} parent=83 // pred_check
          %p6490 = pneg %p1065
        $region174: #{conv5l_forward.1} parent=83 // pred_check_branch
          %6492 = sbr.rel (%p6490) target = $region176
        $region175: #{conv5l_forward.1} parent=83 // pred_region
          %s6493 = scalar_lea.vmem [#allocation4], 432
          %6494 = vst [vmem:[%s6493] sm:$0xff] 0.0
          %6495 = vst [vmem:[%s6493 + $0x8] sm:$0xff] 0.0
          %6496 = vst [vmem:[%s6493 + $0x10] sm:$0xff] 0.0
          %6497 = vst [vmem:[%s6493 + $0x18] sm:$0xff] 0.0
          %6498 = vst [vmem:[%s6493 + $0x20] sm:$0x3] 0.0
          %6499 = vst [vmem:[%s6493 + $0x28] sm:$0x3] 0.0
        $region176: #{conv5l_forward.1} parent=83 // pred_fallthru
          _
        %v6500 = vld [vmem:[#allocation4] sm:$0xff]
        %v6501 = vld [vmem:[#allocation4 + $0x8] sm:$0xff]
        %v6502 = vld [vmem:[#allocation4 + $0x10] sm:$0xff]
        %v6503 = vld [vmem:[#allocation4 + $0x18] sm:$0xff]
        %v6504 = vld [vmem:[#allocation4 + $0x30] sm:$0xff]
        %v6505 = vld [vmem:[#allocation4 + $0x38] sm:$0xff]
        %v6506 = vld [vmem:[#allocation4 + $0x40] sm:$0xff]
        %v6507 = vld [vmem:[#allocation4 + $0x48] sm:$0xff]
        %v6508 = vld [vmem:[#allocation4 + $0x60] sm:$0xff]
        %v6509 = vld [vmem:[#allocation4 + $0x68] sm:$0xff]
        %v6510 = vld [vmem:[#allocation4 + $0x70] sm:$0xff]
        %v6511 = vld [vmem:[#allocation4 + $0x78] sm:$0xff]
        %v6512 = vld [vmem:[#allocation4 + $0x90] sm:$0xff]
        %v6513 = vld [vmem:[#allocation4 + $0x98] sm:$0xff]
        %v6514 = vld [vmem:[#allocation4 + $0xa0] sm:$0xff]
        %v6515 = vld [vmem:[#allocation4 + $0xa8] sm:$0xff]
        %v6516 = vld [vmem:[#allocation4 + $0xc0] sm:$0xff]
        %v6517 = vld [vmem:[#allocation4 + $0xc8] sm:$0xff]
        %v6518 = vld [vmem:[#allocation4 + $0xd0] sm:$0xff]
        %v6519 = vld [vmem:[#allocation4 + $0xd8] sm:$0xff]
        %v6520 = vld [vmem:[#allocation4 + $0xf0] sm:$0xff]
        %v6521 = vld [vmem:[#allocation4 + $0xf8] sm:$0xff]
        %v6522 = vld [vmem:[#allocation4 + $0x100] sm:$0xff]
        %v6523 = vld [vmem:[#allocation4 + $0x108] sm:$0xff]
        %v6524 = vld [vmem:[#allocation4 + $0x120] sm:$0xff]
        %v6525 = vld [vmem:[#allocation4 + $0x128] sm:$0xff]
        %v6526 = vld [vmem:[#allocation4 + $0x130] sm:$0xff]
        %v6527 = vld [vmem:[#allocation4 + $0x138] sm:$0xff]
        %v6528 = vld [vmem:[#allocation4 + $0x150] sm:$0xff]
        %v6529 = vld [vmem:[#allocation4 + $0x158] sm:$0xff]
        %v6530 = vld [vmem:[#allocation4 + $0x160] sm:$0xff]
        %v6531 = vld [vmem:[#allocation4 + $0x168] sm:$0xff]
        %v6532 = vld [vmem:[#allocation4] sm:$0xfe]
        %v6533 = vld [vmem:[#allocation4 + $0x8] sm:$0xfe]
        %v6534 = vld [vmem:[#allocation4 + $0x20] sm:$0x1]
        %v6535 = vld [vmem:[#allocation4 + $0x28] sm:$0x1]
        %v6536 = vld [vmem:[#allocation4 + $0x30] sm:$0xfe]
        %v6537 = vld [vmem:[#allocation4 + $0x38] sm:$0xfe]
        %v6538 = vld [vmem:[#allocation4 + $0x50] sm:$0x1]
        %v6539 = vld [vmem:[#allocation4 + $0x58] sm:$0x1]
        %v6540 = vld [vmem:[#allocation4 + $0x60] sm:$0xfe]
        %v6541 = vld [vmem:[#allocation4 + $0x68] sm:$0xfe]
        %v6542 = vld [vmem:[#allocation4 + $0x80] sm:$0x1]
        %v6543 = vld [vmem:[#allocation4 + $0x88] sm:$0x1]
        %v6544 = vld [vmem:[#allocation4 + $0x90] sm:$0xfe]
        %v6545 = vld [vmem:[#allocation4 + $0x98] sm:$0xfe]
        %v6546 = vld [vmem:[#allocation4 + $0xb0] sm:$0x1]
        %v6547 = vld [vmem:[#allocation4 + $0xb8] sm:$0x1]
        %v6548 = vld [vmem:[#allocation4 + $0xc0] sm:$0xfe]
        %v6549 = vld [vmem:[#allocation4 + $0xc8] sm:$0xfe]
        %v6550 = vld [vmem:[#allocation4 + $0xe0] sm:$0x1]
        %v6551 = vld [vmem:[#allocation4 + $0xe8] sm:$0x1]
        %v6552 = vld [vmem:[#allocation4 + $0xf0] sm:$0xfe]
        %v6553 = vld [vmem:[#allocation4 + $0xf8] sm:$0xfe]
        %v6554 = vld [vmem:[#allocation4 + $0x110] sm:$0x1]
        %v6555 = vld [vmem:[#allocation4 + $0x118] sm:$0x1]
        %v6556 = vld [vmem:[#allocation4 + $0x120] sm:$0xfe]
        %v6557 = vld [vmem:[#allocation4 + $0x128] sm:$0xfe]
        %v6558 = vld [vmem:[#allocation4 + $0x140] sm:$0x1]
        %v6559 = vld [vmem:[#allocation4 + $0x148] sm:$0x1]
        %v6560 = vld [vmem:[#allocation4 + $0x150] sm:$0xfe]
        %v6561 = vld [vmem:[#allocation4 + $0x158] sm:$0xfe]
        %v6562 = vld [vmem:[#allocation4 + $0x170] sm:$0x1]
        %v6563 = vld [vmem:[#allocation4 + $0x178] sm:$0x1]
        %v6612 = vrot.slane %v6532, 1
        %v6613 = vrot.slane %v6502, 1
        %v6614 = vsel %vm2658, %v6612, %v6613
        %v6615 = vrot.slane %v6533, 1
        %v6616 = vrot.slane %v6503, 1
        %v6617 = vsel %vm2658, %v6615, %v6616
        %v6618 = vrot.slane %v6534, 1
        %v6619 = vsel %vm2658, %v6613, %v6618
        %v6620 = vrot.slane %v6535, 1
        %v6621 = vsel %vm2658, %v6616, %v6620
        %v6622 = vrot.slane %v6536, 1
        %v6623 = vrot.slane %v6506, 1
        %v6624 = vsel %vm2658, %v6622, %v6623
        %v6625 = vrot.slane %v6537, 1
        %v6626 = vrot.slane %v6507, 1
        %v6627 = vsel %vm2658, %v6625, %v6626
        %v6628 = vrot.slane %v6538, 1
        %v6629 = vsel %vm2658, %v6623, %v6628
        %v6630 = vrot.slane %v6539, 1
        %v6631 = vsel %vm2658, %v6626, %v6630
        %v6632 = vrot.slane %v6540, 1
        %v6633 = vrot.slane %v6510, 1
        %v6634 = vsel %vm2658, %v6632, %v6633
        %v6635 = vrot.slane %v6541, 1
        %v6636 = vrot.slane %v6511, 1
        %v6637 = vsel %vm2658, %v6635, %v6636
        %v6638 = vrot.slane %v6542, 1
        %v6639 = vsel %vm2658, %v6633, %v6638
        %v6640 = vrot.slane %v6543, 1
        %v6641 = vsel %vm2658, %v6636, %v6640
        %v6642 = vrot.slane %v6544, 1
        %v6643 = vrot.slane %v6514, 1
        %v6644 = vsel %vm2658, %v6642, %v6643
        %v6645 = vrot.slane %v6545, 1
        %v6646 = vrot.slane %v6515, 1
        %v6647 = vsel %vm2658, %v6645, %v6646
        %v6648 = vrot.slane %v6546, 1
        %v6649 = vsel %vm2658, %v6643, %v6648
        %v6650 = vrot.slane %v6547, 1
        %v6651 = vsel %vm2658, %v6646, %v6650
        %v6652 = vrot.slane %v6548, 1
        %v6653 = vrot.slane %v6518, 1
        %v6654 = vsel %vm2658, %v6652, %v6653
        %v6655 = vrot.slane %v6549, 1
        %v6656 = vrot.slane %v6519, 1
        %v6657 = vsel %vm2658, %v6655, %v6656
        %v6658 = vrot.slane %v6550, 1
        %v6659 = vsel %vm2658, %v6653, %v6658
        %v6660 = vrot.slane %v6551, 1
        %v6661 = vsel %vm2658, %v6656, %v6660
        %v6662 = vrot.slane %v6552, 1
        %v6663 = vrot.slane %v6522, 1
        %v6664 = vsel %vm2658, %v6662, %v6663
        %v6665 = vrot.slane %v6553, 1
        %v6666 = vrot.slane %v6523, 1
        %v6667 = vsel %vm2658, %v6665, %v6666
        %v6668 = vrot.slane %v6554, 1
        %v6669 = vsel %vm2658, %v6663, %v6668
        %v6670 = vrot.slane %v6555, 1
        %v6671 = vsel %vm2658, %v6666, %v6670
        %v6672 = vrot.slane %v6556, 1
        %v6673 = vrot.slane %v6526, 1
        %v6674 = vsel %vm2658, %v6672, %v6673
        %v6675 = vrot.slane %v6557, 1
        %v6676 = vrot.slane %v6527, 1
        %v6677 = vsel %vm2658, %v6675, %v6676
        %v6678 = vrot.slane %v6558, 1
        %v6679 = vsel %vm2658, %v6673, %v6678
        %v6680 = vrot.slane %v6559, 1
        %v6681 = vsel %vm2658, %v6676, %v6680
        %v6682 = vrot.slane %v6560, 1
        %v6683 = vrot.slane %v6530, 1
        %v6684 = vsel %vm2658, %v6682, %v6683
        %v6685 = vrot.slane %v6561, 1
        %v6686 = vrot.slane %v6531, 1
        %v6687 = vsel %vm2658, %v6685, %v6686
        %v6688 = vrot.slane %v6562, 1
        %v6689 = vsel %vm2658, %v6683, %v6688
        %v6690 = vrot.slane %v6563, 1
        %v6691 = vsel %vm2658, %v6686, %v6690
        %v6724 = vld [vmem:[#allocation4] sm:$0xfc]
        %v6725 = vld [vmem:[#allocation4 + $0x8] sm:$0xfc]
        %v6726 = vld [vmem:[#allocation4 + $0x20] sm:$0x3]
        %v6727 = vld [vmem:[#allocation4 + $0x28] sm:$0x3]
        %v6728 = vld [vmem:[#allocation4 + $0x30] sm:$0xfc]
        %v6729 = vld [vmem:[#allocation4 + $0x38] sm:$0xfc]
        %v6730 = vld [vmem:[#allocation4 + $0x50] sm:$0x3]
        %v6731 = vld [vmem:[#allocation4 + $0x58] sm:$0x3]
        %v6732 = vld [vmem:[#allocation4 + $0x60] sm:$0xfc]
        %v6733 = vld [vmem:[#allocation4 + $0x68] sm:$0xfc]
        %v6734 = vld [vmem:[#allocation4 + $0x80] sm:$0x3]
        %v6735 = vld [vmem:[#allocation4 + $0x88] sm:$0x3]
        %v6736 = vld [vmem:[#allocation4 + $0x90] sm:$0xfc]
        %v6737 = vld [vmem:[#allocation4 + $0x98] sm:$0xfc]
        %v6738 = vld [vmem:[#allocation4 + $0xb0] sm:$0x3]
        %v6739 = vld [vmem:[#allocation4 + $0xb8] sm:$0x3]
        %v6740 = vld [vmem:[#allocation4 + $0xc0] sm:$0xfc]
        %v6741 = vld [vmem:[#allocation4 + $0xc8] sm:$0xfc]
        %v6742 = vld [vmem:[#allocation4 + $0xe0] sm:$0x3]
        %v6743 = vld [vmem:[#allocation4 + $0xe8] sm:$0x3]
        %v6744 = vld [vmem:[#allocation4 + $0xf0] sm:$0xfc]
        %v6745 = vld [vmem:[#allocation4 + $0xf8] sm:$0xfc]
        %v6746 = vld [vmem:[#allocation4 + $0x110] sm:$0x3]
        %v6747 = vld [vmem:[#allocation4 + $0x118] sm:$0x3]
        %v6748 = vld [vmem:[#allocation4 + $0x120] sm:$0xfc]
        %v6749 = vld [vmem:[#allocation4 + $0x128] sm:$0xfc]
        %v6750 = vld [vmem:[#allocation4 + $0x140] sm:$0x3]
        %v6751 = vld [vmem:[#allocation4 + $0x148] sm:$0x3]
        %v6752 = vld [vmem:[#allocation4 + $0x150] sm:$0xfc]
        %v6753 = vld [vmem:[#allocation4 + $0x158] sm:$0xfc]
        %v6754 = vld [vmem:[#allocation4 + $0x170] sm:$0x3]
        %v6755 = vld [vmem:[#allocation4 + $0x178] sm:$0x3]
        %v6788 = vrot.slane %v6724, 2
        %v6789 = vrot.slane %v6502, 2
        %v6790 = vsel %vm2879, %v6788, %v6789
        %v6791 = vrot.slane %v6725, 2
        %v6792 = vrot.slane %v6503, 2
        %v6793 = vsel %vm2879, %v6791, %v6792
        %v6794 = vrot.slane %v6726, 2
        %v6795 = vsel %vm2879, %v6789, %v6794
        %v6796 = vrot.slane %v6727, 2
        %v6797 = vsel %vm2879, %v6792, %v6796
        %v6798 = vrot.slane %v6728, 2
        %v6799 = vrot.slane %v6506, 2
        %v6800 = vsel %vm2879, %v6798, %v6799
        %v6801 = vrot.slane %v6729, 2
        %v6802 = vrot.slane %v6507, 2
        %v6803 = vsel %vm2879, %v6801, %v6802
        %v6804 = vrot.slane %v6730, 2
        %v6805 = vsel %vm2879, %v6799, %v6804
        %v6806 = vrot.slane %v6731, 2
        %v6807 = vsel %vm2879, %v6802, %v6806
        %v6808 = vrot.slane %v6732, 2
        %v6809 = vrot.slane %v6510, 2
        %v6810 = vsel %vm2879, %v6808, %v6809
        %v6811 = vrot.slane %v6733, 2
        %v6812 = vrot.slane %v6511, 2
        %v6813 = vsel %vm2879, %v6811, %v6812
        %v6814 = vrot.slane %v6734, 2
        %v6815 = vsel %vm2879, %v6809, %v6814
        %v6816 = vrot.slane %v6735, 2
        %v6817 = vsel %vm2879, %v6812, %v6816
        %v6818 = vrot.slane %v6736, 2
        %v6819 = vrot.slane %v6514, 2
        %v6820 = vsel %vm2879, %v6818, %v6819
        %v6821 = vrot.slane %v6737, 2
        %v6822 = vrot.slane %v6515, 2
        %v6823 = vsel %vm2879, %v6821, %v6822
        %v6824 = vrot.slane %v6738, 2
        %v6825 = vsel %vm2879, %v6819, %v6824
        %v6826 = vrot.slane %v6739, 2
        %v6827 = vsel %vm2879, %v6822, %v6826
        %v6828 = vrot.slane %v6740, 2
        %v6829 = vrot.slane %v6518, 2
        %v6830 = vsel %vm2879, %v6828, %v6829
        %v6831 = vrot.slane %v6741, 2
        %v6832 = vrot.slane %v6519, 2
        %v6833 = vsel %vm2879, %v6831, %v6832
        %v6834 = vrot.slane %v6742, 2
        %v6835 = vsel %vm2879, %v6829, %v6834
        %v6836 = vrot.slane %v6743, 2
        %v6837 = vsel %vm2879, %v6832, %v6836
        %v6838 = vrot.slane %v6744, 2
        %v6839 = vrot.slane %v6522, 2
        %v6840 = vsel %vm2879, %v6838, %v6839
        %v6841 = vrot.slane %v6745, 2
        %v6842 = vrot.slane %v6523, 2
        %v6843 = vsel %vm2879, %v6841, %v6842
        %v6844 = vrot.slane %v6746, 2
        %v6845 = vsel %vm2879, %v6839, %v6844
        %v6846 = vrot.slane %v6747, 2
        %v6847 = vsel %vm2879, %v6842, %v6846
        %v6848 = vrot.slane %v6748, 2
        %v6849 = vrot.slane %v6526, 2
        %v6850 = vsel %vm2879, %v6848, %v6849
        %v6851 = vrot.slane %v6749, 2
        %v6852 = vrot.slane %v6527, 2
        %v6853 = vsel %vm2879, %v6851, %v6852
        %v6854 = vrot.slane %v6750, 2
        %v6855 = vsel %vm2879, %v6849, %v6854
        %v6856 = vrot.slane %v6751, 2
        %v6857 = vsel %vm2879, %v6852, %v6856
        %v6858 = vrot.slane %v6752, 2
        %v6859 = vrot.slane %v6530, 2
        %v6860 = vsel %vm2879, %v6858, %v6859
        %v6861 = vrot.slane %v6753, 2
        %v6862 = vrot.slane %v6531, 2
        %v6863 = vsel %vm2879, %v6861, %v6862
        %v6864 = vrot.slane %v6754, 2
        %v6865 = vsel %vm2879, %v6859, %v6864
        %v6866 = vrot.slane %v6755, 2
        %v6867 = vsel %vm2879, %v6862, %v6866
        %s6900 = scalar_lea.vmem [#allocation4], 48
        %v6901 = vld [vmem:[%s6900] sm:$0xff]
        %v6902 = vld [vmem:[%s6900 + $0x8] sm:$0xff]
        %v6903 = vld [vmem:[%s6900 + $0x10] sm:$0xff]
        %v6904 = vld [vmem:[%s6900 + $0x18] sm:$0xff]
        %v6905 = vld [vmem:[%s6900 + $0x30] sm:$0xff]
        %v6906 = vld [vmem:[%s6900 + $0x38] sm:$0xff]
        %v6907 = vld [vmem:[%s6900 + $0x40] sm:$0xff]
        %v6908 = vld [vmem:[%s6900 + $0x48] sm:$0xff]
        %v6909 = vld [vmem:[%s6900 + $0x60] sm:$0xff]
        %v6910 = vld [vmem:[%s6900 + $0x68] sm:$0xff]
        %v6911 = vld [vmem:[%s6900 + $0x70] sm:$0xff]
        %v6912 = vld [vmem:[%s6900 + $0x78] sm:$0xff]
        %v6913 = vld [vmem:[%s6900 + $0x90] sm:$0xff]
        %v6914 = vld [vmem:[%s6900 + $0x98] sm:$0xff]
        %v6915 = vld [vmem:[%s6900 + $0xa0] sm:$0xff]
        %v6916 = vld [vmem:[%s6900 + $0xa8] sm:$0xff]
        %v6917 = vld [vmem:[%s6900 + $0xc0] sm:$0xff]
        %v6918 = vld [vmem:[%s6900 + $0xc8] sm:$0xff]
        %v6919 = vld [vmem:[%s6900 + $0xd0] sm:$0xff]
        %v6920 = vld [vmem:[%s6900 + $0xd8] sm:$0xff]
        %v6921 = vld [vmem:[%s6900 + $0xf0] sm:$0xff]
        %v6922 = vld [vmem:[%s6900 + $0xf8] sm:$0xff]
        %v6923 = vld [vmem:[%s6900 + $0x100] sm:$0xff]
        %v6924 = vld [vmem:[%s6900 + $0x108] sm:$0xff]
        %v6925 = vld [vmem:[%s6900 + $0x120] sm:$0xff]
        %v6926 = vld [vmem:[%s6900 + $0x128] sm:$0xff]
        %v6927 = vld [vmem:[%s6900 + $0x130] sm:$0xff]
        %v6928 = vld [vmem:[%s6900 + $0x138] sm:$0xff]
        %v6929 = vld [vmem:[%s6900 + $0x150] sm:$0xff]
        %v6930 = vld [vmem:[%s6900 + $0x158] sm:$0xff]
        %v6931 = vld [vmem:[%s6900 + $0x160] sm:$0xff]
        %v6932 = vld [vmem:[%s6900 + $0x168] sm:$0xff]
        %v6933 = vld [vmem:[%s6900] sm:$0xfe]
        %v6934 = vld [vmem:[%s6900 + $0x8] sm:$0xfe]
        %v6935 = vld [vmem:[%s6900 + $0x20] sm:$0x1]
        %v6936 = vld [vmem:[%s6900 + $0x28] sm:$0x1]
        %v6937 = vld [vmem:[%s6900 + $0x30] sm:$0xfe]
        %v6938 = vld [vmem:[%s6900 + $0x38] sm:$0xfe]
        %v6939 = vld [vmem:[%s6900 + $0x50] sm:$0x1]
        %v6940 = vld [vmem:[%s6900 + $0x58] sm:$0x1]
        %v6941 = vld [vmem:[%s6900 + $0x60] sm:$0xfe]
        %v6942 = vld [vmem:[%s6900 + $0x68] sm:$0xfe]
        %v6943 = vld [vmem:[%s6900 + $0x80] sm:$0x1]
        %v6944 = vld [vmem:[%s6900 + $0x88] sm:$0x1]
        %v6945 = vld [vmem:[%s6900 + $0x90] sm:$0xfe]
        %v6946 = vld [vmem:[%s6900 + $0x98] sm:$0xfe]
        %v6947 = vld [vmem:[%s6900 + $0xb0] sm:$0x1]
        %v6948 = vld [vmem:[%s6900 + $0xb8] sm:$0x1]
        %v6949 = vld [vmem:[%s6900 + $0xc0] sm:$0xfe]
        %v6950 = vld [vmem:[%s6900 + $0xc8] sm:$0xfe]
        %v6951 = vld [vmem:[%s6900 + $0xe0] sm:$0x1]
        %v6952 = vld [vmem:[%s6900 + $0xe8] sm:$0x1]
        %v6953 = vld [vmem:[%s6900 + $0xf0] sm:$0xfe]
        %v6954 = vld [vmem:[%s6900 + $0xf8] sm:$0xfe]
        %v6955 = vld [vmem:[%s6900 + $0x110] sm:$0x1]
        %v6956 = vld [vmem:[%s6900 + $0x118] sm:$0x1]
        %v6957 = vld [vmem:[%s6900 + $0x120] sm:$0xfe]
        %v6958 = vld [vmem:[%s6900 + $0x128] sm:$0xfe]
        %v6959 = vld [vmem:[%s6900 + $0x140] sm:$0x1]
        %v6960 = vld [vmem:[%s6900 + $0x148] sm:$0x1]
        %v6961 = vld [vmem:[%s6900 + $0x150] sm:$0xfe]
        %v6962 = vld [vmem:[%s6900 + $0x158] sm:$0xfe]
        %v6963 = vld [vmem:[%s6900 + $0x170] sm:$0x1]
        %v6964 = vld [vmem:[%s6900 + $0x178] sm:$0x1]
        %v7013 = vrot.slane %v6933, 1
        %v7014 = vrot.slane %v6903, 1
        %v7015 = vsel %vm2658, %v7013, %v7014
        %v7016 = vrot.slane %v6934, 1
        %v7017 = vrot.slane %v6904, 1
        %v7018 = vsel %vm2658, %v7016, %v7017
        %v7019 = vrot.slane %v6935, 1
        %v7020 = vsel %vm2658, %v7014, %v7019
        %v7021 = vrot.slane %v6936, 1
        %v7022 = vsel %vm2658, %v7017, %v7021
        %v7023 = vrot.slane %v6937, 1
        %v7024 = vrot.slane %v6907, 1
        %v7025 = vsel %vm2658, %v7023, %v7024
        %v7026 = vrot.slane %v6938, 1
        %v7027 = vrot.slane %v6908, 1
        %v7028 = vsel %vm2658, %v7026, %v7027
        %v7029 = vrot.slane %v6939, 1
        %v7030 = vsel %vm2658, %v7024, %v7029
        %v7031 = vrot.slane %v6940, 1
        %v7032 = vsel %vm2658, %v7027, %v7031
        %v7033 = vrot.slane %v6941, 1
        %v7034 = vrot.slane %v6911, 1
        %v7035 = vsel %vm2658, %v7033, %v7034
        %v7036 = vrot.slane %v6942, 1
        %v7037 = vrot.slane %v6912, 1
        %v7038 = vsel %vm2658, %v7036, %v7037
        %v7039 = vrot.slane %v6943, 1
        %v7040 = vsel %vm2658, %v7034, %v7039
        %v7041 = vrot.slane %v6944, 1
        %v7042 = vsel %vm2658, %v7037, %v7041
        %v7043 = vrot.slane %v6945, 1
        %v7044 = vrot.slane %v6915, 1
        %v7045 = vsel %vm2658, %v7043, %v7044
        %v7046 = vrot.slane %v6946, 1
        %v7047 = vrot.slane %v6916, 1
        %v7048 = vsel %vm2658, %v7046, %v7047
        %v7049 = vrot.slane %v6947, 1
        %v7050 = vsel %vm2658, %v7044, %v7049
        %v7051 = vrot.slane %v6948, 1
        %v7052 = vsel %vm2658, %v7047, %v7051
        %v7053 = vrot.slane %v6949, 1
        %v7054 = vrot.slane %v6919, 1
        %v7055 = vsel %vm2658, %v7053, %v7054
        %v7056 = vrot.slane %v6950, 1
        %v7057 = vrot.slane %v6920, 1
        %v7058 = vsel %vm2658, %v7056, %v7057
        %v7059 = vrot.slane %v6951, 1
        %v7060 = vsel %vm2658, %v7054, %v7059
        %v7061 = vrot.slane %v6952, 1
        %v7062 = vsel %vm2658, %v7057, %v7061
        %v7063 = vrot.slane %v6953, 1
        %v7064 = vrot.slane %v6923, 1
        %v7065 = vsel %vm2658, %v7063, %v7064
        %v7066 = vrot.slane %v6954, 1
        %v7067 = vrot.slane %v6924, 1
        %v7068 = vsel %vm2658, %v7066, %v7067
        %v7069 = vrot.slane %v6955, 1
        %v7070 = vsel %vm2658, %v7064, %v7069
        %v7071 = vrot.slane %v6956, 1
        %v7072 = vsel %vm2658, %v7067, %v7071
        %v7073 = vrot.slane %v6957, 1
        %v7074 = vrot.slane %v6927, 1
        %v7075 = vsel %vm2658, %v7073, %v7074
        %v7076 = vrot.slane %v6958, 1
        %v7077 = vrot.slane %v6928, 1
        %v7078 = vsel %vm2658, %v7076, %v7077
        %v7079 = vrot.slane %v6959, 1
        %v7080 = vsel %vm2658, %v7074, %v7079
        %v7081 = vrot.slane %v6960, 1
        %v7082 = vsel %vm2658, %v7077, %v7081
        %v7083 = vrot.slane %v6961, 1
        %v7084 = vrot.slane %v6931, 1
        %v7085 = vsel %vm2658, %v7083, %v7084
        %v7086 = vrot.slane %v6962, 1
        %v7087 = vrot.slane %v6932, 1
        %v7088 = vsel %vm2658, %v7086, %v7087
        %v7089 = vrot.slane %v6963, 1
        %v7090 = vsel %vm2658, %v7084, %v7089
        %v7091 = vrot.slane %v6964, 1
        %v7092 = vsel %vm2658, %v7087, %v7091
        %v7125 = vld [vmem:[%s6900] sm:$0xfc]
        %v7126 = vld [vmem:[%s6900 + $0x8] sm:$0xfc]
        %v7127 = vld [vmem:[%s6900 + $0x20] sm:$0x3]
        %v7128 = vld [vmem:[%s6900 + $0x28] sm:$0x3]
        %v7129 = vld [vmem:[%s6900 + $0x30] sm:$0xfc]
        %v7130 = vld [vmem:[%s6900 + $0x38] sm:$0xfc]
        %v7131 = vld [vmem:[%s6900 + $0x50] sm:$0x3]
        %v7132 = vld [vmem:[%s6900 + $0x58] sm:$0x3]
        %v7133 = vld [vmem:[%s6900 + $0x60] sm:$0xfc]
        %v7134 = vld [vmem:[%s6900 + $0x68] sm:$0xfc]
        %v7135 = vld [vmem:[%s6900 + $0x80] sm:$0x3]
        %v7136 = vld [vmem:[%s6900 + $0x88] sm:$0x3]
        %v7137 = vld [vmem:[%s6900 + $0x90] sm:$0xfc]
        %v7138 = vld [vmem:[%s6900 + $0x98] sm:$0xfc]
        %v7139 = vld [vmem:[%s6900 + $0xb0] sm:$0x3]
        %v7140 = vld [vmem:[%s6900 + $0xb8] sm:$0x3]
        %v7141 = vld [vmem:[%s6900 + $0xc0] sm:$0xfc]
        %v7142 = vld [vmem:[%s6900 + $0xc8] sm:$0xfc]
        %v7143 = vld [vmem:[%s6900 + $0xe0] sm:$0x3]
        %v7144 = vld [vmem:[%s6900 + $0xe8] sm:$0x3]
        %v7145 = vld [vmem:[%s6900 + $0xf0] sm:$0xfc]
        %v7146 = vld [vmem:[%s6900 + $0xf8] sm:$0xfc]
        %v7147 = vld [vmem:[%s6900 + $0x110] sm:$0x3]
        %v7148 = vld [vmem:[%s6900 + $0x118] sm:$0x3]
        %v7149 = vld [vmem:[%s6900 + $0x120] sm:$0xfc]
        %v7150 = vld [vmem:[%s6900 + $0x128] sm:$0xfc]
        %v7151 = vld [vmem:[%s6900 + $0x140] sm:$0x3]
        %v7152 = vld [vmem:[%s6900 + $0x148] sm:$0x3]
        %v7153 = vld [vmem:[%s6900 + $0x150] sm:$0xfc]
        %v7154 = vld [vmem:[%s6900 + $0x158] sm:$0xfc]
        %v7155 = vld [vmem:[%s6900 + $0x170] sm:$0x3]
        %v7156 = vld [vmem:[%s6900 + $0x178] sm:$0x3]
        %v7189 = vrot.slane %v7125, 2
        %v7190 = vrot.slane %v6903, 2
        %v7191 = vsel %vm2879, %v7189, %v7190
        %v7192 = vrot.slane %v7126, 2
        %v7193 = vrot.slane %v6904, 2
        %v7194 = vsel %vm2879, %v7192, %v7193
        %v7195 = vrot.slane %v7127, 2
        %v7196 = vsel %vm2879, %v7190, %v7195
        %v7197 = vrot.slane %v7128, 2
        %v7198 = vsel %vm2879, %v7193, %v7197
        %v7199 = vrot.slane %v7129, 2
        %v7200 = vrot.slane %v6907, 2
        %v7201 = vsel %vm2879, %v7199, %v7200
        %v7202 = vrot.slane %v7130, 2
        %v7203 = vrot.slane %v6908, 2
        %v7204 = vsel %vm2879, %v7202, %v7203
        %v7205 = vrot.slane %v7131, 2
        %v7206 = vsel %vm2879, %v7200, %v7205
        %v7207 = vrot.slane %v7132, 2
        %v7208 = vsel %vm2879, %v7203, %v7207
        %v7209 = vrot.slane %v7133, 2
        %v7210 = vrot.slane %v6911, 2
        %v7211 = vsel %vm2879, %v7209, %v7210
        %v7212 = vrot.slane %v7134, 2
        %v7213 = vrot.slane %v6912, 2
        %v7214 = vsel %vm2879, %v7212, %v7213
        %v7215 = vrot.slane %v7135, 2
        %v7216 = vsel %vm2879, %v7210, %v7215
        %v7217 = vrot.slane %v7136, 2
        %v7218 = vsel %vm2879, %v7213, %v7217
        %v7219 = vrot.slane %v7137, 2
        %v7220 = vrot.slane %v6915, 2
        %v7221 = vsel %vm2879, %v7219, %v7220
        %v7222 = vrot.slane %v7138, 2
        %v7223 = vrot.slane %v6916, 2
        %v7224 = vsel %vm2879, %v7222, %v7223
        %v7225 = vrot.slane %v7139, 2
        %v7226 = vsel %vm2879, %v7220, %v7225
        %v7227 = vrot.slane %v7140, 2
        %v7228 = vsel %vm2879, %v7223, %v7227
        %v7229 = vrot.slane %v7141, 2
        %v7230 = vrot.slane %v6919, 2
        %v7231 = vsel %vm2879, %v7229, %v7230
        %v7232 = vrot.slane %v7142, 2
        %v7233 = vrot.slane %v6920, 2
        %v7234 = vsel %vm2879, %v7232, %v7233
        %v7235 = vrot.slane %v7143, 2
        %v7236 = vsel %vm2879, %v7230, %v7235
        %v7237 = vrot.slane %v7144, 2
        %v7238 = vsel %vm2879, %v7233, %v7237
        %v7239 = vrot.slane %v7145, 2
        %v7240 = vrot.slane %v6923, 2
        %v7241 = vsel %vm2879, %v7239, %v7240
        %v7242 = vrot.slane %v7146, 2
        %v7243 = vrot.slane %v6924, 2
        %v7244 = vsel %vm2879, %v7242, %v7243
        %v7245 = vrot.slane %v7147, 2
        %v7246 = vsel %vm2879, %v7240, %v7245
        %v7247 = vrot.slane %v7148, 2
        %v7248 = vsel %vm2879, %v7243, %v7247
        %v7249 = vrot.slane %v7149, 2
        %v7250 = vrot.slane %v6927, 2
        %v7251 = vsel %vm2879, %v7249, %v7250
        %v7252 = vrot.slane %v7150, 2
        %v7253 = vrot.slane %v6928, 2
        %v7254 = vsel %vm2879, %v7252, %v7253
        %v7255 = vrot.slane %v7151, 2
        %v7256 = vsel %vm2879, %v7250, %v7255
        %v7257 = vrot.slane %v7152, 2
        %v7258 = vsel %vm2879, %v7253, %v7257
        %v7259 = vrot.slane %v7153, 2
        %v7260 = vrot.slane %v6931, 2
        %v7261 = vsel %vm2879, %v7259, %v7260
        %v7262 = vrot.slane %v7154, 2
        %v7263 = vrot.slane %v6932, 2
        %v7264 = vsel %vm2879, %v7262, %v7263
        %v7265 = vrot.slane %v7155, 2
        %v7266 = vsel %vm2879, %v7260, %v7265
        %v7267 = vrot.slane %v7156, 2
        %v7268 = vsel %vm2879, %v7263, %v7267
        %s7301 = scalar_lea.vmem [#allocation4], 96
        %v7302 = vld [vmem:[%s7301] sm:$0xff]
        %v7303 = vld [vmem:[%s7301 + $0x8] sm:$0xff]
        %v7304 = vld [vmem:[%s7301 + $0x10] sm:$0xff]
        %v7305 = vld [vmem:[%s7301 + $0x18] sm:$0xff]
        %v7306 = vld [vmem:[%s7301 + $0x30] sm:$0xff]
        %v7307 = vld [vmem:[%s7301 + $0x38] sm:$0xff]
        %v7308 = vld [vmem:[%s7301 + $0x40] sm:$0xff]
        %v7309 = vld [vmem:[%s7301 + $0x48] sm:$0xff]
        %v7310 = vld [vmem:[%s7301 + $0x60] sm:$0xff]
        %v7311 = vld [vmem:[%s7301 + $0x68] sm:$0xff]
        %v7312 = vld [vmem:[%s7301 + $0x70] sm:$0xff]
        %v7313 = vld [vmem:[%s7301 + $0x78] sm:$0xff]
        %v7314 = vld [vmem:[%s7301 + $0x90] sm:$0xff]
        %v7315 = vld [vmem:[%s7301 + $0x98] sm:$0xff]
        %v7316 = vld [vmem:[%s7301 + $0xa0] sm:$0xff]
        %v7317 = vld [vmem:[%s7301 + $0xa8] sm:$0xff]
        %v7318 = vld [vmem:[%s7301 + $0xc0] sm:$0xff]
        %v7319 = vld [vmem:[%s7301 + $0xc8] sm:$0xff]
        %v7320 = vld [vmem:[%s7301 + $0xd0] sm:$0xff]
        %v7321 = vld [vmem:[%s7301 + $0xd8] sm:$0xff]
        %v7322 = vld [vmem:[%s7301 + $0xf0] sm:$0xff]
        %v7323 = vld [vmem:[%s7301 + $0xf8] sm:$0xff]
        %v7324 = vld [vmem:[%s7301 + $0x100] sm:$0xff]
        %v7325 = vld [vmem:[%s7301 + $0x108] sm:$0xff]
        %v7326 = vld [vmem:[%s7301 + $0x120] sm:$0xff]
        %v7327 = vld [vmem:[%s7301 + $0x128] sm:$0xff]
        %v7328 = vld [vmem:[%s7301 + $0x130] sm:$0xff]
        %v7329 = vld [vmem:[%s7301 + $0x138] sm:$0xff]
        %v7330 = vld [vmem:[%s7301 + $0x150] sm:$0xff]
        %v7331 = vld [vmem:[%s7301 + $0x158] sm:$0xff]
        %v7332 = vld [vmem:[%s7301 + $0x160] sm:$0xff]
        %v7333 = vld [vmem:[%s7301 + $0x168] sm:$0xff]
        %v7334 = vld [vmem:[%s7301] sm:$0xfe]
        %v7335 = vld [vmem:[%s7301 + $0x8] sm:$0xfe]
        %v7336 = vld [vmem:[%s7301 + $0x20] sm:$0x1]
        %v7337 = vld [vmem:[%s7301 + $0x28] sm:$0x1]
        %v7338 = vld [vmem:[%s7301 + $0x30] sm:$0xfe]
        %v7339 = vld [vmem:[%s7301 + $0x38] sm:$0xfe]
        %v7340 = vld [vmem:[%s7301 + $0x50] sm:$0x1]
        %v7341 = vld [vmem:[%s7301 + $0x58] sm:$0x1]
        %v7342 = vld [vmem:[%s7301 + $0x60] sm:$0xfe]
        %v7343 = vld [vmem:[%s7301 + $0x68] sm:$0xfe]
        %v7344 = vld [vmem:[%s7301 + $0x80] sm:$0x1]
        %v7345 = vld [vmem:[%s7301 + $0x88] sm:$0x1]
        %v7346 = vld [vmem:[%s7301 + $0x90] sm:$0xfe]
        %v7347 = vld [vmem:[%s7301 + $0x98] sm:$0xfe]
        %v7348 = vld [vmem:[%s7301 + $0xb0] sm:$0x1]
        %v7349 = vld [vmem:[%s7301 + $0xb8] sm:$0x1]
        %v7350 = vld [vmem:[%s7301 + $0xc0] sm:$0xfe]
        %v7351 = vld [vmem:[%s7301 + $0xc8] sm:$0xfe]
        %v7352 = vld [vmem:[%s7301 + $0xe0] sm:$0x1]
        %v7353 = vld [vmem:[%s7301 + $0xe8] sm:$0x1]
        %v7354 = vld [vmem:[%s7301 + $0xf0] sm:$0xfe]
        %v7355 = vld [vmem:[%s7301 + $0xf8] sm:$0xfe]
        %v7356 = vld [vmem:[%s7301 + $0x110] sm:$0x1]
        %v7357 = vld [vmem:[%s7301 + $0x118] sm:$0x1]
        %v7358 = vld [vmem:[%s7301 + $0x120] sm:$0xfe]
        %v7359 = vld [vmem:[%s7301 + $0x128] sm:$0xfe]
        %v7360 = vld [vmem:[%s7301 + $0x140] sm:$0x1]
        %v7361 = vld [vmem:[%s7301 + $0x148] sm:$0x1]
        %v7362 = vld [vmem:[%s7301 + $0x150] sm:$0xfe]
        %v7363 = vld [vmem:[%s7301 + $0x158] sm:$0xfe]
        %v7364 = vld [vmem:[%s7301 + $0x170] sm:$0x1]
        %v7365 = vld [vmem:[%s7301 + $0x178] sm:$0x1]
        %v7414 = vrot.slane %v7334, 1
        %v7415 = vrot.slane %v7304, 1
        %v7416 = vsel %vm2658, %v7414, %v7415
        %v7417 = vrot.slane %v7335, 1
        %v7418 = vrot.slane %v7305, 1
        %v7419 = vsel %vm2658, %v7417, %v7418
        %v7420 = vrot.slane %v7336, 1
        %v7421 = vsel %vm2658, %v7415, %v7420
        %v7422 = vrot.slane %v7337, 1
        %v7423 = vsel %vm2658, %v7418, %v7422
        %v7424 = vrot.slane %v7338, 1
        %v7425 = vrot.slane %v7308, 1
        %v7426 = vsel %vm2658, %v7424, %v7425
        %v7427 = vrot.slane %v7339, 1
        %v7428 = vrot.slane %v7309, 1
        %v7429 = vsel %vm2658, %v7427, %v7428
        %v7430 = vrot.slane %v7340, 1
        %v7431 = vsel %vm2658, %v7425, %v7430
        %v7432 = vrot.slane %v7341, 1
        %v7433 = vsel %vm2658, %v7428, %v7432
        %v7434 = vrot.slane %v7342, 1
        %v7435 = vrot.slane %v7312, 1
        %v7436 = vsel %vm2658, %v7434, %v7435
        %v7437 = vrot.slane %v7343, 1
        %v7438 = vrot.slane %v7313, 1
        %v7439 = vsel %vm2658, %v7437, %v7438
        %v7440 = vrot.slane %v7344, 1
        %v7441 = vsel %vm2658, %v7435, %v7440
        %v7442 = vrot.slane %v7345, 1
        %v7443 = vsel %vm2658, %v7438, %v7442
        %v7444 = vrot.slane %v7346, 1
        %v7445 = vrot.slane %v7316, 1
        %v7446 = vsel %vm2658, %v7444, %v7445
        %v7447 = vrot.slane %v7347, 1
        %v7448 = vrot.slane %v7317, 1
        %v7449 = vsel %vm2658, %v7447, %v7448
        %v7450 = vrot.slane %v7348, 1
        %v7451 = vsel %vm2658, %v7445, %v7450
        %v7452 = vrot.slane %v7349, 1
        %v7453 = vsel %vm2658, %v7448, %v7452
        %v7454 = vrot.slane %v7350, 1
        %v7455 = vrot.slane %v7320, 1
        %v7456 = vsel %vm2658, %v7454, %v7455
        %v7457 = vrot.slane %v7351, 1
        %v7458 = vrot.slane %v7321, 1
        %v7459 = vsel %vm2658, %v7457, %v7458
        %v7460 = vrot.slane %v7352, 1
        %v7461 = vsel %vm2658, %v7455, %v7460
        %v7462 = vrot.slane %v7353, 1
        %v7463 = vsel %vm2658, %v7458, %v7462
        %v7464 = vrot.slane %v7354, 1
        %v7465 = vrot.slane %v7324, 1
        %v7466 = vsel %vm2658, %v7464, %v7465
        %v7467 = vrot.slane %v7355, 1
        %v7468 = vrot.slane %v7325, 1
        %v7469 = vsel %vm2658, %v7467, %v7468
        %v7470 = vrot.slane %v7356, 1
        %v7471 = vsel %vm2658, %v7465, %v7470
        %v7472 = vrot.slane %v7357, 1
        %v7473 = vsel %vm2658, %v7468, %v7472
        %v7474 = vrot.slane %v7358, 1
        %v7475 = vrot.slane %v7328, 1
        %v7476 = vsel %vm2658, %v7474, %v7475
        %v7477 = vrot.slane %v7359, 1
        %v7478 = vrot.slane %v7329, 1
        %v7479 = vsel %vm2658, %v7477, %v7478
        %v7480 = vrot.slane %v7360, 1
        %v7481 = vsel %vm2658, %v7475, %v7480
        %v7482 = vrot.slane %v7361, 1
        %v7483 = vsel %vm2658, %v7478, %v7482
        %v7484 = vrot.slane %v7362, 1
        %v7485 = vrot.slane %v7332, 1
        %v7486 = vsel %vm2658, %v7484, %v7485
        %v7487 = vrot.slane %v7363, 1
        %v7488 = vrot.slane %v7333, 1
        %v7489 = vsel %vm2658, %v7487, %v7488
        %v7490 = vrot.slane %v7364, 1
        %v7491 = vsel %vm2658, %v7485, %v7490
        %v7492 = vrot.slane %v7365, 1
        %v7493 = vsel %vm2658, %v7488, %v7492
        %v7526 = vld [vmem:[%s7301] sm:$0xfc]
        %v7527 = vld [vmem:[%s7301 + $0x8] sm:$0xfc]
        %v7528 = vld [vmem:[%s7301 + $0x20] sm:$0x3]
        %v7529 = vld [vmem:[%s7301 + $0x28] sm:$0x3]
        %v7530 = vld [vmem:[%s7301 + $0x30] sm:$0xfc]
        %v7531 = vld [vmem:[%s7301 + $0x38] sm:$0xfc]
        %v7532 = vld [vmem:[%s7301 + $0x50] sm:$0x3]
        %v7533 = vld [vmem:[%s7301 + $0x58] sm:$0x3]
        %v7534 = vld [vmem:[%s7301 + $0x60] sm:$0xfc]
        %v7535 = vld [vmem:[%s7301 + $0x68] sm:$0xfc]
        %v7536 = vld [vmem:[%s7301 + $0x80] sm:$0x3]
        %v7537 = vld [vmem:[%s7301 + $0x88] sm:$0x3]
        %v7538 = vld [vmem:[%s7301 + $0x90] sm:$0xfc]
        %v7539 = vld [vmem:[%s7301 + $0x98] sm:$0xfc]
        %v7540 = vld [vmem:[%s7301 + $0xb0] sm:$0x3]
        %v7541 = vld [vmem:[%s7301 + $0xb8] sm:$0x3]
        %v7542 = vld [vmem:[%s7301 + $0xc0] sm:$0xfc]
        %v7543 = vld [vmem:[%s7301 + $0xc8] sm:$0xfc]
        %v7544 = vld [vmem:[%s7301 + $0xe0] sm:$0x3]
        %v7545 = vld [vmem:[%s7301 + $0xe8] sm:$0x3]
        %v7546 = vld [vmem:[%s7301 + $0xf0] sm:$0xfc]
        %v7547 = vld [vmem:[%s7301 + $0xf8] sm:$0xfc]
        %v7548 = vld [vmem:[%s7301 + $0x110] sm:$0x3]
        %v7549 = vld [vmem:[%s7301 + $0x118] sm:$0x3]
        %v7550 = vld [vmem:[%s7301 + $0x120] sm:$0xfc]
        %v7551 = vld [vmem:[%s7301 + $0x128] sm:$0xfc]
        %v7552 = vld [vmem:[%s7301 + $0x140] sm:$0x3]
        %v7553 = vld [vmem:[%s7301 + $0x148] sm:$0x3]
        %v7554 = vld [vmem:[%s7301 + $0x150] sm:$0xfc]
        %v7555 = vld [vmem:[%s7301 + $0x158] sm:$0xfc]
        %v7556 = vld [vmem:[%s7301 + $0x170] sm:$0x3]
        %v7557 = vld [vmem:[%s7301 + $0x178] sm:$0x3]
        %v7590 = vrot.slane %v7526, 2
        %v7591 = vrot.slane %v7304, 2
        %v7592 = vsel %vm2879, %v7590, %v7591
        %v7593 = vrot.slane %v7527, 2
        %v7594 = vrot.slane %v7305, 2
        %v7595 = vsel %vm2879, %v7593, %v7594
        %v7596 = vrot.slane %v7528, 2
        %v7597 = vsel %vm2879, %v7591, %v7596
        %v7598 = vrot.slane %v7529, 2
        %v7599 = vsel %vm2879, %v7594, %v7598
        %v7600 = vrot.slane %v7530, 2
        %v7601 = vrot.slane %v7308, 2
        %v7602 = vsel %vm2879, %v7600, %v7601
        %v7603 = vrot.slane %v7531, 2
        %v7604 = vrot.slane %v7309, 2
        %v7605 = vsel %vm2879, %v7603, %v7604
        %v7606 = vrot.slane %v7532, 2
        %v7607 = vsel %vm2879, %v7601, %v7606
        %v7608 = vrot.slane %v7533, 2
        %v7609 = vsel %vm2879, %v7604, %v7608
        %v7610 = vrot.slane %v7534, 2
        %v7611 = vrot.slane %v7312, 2
        %v7612 = vsel %vm2879, %v7610, %v7611
        %v7613 = vrot.slane %v7535, 2
        %v7614 = vrot.slane %v7313, 2
        %v7615 = vsel %vm2879, %v7613, %v7614
        %v7616 = vrot.slane %v7536, 2
        %v7617 = vsel %vm2879, %v7611, %v7616
        %v7618 = vrot.slane %v7537, 2
        %v7619 = vsel %vm2879, %v7614, %v7618
        %v7620 = vrot.slane %v7538, 2
        %v7621 = vrot.slane %v7316, 2
        %v7622 = vsel %vm2879, %v7620, %v7621
        %v7623 = vrot.slane %v7539, 2
        %v7624 = vrot.slane %v7317, 2
        %v7625 = vsel %vm2879, %v7623, %v7624
        %v7626 = vrot.slane %v7540, 2
        %v7627 = vsel %vm2879, %v7621, %v7626
        %v7628 = vrot.slane %v7541, 2
        %v7629 = vsel %vm2879, %v7624, %v7628
        %v7630 = vrot.slane %v7542, 2
        %v7631 = vrot.slane %v7320, 2
        %v7632 = vsel %vm2879, %v7630, %v7631
        %v7633 = vrot.slane %v7543, 2
        %v7634 = vrot.slane %v7321, 2
        %v7635 = vsel %vm2879, %v7633, %v7634
        %v7636 = vrot.slane %v7544, 2
        %v7637 = vsel %vm2879, %v7631, %v7636
        %v7638 = vrot.slane %v7545, 2
        %v7639 = vsel %vm2879, %v7634, %v7638
        %v7640 = vrot.slane %v7546, 2
        %v7641 = vrot.slane %v7324, 2
        %v7642 = vsel %vm2879, %v7640, %v7641
        %v7643 = vrot.slane %v7547, 2
        %v7644 = vrot.slane %v7325, 2
        %v7645 = vsel %vm2879, %v7643, %v7644
        %v7646 = vrot.slane %v7548, 2
        %v7647 = vsel %vm2879, %v7641, %v7646
        %v7648 = vrot.slane %v7549, 2
        %v7649 = vsel %vm2879, %v7644, %v7648
        %v7650 = vrot.slane %v7550, 2
        %v7651 = vrot.slane %v7328, 2
        %v7652 = vsel %vm2879, %v7650, %v7651
        %v7653 = vrot.slane %v7551, 2
        %v7654 = vrot.slane %v7329, 2
        %v7655 = vsel %vm2879, %v7653, %v7654
        %v7656 = vrot.slane %v7552, 2
        %v7657 = vsel %vm2879, %v7651, %v7656
        %v7658 = vrot.slane %v7553, 2
        %v7659 = vsel %vm2879, %v7654, %v7658
        %v7660 = vrot.slane %v7554, 2
        %v7661 = vrot.slane %v7332, 2
        %v7662 = vsel %vm2879, %v7660, %v7661
        %v7663 = vrot.slane %v7555, 2
        %v7664 = vrot.slane %v7333, 2
        %v7665 = vsel %vm2879, %v7663, %v7664
        %v7666 = vrot.slane %v7556, 2
        %v7667 = vsel %vm2879, %v7661, %v7666
        %v7668 = vrot.slane %v7557, 2
        %v7669 = vsel %vm2879, %v7664, %v7668
        %v7702 = vld [vmem:[#allocation22] sm:$0xff]
        %v7703 = vld [vmem:[#allocation22 + $0x8] sm:$0xff]
        %v7704 = vld [vmem:[#allocation22 + $0x10] sm:$0xff]
        %v7705 = vld [vmem:[#allocation22 + $0x18] sm:$0xff]
        %v7706 = vld [vmem:[#allocation22 + $0x20] sm:$0xff]
        %v7707 = vld [vmem:[#allocation22 + $0x28] sm:$0xff]
        %v7708 = vld [vmem:[#allocation22 + $0x30] sm:$0xff]
        %v7709 = vld [vmem:[#allocation22 + $0x38] sm:$0xff]
        %v7710 = vld [vmem:[#allocation22 + $0x40] sm:$0xff]
        %v7711 = vld [vmem:[#allocation22 + $0x48] sm:$0xff]
        %v7712 = vld [vmem:[#allocation22 + $0x50] sm:$0xff]
        %v7713 = vld [vmem:[#allocation22 + $0x58] sm:$0xff]
        %v7714 = vld [vmem:[#allocation22 + $0x60] sm:$0xff]
        %v7715 = vld [vmem:[#allocation22 + $0x68] sm:$0xff]
        %v7716 = vld [vmem:[#allocation22 + $0x70] sm:$0xff]
        %v7717 = vld [vmem:[#allocation22 + $0x78] sm:$0xff]
        %v7718 = vld [vmem:[#allocation22 + $0x80] sm:$0xff]
        %v7719 = vld [vmem:[#allocation22 + $0x88] sm:$0xff]
        %v7720 = vld [vmem:[#allocation22 + $0x90] sm:$0xff]
        %v7721 = vld [vmem:[#allocation22 + $0x98] sm:$0xff]
        %v7722 = vld [vmem:[#allocation22 + $0xa0] sm:$0xff]
        %v7723 = vld [vmem:[#allocation22 + $0xa8] sm:$0xff]
        %v7724 = vld [vmem:[#allocation22 + $0xb0] sm:$0xff]
        %v7725 = vld [vmem:[#allocation22 + $0xb8] sm:$0xff]
        %v7726 = vld [vmem:[#allocation22 + $0xc0] sm:$0xff]
        %v7727 = vld [vmem:[#allocation22 + $0xc8] sm:$0xff]
        %v7728 = vld [vmem:[#allocation22 + $0xd0] sm:$0xff]
        %v7729 = vld [vmem:[#allocation22 + $0xd8] sm:$0xff]
        %v7730 = vld [vmem:[#allocation22 + $0xe0] sm:$0xff]
        %v7731 = vld [vmem:[#allocation22 + $0xe8] sm:$0xff]
        %v7732 = vld [vmem:[#allocation22 + $0xf0] sm:$0xff]
        %v7733 = vld [vmem:[#allocation22 + $0xf8] sm:$0xff]
        %v7734 = vld [vmem:[#allocation22 + $0x100] sm:$0xff]
        %v7735 = vld [vmem:[#allocation22 + $0x108] sm:$0xff]
        %v7736 = vld [vmem:[#allocation22 + $0x110] sm:$0xff]
        %v7737 = vld [vmem:[#allocation22 + $0x118] sm:$0xff]
        %v7738 = vld [vmem:[#allocation22 + $0x120] sm:$0xff]
        %v7739 = vld [vmem:[#allocation22 + $0x128] sm:$0xff]
        %v7740 = vld [vmem:[#allocation22 + $0x130] sm:$0xff]
        %v7741 = vld [vmem:[#allocation22 + $0x138] sm:$0xff]
        %v7742 = vld [vmem:[#allocation22 + $0x140] sm:$0xff]
        %v7743 = vld [vmem:[#allocation22 + $0x148] sm:$0xff]
        %v7744 = vld [vmem:[#allocation22 + $0x150] sm:$0xff]
        %v7745 = vld [vmem:[#allocation22 + $0x158] sm:$0xff]
        %v7746 = vld [vmem:[#allocation22 + $0x160] sm:$0xff]
        %v7747 = vld [vmem:[#allocation22 + $0x168] sm:$0xff]
        %v7748 = vld [vmem:[#allocation22 + $0x170] sm:$0xff]
        %v7749 = vld [vmem:[#allocation22 + $0x178] sm:$0xff]
        %v7750 = vld [vmem:[#allocation22 + $0x180] sm:$0xff]
        %v7751 = vld [vmem:[#allocation22 + $0x188] sm:$0xff]
        %v7752 = vld [vmem:[#allocation22 + $0x190] sm:$0xff]
        %v7753 = vld [vmem:[#allocation22 + $0x198] sm:$0xff]
        %v7754 = vld [vmem:[#allocation22 + $0x1a0] sm:$0xff]
        %v7755 = vld [vmem:[#allocation22 + $0x1a8] sm:$0xff]
        %v7756 = vld [vmem:[#allocation22 + $0x1b0] sm:$0xff]
        %v7757 = vld [vmem:[#allocation22 + $0x1b8] sm:$0xff]
        %v7758 = vld [vmem:[#allocation22 + $0x1c0] sm:$0xff]
        %v7759 = vld [vmem:[#allocation22 + $0x1c8] sm:$0xff]
        %v7760 = vld [vmem:[#allocation22 + $0x1d0] sm:$0xff]
        %v7761 = vld [vmem:[#allocation22 + $0x1d8] sm:$0xff]
        %v7762 = vld [vmem:[#allocation22 + $0x1e0] sm:$0xff]
        %v7763 = vld [vmem:[#allocation22 + $0x1e8] sm:$0xff]
        %v7764 = vld [vmem:[#allocation22 + $0x1f0] sm:$0xff]
        %v7765 = vld [vmem:[#allocation22 + $0x1f8] sm:$0xff]
        %v7766 = vld [vmem:[#allocation22 + $0x200] sm:$0xff]
        %v7767 = vld [vmem:[#allocation22 + $0x208] sm:$0xff]
        %v7768 = vld [vmem:[#allocation22 + $0x210] sm:$0xff]
        %v7769 = vld [vmem:[#allocation22 + $0x218] sm:$0xff]
        %v7770 = vld [vmem:[#allocation22 + $0x220] sm:$0xff]
        %v7771 = vld [vmem:[#allocation22 + $0x228] sm:$0xff]
        %v7772 = vld [vmem:[#allocation22 + $0x230] sm:$0xff]
        %v7773 = vld [vmem:[#allocation22 + $0x238] sm:$0xff]
        %v7774 = vld [vmem:[#allocation22 + $0x240] sm:$0xff]
        %v7775 = vld [vmem:[#allocation22 + $0x248] sm:$0xff]
        %v7776 = vld [vmem:[#allocation22 + $0x250] sm:$0xff]
        %v7777 = vld [vmem:[#allocation22 + $0x258] sm:$0xff]
        %v7778 = vld [vmem:[#allocation22 + $0x260] sm:$0xff]
        %v7779 = vld [vmem:[#allocation22 + $0x268] sm:$0xff]
        %v7780 = vld [vmem:[#allocation22 + $0x270] sm:$0xff]
        %v7781 = vld [vmem:[#allocation22 + $0x278] sm:$0xff]
        %v7782 = vld [vmem:[#allocation22 + $0x280] sm:$0xff]
        %v7783 = vld [vmem:[#allocation22 + $0x288] sm:$0xff]
        %v7784 = vld [vmem:[#allocation22 + $0x290] sm:$0xff]
        %v7785 = vld [vmem:[#allocation22 + $0x298] sm:$0xff]
        %v7786 = vld [vmem:[#allocation22 + $0x2a0] sm:$0xff]
        %v7787 = vld [vmem:[#allocation22 + $0x2a8] sm:$0xff]
        %v7788 = vld [vmem:[#allocation22 + $0x2b0] sm:$0xff]
        %v7789 = vld [vmem:[#allocation22 + $0x2b8] sm:$0xff]
        %v7790 = vld [vmem:[#allocation22 + $0x2c0] sm:$0xff]
        %v7791 = vld [vmem:[#allocation22 + $0x2c8] sm:$0xff]
        %v7792 = vld [vmem:[#allocation22 + $0x2d0] sm:$0xff]
        %v7793 = vld [vmem:[#allocation22 + $0x2d8] sm:$0xff]
        %v7794 = vld [vmem:[#allocation22 + $0x2e0] sm:$0xff]
        %v7795 = vld [vmem:[#allocation22 + $0x2e8] sm:$0xff]
        %v7796 = vld [vmem:[#allocation22 + $0x2f0] sm:$0xff]
        %v7797 = vld [vmem:[#allocation22 + $0x2f8] sm:$0xff]
        %v7798 = vld [vmem:[#allocation22 + $0x300] sm:$0xff]
        %v7799 = vld [vmem:[#allocation22 + $0x308] sm:$0xff]
        %v7800 = vld [vmem:[#allocation22 + $0x310] sm:$0xff]
        %v7801 = vld [vmem:[#allocation22 + $0x318] sm:$0xff]
        %v7802 = vld [vmem:[#allocation22 + $0x320] sm:$0xff]
        %v7803 = vld [vmem:[#allocation22 + $0x328] sm:$0xff]
        %v7804 = vld [vmem:[#allocation22 + $0x330] sm:$0xff]
        %v7805 = vld [vmem:[#allocation22 + $0x338] sm:$0xff]
        %v7806 = vld [vmem:[#allocation22 + $0x340] sm:$0xff]
        %v7807 = vld [vmem:[#allocation22 + $0x348] sm:$0xff]
        %v7808 = vld [vmem:[#allocation22 + $0x350] sm:$0xff]
        %v7809 = vld [vmem:[#allocation22 + $0x358] sm:$0xff]
        %v7810 = vld [vmem:[#allocation22 + $0x360] sm:$0xff]
        %v7811 = vld [vmem:[#allocation22 + $0x368] sm:$0xff]
        %v7812 = vld [vmem:[#allocation22 + $0x370] sm:$0xff]
        %v7813 = vld [vmem:[#allocation22 + $0x378] sm:$0xff]
        %v7814 = vld [vmem:[#allocation22 + $0x380] sm:$0xff]
        %v7815 = vld [vmem:[#allocation22 + $0x388] sm:$0xff]
        %v7816 = vld [vmem:[#allocation22 + $0x390] sm:$0xff]
        %v7817 = vld [vmem:[#allocation22 + $0x398] sm:$0xff]
        %v7818 = vld [vmem:[#allocation22 + $0x3a0] sm:$0xff]
        %v7819 = vld [vmem:[#allocation22 + $0x3a8] sm:$0xff]
        %v7820 = vld [vmem:[#allocation22 + $0x3b0] sm:$0xff]
        %v7821 = vld [vmem:[#allocation22 + $0x3b8] sm:$0xff]
        %v7822 = vld [vmem:[#allocation22 + $0x3c0] sm:$0xff]
        %v7823 = vld [vmem:[#allocation22 + $0x3c8] sm:$0xff]
        %v7824 = vld [vmem:[#allocation22 + $0x3d0] sm:$0xff]
        %v7825 = vld [vmem:[#allocation22 + $0x3d8] sm:$0xff]
        %v7826 = vld [vmem:[#allocation22 + $0x3e0] sm:$0xff]
        %v7827 = vld [vmem:[#allocation22 + $0x3e8] sm:$0xff]
        %v7828 = vld [vmem:[#allocation22 + $0x3f0] sm:$0xff]
        %v7829 = vld [vmem:[#allocation22 + $0x3f8] sm:$0xff]
        %v7830 = vld [vmem:[#allocation22 + $0x400] sm:$0xff]
        %v7831 = vld [vmem:[#allocation22 + $0x408] sm:$0xff]
        %v7832 = vld [vmem:[#allocation22 + $0x410] sm:$0xff]
        %v7833 = vld [vmem:[#allocation22 + $0x418] sm:$0xff]
        %v7834 = vld [vmem:[#allocation22 + $0x420] sm:$0xff]
        %v7835 = vld [vmem:[#allocation22 + $0x428] sm:$0xff]
        %v7836 = vld [vmem:[#allocation22 + $0x430] sm:$0xff]
        %v7837 = vld [vmem:[#allocation22 + $0x438] sm:$0xff]
        %v7838 = vld [vmem:[#allocation22 + $0x440] sm:$0xff]
        %v7839 = vld [vmem:[#allocation22 + $0x448] sm:$0xff]
        %v7840 = vld [vmem:[#allocation22 + $0x450] sm:$0xff]
        %v7841 = vld [vmem:[#allocation22 + $0x458] sm:$0xff]
        %v7842 = vld [vmem:[#allocation22 + $0x460] sm:$0xff]
        %v7843 = vld [vmem:[#allocation22 + $0x468] sm:$0xff]
        %v7844 = vld [vmem:[#allocation22 + $0x470] sm:$0xff]
        %v7845 = vld [vmem:[#allocation22 + $0x478] sm:$0xff]
        %v7846 = vld [vmem:[#allocation22 + $0x480] sm:$0xff]
        %v7847 = vld [vmem:[#allocation22 + $0x488] sm:$0xff]
        %v7848 = vld [vmem:[#allocation22 + $0x490] sm:$0xff]
        %v7849 = vld [vmem:[#allocation22 + $0x498] sm:$0xff]
        %v7850 = vld [vmem:[#allocation22 + $0x4a0] sm:$0xff]
        %v7851 = vld [vmem:[#allocation22 + $0x4a8] sm:$0xff]
        %v7852 = vld [vmem:[#allocation22 + $0x4b0] sm:$0xff]
        %v7853 = vld [vmem:[#allocation22 + $0x4b8] sm:$0xff]
        %v7854 = vld [vmem:[#allocation22 + $0x4c0] sm:$0xff]
        %v7855 = vld [vmem:[#allocation22 + $0x4c8] sm:$0xff]
        %v7856 = vld [vmem:[#allocation22 + $0x4d0] sm:$0xff]
        %v7857 = vld [vmem:[#allocation22 + $0x4d8] sm:$0xff]
        %v7858 = vld [vmem:[#allocation22 + $0x4e0] sm:$0xff]
        %v7859 = vld [vmem:[#allocation22 + $0x4e8] sm:$0xff]
        %v7860 = vld [vmem:[#allocation22 + $0x4f0] sm:$0xff]
        %v7861 = vld [vmem:[#allocation22 + $0x4f8] sm:$0xff]
        %v7862 = vld [vmem:[#allocation22 + $0x500] sm:$0xff]
        %v7863 = vld [vmem:[#allocation22 + $0x508] sm:$0xff]
        %v7864 = vld [vmem:[#allocation22 + $0x510] sm:$0xff]
        %v7865 = vld [vmem:[#allocation22 + $0x518] sm:$0xff]
        %v7866 = vld [vmem:[#allocation22 + $0x520] sm:$0xff]
        %v7867 = vld [vmem:[#allocation22 + $0x528] sm:$0xff]
        %v7868 = vld [vmem:[#allocation22 + $0x530] sm:$0xff]
        %v7869 = vld [vmem:[#allocation22 + $0x538] sm:$0xff]
        %v7870 = vld [vmem:[#allocation22 + $0x540] sm:$0xff]
        %v7871 = vld [vmem:[#allocation22 + $0x548] sm:$0xff]
        %v7872 = vld [vmem:[#allocation22 + $0x550] sm:$0xff]
        %v7873 = vld [vmem:[#allocation22 + $0x558] sm:$0xff]
        %v7874 = vld [vmem:[#allocation22 + $0x560] sm:$0xff]
        %v7875 = vld [vmem:[#allocation22 + $0x568] sm:$0xff]
        %v7876 = vld [vmem:[#allocation22 + $0x570] sm:$0xff]
        %v7877 = vld [vmem:[#allocation22 + $0x578] sm:$0xff]
        %v7878 = vld [vmem:[#allocation22 + $0x580] sm:$0xff]
        %v7879 = vld [vmem:[#allocation22 + $0x588] sm:$0xff]
        %v7880 = vld [vmem:[#allocation22 + $0x590] sm:$0xff]
        %v7881 = vld [vmem:[#allocation22 + $0x598] sm:$0xff]
        %v7882 = vld [vmem:[#allocation22 + $0x5a0] sm:$0xff]
        %v7883 = vld [vmem:[#allocation22 + $0x5a8] sm:$0xff]
        %v7884 = vld [vmem:[#allocation22 + $0x5b0] sm:$0xff]
        %v7885 = vld [vmem:[#allocation22 + $0x5b8] sm:$0xff]
        %v7886 = vld [vmem:[#allocation22 + $0x5c0] sm:$0xff]
        %v7887 = vld [vmem:[#allocation22 + $0x5c8] sm:$0xff]
        %v7888 = vld [vmem:[#allocation22 + $0x5d0] sm:$0xff]
        %v7889 = vld [vmem:[#allocation22 + $0x5d8] sm:$0xff]
        %v7890 = vld [vmem:[#allocation22 + $0x5e0] sm:$0xff]
        %v7891 = vld [vmem:[#allocation22 + $0x5e8] sm:$0xff]
        %v7892 = vld [vmem:[#allocation22 + $0x5f0] sm:$0xff]
        %v7893 = vld [vmem:[#allocation22 + $0x5f8] sm:$0xff]
        %v7894 = vld [vmem:[#allocation22 + $0x600] sm:$0xff]
        %v7895 = vld [vmem:[#allocation22 + $0x608] sm:$0xff]
        %v7896 = vld [vmem:[#allocation22 + $0x610] sm:$0xff]
        %v7897 = vld [vmem:[#allocation22 + $0x618] sm:$0xff]
        %v7898 = vld [vmem:[#allocation22 + $0x620] sm:$0xff]
        %v7899 = vld [vmem:[#allocation22 + $0x628] sm:$0xff]
        %v7900 = vld [vmem:[#allocation22 + $0x630] sm:$0xff]
        %v7901 = vld [vmem:[#allocation22 + $0x638] sm:$0xff]
        %v7902 = vld [vmem:[#allocation22 + $0x640] sm:$0xff]
        %v7903 = vld [vmem:[#allocation22 + $0x648] sm:$0xff]
        %v7904 = vld [vmem:[#allocation22 + $0x650] sm:$0xff]
        %v7905 = vld [vmem:[#allocation22 + $0x658] sm:$0xff]
        %v7906 = vld [vmem:[#allocation22 + $0x660] sm:$0xff]
        %v7907 = vld [vmem:[#allocation22 + $0x668] sm:$0xff]
        %v7908 = vld [vmem:[#allocation22 + $0x670] sm:$0xff]
        %v7909 = vld [vmem:[#allocation22 + $0x678] sm:$0xff]
        %v7910 = vld [vmem:[#allocation22 + $0x680] sm:$0xff]
        %v7911 = vld [vmem:[#allocation22 + $0x688] sm:$0xff]
        %v7912 = vld [vmem:[#allocation22 + $0x690] sm:$0xff]
        %v7913 = vld [vmem:[#allocation22 + $0x698] sm:$0xff]
        %v7914 = vld [vmem:[#allocation22 + $0x6a0] sm:$0xff]
        %v7915 = vld [vmem:[#allocation22 + $0x6a8] sm:$0xff]
        %v7916 = vld [vmem:[#allocation22 + $0x6b0] sm:$0xff]
        %v7917 = vld [vmem:[#allocation22 + $0x6b8] sm:$0xff]
        %v7918 = vld [vmem:[#allocation22 + $0x6c0] sm:$0xff]
        %v7919 = vld [vmem:[#allocation22 + $0x6c8] sm:$0xff]
        %v7920 = vld [vmem:[#allocation22 + $0x6d0] sm:$0xff]
        %v7921 = vld [vmem:[#allocation22 + $0x6d8] sm:$0xff]
        %v7922 = vld [vmem:[#allocation22 + $0x6e0] sm:$0xff]
        %v7923 = vld [vmem:[#allocation22 + $0x6e8] sm:$0xff]
        %v7924 = vld [vmem:[#allocation22 + $0x6f0] sm:$0xff]
        %v7925 = vld [vmem:[#allocation22 + $0x6f8] sm:$0xff]
        %v7926 = vld [vmem:[#allocation22 + $0x700] sm:$0xff]
        %v7927 = vld [vmem:[#allocation22 + $0x708] sm:$0xff]
        %v7928 = vld [vmem:[#allocation22 + $0x710] sm:$0xff]
        %v7929 = vld [vmem:[#allocation22 + $0x718] sm:$0xff]
        %v7930 = vld [vmem:[#allocation22 + $0x720] sm:$0xff]
        %v7931 = vld [vmem:[#allocation22 + $0x728] sm:$0xff]
        %v7932 = vld [vmem:[#allocation22 + $0x730] sm:$0xff]
        %v7933 = vld [vmem:[#allocation22 + $0x738] sm:$0xff]
        %v7934 = vld [vmem:[#allocation22 + $0x740] sm:$0xff]
        %v7935 = vld [vmem:[#allocation22 + $0x748] sm:$0xff]
        %v7936 = vld [vmem:[#allocation22 + $0x750] sm:$0xff]
        %v7937 = vld [vmem:[#allocation22 + $0x758] sm:$0xff]
        %v7938 = vld [vmem:[#allocation22 + $0x760] sm:$0xff]
        %v7939 = vld [vmem:[#allocation22 + $0x768] sm:$0xff]
        %v7940 = vld [vmem:[#allocation22 + $0x770] sm:$0xff]
        %v7941 = vld [vmem:[#allocation22 + $0x778] sm:$0xff]
        %v7942 = vld [vmem:[#allocation22 + $0x780] sm:$0xff]
        %v7943 = vld [vmem:[#allocation22 + $0x788] sm:$0xff]
        %v7944 = vld [vmem:[#allocation22 + $0x790] sm:$0xff]
        %v7945 = vld [vmem:[#allocation22 + $0x798] sm:$0xff]
        %v7946 = vld [vmem:[#allocation22 + $0x7a0] sm:$0xff]
        %v7947 = vld [vmem:[#allocation22 + $0x7a8] sm:$0xff]
        %v7948 = vld [vmem:[#allocation22 + $0x7b0] sm:$0xff]
        %v7949 = vld [vmem:[#allocation22 + $0x7b8] sm:$0xff]
        %v7950 = vld [vmem:[#allocation22 + $0x7c0] sm:$0xff]
        %v7951 = vld [vmem:[#allocation22 + $0x7c8] sm:$0xff]
        %v7952 = vld [vmem:[#allocation22 + $0x7d0] sm:$0xff]
        %v7953 = vld [vmem:[#allocation22 + $0x7d8] sm:$0xff]
        %v7954 = vld [vmem:[#allocation22 + $0x7e0] sm:$0xff]
        %v7955 = vld [vmem:[#allocation22 + $0x7e8] sm:$0xff]
        %v7956 = vld [vmem:[#allocation22 + $0x7f0] sm:$0xff]
        %v7957 = vld [vmem:[#allocation22 + $0x7f8] sm:$0xff]
        %v7958 = vld [vmem:[#allocation22 + $0x800] sm:$0xff]
        %v7959 = vld [vmem:[#allocation22 + $0x808] sm:$0xff]
        %v7960 = vld [vmem:[#allocation22 + $0x810] sm:$0xff]
        %v7961 = vld [vmem:[#allocation22 + $0x818] sm:$0xff]
        %v7962 = vld [vmem:[#allocation22 + $0x820] sm:$0xff]
        %v7963 = vld [vmem:[#allocation22 + $0x828] sm:$0xff]
        %v7964 = vld [vmem:[#allocation22 + $0x830] sm:$0xff]
        %v7965 = vld [vmem:[#allocation22 + $0x838] sm:$0xff]
        %v7966 = vld [vmem:[#allocation22 + $0x840] sm:$0xff]
        %v7967 = vld [vmem:[#allocation22 + $0x848] sm:$0xff]
        %v7968 = vld [vmem:[#allocation22 + $0x850] sm:$0xff]
        %v7969 = vld [vmem:[#allocation22 + $0x858] sm:$0xff]
        %v7970 = vld [vmem:[#allocation22 + $0x860] sm:$0xff]
        %v7971 = vld [vmem:[#allocation22 + $0x868] sm:$0xff]
        %v7972 = vld [vmem:[#allocation22 + $0x870] sm:$0xff]
        %v7973 = vld [vmem:[#allocation22 + $0x878] sm:$0xff]
        %v7974 = vld [vmem:[#allocation22 + $0x880] sm:$0xff]
        %v7975 = vld [vmem:[#allocation22 + $0x888] sm:$0xff]
        %v7976 = vld [vmem:[#allocation22 + $0x890] sm:$0xff]
        %v7977 = vld [vmem:[#allocation22 + $0x898] sm:$0xff]
        %v7978 = vld [vmem:[#allocation22 + $0x8a0] sm:$0xff]
        %v7979 = vld [vmem:[#allocation22 + $0x8a8] sm:$0xff]
        %v7980 = vld [vmem:[#allocation22 + $0x8b0] sm:$0xff]
        %v7981 = vld [vmem:[#allocation22 + $0x8b8] sm:$0xff]
        %v7982 = vld [vmem:[#allocation22 + $0x8c0] sm:$0xff]
        %v7983 = vld [vmem:[#allocation22 + $0x8c8] sm:$0xff]
        %v7984 = vld [vmem:[#allocation22 + $0x8d0] sm:$0xff]
        %v7985 = vld [vmem:[#allocation22 + $0x8d8] sm:$0xff]
        %v7986 = vld [vmem:[#allocation22 + $0x8e0] sm:$0xff]
        %v7987 = vld [vmem:[#allocation22 + $0x8e8] sm:$0xff]
        %v7988 = vld [vmem:[#allocation22 + $0x8f0] sm:$0xff]
        %v7989 = vld [vmem:[#allocation22 + $0x8f8] sm:$0xff]
        %7990 = vmatpush.msra.mxu0 %v7717
        %7991 = vmatpush.msra.mxu0 %v7716
        %7992 = vmatpush.msra.mxu0 %v7715
        %7993 = vmatpush.msra.mxu0 %v7714
        %7994 = vmatpush.msra.mxu0 %v7713
        %7995 = vmatpush.msra.mxu0 %v7712
        %7996 = vmatpush.msra.mxu0 %v7711
        %7997 = vmatpush.msra.mxu0 %v7710
        %7998 = vmatpush.msra.mxu0 %v7709
        %7999 = vmatpush.msra.mxu0 %v7708
        %8000 = vmatpush.msra.mxu0 %v7707
        %8001 = vmatpush.msra.mxu0 %v7706
        %8002 = vmatpush.msra.mxu0 %v7705
        %8003 = vmatpush.msra.mxu0 %v7704
        %8004 = vmatpush.msra.mxu0 %v7703
        %8005 = vmatpush.msra.mxu0 %v7702
        %8006 = vmatmul.f32.gmra.mxu0 %v6500
        %v8007 = vpop.f32.mrf.mxu0
        %v8008 = vadd.f32 0.0, %v8007
        %8009 = vmatmul.f32.gmra.mxu0 %v6502
        %v8010 = vpop.f32.mrf.mxu0
        %v8011 = vadd.f32 0.0, %v8010
        %8012 = vmatmul.f32.gmra.mxu0 %v6504
        %v8013 = vpop.f32.mrf.mxu0
        %v8014 = vadd.f32 0.0, %v8013
        %8015 = vmatmul.f32.gmra.mxu0 %v6506
        %v8016 = vpop.f32.mrf.mxu0
        %v8017 = vadd.f32 0.0, %v8016
        %8018 = vmatmul.f32.gmra.mxu0 %v6508
        %v8019 = vpop.f32.mrf.mxu0
        %v8020 = vadd.f32 0.0, %v8019
        %8021 = vmatmul.f32.gmra.mxu0 %v6510
        %v8022 = vpop.f32.mrf.mxu0
        %v8023 = vadd.f32 0.0, %v8022
        %8024 = vmatmul.f32.gmra.mxu0 %v6512
        %v8025 = vpop.f32.mrf.mxu0
        %v8026 = vadd.f32 0.0, %v8025
        %8027 = vmatmul.f32.gmra.mxu0 %v6514
        %v8028 = vpop.f32.mrf.mxu0
        %v8029 = vadd.f32 0.0, %v8028
        %8030 = vmatmul.f32.gmra.mxu0 %v6516
        %v8031 = vpop.f32.mrf.mxu0
        %v8032 = vadd.f32 0.0, %v8031
        %8033 = vmatmul.f32.gmra.mxu0 %v6518
        %v8034 = vpop.f32.mrf.mxu0
        %v8035 = vadd.f32 0.0, %v8034
        %8036 = vmatmul.f32.gmra.mxu0 %v6520
        %v8037 = vpop.f32.mrf.mxu0
        %v8038 = vadd.f32 0.0, %v8037
        %8039 = vmatmul.f32.gmra.mxu0 %v6522
        %v8040 = vpop.f32.mrf.mxu0
        %v8041 = vadd.f32 0.0, %v8040
        %8042 = vmatmul.f32.gmra.mxu0 %v6524
        %v8043 = vpop.f32.mrf.mxu0
        %v8044 = vadd.f32 0.0, %v8043
        %8045 = vmatmul.f32.gmra.mxu0 %v6526
        %v8046 = vpop.f32.mrf.mxu0
        %v8047 = vadd.f32 0.0, %v8046
        %8048 = vmatmul.f32.gmra.mxu0 %v6528
        %v8049 = vpop.f32.mrf.mxu0
        %v8050 = vadd.f32 0.0, %v8049
        %8051 = vmatmul.f32.gmra.mxu0 %v6530
        %v8052 = vpop.f32.mrf.mxu0
        %v8053 = vadd.f32 0.0, %v8052
        %8054 = vdwg.mxu0
        %8055 = vmatpush.msra.mxu0 %v7733
        %8056 = vmatpush.msra.mxu0 %v7732
        %8057 = vmatpush.msra.mxu0 %v7731
        %8058 = vmatpush.msra.mxu0 %v7730
        %8059 = vmatpush.msra.mxu0 %v7729
        %8060 = vmatpush.msra.mxu0 %v7728
        %8061 = vmatpush.msra.mxu0 %v7727
        %8062 = vmatpush.msra.mxu0 %v7726
        %8063 = vmatpush.msra.mxu0 %v7725
        %8064 = vmatpush.msra.mxu0 %v7724
        %8065 = vmatpush.msra.mxu0 %v7723
        %8066 = vmatpush.msra.mxu0 %v7722
        %8067 = vmatpush.msra.mxu0 %v7721
        %8068 = vmatpush.msra.mxu0 %v7720
        %8069 = vmatpush.msra.mxu0 %v7719
        %8070 = vmatpush.msra.mxu0 %v7718
        %8071 = vmatmul.f32.gmra.mxu0 %v6501
        %v8072 = vpop.f32.mrf.mxu0
        %v8073 = vadd.f32 %v8008, %v8072
        %8074 = vmatmul.f32.gmra.mxu0 %v6503
        %v8075 = vpop.f32.mrf.mxu0
        %v8076 = vadd.f32 %v8011, %v8075
        %8077 = vmatmul.f32.gmra.mxu0 %v6505
        %v8078 = vpop.f32.mrf.mxu0
        %v8079 = vadd.f32 %v8014, %v8078
        %8080 = vmatmul.f32.gmra.mxu0 %v6507
        %v8081 = vpop.f32.mrf.mxu0
        %v8082 = vadd.f32 %v8017, %v8081
        %8083 = vmatmul.f32.gmra.mxu0 %v6509
        %v8084 = vpop.f32.mrf.mxu0
        %v8085 = vadd.f32 %v8020, %v8084
        %8086 = vmatmul.f32.gmra.mxu0 %v6511
        %v8087 = vpop.f32.mrf.mxu0
        %v8088 = vadd.f32 %v8023, %v8087
        %8089 = vmatmul.f32.gmra.mxu0 %v6513
        %v8090 = vpop.f32.mrf.mxu0
        %v8091 = vadd.f32 %v8026, %v8090
        %8092 = vmatmul.f32.gmra.mxu0 %v6515
        %v8093 = vpop.f32.mrf.mxu0
        %v8094 = vadd.f32 %v8029, %v8093
        %8095 = vmatmul.f32.gmra.mxu0 %v6517
        %v8096 = vpop.f32.mrf.mxu0
        %v8097 = vadd.f32 %v8032, %v8096
        %8098 = vmatmul.f32.gmra.mxu0 %v6519
        %v8099 = vpop.f32.mrf.mxu0
        %v8100 = vadd.f32 %v8035, %v8099
        %8101 = vmatmul.f32.gmra.mxu0 %v6521
        %v8102 = vpop.f32.mrf.mxu0
        %v8103 = vadd.f32 %v8038, %v8102
        %8104 = vmatmul.f32.gmra.mxu0 %v6523
        %v8105 = vpop.f32.mrf.mxu0
        %v8106 = vadd.f32 %v8041, %v8105
        %8107 = vmatmul.f32.gmra.mxu0 %v6525
        %v8108 = vpop.f32.mrf.mxu0
        %v8109 = vadd.f32 %v8044, %v8108
        %8110 = vmatmul.f32.gmra.mxu0 %v6527
        %v8111 = vpop.f32.mrf.mxu0
        %v8112 = vadd.f32 %v8047, %v8111
        %8113 = vmatmul.f32.gmra.mxu0 %v6529
        %v8114 = vpop.f32.mrf.mxu0
        %v8115 = vadd.f32 %v8050, %v8114
        %8116 = vmatmul.f32.gmra.mxu0 %v6531
        %v8117 = vpop.f32.mrf.mxu0
        %v8118 = vadd.f32 %v8053, %v8117
        %8119 = vdwg.mxu0
        %8120 = vmatpush.msra.mxu0 %v7749
        %8121 = vmatpush.msra.mxu0 %v7748
        %8122 = vmatpush.msra.mxu0 %v7747
        %8123 = vmatpush.msra.mxu0 %v7746
        %8124 = vmatpush.msra.mxu0 %v7745
        %8125 = vmatpush.msra.mxu0 %v7744
        %8126 = vmatpush.msra.mxu0 %v7743
        %8127 = vmatpush.msra.mxu0 %v7742
        %8128 = vmatpush.msra.mxu0 %v7741
        %8129 = vmatpush.msra.mxu0 %v7740
        %8130 = vmatpush.msra.mxu0 %v7739
        %8131 = vmatpush.msra.mxu0 %v7738
        %8132 = vmatpush.msra.mxu0 %v7737
        %8133 = vmatpush.msra.mxu0 %v7736
        %8134 = vmatpush.msra.mxu0 %v7735
        %8135 = vmatpush.msra.mxu0 %v7734
        %8136 = vmatmul.f32.gmra.mxu0 %v6614
        %v8137 = vpop.f32.mrf.mxu0
        %v8138 = vadd.f32 %v8073, %v8137
        %8139 = vmatmul.f32.gmra.mxu0 %v6619
        %v8140 = vpop.f32.mrf.mxu0
        %v8141 = vadd.f32 %v8076, %v8140
        %8142 = vmatmul.f32.gmra.mxu0 %v6624
        %v8143 = vpop.f32.mrf.mxu0
        %v8144 = vadd.f32 %v8079, %v8143
        %8145 = vmatmul.f32.gmra.mxu0 %v6629
        %v8146 = vpop.f32.mrf.mxu0
        %v8147 = vadd.f32 %v8082, %v8146
        %8148 = vmatmul.f32.gmra.mxu0 %v6634
        %v8149 = vpop.f32.mrf.mxu0
        %v8150 = vadd.f32 %v8085, %v8149
        %8151 = vmatmul.f32.gmra.mxu0 %v6639
        %v8152 = vpop.f32.mrf.mxu0
        %v8153 = vadd.f32 %v8088, %v8152
        %8154 = vmatmul.f32.gmra.mxu0 %v6644
        %v8155 = vpop.f32.mrf.mxu0
        %v8156 = vadd.f32 %v8091, %v8155
        %8157 = vmatmul.f32.gmra.mxu0 %v6649
        %v8158 = vpop.f32.mrf.mxu0
        %v8159 = vadd.f32 %v8094, %v8158
        %8160 = vmatmul.f32.gmra.mxu0 %v6654
        %v8161 = vpop.f32.mrf.mxu0
        %v8162 = vadd.f32 %v8097, %v8161
        %8163 = vmatmul.f32.gmra.mxu0 %v6659
        %v8164 = vpop.f32.mrf.mxu0
        %v8165 = vadd.f32 %v8100, %v8164
        %8166 = vmatmul.f32.gmra.mxu0 %v6664
        %v8167 = vpop.f32.mrf.mxu0
        %v8168 = vadd.f32 %v8103, %v8167
        %8169 = vmatmul.f32.gmra.mxu0 %v6669
        %v8170 = vpop.f32.mrf.mxu0
        %v8171 = vadd.f32 %v8106, %v8170
        %8172 = vmatmul.f32.gmra.mxu0 %v6674
        %v8173 = vpop.f32.mrf.mxu0
        %v8174 = vadd.f32 %v8109, %v8173
        %8175 = vmatmul.f32.gmra.mxu0 %v6679
        %v8176 = vpop.f32.mrf.mxu0
        %v8177 = vadd.f32 %v8112, %v8176
        %8178 = vmatmul.f32.gmra.mxu0 %v6684
        %v8179 = vpop.f32.mrf.mxu0
        %v8180 = vadd.f32 %v8115, %v8179
        %8181 = vmatmul.f32.gmra.mxu0 %v6689
        %v8182 = vpop.f32.mrf.mxu0
        %v8183 = vadd.f32 %v8118, %v8182
        %8184 = vdwg.mxu0
        %8185 = vmatpush.msra.mxu0 %v7765
        %8186 = vmatpush.msra.mxu0 %v7764
        %8187 = vmatpush.msra.mxu0 %v7763
        %8188 = vmatpush.msra.mxu0 %v7762
        %8189 = vmatpush.msra.mxu0 %v7761
        %8190 = vmatpush.msra.mxu0 %v7760
        %8191 = vmatpush.msra.mxu0 %v7759
        %8192 = vmatpush.msra.mxu0 %v7758
        %8193 = vmatpush.msra.mxu0 %v7757
        %8194 = vmatpush.msra.mxu0 %v7756
        %8195 = vmatpush.msra.mxu0 %v7755
        %8196 = vmatpush.msra.mxu0 %v7754
        %8197 = vmatpush.msra.mxu0 %v7753
        %8198 = vmatpush.msra.mxu0 %v7752
        %8199 = vmatpush.msra.mxu0 %v7751
        %8200 = vmatpush.msra.mxu0 %v7750
        %8201 = vmatmul.f32.gmra.mxu0 %v6617
        %v8202 = vpop.f32.mrf.mxu0
        %v8203 = vadd.f32 %v8138, %v8202
        %8204 = vmatmul.f32.gmra.mxu0 %v6621
        %v8205 = vpop.f32.mrf.mxu0
        %v8206 = vadd.f32 %v8141, %v8205
        %8207 = vmatmul.f32.gmra.mxu0 %v6627
        %v8208 = vpop.f32.mrf.mxu0
        %v8209 = vadd.f32 %v8144, %v8208
        %8210 = vmatmul.f32.gmra.mxu0 %v6631
        %v8211 = vpop.f32.mrf.mxu0
        %v8212 = vadd.f32 %v8147, %v8211
        %8213 = vmatmul.f32.gmra.mxu0 %v6637
        %v8214 = vpop.f32.mrf.mxu0
        %v8215 = vadd.f32 %v8150, %v8214
        %8216 = vmatmul.f32.gmra.mxu0 %v6641
        %v8217 = vpop.f32.mrf.mxu0
        %v8218 = vadd.f32 %v8153, %v8217
        %8219 = vmatmul.f32.gmra.mxu0 %v6647
        %v8220 = vpop.f32.mrf.mxu0
        %v8221 = vadd.f32 %v8156, %v8220
        %8222 = vmatmul.f32.gmra.mxu0 %v6651
        %v8223 = vpop.f32.mrf.mxu0
        %v8224 = vadd.f32 %v8159, %v8223
        %8225 = vmatmul.f32.gmra.mxu0 %v6657
        %v8226 = vpop.f32.mrf.mxu0
        %v8227 = vadd.f32 %v8162, %v8226
        %8228 = vmatmul.f32.gmra.mxu0 %v6661
        %v8229 = vpop.f32.mrf.mxu0
        %v8230 = vadd.f32 %v8165, %v8229
        %8231 = vmatmul.f32.gmra.mxu0 %v6667
        %v8232 = vpop.f32.mrf.mxu0
        %v8233 = vadd.f32 %v8168, %v8232
        %8234 = vmatmul.f32.gmra.mxu0 %v6671
        %v8235 = vpop.f32.mrf.mxu0
        %v8236 = vadd.f32 %v8171, %v8235
        %8237 = vmatmul.f32.gmra.mxu0 %v6677
        %v8238 = vpop.f32.mrf.mxu0
        %v8239 = vadd.f32 %v8174, %v8238
        %8240 = vmatmul.f32.gmra.mxu0 %v6681
        %v8241 = vpop.f32.mrf.mxu0
        %v8242 = vadd.f32 %v8177, %v8241
        %8243 = vmatmul.f32.gmra.mxu0 %v6687
        %v8244 = vpop.f32.mrf.mxu0
        %v8245 = vadd.f32 %v8180, %v8244
        %8246 = vmatmul.f32.gmra.mxu0 %v6691
        %v8247 = vpop.f32.mrf.mxu0
        %v8248 = vadd.f32 %v8183, %v8247
        %8249 = vdwg.mxu0
        %8250 = vmatpush.msra.mxu0 %v7781
        %8251 = vmatpush.msra.mxu0 %v7780
        %8252 = vmatpush.msra.mxu0 %v7779
        %8253 = vmatpush.msra.mxu0 %v7778
        %8254 = vmatpush.msra.mxu0 %v7777
        %8255 = vmatpush.msra.mxu0 %v7776
        %8256 = vmatpush.msra.mxu0 %v7775
        %8257 = vmatpush.msra.mxu0 %v7774
        %8258 = vmatpush.msra.mxu0 %v7773
        %8259 = vmatpush.msra.mxu0 %v7772
        %8260 = vmatpush.msra.mxu0 %v7771
        %8261 = vmatpush.msra.mxu0 %v7770
        %8262 = vmatpush.msra.mxu0 %v7769
        %8263 = vmatpush.msra.mxu0 %v7768
        %8264 = vmatpush.msra.mxu0 %v7767
        %8265 = vmatpush.msra.mxu0 %v7766
        %8266 = vmatmul.f32.gmra.mxu0 %v6790
        %v8267 = vpop.f32.mrf.mxu0
        %v8268 = vadd.f32 %v8203, %v8267
        %8269 = vmatmul.f32.gmra.mxu0 %v6795
        %v8270 = vpop.f32.mrf.mxu0
        %v8271 = vadd.f32 %v8206, %v8270
        %8272 = vmatmul.f32.gmra.mxu0 %v6800
        %v8273 = vpop.f32.mrf.mxu0
        %v8274 = vadd.f32 %v8209, %v8273
        %8275 = vmatmul.f32.gmra.mxu0 %v6805
        %v8276 = vpop.f32.mrf.mxu0
        %v8277 = vadd.f32 %v8212, %v8276
        %8278 = vmatmul.f32.gmra.mxu0 %v6810
        %v8279 = vpop.f32.mrf.mxu0
        %v8280 = vadd.f32 %v8215, %v8279
        %8281 = vmatmul.f32.gmra.mxu0 %v6815
        %v8282 = vpop.f32.mrf.mxu0
        %v8283 = vadd.f32 %v8218, %v8282
        %8284 = vmatmul.f32.gmra.mxu0 %v6820
        %v8285 = vpop.f32.mrf.mxu0
        %v8286 = vadd.f32 %v8221, %v8285
        %8287 = vmatmul.f32.gmra.mxu0 %v6825
        %v8288 = vpop.f32.mrf.mxu0
        %v8289 = vadd.f32 %v8224, %v8288
        %8290 = vmatmul.f32.gmra.mxu0 %v6830
        %v8291 = vpop.f32.mrf.mxu0
        %v8292 = vadd.f32 %v8227, %v8291
        %8293 = vmatmul.f32.gmra.mxu0 %v6835
        %v8294 = vpop.f32.mrf.mxu0
        %v8295 = vadd.f32 %v8230, %v8294
        %8296 = vmatmul.f32.gmra.mxu0 %v6840
        %v8297 = vpop.f32.mrf.mxu0
        %v8298 = vadd.f32 %v8233, %v8297
        %8299 = vmatmul.f32.gmra.mxu0 %v6845
        %v8300 = vpop.f32.mrf.mxu0
        %v8301 = vadd.f32 %v8236, %v8300
        %8302 = vmatmul.f32.gmra.mxu0 %v6850
        %v8303 = vpop.f32.mrf.mxu0
        %v8304 = vadd.f32 %v8239, %v8303
        %8305 = vmatmul.f32.gmra.mxu0 %v6855
        %v8306 = vpop.f32.mrf.mxu0
        %v8307 = vadd.f32 %v8242, %v8306
        %8308 = vmatmul.f32.gmra.mxu0 %v6860
        %v8309 = vpop.f32.mrf.mxu0
        %v8310 = vadd.f32 %v8245, %v8309
        %8311 = vmatmul.f32.gmra.mxu0 %v6865
        %v8312 = vpop.f32.mrf.mxu0
        %v8313 = vadd.f32 %v8248, %v8312
        %8314 = vdwg.mxu0
        %8315 = vmatpush.msra.mxu0 %v7797
        %8316 = vmatpush.msra.mxu0 %v7796
        %8317 = vmatpush.msra.mxu0 %v7795
        %8318 = vmatpush.msra.mxu0 %v7794
        %8319 = vmatpush.msra.mxu0 %v7793
        %8320 = vmatpush.msra.mxu0 %v7792
        %8321 = vmatpush.msra.mxu0 %v7791
        %8322 = vmatpush.msra.mxu0 %v7790
        %8323 = vmatpush.msra.mxu0 %v7789
        %8324 = vmatpush.msra.mxu0 %v7788
        %8325 = vmatpush.msra.mxu0 %v7787
        %8326 = vmatpush.msra.mxu0 %v7786
        %8327 = vmatpush.msra.mxu0 %v7785
        %8328 = vmatpush.msra.mxu0 %v7784
        %8329 = vmatpush.msra.mxu0 %v7783
        %8330 = vmatpush.msra.mxu0 %v7782
        %8331 = vmatmul.f32.gmra.mxu0 %v6793
        %v8332 = vpop.f32.mrf.mxu0
        %v8333 = vadd.f32 %v8268, %v8332
        %8334 = vmatmul.f32.gmra.mxu0 %v6797
        %v8335 = vpop.f32.mrf.mxu0
        %v8336 = vadd.f32 %v8271, %v8335
        %8337 = vmatmul.f32.gmra.mxu0 %v6803
        %v8338 = vpop.f32.mrf.mxu0
        %v8339 = vadd.f32 %v8274, %v8338
        %8340 = vmatmul.f32.gmra.mxu0 %v6807
        %v8341 = vpop.f32.mrf.mxu0
        %v8342 = vadd.f32 %v8277, %v8341
        %8343 = vmatmul.f32.gmra.mxu0 %v6813
        %v8344 = vpop.f32.mrf.mxu0
        %v8345 = vadd.f32 %v8280, %v8344
        %8346 = vmatmul.f32.gmra.mxu0 %v6817
        %v8347 = vpop.f32.mrf.mxu0
        %v8348 = vadd.f32 %v8283, %v8347
        %8349 = vmatmul.f32.gmra.mxu0 %v6823
        %v8350 = vpop.f32.mrf.mxu0
        %v8351 = vadd.f32 %v8286, %v8350
        %8352 = vmatmul.f32.gmra.mxu0 %v6827
        %v8353 = vpop.f32.mrf.mxu0
        %v8354 = vadd.f32 %v8289, %v8353
        %8355 = vmatmul.f32.gmra.mxu0 %v6833
        %v8356 = vpop.f32.mrf.mxu0
        %v8357 = vadd.f32 %v8292, %v8356
        %8358 = vmatmul.f32.gmra.mxu0 %v6837
        %v8359 = vpop.f32.mrf.mxu0
        %v8360 = vadd.f32 %v8295, %v8359
        %8361 = vmatmul.f32.gmra.mxu0 %v6843
        %v8362 = vpop.f32.mrf.mxu0
        %v8363 = vadd.f32 %v8298, %v8362
        %8364 = vmatmul.f32.gmra.mxu0 %v6847
        %v8365 = vpop.f32.mrf.mxu0
        %v8366 = vadd.f32 %v8301, %v8365
        %8367 = vmatmul.f32.gmra.mxu0 %v6853
        %v8368 = vpop.f32.mrf.mxu0
        %v8369 = vadd.f32 %v8304, %v8368
        %8370 = vmatmul.f32.gmra.mxu0 %v6857
        %v8371 = vpop.f32.mrf.mxu0
        %v8372 = vadd.f32 %v8307, %v8371
        %8373 = vmatmul.f32.gmra.mxu0 %v6863
        %v8374 = vpop.f32.mrf.mxu0
        %v8375 = vadd.f32 %v8310, %v8374
        %8376 = vmatmul.f32.gmra.mxu0 %v6867
        %v8377 = vpop.f32.mrf.mxu0
        %v8378 = vadd.f32 %v8313, %v8377
        %8379 = vdwg.mxu0
        %8380 = vmatpush.msra.mxu0 %v7813
        %8381 = vmatpush.msra.mxu0 %v7812
        %8382 = vmatpush.msra.mxu0 %v7811
        %8383 = vmatpush.msra.mxu0 %v7810
        %8384 = vmatpush.msra.mxu0 %v7809
        %8385 = vmatpush.msra.mxu0 %v7808
        %8386 = vmatpush.msra.mxu0 %v7807
        %8387 = vmatpush.msra.mxu0 %v7806
        %8388 = vmatpush.msra.mxu0 %v7805
        %8389 = vmatpush.msra.mxu0 %v7804
        %8390 = vmatpush.msra.mxu0 %v7803
        %8391 = vmatpush.msra.mxu0 %v7802
        %8392 = vmatpush.msra.mxu0 %v7801
        %8393 = vmatpush.msra.mxu0 %v7800
        %8394 = vmatpush.msra.mxu0 %v7799
        %8395 = vmatpush.msra.mxu0 %v7798
        %8396 = vmatmul.f32.gmra.mxu0 %v6901
        %v8397 = vpop.f32.mrf.mxu0
        %v8398 = vadd.f32 %v8333, %v8397
        %8399 = vmatmul.f32.gmra.mxu0 %v6903
        %v8400 = vpop.f32.mrf.mxu0
        %v8401 = vadd.f32 %v8336, %v8400
        %8402 = vmatmul.f32.gmra.mxu0 %v6905
        %v8403 = vpop.f32.mrf.mxu0
        %v8404 = vadd.f32 %v8339, %v8403
        %8405 = vmatmul.f32.gmra.mxu0 %v6907
        %v8406 = vpop.f32.mrf.mxu0
        %v8407 = vadd.f32 %v8342, %v8406
        %8408 = vmatmul.f32.gmra.mxu0 %v6909
        %v8409 = vpop.f32.mrf.mxu0
        %v8410 = vadd.f32 %v8345, %v8409
        %8411 = vmatmul.f32.gmra.mxu0 %v6911
        %v8412 = vpop.f32.mrf.mxu0
        %v8413 = vadd.f32 %v8348, %v8412
        %8414 = vmatmul.f32.gmra.mxu0 %v6913
        %v8415 = vpop.f32.mrf.mxu0
        %v8416 = vadd.f32 %v8351, %v8415
        %8417 = vmatmul.f32.gmra.mxu0 %v6915
        %v8418 = vpop.f32.mrf.mxu0
        %v8419 = vadd.f32 %v8354, %v8418
        %8420 = vmatmul.f32.gmra.mxu0 %v6917
        %v8421 = vpop.f32.mrf.mxu0
        %v8422 = vadd.f32 %v8357, %v8421
        %8423 = vmatmul.f32.gmra.mxu0 %v6919
        %v8424 = vpop.f32.mrf.mxu0
        %v8425 = vadd.f32 %v8360, %v8424
        %8426 = vmatmul.f32.gmra.mxu0 %v6921
        %v8427 = vpop.f32.mrf.mxu0
        %v8428 = vadd.f32 %v8363, %v8427
        %8429 = vmatmul.f32.gmra.mxu0 %v6923
        %v8430 = vpop.f32.mrf.mxu0
        %v8431 = vadd.f32 %v8366, %v8430
        %8432 = vmatmul.f32.gmra.mxu0 %v6925
        %v8433 = vpop.f32.mrf.mxu0
        %v8434 = vadd.f32 %v8369, %v8433
        %8435 = vmatmul.f32.gmra.mxu0 %v6927
        %v8436 = vpop.f32.mrf.mxu0
        %v8437 = vadd.f32 %v8372, %v8436
        %8438 = vmatmul.f32.gmra.mxu0 %v6929
        %v8439 = vpop.f32.mrf.mxu0
        %v8440 = vadd.f32 %v8375, %v8439
        %8441 = vmatmul.f32.gmra.mxu0 %v6931
        %v8442 = vpop.f32.mrf.mxu0
        %v8443 = vadd.f32 %v8378, %v8442
        %8444 = vdwg.mxu0
        %8445 = vmatpush.msra.mxu0 %v7829
        %8446 = vmatpush.msra.mxu0 %v7828
        %8447 = vmatpush.msra.mxu0 %v7827
        %8448 = vmatpush.msra.mxu0 %v7826
        %8449 = vmatpush.msra.mxu0 %v7825
        %8450 = vmatpush.msra.mxu0 %v7824
        %8451 = vmatpush.msra.mxu0 %v7823
        %8452 = vmatpush.msra.mxu0 %v7822
        %8453 = vmatpush.msra.mxu0 %v7821
        %8454 = vmatpush.msra.mxu0 %v7820
        %8455 = vmatpush.msra.mxu0 %v7819
        %8456 = vmatpush.msra.mxu0 %v7818
        %8457 = vmatpush.msra.mxu0 %v7817
        %8458 = vmatpush.msra.mxu0 %v7816
        %8459 = vmatpush.msra.mxu0 %v7815
        %8460 = vmatpush.msra.mxu0 %v7814
        %8461 = vmatmul.f32.gmra.mxu0 %v6902
        %v8462 = vpop.f32.mrf.mxu0
        %v8463 = vadd.f32 %v8398, %v8462
        %8464 = vmatmul.f32.gmra.mxu0 %v6904
        %v8465 = vpop.f32.mrf.mxu0
        %v8466 = vadd.f32 %v8401, %v8465
        %8467 = vmatmul.f32.gmra.mxu0 %v6906
        %v8468 = vpop.f32.mrf.mxu0
        %v8469 = vadd.f32 %v8404, %v8468
        %8470 = vmatmul.f32.gmra.mxu0 %v6908
        %v8471 = vpop.f32.mrf.mxu0
        %v8472 = vadd.f32 %v8407, %v8471
        %8473 = vmatmul.f32.gmra.mxu0 %v6910
        %v8474 = vpop.f32.mrf.mxu0
        %v8475 = vadd.f32 %v8410, %v8474
        %8476 = vmatmul.f32.gmra.mxu0 %v6912
        %v8477 = vpop.f32.mrf.mxu0
        %v8478 = vadd.f32 %v8413, %v8477
        %8479 = vmatmul.f32.gmra.mxu0 %v6914
        %v8480 = vpop.f32.mrf.mxu0
        %v8481 = vadd.f32 %v8416, %v8480
        %8482 = vmatmul.f32.gmra.mxu0 %v6916
        %v8483 = vpop.f32.mrf.mxu0
        %v8484 = vadd.f32 %v8419, %v8483
        %8485 = vmatmul.f32.gmra.mxu0 %v6918
        %v8486 = vpop.f32.mrf.mxu0
        %v8487 = vadd.f32 %v8422, %v8486
        %8488 = vmatmul.f32.gmra.mxu0 %v6920
        %v8489 = vpop.f32.mrf.mxu0
        %v8490 = vadd.f32 %v8425, %v8489
        %8491 = vmatmul.f32.gmra.mxu0 %v6922
        %v8492 = vpop.f32.mrf.mxu0
        %v8493 = vadd.f32 %v8428, %v8492
        %8494 = vmatmul.f32.gmra.mxu0 %v6924
        %v8495 = vpop.f32.mrf.mxu0
        %v8496 = vadd.f32 %v8431, %v8495
        %8497 = vmatmul.f32.gmra.mxu0 %v6926
        %v8498 = vpop.f32.mrf.mxu0
        %v8499 = vadd.f32 %v8434, %v8498
        %8500 = vmatmul.f32.gmra.mxu0 %v6928
        %v8501 = vpop.f32.mrf.mxu0
        %v8502 = vadd.f32 %v8437, %v8501
        %8503 = vmatmul.f32.gmra.mxu0 %v6930
        %v8504 = vpop.f32.mrf.mxu0
        %v8505 = vadd.f32 %v8440, %v8504
        %8506 = vmatmul.f32.gmra.mxu0 %v6932
        %v8507 = vpop.f32.mrf.mxu0
        %v8508 = vadd.f32 %v8443, %v8507
        %8509 = vdwg.mxu0
        %8510 = vmatpush.msra.mxu0 %v7845
        %8511 = vmatpush.msra.mxu0 %v7844
        %8512 = vmatpush.msra.mxu0 %v7843
        %8513 = vmatpush.msra.mxu0 %v7842
        %8514 = vmatpush.msra.mxu0 %v7841
        %8515 = vmatpush.msra.mxu0 %v7840
        %8516 = vmatpush.msra.mxu0 %v7839
        %8517 = vmatpush.msra.mxu0 %v7838
        %8518 = vmatpush.msra.mxu0 %v7837
        %8519 = vmatpush.msra.mxu0 %v7836
        %8520 = vmatpush.msra.mxu0 %v7835
        %8521 = vmatpush.msra.mxu0 %v7834
        %8522 = vmatpush.msra.mxu0 %v7833
        %8523 = vmatpush.msra.mxu0 %v7832
        %8524 = vmatpush.msra.mxu0 %v7831
        %8525 = vmatpush.msra.mxu0 %v7830
        %8526 = vmatmul.f32.gmra.mxu0 %v7015
        %v8527 = vpop.f32.mrf.mxu0
        %v8528 = vadd.f32 %v8463, %v8527
        %8529 = vmatmul.f32.gmra.mxu0 %v7020
        %v8530 = vpop.f32.mrf.mxu0
        %v8531 = vadd.f32 %v8466, %v8530
        %8532 = vmatmul.f32.gmra.mxu0 %v7025
        %v8533 = vpop.f32.mrf.mxu0
        %v8534 = vadd.f32 %v8469, %v8533
        %8535 = vmatmul.f32.gmra.mxu0 %v7030
        %v8536 = vpop.f32.mrf.mxu0
        %v8537 = vadd.f32 %v8472, %v8536
        %8538 = vmatmul.f32.gmra.mxu0 %v7035
        %v8539 = vpop.f32.mrf.mxu0
        %v8540 = vadd.f32 %v8475, %v8539
        %8541 = vmatmul.f32.gmra.mxu0 %v7040
        %v8542 = vpop.f32.mrf.mxu0
        %v8543 = vadd.f32 %v8478, %v8542
        %8544 = vmatmul.f32.gmra.mxu0 %v7045
        %v8545 = vpop.f32.mrf.mxu0
        %v8546 = vadd.f32 %v8481, %v8545
        %8547 = vmatmul.f32.gmra.mxu0 %v7050
        %v8548 = vpop.f32.mrf.mxu0
        %v8549 = vadd.f32 %v8484, %v8548
        %8550 = vmatmul.f32.gmra.mxu0 %v7055
        %v8551 = vpop.f32.mrf.mxu0
        %v8552 = vadd.f32 %v8487, %v8551
        %8553 = vmatmul.f32.gmra.mxu0 %v7060
        %v8554 = vpop.f32.mrf.mxu0
        %v8555 = vadd.f32 %v8490, %v8554
        %8556 = vmatmul.f32.gmra.mxu0 %v7065
        %v8557 = vpop.f32.mrf.mxu0
        %v8558 = vadd.f32 %v8493, %v8557
        %8559 = vmatmul.f32.gmra.mxu0 %v7070
        %v8560 = vpop.f32.mrf.mxu0
        %v8561 = vadd.f32 %v8496, %v8560
        %8562 = vmatmul.f32.gmra.mxu0 %v7075
        %v8563 = vpop.f32.mrf.mxu0
        %v8564 = vadd.f32 %v8499, %v8563
        %8565 = vmatmul.f32.gmra.mxu0 %v7080
        %v8566 = vpop.f32.mrf.mxu0
        %v8567 = vadd.f32 %v8502, %v8566
        %8568 = vmatmul.f32.gmra.mxu0 %v7085
        %v8569 = vpop.f32.mrf.mxu0
        %v8570 = vadd.f32 %v8505, %v8569
        %8571 = vmatmul.f32.gmra.mxu0 %v7090
        %v8572 = vpop.f32.mrf.mxu0
        %v8573 = vadd.f32 %v8508, %v8572
        %8574 = vdwg.mxu0
        %8575 = vmatpush.msra.mxu0 %v7861
        %8576 = vmatpush.msra.mxu0 %v7860
        %8577 = vmatpush.msra.mxu0 %v7859
        %8578 = vmatpush.msra.mxu0 %v7858
        %8579 = vmatpush.msra.mxu0 %v7857
        %8580 = vmatpush.msra.mxu0 %v7856
        %8581 = vmatpush.msra.mxu0 %v7855
        %8582 = vmatpush.msra.mxu0 %v7854
        %8583 = vmatpush.msra.mxu0 %v7853
        %8584 = vmatpush.msra.mxu0 %v7852
        %8585 = vmatpush.msra.mxu0 %v7851
        %8586 = vmatpush.msra.mxu0 %v7850
        %8587 = vmatpush.msra.mxu0 %v7849
        %8588 = vmatpush.msra.mxu0 %v7848
        %8589 = vmatpush.msra.mxu0 %v7847
        %8590 = vmatpush.msra.mxu0 %v7846
        %8591 = vmatmul.f32.gmra.mxu0 %v7018
        %v8592 = vpop.f32.mrf.mxu0
        %v8593 = vadd.f32 %v8528, %v8592
        %8594 = vmatmul.f32.gmra.mxu0 %v7022
        %v8595 = vpop.f32.mrf.mxu0
        %v8596 = vadd.f32 %v8531, %v8595
        %8597 = vmatmul.f32.gmra.mxu0 %v7028
        %v8598 = vpop.f32.mrf.mxu0
        %v8599 = vadd.f32 %v8534, %v8598
        %8600 = vmatmul.f32.gmra.mxu0 %v7032
        %v8601 = vpop.f32.mrf.mxu0
        %v8602 = vadd.f32 %v8537, %v8601
        %8603 = vmatmul.f32.gmra.mxu0 %v7038
        %v8604 = vpop.f32.mrf.mxu0
        %v8605 = vadd.f32 %v8540, %v8604
        %8606 = vmatmul.f32.gmra.mxu0 %v7042
        %v8607 = vpop.f32.mrf.mxu0
        %v8608 = vadd.f32 %v8543, %v8607
        %8609 = vmatmul.f32.gmra.mxu0 %v7048
        %v8610 = vpop.f32.mrf.mxu0
        %v8611 = vadd.f32 %v8546, %v8610
        %8612 = vmatmul.f32.gmra.mxu0 %v7052
        %v8613 = vpop.f32.mrf.mxu0
        %v8614 = vadd.f32 %v8549, %v8613
        %8615 = vmatmul.f32.gmra.mxu0 %v7058
        %v8616 = vpop.f32.mrf.mxu0
        %v8617 = vadd.f32 %v8552, %v8616
        %8618 = vmatmul.f32.gmra.mxu0 %v7062
        %v8619 = vpop.f32.mrf.mxu0
        %v8620 = vadd.f32 %v8555, %v8619
        %8621 = vmatmul.f32.gmra.mxu0 %v7068
        %v8622 = vpop.f32.mrf.mxu0
        %v8623 = vadd.f32 %v8558, %v8622
        %8624 = vmatmul.f32.gmra.mxu0 %v7072
        %v8625 = vpop.f32.mrf.mxu0
        %v8626 = vadd.f32 %v8561, %v8625
        %8627 = vmatmul.f32.gmra.mxu0 %v7078
        %v8628 = vpop.f32.mrf.mxu0
        %v8629 = vadd.f32 %v8564, %v8628
        %8630 = vmatmul.f32.gmra.mxu0 %v7082
        %v8631 = vpop.f32.mrf.mxu0
        %v8632 = vadd.f32 %v8567, %v8631
        %8633 = vmatmul.f32.gmra.mxu0 %v7088
        %v8634 = vpop.f32.mrf.mxu0
        %v8635 = vadd.f32 %v8570, %v8634
        %8636 = vmatmul.f32.gmra.mxu0 %v7092
        %v8637 = vpop.f32.mrf.mxu0
        %v8638 = vadd.f32 %v8573, %v8637
        %8639 = vdwg.mxu0
        %8640 = vmatpush.msra.mxu0 %v7877
        %8641 = vmatpush.msra.mxu0 %v7876
        %8642 = vmatpush.msra.mxu0 %v7875
        %8643 = vmatpush.msra.mxu0 %v7874
        %8644 = vmatpush.msra.mxu0 %v7873
        %8645 = vmatpush.msra.mxu0 %v7872
        %8646 = vmatpush.msra.mxu0 %v7871
        %8647 = vmatpush.msra.mxu0 %v7870
        %8648 = vmatpush.msra.mxu0 %v7869
        %8649 = vmatpush.msra.mxu0 %v7868
        %8650 = vmatpush.msra.mxu0 %v7867
        %8651 = vmatpush.msra.mxu0 %v7866
        %8652 = vmatpush.msra.mxu0 %v7865
        %8653 = vmatpush.msra.mxu0 %v7864
        %8654 = vmatpush.msra.mxu0 %v7863
        %8655 = vmatpush.msra.mxu0 %v7862
        %8656 = vmatmul.f32.gmra.mxu0 %v7191
        %v8657 = vpop.f32.mrf.mxu0
        %v8658 = vadd.f32 %v8593, %v8657
        %8659 = vmatmul.f32.gmra.mxu0 %v7196
        %v8660 = vpop.f32.mrf.mxu0
        %v8661 = vadd.f32 %v8596, %v8660
        %8662 = vmatmul.f32.gmra.mxu0 %v7201
        %v8663 = vpop.f32.mrf.mxu0
        %v8664 = vadd.f32 %v8599, %v8663
        %8665 = vmatmul.f32.gmra.mxu0 %v7206
        %v8666 = vpop.f32.mrf.mxu0
        %v8667 = vadd.f32 %v8602, %v8666
        %8668 = vmatmul.f32.gmra.mxu0 %v7211
        %v8669 = vpop.f32.mrf.mxu0
        %v8670 = vadd.f32 %v8605, %v8669
        %8671 = vmatmul.f32.gmra.mxu0 %v7216
        %v8672 = vpop.f32.mrf.mxu0
        %v8673 = vadd.f32 %v8608, %v8672
        %8674 = vmatmul.f32.gmra.mxu0 %v7221
        %v8675 = vpop.f32.mrf.mxu0
        %v8676 = vadd.f32 %v8611, %v8675
        %8677 = vmatmul.f32.gmra.mxu0 %v7226
        %v8678 = vpop.f32.mrf.mxu0
        %v8679 = vadd.f32 %v8614, %v8678
        %8680 = vmatmul.f32.gmra.mxu0 %v7231
        %v8681 = vpop.f32.mrf.mxu0
        %v8682 = vadd.f32 %v8617, %v8681
        %8683 = vmatmul.f32.gmra.mxu0 %v7236
        %v8684 = vpop.f32.mrf.mxu0
        %v8685 = vadd.f32 %v8620, %v8684
        %8686 = vmatmul.f32.gmra.mxu0 %v7241
        %v8687 = vpop.f32.mrf.mxu0
        %v8688 = vadd.f32 %v8623, %v8687
        %8689 = vmatmul.f32.gmra.mxu0 %v7246
        %v8690 = vpop.f32.mrf.mxu0
        %v8691 = vadd.f32 %v8626, %v8690
        %8692 = vmatmul.f32.gmra.mxu0 %v7251
        %v8693 = vpop.f32.mrf.mxu0
        %v8694 = vadd.f32 %v8629, %v8693
        %8695 = vmatmul.f32.gmra.mxu0 %v7256
        %v8696 = vpop.f32.mrf.mxu0
        %v8697 = vadd.f32 %v8632, %v8696
        %8698 = vmatmul.f32.gmra.mxu0 %v7261
        %v8699 = vpop.f32.mrf.mxu0
        %v8700 = vadd.f32 %v8635, %v8699
        %8701 = vmatmul.f32.gmra.mxu0 %v7266
        %v8702 = vpop.f32.mrf.mxu0
        %v8703 = vadd.f32 %v8638, %v8702
        %8704 = vdwg.mxu0
        %8705 = vmatpush.msra.mxu0 %v7893
        %8706 = vmatpush.msra.mxu0 %v7892
        %8707 = vmatpush.msra.mxu0 %v7891
        %8708 = vmatpush.msra.mxu0 %v7890
        %8709 = vmatpush.msra.mxu0 %v7889
        %8710 = vmatpush.msra.mxu0 %v7888
        %8711 = vmatpush.msra.mxu0 %v7887
        %8712 = vmatpush.msra.mxu0 %v7886
        %8713 = vmatpush.msra.mxu0 %v7885
        %8714 = vmatpush.msra.mxu0 %v7884
        %8715 = vmatpush.msra.mxu0 %v7883
        %8716 = vmatpush.msra.mxu0 %v7882
        %8717 = vmatpush.msra.mxu0 %v7881
        %8718 = vmatpush.msra.mxu0 %v7880
        %8719 = vmatpush.msra.mxu0 %v7879
        %8720 = vmatpush.msra.mxu0 %v7878
        %8721 = vmatmul.f32.gmra.mxu0 %v7194
        %v8722 = vpop.f32.mrf.mxu0
        %v8723 = vadd.f32 %v8658, %v8722
        %8724 = vmatmul.f32.gmra.mxu0 %v7198
        %v8725 = vpop.f32.mrf.mxu0
        %v8726 = vadd.f32 %v8661, %v8725
        %8727 = vmatmul.f32.gmra.mxu0 %v7204
        %v8728 = vpop.f32.mrf.mxu0
        %v8729 = vadd.f32 %v8664, %v8728
        %8730 = vmatmul.f32.gmra.mxu0 %v7208
        %v8731 = vpop.f32.mrf.mxu0
        %v8732 = vadd.f32 %v8667, %v8731
        %8733 = vmatmul.f32.gmra.mxu0 %v7214
        %v8734 = vpop.f32.mrf.mxu0
        %v8735 = vadd.f32 %v8670, %v8734
        %8736 = vmatmul.f32.gmra.mxu0 %v7218
        %v8737 = vpop.f32.mrf.mxu0
        %v8738 = vadd.f32 %v8673, %v8737
        %8739 = vmatmul.f32.gmra.mxu0 %v7224
        %v8740 = vpop.f32.mrf.mxu0
        %v8741 = vadd.f32 %v8676, %v8740
        %8742 = vmatmul.f32.gmra.mxu0 %v7228
        %v8743 = vpop.f32.mrf.mxu0
        %v8744 = vadd.f32 %v8679, %v8743
        %8745 = vmatmul.f32.gmra.mxu0 %v7234
        %v8746 = vpop.f32.mrf.mxu0
        %v8747 = vadd.f32 %v8682, %v8746
        %8748 = vmatmul.f32.gmra.mxu0 %v7238
        %v8749 = vpop.f32.mrf.mxu0
        %v8750 = vadd.f32 %v8685, %v8749
        %8751 = vmatmul.f32.gmra.mxu0 %v7244
        %v8752 = vpop.f32.mrf.mxu0
        %v8753 = vadd.f32 %v8688, %v8752
        %8754 = vmatmul.f32.gmra.mxu0 %v7248
        %v8755 = vpop.f32.mrf.mxu0
        %v8756 = vadd.f32 %v8691, %v8755
        %8757 = vmatmul.f32.gmra.mxu0 %v7254
        %v8758 = vpop.f32.mrf.mxu0
        %v8759 = vadd.f32 %v8694, %v8758
        %8760 = vmatmul.f32.gmra.mxu0 %v7258
        %v8761 = vpop.f32.mrf.mxu0
        %v8762 = vadd.f32 %v8697, %v8761
        %8763 = vmatmul.f32.gmra.mxu0 %v7264
        %v8764 = vpop.f32.mrf.mxu0
        %v8765 = vadd.f32 %v8700, %v8764
        %8766 = vmatmul.f32.gmra.mxu0 %v7268
        %v8767 = vpop.f32.mrf.mxu0
        %v8768 = vadd.f32 %v8703, %v8767
        %8769 = vdwg.mxu0
        %8770 = vmatpush.msra.mxu0 %v7909
        %8771 = vmatpush.msra.mxu0 %v7908
        %8772 = vmatpush.msra.mxu0 %v7907
        %8773 = vmatpush.msra.mxu0 %v7906
        %8774 = vmatpush.msra.mxu0 %v7905
        %8775 = vmatpush.msra.mxu0 %v7904
        %8776 = vmatpush.msra.mxu0 %v7903
        %8777 = vmatpush.msra.mxu0 %v7902
        %8778 = vmatpush.msra.mxu0 %v7901
        %8779 = vmatpush.msra.mxu0 %v7900
        %8780 = vmatpush.msra.mxu0 %v7899
        %8781 = vmatpush.msra.mxu0 %v7898
        %8782 = vmatpush.msra.mxu0 %v7897
        %8783 = vmatpush.msra.mxu0 %v7896
        %8784 = vmatpush.msra.mxu0 %v7895
        %8785 = vmatpush.msra.mxu0 %v7894
        %8786 = vmatmul.f32.gmra.mxu0 %v7302
        %v8787 = vpop.f32.mrf.mxu0
        %v8788 = vadd.f32 %v8723, %v8787
        %8789 = vmatmul.f32.gmra.mxu0 %v7304
        %v8790 = vpop.f32.mrf.mxu0
        %v8791 = vadd.f32 %v8726, %v8790
        %8792 = vmatmul.f32.gmra.mxu0 %v7306
        %v8793 = vpop.f32.mrf.mxu0
        %v8794 = vadd.f32 %v8729, %v8793
        %8795 = vmatmul.f32.gmra.mxu0 %v7308
        %v8796 = vpop.f32.mrf.mxu0
        %v8797 = vadd.f32 %v8732, %v8796
        %8798 = vmatmul.f32.gmra.mxu0 %v7310
        %v8799 = vpop.f32.mrf.mxu0
        %v8800 = vadd.f32 %v8735, %v8799
        %8801 = vmatmul.f32.gmra.mxu0 %v7312
        %v8802 = vpop.f32.mrf.mxu0
        %v8803 = vadd.f32 %v8738, %v8802
        %8804 = vmatmul.f32.gmra.mxu0 %v7314
        %v8805 = vpop.f32.mrf.mxu0
        %v8806 = vadd.f32 %v8741, %v8805
        %8807 = vmatmul.f32.gmra.mxu0 %v7316
        %v8808 = vpop.f32.mrf.mxu0
        %v8809 = vadd.f32 %v8744, %v8808
        %8810 = vmatmul.f32.gmra.mxu0 %v7318
        %v8811 = vpop.f32.mrf.mxu0
        %v8812 = vadd.f32 %v8747, %v8811
        %8813 = vmatmul.f32.gmra.mxu0 %v7320
        %v8814 = vpop.f32.mrf.mxu0
        %v8815 = vadd.f32 %v8750, %v8814
        %8816 = vmatmul.f32.gmra.mxu0 %v7322
        %v8817 = vpop.f32.mrf.mxu0
        %v8818 = vadd.f32 %v8753, %v8817
        %8819 = vmatmul.f32.gmra.mxu0 %v7324
        %v8820 = vpop.f32.mrf.mxu0
        %v8821 = vadd.f32 %v8756, %v8820
        %8822 = vmatmul.f32.gmra.mxu0 %v7326
        %v8823 = vpop.f32.mrf.mxu0
        %v8824 = vadd.f32 %v8759, %v8823
        %8825 = vmatmul.f32.gmra.mxu0 %v7328
        %v8826 = vpop.f32.mrf.mxu0
        %v8827 = vadd.f32 %v8762, %v8826
        %8828 = vmatmul.f32.gmra.mxu0 %v7330
        %v8829 = vpop.f32.mrf.mxu0
        %v8830 = vadd.f32 %v8765, %v8829
        %8831 = vmatmul.f32.gmra.mxu0 %v7332
        %v8832 = vpop.f32.mrf.mxu0
        %v8833 = vadd.f32 %v8768, %v8832
        %8834 = vdwg.mxu0
        %8835 = vmatpush.msra.mxu0 %v7925
        %8836 = vmatpush.msra.mxu0 %v7924
        %8837 = vmatpush.msra.mxu0 %v7923
        %8838 = vmatpush.msra.mxu0 %v7922
        %8839 = vmatpush.msra.mxu0 %v7921
        %8840 = vmatpush.msra.mxu0 %v7920
        %8841 = vmatpush.msra.mxu0 %v7919
        %8842 = vmatpush.msra.mxu0 %v7918
        %8843 = vmatpush.msra.mxu0 %v7917
        %8844 = vmatpush.msra.mxu0 %v7916
        %8845 = vmatpush.msra.mxu0 %v7915
        %8846 = vmatpush.msra.mxu0 %v7914
        %8847 = vmatpush.msra.mxu0 %v7913
        %8848 = vmatpush.msra.mxu0 %v7912
        %8849 = vmatpush.msra.mxu0 %v7911
        %8850 = vmatpush.msra.mxu0 %v7910
        %8851 = vmatmul.f32.gmra.mxu0 %v7303
        %v8852 = vpop.f32.mrf.mxu0
        %v8853 = vadd.f32 %v8788, %v8852
        %8854 = vmatmul.f32.gmra.mxu0 %v7305
        %v8855 = vpop.f32.mrf.mxu0
        %v8856 = vadd.f32 %v8791, %v8855
        %8857 = vmatmul.f32.gmra.mxu0 %v7307
        %v8858 = vpop.f32.mrf.mxu0
        %v8859 = vadd.f32 %v8794, %v8858
        %8860 = vmatmul.f32.gmra.mxu0 %v7309
        %v8861 = vpop.f32.mrf.mxu0
        %v8862 = vadd.f32 %v8797, %v8861
        %8863 = vmatmul.f32.gmra.mxu0 %v7311
        %v8864 = vpop.f32.mrf.mxu0
        %v8865 = vadd.f32 %v8800, %v8864
        %8866 = vmatmul.f32.gmra.mxu0 %v7313
        %v8867 = vpop.f32.mrf.mxu0
        %v8868 = vadd.f32 %v8803, %v8867
        %8869 = vmatmul.f32.gmra.mxu0 %v7315
        %v8870 = vpop.f32.mrf.mxu0
        %v8871 = vadd.f32 %v8806, %v8870
        %8872 = vmatmul.f32.gmra.mxu0 %v7317
        %v8873 = vpop.f32.mrf.mxu0
        %v8874 = vadd.f32 %v8809, %v8873
        %8875 = vmatmul.f32.gmra.mxu0 %v7319
        %v8876 = vpop.f32.mrf.mxu0
        %v8877 = vadd.f32 %v8812, %v8876
        %8878 = vmatmul.f32.gmra.mxu0 %v7321
        %v8879 = vpop.f32.mrf.mxu0
        %v8880 = vadd.f32 %v8815, %v8879
        %8881 = vmatmul.f32.gmra.mxu0 %v7323
        %v8882 = vpop.f32.mrf.mxu0
        %v8883 = vadd.f32 %v8818, %v8882
        %8884 = vmatmul.f32.gmra.mxu0 %v7325
        %v8885 = vpop.f32.mrf.mxu0
        %v8886 = vadd.f32 %v8821, %v8885
        %8887 = vmatmul.f32.gmra.mxu0 %v7327
        %v8888 = vpop.f32.mrf.mxu0
        %v8889 = vadd.f32 %v8824, %v8888
        %8890 = vmatmul.f32.gmra.mxu0 %v7329
        %v8891 = vpop.f32.mrf.mxu0
        %v8892 = vadd.f32 %v8827, %v8891
        %8893 = vmatmul.f32.gmra.mxu0 %v7331
        %v8894 = vpop.f32.mrf.mxu0
        %v8895 = vadd.f32 %v8830, %v8894
        %8896 = vmatmul.f32.gmra.mxu0 %v7333
        %v8897 = vpop.f32.mrf.mxu0
        %v8898 = vadd.f32 %v8833, %v8897
        %8899 = vdwg.mxu0
        %8900 = vmatpush.msra.mxu0 %v7941
        %8901 = vmatpush.msra.mxu0 %v7940
        %8902 = vmatpush.msra.mxu0 %v7939
        %8903 = vmatpush.msra.mxu0 %v7938
        %8904 = vmatpush.msra.mxu0 %v7937
        %8905 = vmatpush.msra.mxu0 %v7936
        %8906 = vmatpush.msra.mxu0 %v7935
        %8907 = vmatpush.msra.mxu0 %v7934
        %8908 = vmatpush.msra.mxu0 %v7933
        %8909 = vmatpush.msra.mxu0 %v7932
        %8910 = vmatpush.msra.mxu0 %v7931
        %8911 = vmatpush.msra.mxu0 %v7930
        %8912 = vmatpush.msra.mxu0 %v7929
        %8913 = vmatpush.msra.mxu0 %v7928
        %8914 = vmatpush.msra.mxu0 %v7927
        %8915 = vmatpush.msra.mxu0 %v7926
        %8916 = vmatmul.f32.gmra.mxu0 %v7416
        %v8917 = vpop.f32.mrf.mxu0
        %v8918 = vadd.f32 %v8853, %v8917
        %8919 = vmatmul.f32.gmra.mxu0 %v7421
        %v8920 = vpop.f32.mrf.mxu0
        %v8921 = vadd.f32 %v8856, %v8920
        %8922 = vmatmul.f32.gmra.mxu0 %v7426
        %v8923 = vpop.f32.mrf.mxu0
        %v8924 = vadd.f32 %v8859, %v8923
        %8925 = vmatmul.f32.gmra.mxu0 %v7431
        %v8926 = vpop.f32.mrf.mxu0
        %v8927 = vadd.f32 %v8862, %v8926
        %8928 = vmatmul.f32.gmra.mxu0 %v7436
        %v8929 = vpop.f32.mrf.mxu0
        %v8930 = vadd.f32 %v8865, %v8929
        %8931 = vmatmul.f32.gmra.mxu0 %v7441
        %v8932 = vpop.f32.mrf.mxu0
        %v8933 = vadd.f32 %v8868, %v8932
        %8934 = vmatmul.f32.gmra.mxu0 %v7446
        %v8935 = vpop.f32.mrf.mxu0
        %v8936 = vadd.f32 %v8871, %v8935
        %8937 = vmatmul.f32.gmra.mxu0 %v7451
        %v8938 = vpop.f32.mrf.mxu0
        %v8939 = vadd.f32 %v8874, %v8938
        %8940 = vmatmul.f32.gmra.mxu0 %v7456
        %v8941 = vpop.f32.mrf.mxu0
        %v8942 = vadd.f32 %v8877, %v8941
        %8943 = vmatmul.f32.gmra.mxu0 %v7461
        %v8944 = vpop.f32.mrf.mxu0
        %v8945 = vadd.f32 %v8880, %v8944
        %8946 = vmatmul.f32.gmra.mxu0 %v7466
        %v8947 = vpop.f32.mrf.mxu0
        %v8948 = vadd.f32 %v8883, %v8947
        %8949 = vmatmul.f32.gmra.mxu0 %v7471
        %v8950 = vpop.f32.mrf.mxu0
        %v8951 = vadd.f32 %v8886, %v8950
        %8952 = vmatmul.f32.gmra.mxu0 %v7476
        %v8953 = vpop.f32.mrf.mxu0
        %v8954 = vadd.f32 %v8889, %v8953
        %8955 = vmatmul.f32.gmra.mxu0 %v7481
        %v8956 = vpop.f32.mrf.mxu0
        %v8957 = vadd.f32 %v8892, %v8956
        %8958 = vmatmul.f32.gmra.mxu0 %v7486
        %v8959 = vpop.f32.mrf.mxu0
        %v8960 = vadd.f32 %v8895, %v8959
        %8961 = vmatmul.f32.gmra.mxu0 %v7491
        %v8962 = vpop.f32.mrf.mxu0
        %v8963 = vadd.f32 %v8898, %v8962
        %8964 = vdwg.mxu0
        %8965 = vmatpush.msra.mxu0 %v7957
        %8966 = vmatpush.msra.mxu0 %v7956
        %8967 = vmatpush.msra.mxu0 %v7955
        %8968 = vmatpush.msra.mxu0 %v7954
        %8969 = vmatpush.msra.mxu0 %v7953
        %8970 = vmatpush.msra.mxu0 %v7952
        %8971 = vmatpush.msra.mxu0 %v7951
        %8972 = vmatpush.msra.mxu0 %v7950
        %8973 = vmatpush.msra.mxu0 %v7949
        %8974 = vmatpush.msra.mxu0 %v7948
        %8975 = vmatpush.msra.mxu0 %v7947
        %8976 = vmatpush.msra.mxu0 %v7946
        %8977 = vmatpush.msra.mxu0 %v7945
        %8978 = vmatpush.msra.mxu0 %v7944
        %8979 = vmatpush.msra.mxu0 %v7943
        %8980 = vmatpush.msra.mxu0 %v7942
        %8981 = vmatmul.f32.gmra.mxu0 %v7419
        %v8982 = vpop.f32.mrf.mxu0
        %v8983 = vadd.f32 %v8918, %v8982
        %8984 = vmatmul.f32.gmra.mxu0 %v7423
        %v8985 = vpop.f32.mrf.mxu0
        %v8986 = vadd.f32 %v8921, %v8985
        %8987 = vmatmul.f32.gmra.mxu0 %v7429
        %v8988 = vpop.f32.mrf.mxu0
        %v8989 = vadd.f32 %v8924, %v8988
        %8990 = vmatmul.f32.gmra.mxu0 %v7433
        %v8991 = vpop.f32.mrf.mxu0
        %v8992 = vadd.f32 %v8927, %v8991
        %8993 = vmatmul.f32.gmra.mxu0 %v7439
        %v8994 = vpop.f32.mrf.mxu0
        %v8995 = vadd.f32 %v8930, %v8994
        %8996 = vmatmul.f32.gmra.mxu0 %v7443
        %v8997 = vpop.f32.mrf.mxu0
        %v8998 = vadd.f32 %v8933, %v8997
        %8999 = vmatmul.f32.gmra.mxu0 %v7449
        %v9000 = vpop.f32.mrf.mxu0
        %v9001 = vadd.f32 %v8936, %v9000
        %9002 = vmatmul.f32.gmra.mxu0 %v7453
        %v9003 = vpop.f32.mrf.mxu0
        %v9004 = vadd.f32 %v8939, %v9003
        %9005 = vmatmul.f32.gmra.mxu0 %v7459
        %v9006 = vpop.f32.mrf.mxu0
        %v9007 = vadd.f32 %v8942, %v9006
        %9008 = vmatmul.f32.gmra.mxu0 %v7463
        %v9009 = vpop.f32.mrf.mxu0
        %v9010 = vadd.f32 %v8945, %v9009
        %9011 = vmatmul.f32.gmra.mxu0 %v7469
        %v9012 = vpop.f32.mrf.mxu0
        %v9013 = vadd.f32 %v8948, %v9012
        %9014 = vmatmul.f32.gmra.mxu0 %v7473
        %v9015 = vpop.f32.mrf.mxu0
        %v9016 = vadd.f32 %v8951, %v9015
        %9017 = vmatmul.f32.gmra.mxu0 %v7479
        %v9018 = vpop.f32.mrf.mxu0
        %v9019 = vadd.f32 %v8954, %v9018
        %9020 = vmatmul.f32.gmra.mxu0 %v7483
        %v9021 = vpop.f32.mrf.mxu0
        %v9022 = vadd.f32 %v8957, %v9021
        %9023 = vmatmul.f32.gmra.mxu0 %v7489
        %v9024 = vpop.f32.mrf.mxu0
        %v9025 = vadd.f32 %v8960, %v9024
        %9026 = vmatmul.f32.gmra.mxu0 %v7493
        %v9027 = vpop.f32.mrf.mxu0
        %v9028 = vadd.f32 %v8963, %v9027
        %9029 = vdwg.mxu0
        %9030 = vmatpush.msra.mxu0 %v7973
        %9031 = vmatpush.msra.mxu0 %v7972
        %9032 = vmatpush.msra.mxu0 %v7971
        %9033 = vmatpush.msra.mxu0 %v7970
        %9034 = vmatpush.msra.mxu0 %v7969
        %9035 = vmatpush.msra.mxu0 %v7968
        %9036 = vmatpush.msra.mxu0 %v7967
        %9037 = vmatpush.msra.mxu0 %v7966
        %9038 = vmatpush.msra.mxu0 %v7965
        %9039 = vmatpush.msra.mxu0 %v7964
        %9040 = vmatpush.msra.mxu0 %v7963
        %9041 = vmatpush.msra.mxu0 %v7962
        %9042 = vmatpush.msra.mxu0 %v7961
        %9043 = vmatpush.msra.mxu0 %v7960
        %9044 = vmatpush.msra.mxu0 %v7959
        %9045 = vmatpush.msra.mxu0 %v7958
        %9046 = vmatmul.f32.gmra.mxu0 %v7592
        %v9047 = vpop.f32.mrf.mxu0
        %v9048 = vadd.f32 %v8983, %v9047
        %9049 = vmatmul.f32.gmra.mxu0 %v7597
        %v9050 = vpop.f32.mrf.mxu0
        %v9051 = vadd.f32 %v8986, %v9050
        %9052 = vmatmul.f32.gmra.mxu0 %v7602
        %v9053 = vpop.f32.mrf.mxu0
        %v9054 = vadd.f32 %v8989, %v9053
        %9055 = vmatmul.f32.gmra.mxu0 %v7607
        %v9056 = vpop.f32.mrf.mxu0
        %v9057 = vadd.f32 %v8992, %v9056
        %9058 = vmatmul.f32.gmra.mxu0 %v7612
        %v9059 = vpop.f32.mrf.mxu0
        %v9060 = vadd.f32 %v8995, %v9059
        %9061 = vmatmul.f32.gmra.mxu0 %v7617
        %v9062 = vpop.f32.mrf.mxu0
        %v9063 = vadd.f32 %v8998, %v9062
        %9064 = vmatmul.f32.gmra.mxu0 %v7622
        %v9065 = vpop.f32.mrf.mxu0
        %v9066 = vadd.f32 %v9001, %v9065
        %9067 = vmatmul.f32.gmra.mxu0 %v7627
        %v9068 = vpop.f32.mrf.mxu0
        %v9069 = vadd.f32 %v9004, %v9068
        %9070 = vmatmul.f32.gmra.mxu0 %v7632
        %v9071 = vpop.f32.mrf.mxu0
        %v9072 = vadd.f32 %v9007, %v9071
        %9073 = vmatmul.f32.gmra.mxu0 %v7637
        %v9074 = vpop.f32.mrf.mxu0
        %v9075 = vadd.f32 %v9010, %v9074
        %9076 = vmatmul.f32.gmra.mxu0 %v7642
        %v9077 = vpop.f32.mrf.mxu0
        %v9078 = vadd.f32 %v9013, %v9077
        %9079 = vmatmul.f32.gmra.mxu0 %v7647
        %v9080 = vpop.f32.mrf.mxu0
        %v9081 = vadd.f32 %v9016, %v9080
        %9082 = vmatmul.f32.gmra.mxu0 %v7652
        %v9083 = vpop.f32.mrf.mxu0
        %v9084 = vadd.f32 %v9019, %v9083
        %9085 = vmatmul.f32.gmra.mxu0 %v7657
        %v9086 = vpop.f32.mrf.mxu0
        %v9087 = vadd.f32 %v9022, %v9086
        %9088 = vmatmul.f32.gmra.mxu0 %v7662
        %v9089 = vpop.f32.mrf.mxu0
        %v9090 = vadd.f32 %v9025, %v9089
        %9091 = vmatmul.f32.gmra.mxu0 %v7667
        %v9092 = vpop.f32.mrf.mxu0
        %v9093 = vadd.f32 %v9028, %v9092
        %9094 = vdwg.mxu0
        %9095 = vmatpush.msra.mxu0 %v7989
        %9096 = vmatpush.msra.mxu0 %v7988
        %9097 = vmatpush.msra.mxu0 %v7987
        %9098 = vmatpush.msra.mxu0 %v7986
        %9099 = vmatpush.msra.mxu0 %v7985
        %9100 = vmatpush.msra.mxu0 %v7984
        %9101 = vmatpush.msra.mxu0 %v7983
        %9102 = vmatpush.msra.mxu0 %v7982
        %9103 = vmatpush.msra.mxu0 %v7981
        %9104 = vmatpush.msra.mxu0 %v7980
        %9105 = vmatpush.msra.mxu0 %v7979
        %9106 = vmatpush.msra.mxu0 %v7978
        %9107 = vmatpush.msra.mxu0 %v7977
        %9108 = vmatpush.msra.mxu0 %v7976
        %9109 = vmatpush.msra.mxu0 %v7975
        %9110 = vmatpush.msra.mxu0 %v7974
        %9111 = vmatmul.f32.gmra.mxu0 %v7595
        %v9112 = vpop.f32.mrf.mxu0
        %v9113 = vadd.f32 %v9048, %v9112
        %9114 = vmatmul.f32.gmra.mxu0 %v7599
        %v9115 = vpop.f32.mrf.mxu0
        %v9116 = vadd.f32 %v9051, %v9115
        %9117 = vmatmul.f32.gmra.mxu0 %v7605
        %v9118 = vpop.f32.mrf.mxu0
        %v9119 = vadd.f32 %v9054, %v9118
        %9120 = vmatmul.f32.gmra.mxu0 %v7609
        %v9121 = vpop.f32.mrf.mxu0
        %v9122 = vadd.f32 %v9057, %v9121
        %9123 = vmatmul.f32.gmra.mxu0 %v7615
        %v9124 = vpop.f32.mrf.mxu0
        %v9125 = vadd.f32 %v9060, %v9124
        %9126 = vmatmul.f32.gmra.mxu0 %v7619
        %v9127 = vpop.f32.mrf.mxu0
        %v9128 = vadd.f32 %v9063, %v9127
        %9129 = vmatmul.f32.gmra.mxu0 %v7625
        %v9130 = vpop.f32.mrf.mxu0
        %v9131 = vadd.f32 %v9066, %v9130
        %9132 = vmatmul.f32.gmra.mxu0 %v7629
        %v9133 = vpop.f32.mrf.mxu0
        %v9134 = vadd.f32 %v9069, %v9133
        %9135 = vmatmul.f32.gmra.mxu0 %v7635
        %v9136 = vpop.f32.mrf.mxu0
        %v9137 = vadd.f32 %v9072, %v9136
        %9138 = vmatmul.f32.gmra.mxu0 %v7639
        %v9139 = vpop.f32.mrf.mxu0
        %v9140 = vadd.f32 %v9075, %v9139
        %9141 = vmatmul.f32.gmra.mxu0 %v7645
        %v9142 = vpop.f32.mrf.mxu0
        %v9143 = vadd.f32 %v9078, %v9142
        %9144 = vmatmul.f32.gmra.mxu0 %v7649
        %v9145 = vpop.f32.mrf.mxu0
        %v9146 = vadd.f32 %v9081, %v9145
        %9147 = vmatmul.f32.gmra.mxu0 %v7655
        %v9148 = vpop.f32.mrf.mxu0
        %v9149 = vadd.f32 %v9084, %v9148
        %9150 = vmatmul.f32.gmra.mxu0 %v7659
        %v9151 = vpop.f32.mrf.mxu0
        %v9152 = vadd.f32 %v9087, %v9151
        %9153 = vmatmul.f32.gmra.mxu0 %v7665
        %v9154 = vpop.f32.mrf.mxu0
        %v9155 = vadd.f32 %v9090, %v9154
        %9156 = vmatmul.f32.gmra.mxu0 %v7669
        %v9157 = vpop.f32.mrf.mxu0
        %v9158 = vadd.f32 %v9093, %v9157
        %9159 = vdwg.mxu0
        %v9160 = vld [vmem:[#allocation23] sm:$0x1]
        %v9162 = vperm.slane %v9160, 0
        %v9164 = vmul.f32 %v9113, %v9162
        %v9165 = vmul.f32 %v9116, %v9162
        %v9166 = vmul.f32 %v9119, %v9162
        %v9167 = vmul.f32 %v9122, %v9162
        %v9168 = vmul.f32 %v9125, %v9162
        %v9169 = vmul.f32 %v9128, %v9162
        %v9170 = vmul.f32 %v9131, %v9162
        %v9171 = vmul.f32 %v9134, %v9162
        %v9172 = vmul.f32 %v9137, %v9162
        %v9173 = vmul.f32 %v9140, %v9162
        %v9174 = vmul.f32 %v9143, %v9162
        %v9175 = vmul.f32 %v9146, %v9162
        %v9176 = vmul.f32 %v9149, %v9162
        %v9177 = vmul.f32 %v9152, %v9162
        %v9178 = vmul.f32 %v9155, %v9162
        %v9179 = vmul.f32 %v9158, %v9162
        %v9180 = vld [vmem:[#allocation25] sm:$0x1]
        %v9182 = vperm.slane %v9180, 0
        %v9184 = vadd.f32 %v9164, %v9182
        %v9185 = vadd.f32 %v9165, %v9182
        %v9186 = vadd.f32 %v9166, %v9182
        %v9187 = vadd.f32 %v9167, %v9182
        %v9188 = vadd.f32 %v9168, %v9182
        %v9189 = vadd.f32 %v9169, %v9182
        %v9190 = vadd.f32 %v9170, %v9182
        %v9191 = vadd.f32 %v9171, %v9182
        %v9192 = vadd.f32 %v9172, %v9182
        %v9193 = vadd.f32 %v9173, %v9182
        %v9194 = vadd.f32 %v9174, %v9182
        %v9195 = vadd.f32 %v9175, %v9182
        %v9196 = vadd.f32 %v9176, %v9182
        %v9197 = vadd.f32 %v9177, %v9182
        %v9198 = vadd.f32 %v9178, %v9182
        %v9199 = vadd.f32 %v9179, %v9182
        %vm9200 = vcmp.gt.f32.partialorder %v9184, 0.0
        %vm9201 = vcmp.gt.f32.partialorder %v9185, 0.0
        %vm9202 = vcmp.gt.f32.partialorder %v9186, 0.0
        %vm9203 = vcmp.gt.f32.partialorder %v9187, 0.0
        %vm9204 = vcmp.gt.f32.partialorder %v9188, 0.0
        %vm9205 = vcmp.gt.f32.partialorder %v9189, 0.0
        %vm9206 = vcmp.gt.f32.partialorder %v9190, 0.0
        %vm9207 = vcmp.gt.f32.partialorder %v9191, 0.0
        %vm9208 = vcmp.gt.f32.partialorder %v9192, 0.0
        %vm9209 = vcmp.gt.f32.partialorder %v9193, 0.0
        %vm9210 = vcmp.gt.f32.partialorder %v9194, 0.0
        %vm9211 = vcmp.gt.f32.partialorder %v9195, 0.0
        %vm9212 = vcmp.gt.f32.partialorder %v9196, 0.0
        %vm9213 = vcmp.gt.f32.partialorder %v9197, 0.0
        %vm9214 = vcmp.gt.f32.partialorder %v9198, 0.0
        %vm9215 = vcmp.gt.f32.partialorder %v9199, 0.0
        %v9216 = vmul.f32 %v9184, 0.01
        %v9217 = vmul.f32 %v9185, 0.01
        %v9218 = vmul.f32 %v9186, 0.01
        %v9219 = vmul.f32 %v9187, 0.01
        %v9220 = vmul.f32 %v9188, 0.01
        %v9221 = vmul.f32 %v9189, 0.01
        %v9222 = vmul.f32 %v9190, 0.01
        %v9223 = vmul.f32 %v9191, 0.01
        %v9224 = vmul.f32 %v9192, 0.01
        %v9225 = vmul.f32 %v9193, 0.01
        %v9226 = vmul.f32 %v9194, 0.01
        %v9227 = vmul.f32 %v9195, 0.01
        %v9228 = vmul.f32 %v9196, 0.01
        %v9229 = vmul.f32 %v9197, 0.01
        %v9230 = vmul.f32 %v9198, 0.01
        %v9231 = vmul.f32 %v9199, 0.01
        %v9232 = vsel %vm9200, %v9184, %v9216
        %v9233 = vsel %vm9201, %v9185, %v9217
        %v9234 = vsel %vm9202, %v9186, %v9218
        %v9235 = vsel %vm9203, %v9187, %v9219
        %v9236 = vsel %vm9204, %v9188, %v9220
        %v9237 = vsel %vm9205, %v9189, %v9221
        %v9238 = vsel %vm9206, %v9190, %v9222
        %v9239 = vsel %vm9207, %v9191, %v9223
        %v9240 = vsel %vm9208, %v9192, %v9224
        %v9241 = vsel %vm9209, %v9193, %v9225
        %v9242 = vsel %vm9210, %v9194, %v9226
        %v9243 = vsel %vm9211, %v9195, %v9227
        %v9244 = vsel %vm9212, %v9196, %v9228
        %v9245 = vsel %vm9213, %v9197, %v9229
        %v9246 = vsel %vm9214, %v9198, %v9230
        %v9247 = vsel %vm9215, %v9199, %v9231
        %v9248 = vld [vmem:[#allocation26] sm:$0xff]
        %v9249 = vld [vmem:[#allocation26 + $0x8] sm:$0xff]
        %v9250 = vld [vmem:[#allocation26 + $0x10] sm:$0xff]
        %v9251 = vld [vmem:[#allocation26 + $0x18] sm:$0xff]
        %v9252 = vld [vmem:[#allocation26 + $0x20] sm:$0xff]
        %v9253 = vld [vmem:[#allocation26 + $0x28] sm:$0xff]
        %v9254 = vld [vmem:[#allocation26 + $0x30] sm:$0xff]
        %v9255 = vld [vmem:[#allocation26 + $0x38] sm:$0xff]
        %v9256 = vld [vmem:[#allocation26 + $0x40] sm:$0xff]
        %v9257 = vld [vmem:[#allocation26 + $0x48] sm:$0xff]
        %v9258 = vld [vmem:[#allocation26 + $0x50] sm:$0xff]
        %v9259 = vld [vmem:[#allocation26 + $0x58] sm:$0xff]
        %v9260 = vld [vmem:[#allocation26 + $0x60] sm:$0xff]
        %v9261 = vld [vmem:[#allocation26 + $0x68] sm:$0xff]
        %v9262 = vld [vmem:[#allocation26 + $0x70] sm:$0xff]
        %v9263 = vld [vmem:[#allocation26 + $0x78] sm:$0xff]
        %9264 = vmatpush.msra.mxu0 %v9263
        %9265 = vmatpush.msra.mxu0 %v9262
        %9266 = vmatpush.msra.mxu0 %v9261
        %9267 = vmatpush.msra.mxu0 %v9260
        %9268 = vmatpush.msra.mxu0 %v9259
        %9269 = vmatpush.msra.mxu0 %v9258
        %9270 = vmatpush.msra.mxu0 %v9257
        %9271 = vmatpush.msra.mxu0 %v9256
        %9272 = vmatpush.msra.mxu0 %v9255
        %9273 = vmatpush.msra.mxu0 %v9254
        %9274 = vmatpush.msra.mxu0 %v9253
        %9275 = vmatpush.msra.mxu0 %v9252
        %9276 = vmatpush.msra.mxu0 %v9251
        %9277 = vmatpush.msra.mxu0 %v9250
        %9278 = vmatpush.msra.mxu0 %v9249
        %9279 = vmatpush.msra.mxu0 %v9248
        %9280 = vmatmul.f32.gmra.mxu0 %v9232
        %v9281 = vpop.f32.mrf.mxu0
        %v9282 = vadd.f32 0.0, %v9281
        %9283 = vmatmul.f32.gmra.mxu0 %v9233
        %v9284 = vpop.f32.mrf.mxu0
        %v9285 = vadd.f32 0.0, %v9284
        %9286 = vmatmul.f32.gmra.mxu0 %v9234
        %v9287 = vpop.f32.mrf.mxu0
        %v9288 = vadd.f32 0.0, %v9287
        %9289 = vmatmul.f32.gmra.mxu0 %v9235
        %v9290 = vpop.f32.mrf.mxu0
        %v9291 = vadd.f32 0.0, %v9290
        %9292 = vmatmul.f32.gmra.mxu0 %v9236
        %v9293 = vpop.f32.mrf.mxu0
        %v9294 = vadd.f32 0.0, %v9293
        %9295 = vmatmul.f32.gmra.mxu0 %v9237
        %v9296 = vpop.f32.mrf.mxu0
        %v9297 = vadd.f32 0.0, %v9296
        %9298 = vmatmul.f32.gmra.mxu0 %v9238
        %v9299 = vpop.f32.mrf.mxu0
        %v9300 = vadd.f32 0.0, %v9299
        %9301 = vmatmul.f32.gmra.mxu0 %v9239
        %v9302 = vpop.f32.mrf.mxu0
        %v9303 = vadd.f32 0.0, %v9302
        %9304 = vmatmul.f32.gmra.mxu0 %v9240
        %v9305 = vpop.f32.mrf.mxu0
        %v9306 = vadd.f32 0.0, %v9305
        %9307 = vmatmul.f32.gmra.mxu0 %v9241
        %v9308 = vpop.f32.mrf.mxu0
        %v9309 = vadd.f32 0.0, %v9308
        %9310 = vmatmul.f32.gmra.mxu0 %v9242
        %v9311 = vpop.f32.mrf.mxu0
        %v9312 = vadd.f32 0.0, %v9311
        %9313 = vmatmul.f32.gmra.mxu0 %v9243
        %v9314 = vpop.f32.mrf.mxu0
        %v9315 = vadd.f32 0.0, %v9314
        %9316 = vmatmul.f32.gmra.mxu0 %v9244
        %v9317 = vpop.f32.mrf.mxu0
        %v9318 = vadd.f32 0.0, %v9317
        %9319 = vmatmul.f32.gmra.mxu0 %v9245
        %v9320 = vpop.f32.mrf.mxu0
        %v9321 = vadd.f32 0.0, %v9320
        %9322 = vmatmul.f32.gmra.mxu0 %v9246
        %v9323 = vpop.f32.mrf.mxu0
        %v9324 = vadd.f32 0.0, %v9323
        %9325 = vmatmul.f32.gmra.mxu0 %v9247
        %v9326 = vpop.f32.mrf.mxu0
        %v9327 = vadd.f32 0.0, %v9326
        %9328 = vdwg.mxu0
        %v9329 = vld [vmem:[#allocation28] sm:$0x1]
        %v9331 = vperm.slane %v9329, 0
        %v9333 = vmul.f32 %v9282, %v9331
        %v9334 = vmul.f32 %v9285, %v9331
        %v9335 = vmul.f32 %v9288, %v9331
        %v9336 = vmul.f32 %v9291, %v9331
        %v9337 = vmul.f32 %v9294, %v9331
        %v9338 = vmul.f32 %v9297, %v9331
        %v9339 = vmul.f32 %v9300, %v9331
        %v9340 = vmul.f32 %v9303, %v9331
        %v9341 = vmul.f32 %v9306, %v9331
        %v9342 = vmul.f32 %v9309, %v9331
        %v9343 = vmul.f32 %v9312, %v9331
        %v9344 = vmul.f32 %v9315, %v9331
        %v9345 = vmul.f32 %v9318, %v9331
        %v9346 = vmul.f32 %v9321, %v9331
        %v9347 = vmul.f32 %v9324, %v9331
        %v9348 = vmul.f32 %v9327, %v9331
        %v9349 = vld [vmem:[#allocation29] sm:$0x1]
        %v9351 = vperm.slane %v9349, 0
        %v9353 = vadd.f32 %v9333, %v9351
        %v9354 = vadd.f32 %v9334, %v9351
        %v9355 = vadd.f32 %v9335, %v9351
        %v9356 = vadd.f32 %v9336, %v9351
        %v9357 = vadd.f32 %v9337, %v9351
        %v9358 = vadd.f32 %v9338, %v9351
        %v9359 = vadd.f32 %v9339, %v9351
        %v9360 = vadd.f32 %v9340, %v9351
        %v9361 = vadd.f32 %v9341, %v9351
        %v9362 = vadd.f32 %v9342, %v9351
        %v9363 = vadd.f32 %v9343, %v9351
        %v9364 = vadd.f32 %v9344, %v9351
        %v9365 = vadd.f32 %v9345, %v9351
        %v9366 = vadd.f32 %v9346, %v9351
        %v9367 = vadd.f32 %v9347, %v9351
        %v9368 = vadd.f32 %v9348, %v9351
        %vm9369 = vcmp.gt.f32.partialorder %v9353, 0.0
        %vm9370 = vcmp.gt.f32.partialorder %v9354, 0.0
        %vm9371 = vcmp.gt.f32.partialorder %v9355, 0.0
        %vm9372 = vcmp.gt.f32.partialorder %v9356, 0.0
        %vm9373 = vcmp.gt.f32.partialorder %v9357, 0.0
        %vm9374 = vcmp.gt.f32.partialorder %v9358, 0.0
        %vm9375 = vcmp.gt.f32.partialorder %v9359, 0.0
        %vm9376 = vcmp.gt.f32.partialorder %v9360, 0.0
        %vm9377 = vcmp.gt.f32.partialorder %v9361, 0.0
        %vm9378 = vcmp.gt.f32.partialorder %v9362, 0.0
        %vm9379 = vcmp.gt.f32.partialorder %v9363, 0.0
        %vm9380 = vcmp.gt.f32.partialorder %v9364, 0.0
        %vm9381 = vcmp.gt.f32.partialorder %v9365, 0.0
        %vm9382 = vcmp.gt.f32.partialorder %v9366, 0.0
        %vm9383 = vcmp.gt.f32.partialorder %v9367, 0.0
        %vm9384 = vcmp.gt.f32.partialorder %v9368, 0.0
        %v9385 = vmul.f32 %v9353, 0.01
        %v9386 = vmul.f32 %v9354, 0.01
        %v9387 = vmul.f32 %v9355, 0.01
        %v9388 = vmul.f32 %v9356, 0.01
        %v9389 = vmul.f32 %v9357, 0.01
        %v9390 = vmul.f32 %v9358, 0.01
        %v9391 = vmul.f32 %v9359, 0.01
        %v9392 = vmul.f32 %v9360, 0.01
        %v9393 = vmul.f32 %v9361, 0.01
        %v9394 = vmul.f32 %v9362, 0.01
        %v9395 = vmul.f32 %v9363, 0.01
        %v9396 = vmul.f32 %v9364, 0.01
        %v9397 = vmul.f32 %v9365, 0.01
        %v9398 = vmul.f32 %v9366, 0.01
        %v9399 = vmul.f32 %v9367, 0.01
        %v9400 = vmul.f32 %v9368, 0.01
        %v9401 = vsel %vm9369, %v9353, %v9385
        %v9402 = vsel %vm9370, %v9354, %v9386
        %v9403 = vsel %vm9371, %v9355, %v9387
        %v9404 = vsel %vm9372, %v9356, %v9388
        %v9405 = vsel %vm9373, %v9357, %v9389
        %v9406 = vsel %vm9374, %v9358, %v9390
        %v9407 = vsel %vm9375, %v9359, %v9391
        %v9408 = vsel %vm9376, %v9360, %v9392
        %v9409 = vsel %vm9377, %v9361, %v9393
        %v9410 = vsel %vm9378, %v9362, %v9394
        %v9411 = vsel %vm9379, %v9363, %v9395
        %v9412 = vsel %vm9380, %v9364, %v9396
        %v9413 = vsel %vm9381, %v9365, %v9397
        %v9414 = vsel %vm9382, %v9366, %v9398
        %v9415 = vsel %vm9383, %v9367, %v9399
        %v9416 = vsel %vm9384, %v9368, %v9400
        %9417 = vst [vmem:[%s783] sm:$0xff] %v9401
        %9418 = vst [vmem:[%s783 + $0x8] sm:$0xff] %v9402
        %9419 = vst [vmem:[%s783 + $0x10] sm:$0xff] %v9403
        %9420 = vst [vmem:[%s783 + $0x18] sm:$0xff] %v9404
        %9421 = vst [vmem:[%s783 + $0x20] sm:$0xff] %v9405
        %9422 = vst [vmem:[%s783 + $0x28] sm:$0xff] %v9406
        %9423 = vst [vmem:[%s783 + $0x30] sm:$0xff] %v9407
        %9424 = vst [vmem:[%s783 + $0x38] sm:$0xff] %v9408
        %9425 = vst [vmem:[%s783 + $0x40] sm:$0xff] %v9409
        %9426 = vst [vmem:[%s783 + $0x48] sm:$0xff] %v9410
        %9427 = vst [vmem:[%s783 + $0x50] sm:$0xff] %v9411
        %9428 = vst [vmem:[%s783 + $0x58] sm:$0xff] %v9412
        %9429 = vst [vmem:[%s783 + $0x60] sm:$0xff] %v9413
        %9430 = vst [vmem:[%s783 + $0x68] sm:$0xff] %v9414
        %9431 = vst [vmem:[%s783 + $0x70] sm:$0xff] %v9415
        %9432 = vst [vmem:[%s783 + $0x78] sm:$0xff] %v9416
        %s9433 = sand.u32 %s404, 1
        %s9434 = scalar_lea.sflag [#allocation7], %s9433
        %s9435 = sand.u32 %s404, 1
        %s9436 = smul.addr %s9435, 128
        %s9437 = scalar_lea.vmem [#allocation31], %s9436
        // Predicated region
        $region177: #{conv5l_forward.1} parent=83 // pred_check
          %p9438 = pneg %p414
        $region178: #{conv5l_forward.1} parent=83 // pred_check_branch
          %9440 = sbr.rel (%p9438) target = $region180
        $region179: #{conv5l_forward.1} parent=83 // pred_region
          %s9441 = smul.u32 8, %s46
          %9443 = vsyncadd %s9434, 0
          %s9444 = smul.addr %s9441, 2
          %s9445 = smul.addr %s45, 32
          %s9446 = sadd.s32 %s9444, %s9445
          %s9447 = smul.addr %s9446, 8
          %s9448 = scalar_lea.hbm %s16, %s9447
          %s9449 = sshll.u32 %s9437, 4
          %s9450 = int_to_ptr.vmem [resolvable:$true] %s9449
          %s9451 = sshll.u32 %s9448, 4
          %s9452 = int_to_ptr.hbm [resolvable:$true] %s9451
          %9457 = dma.vmem_to_hbm [thread:$0]  %s9450, 2048, %s9452, %s9434, 128, 128, 8
        $region180: #{conv5l_forward.1} parent=83 // pred_fallthru
          _
      $region84: #{conv5l_forward.1} parent=5 // pred_fallthru
        _
      %p9458 = scmp.le.s32.totalorder 2, %s36
      // Predicated region
      $region181: #{conv5l_forward.1} parent=5 // pred_check
        %p9459 = pneg %p9458
      $region182: #{conv5l_forward.1} parent=5 // pred_check_branch
        %9461 = sbr.rel (%p9459) target = $region184
      $region183: #{conv5l_forward.1} parent=5 // pred_region
        %s9462 = ssub.s32 %s36, 2
        // Predicated region
        $region185: #{conv5l_forward.1} parent=183 // pred_check
          %p9463 = pneg %p420
        $region186: #{conv5l_forward.1} parent=183 // pred_check_branch
          %9465 = sbr.rel (%p9463) target = $region188
        $region187: #{conv5l_forward.1} parent=183 // pred_region
          %s9466 = sand.u32 %s405, 1
          %s9467 = scalar_lea.sflag [#allocation7], %s9466
          %s9468 = sand.u32 %s405, 1
          %s9469 = smul.addr %s9468, 128
          %s9470 = scalar_lea.vmem [#allocation31], %s9469
          %9472 = dma.done %s9467, 2048
        $region188: #{conv5l_forward.1} parent=183 // pred_fallthru
          _
      $region184: #{conv5l_forward.1} parent=5 // pred_fallthru
        _
    $region6: #{conv5l_forward.1} parent=1 // loop_footer
      %s40 = sadd.s32 1, %s36
    $region7: #{conv5l_forward.1} parent=1 // loop_footer_branch
      %35 = sbr.rel target = $region3
    $region8: #{conv5l_forward.1} parent=1 // loop_exit
      _
    %9473 = vsyncpa [#allocation6], 1
    %s9474 = scalar_lea.sflag [#allocation6], 1
    %9475 = vsyncpa %s9474, 1
    %9476 = vsyncpa [#allocation9], 1
    %9477 = vsyncpa [#allocation12], 1
    %9478 = vsyncpa [#allocation15], 1
    %9479 = vsyncpa [#allocation18], 1
    %9480 = vsyncpa [#allocation21], 1
    %9481 = vsyncpa [#allocation24], 1
    %9482 = vsyncpa [#allocation27], 1
    %9483 = vsyncpa [#allocation30], 1
    %9484 = vsyncpa [#allocation7], 1
    %s9485 = scalar_lea.sflag [#allocation7], 1
    %9486 = vsyncpa %s9485, 1

</llo_original>
